<compile_context>
chip_gen: v5e
topology: v5e:2x2
jax: 0.10.0
libtpu: 0.0.40
codegen_flags: <defaults>
</compile_context>

<pallas_src>
import functools

import jax
import jax.numpy as jnp
from jax import lax
from jax.experimental import pallas as pl
from jax.experimental.pallas import tpu as pltpu

FEAT = 2048          # resnet50 final channel count
HID = 512            # classifier hidden width
LEAKY_SLOPE = 0.1
BN_EPS = 1e-5
LANE = 128
B_TILE = 8           # samples per backbone grid step (sublane multiple)


def _round_up(x, m):
    return (x + m - 1) // m * m


def _tpu_vmem_capacity_bytes():
    """Trace-time VMEM capacity query; conservative (v7x-sized) fallback."""
    try:
        return int(pltpu.get_tpu_info().vmem_capacity_bytes)
    except Exception:
        return 64 << 20


# ---------------------------------------------------------------------------
# Backbone stand-in (per-pixel projection + ReLU) + AdaptiveAvgPool2d((1,1))
# ---------------------------------------------------------------------------
def backbone_pool_kernel(x_ref, w_ref, b_ref, o32_ref, o16_ref, acc_ref,
                         *, inv_hw, hw_total, hw_ragged):
    """grid = (batch tiles [parallel], HW tiles [arbitrary / reduction])

    x_ref: (bt, tile_hw, C) bf16     w_ref: (C, FEAT) bf16
    b_ref: (1, FEAT) f32             o32_ref/acc_ref: (bt, FEAT) f32
    o16_ref: (bt, FEAT) bf16
    """
    k = pl.program_id(1)

    @pl.when(k == 0)
    def _():
        acc_ref[...] = jnp.zeros_like(acc_ref)

    bt, thw, c = x_ref.shape
    x = x_ref[...]                                            # (bt, thw, C) bf16

    if hw_ragged:
        # Last HW tile over-covers H*W; OOB reads are unspecified, so zero those
        # spatial rows on the (tiny) bf16 input before the matmul.
        hw_idx = k * thw + lax.broadcasted_iota(jnp.int32, (1, thw, 1), 1)
        x = jnp.where(hw_idx < hw_total, x, jnp.zeros_like(x))

    # One merged MXU matmul over all bt*thw spatial rows (leading dims merge
    # only, so the reshape stays within (8,128) tile boundaries).
    h = jnp.dot(x.reshape(bt * thw, c), w_ref[...],
                preferred_element_type=jnp.float32)           # (bt*thw, FEAT) f32
    h = jnp.maximum(h + b_ref[...], 0.0)                      # ReLU in f32
    part_sum = jnp.sum(h.reshape(bt, thw, FEAT), axis=1)      # (bt, FEAT)

    if hw_ragged:
        # The zeroed pad rows still contributed ReLU(bias) each; remove that
        # analytically (exact for any bias, including nonzero).
        n_pad = jnp.maximum((k + 1) * thw - hw_total, 0).astype(jnp.float32)
        part_sum = part_sum - n_pad * jnp.maximum(b_ref[...], 0.0)

    acc_ref[...] += part_sum                                  # single dense update

    @pl.when(k == pl.num_programs(1) - 1)
    def _():
        feat = acc_ref[...] * inv_hw                          # mean over H*W
        o32_ref[...] = feat                                   # returned features
        o16_ref[...] = feat.astype(jnp.bfloat16)              # classifier input


# ---------------------------------------------------------------------------
# Fused classifier head: Linear -> BN1d(eval, bias folded) -> LeakyReLU -> Linear
# ---------------------------------------------------------------------------
def classifier_kernel(f_ref, w1_ref, scale_ref, shift_ref, w2_ref, b2_ref, y_ref):
    h = jnp.dot(f_ref[...], w1_ref[...],
                preferred_element_type=jnp.float32)           # (tile_m, 512) f32
    h = h * scale_ref[...] + shift_ref[...]                   # folded bias + BN
    h = jnp.where(h >= 0.0, h, LEAKY_SLOPE * h)               # LeakyReLU(0.1)
    # Dropout(p=0.5) is the identity in eval mode.
    y_ref[...] = jnp.dot(h.astype(w2_ref.dtype), w2_ref[...],
                         preferred_element_type=jnp.float32) + b2_ref[...]


# ---------------------------------------------------------------------------
# Parameters (matching the PyTorch init for the classifier; synthetic stem)
# ---------------------------------------------------------------------------
def init_params(key, in_ch, num_classes):
    k = jax.random.split(key, 4)
    # Stand-in backbone projection (deterministic synthetic weights).
    stem_w = jax.random.normal(k[0], (in_ch, FEAT), jnp.float32) * (2.0 / in_ch) ** 0.5
    stem_b = jnp.zeros((1, FEAT), jnp.float32)
    # classifier[0]: Linear(2048, 512); kaiming_normal_(mode='fan_out').
    w1 = jax.random.normal(k[1], (FEAT, HID), jnp.float32) * (2.0 / HID) ** 0.5
    b1 = jnp.zeros((HID,), jnp.float32)
    # classifier[1]: BatchNorm1d(512); gamma ~ N(1, 0.02), beta = 0,
    # eval mode uses running stats (mean 0, var 1).
    gamma = 1.0 + 0.02 * jax.random.normal(k[2], (HID,), jnp.float32)
    beta = jnp.zeros((HID,), jnp.float32)
    running_mean = jnp.zeros((HID,), jnp.float32)
    running_var = jnp.ones((HID,), jnp.float32)
    bn_scale = gamma / jnp.sqrt(running_var + BN_EPS)
    # Linear bias followed by eval-mode BN is one affine: fold b1 in here.
    bn_shift = (b1 - running_mean) * bn_scale + beta
    # classifier[4]: Linear(512, num_classes); weight std = 0.001, bias = 0.
    w2 = jax.random.normal(k[3], (HID, num_classes), jnp.float32) * 0.001
    b2 = jnp.zeros((1, num_classes), jnp.float32)
    return dict(stem_w=stem_w, stem_b=stem_b, w1=w1,
                bn_scale=bn_scale.reshape(1, HID),
                bn_shift=bn_shift.reshape(1, HID),
                w2=w2, b2=b2)


# ---------------------------------------------------------------------------
# Forward
# ---------------------------------------------------------------------------
def ide_forward(x_nchw, params):
    N, C, H, W = x_nchw.shape
    HW = H * W
    num_classes = params["w2"].shape[1]

    # Generation-aware tiling: v5e/v6e have 128 MiB VMEM, v7x only 64 MiB.
    big_vmem = _tpu_vmem_capacity_bytes() >= (100 << 20)
    max_hw_tile = 256 if big_vmem else 128
    backbone_vmem_limit = (64 << 20) if big_vmem else (32 << 20)

    # NCHW -> (N, H*W, C): channels on the lane axis.
    # TODO(synk): fold this transpose into the real ResNet50 stem once the
    # stand-in backbone is replaced; for now it is one extra HBM pass.
    x = jnp.transpose(x_nchw, (0, 2, 3, 1)).reshape(N, HW, C).astype(jnp.bfloat16)

    # Row (batch) tiling without padding x: ragged tails are handled by partial
    # boundary blocks; their garbage only lands in output rows >= N (discarded).
    if N <= B_TILE:
        bt, n_rows = N, N            # full-extent blocks, no padding at all
    else:
        bt, n_rows = B_TILE, _round_up(N, B_TILE)

    tile_hw = HW if HW <= max_hw_tile else max_hw_tile
    hw_tiles = pl.cdiv(HW, tile_hw)
    hw_ragged = (HW % tile_hw) != 0

    stem_w = params["stem_w"].astype(jnp.bfloat16)

    # --- backbone stand-in + global average pool ---------------------------
    feat_f32, feat_bf16 = pl.pallas_call(
        functools.partial(backbone_pool_kernel, inv_hw=1.0 / float(HW),
                          hw_total=HW, hw_ragged=hw_ragged),
        out_shape=(jax.ShapeDtypeStruct((n_rows, FEAT), jnp.float32),
                   jax.ShapeDtypeStruct((n_rows, FEAT), jnp.bfloat16)),
        grid=(n_rows // bt, hw_tiles),
        in_specs=[
            pl.BlockSpec((bt, tile_hw, C), lambda n, k: (n, k, 0)),
            pl.BlockSpec((C, FEAT), lambda n, k: (0, 0)),
            pl.BlockSpec((1, FEAT), lambda n, k: (0, 0)),
        ],
        out_specs=(pl.BlockSpec((bt, FEAT), lambda n, k: (n, 0)),
                   pl.BlockSpec((bt, FEAT), lambda n, k: (n, 0))),
        scratch_shapes=[pltpu.VMEM((bt, FEAT), jnp.float32)],
        compiler_params=pltpu.CompilerParams(
            dimension_semantics=("parallel", "arbitrary"),
            vmem_limit_bytes=backbone_vmem_limit),
    )(x, stem_w, params["stem_b"])

    feat = feat_f32[:N]     # (N, 2048) f32 == backbone(x).squeeze() for N > 1
    # TODO(synk): PyTorch .squeeze() collapses to (2048,) when N == 1.

    # --- fused classifier head ---------------------------------------------
    tile_m = min(256, n_rows)               # 256-wide MXU rows on v6e/v7x
    row_tiles = pl.cdiv(n_rows, tile_m)

    nc_pad = _round_up(num_classes, LANE)   # lane-dense logits
    if nc_pad >= 512:
        tile_nc = 256                       # class-axis tiles -> megacore work
        nc_pad = _round_up(nc_pad, tile_nc)
    else:
        tile_nc = nc_pad
    nc_tiles = nc_pad // tile_nc

    w1 = params["w1"].astype(jnp.bfloat16)
    w2 = jnp.pad(params["w2"], ((0, 0), (0, nc_pad - num_classes))).astype(jnp.bfloat16)
    b2 = jnp.pad(params["b2"], ((0, 0), (0, nc_pad - num_classes)))

    logits_pad = pl.pallas_call(
        classifier_kernel,
        out_shape=jax.ShapeDtypeStruct((n_rows, nc_pad), jnp.float32),
        grid=(row_tiles, nc_tiles),
        in_specs=[
            pl.BlockSpec((tile_m, FEAT), lambda i, j: (i, 0)),
            pl.BlockSpec((FEAT, HID), lambda i, j: (0, 0)),
            pl.BlockSpec((1, HID), lambda i, j: (0, 0)),
            pl.BlockSpec((1, HID), lambda i, j: (0, 0)),
            pl.BlockSpec((HID, tile_nc), lambda i, j: (0, j)),
            pl.BlockSpec((1, tile_nc), lambda i, j: (0, j)),
        ],
        out_specs=pl.BlockSpec((tile_m, tile_nc), lambda i, j: (i, j)),
        compiler_params=pltpu.CompilerParams(
            dimension_semantics=("parallel", "parallel"),
            vmem_limit_bytes=32 << 20),
    )(feat_bf16, w1, params["bn_scale"], params["bn_shift"], w2, b2)

    logits = logits_pad[:N, :num_classes]
    return feat, logits


if __name__ == "__main__":
    key = jax.random.PRNGKey(0)
    k_x, k_p = jax.random.split(key)

    N, C, H, W = 2, 4, 16, 16
    NUM_CLASSES = 16

    x = jax.random.normal(k_x, (N, C, H, W), jnp.float32)
    params = init_params(k_p, C, NUM_CLASSES)

    feat, logits = jax.jit(ide_forward)(x, params)
    jax.block_until_ready((feat, logits))

    assert feat.shape == (N, FEAT), feat.shape
    assert logits.shape == (N, NUM_CLASSES), logits.shape
    assert bool(jnp.all(jnp.isfinite(feat))) and bool(jnp.all(jnp.isfinite(logits)))
    print("KERNEL_OK")
</pallas_src>

<mosaic_0001>
module attributes {stable_mosaic.version = 11 : i64} {
  func.func @backbone_pool_kernel(%arg0: i32, %arg1: i32, %arg2: memref<2x128x4xbf16, #tpu.memory_space<vmem>>, %arg3: memref<4x2048xbf16, #tpu.memory_space<vmem>>, %arg4: memref<1x2048xf32, #tpu.memory_space<vmem>>, %arg5: memref<2x2048xf32, #tpu.memory_space<vmem>>, %arg6: memref<2x2048xbf16, #tpu.memory_space<vmem>>, %arg7: memref<2x2048xf32, #tpu.memory_space<vmem>>) attributes {dimension_semantics = [#tpu.dimension_semantics<parallel>, #tpu.dimension_semantics<arbitrary>], iteration_bounds = array<i64: 1, 2>, scalar_prefetch = 0 : i64, scratch_operands = 1 : i64, tpu.core_type = #tpu.core_type<tc>, window_params = [{transform_indices = @transform_0, window_bounds = array<i64: 2, 128, 4>}, {pipeline_mode = #tpu.pipeline_mode<synchronous>, transform_indices = @transform_1, window_bounds = array<i64: 4, 2048>}, {pipeline_mode = #tpu.pipeline_mode<synchronous>, transform_indices = @transform_2, window_bounds = array<i64: 1, 2048>}, {transform_indices = @transform_3, window_bounds = array<i64: 2, 2048>}, {transform_indices = @transform_4, window_bounds = array<i64: 2, 2048>}]} {
    %c0_i32 = arith.constant 0 : i32
    %0 = arith.cmpi eq, %arg1, %c0_i32 : i32
    %1 = arith.extui %0 : i1 to i32
    %c0_i32_0 = arith.constant 0 : i32
    %2 = arith.cmpi ne, %1, %c0_i32_0 : i32
    scf.if %2 {
      %cst_14 = arith.constant 0.000000e+00 : f32
      %20 = vector.broadcast %cst_14 : f32 to vector<2x2048xf32>
      %c0_15 = arith.constant 0 : index
      %c0_16 = arith.constant 0 : index
      %21 = vector.load %arg7[%c0_15, %c0_16] : memref<2x2048xf32, #tpu.memory_space<vmem>>, vector<2x2048xf32>
      tpu.vector_store %arg7[%c0_15, %c0_16], %20 {strides = array<i32>} : memref<2x2048xf32, #tpu.memory_space<vmem>>, vector<2x2048xf32>,
    } else {
    }
    %c0 = arith.constant 0 : index
    %c0_1 = arith.constant 0 : index
    %c0_2 = arith.constant 0 : index
    %3 = vector.load %arg2[%c0, %c0_1, %c0_2] : memref<2x128x4xbf16, #tpu.memory_space<vmem>>, vector<2x128x4xbf16>
    %4 = vector.shape_cast %3 : vector<2x128x4xbf16> to vector<256x4xbf16>
    %c0_3 = arith.constant 0 : index
    %c0_4 = arith.constant 0 : index
    %5 = vector.load %arg3[%c0_3, %c0_4] : memref<4x2048xbf16, #tpu.memory_space<vmem>>, vector<4x2048xbf16>
    %cst = arith.constant dense<0.000000e+00> : vector<256x2048xf32>
    %6 = tpu.matmul %4, %5, %cst {dimension_numbers = #tpu.dot_dimension_numbers<[1], [0], [0], [1], [0, 0, 1, 1], [], []>} : vector<256x4xbf16>, vector<4x2048xbf16>, vector<256x2048xf32> -> vector<256x2048xf32>
    %c0_5 = arith.constant 0 : index
    %c0_6 = arith.constant 0 : index
    %7 = vector.load %arg4[%c0_5, %c0_6] : memref<1x2048xf32, #tpu.memory_space<vmem>>, vector<1x2048xf32>
    %8 = vector.broadcast %7 : vector<1x2048xf32> to vector<256x2048xf32>
    %9 = arith.addf %6, %8 : vector<256x2048xf32>
    %cst_7 = arith.constant 0.000000e+00 : f32
    %10 = vector.broadcast %cst_7 : f32 to vector<256x2048xf32>
    %11 = arith.maximumf %9, %10 : vector<256x2048xf32>
    %12 = vector.shape_cast %11 : vector<256x2048xf32> to vector<2x128x2048xf32>
    %cst_8 = arith.constant dense<0.000000e+00> : vector<2x2048xf32>
    %13 = vector.multi_reduction <add>, %12, %cst_8 [1] : vector<2x128x2048xf32> to vector<2x2048xf32>
    %c0_9 = arith.constant 0 : index
    %c0_10 = arith.constant 0 : index
    %14 = vector.load %arg7[%c0_9, %c0_10] : memref<2x2048xf32, #tpu.memory_space<vmem>>, vector<2x2048xf32>
    %15 = arith.addf %14, %13 : vector<2x2048xf32>
    %c0_11 = arith.constant 0 : index
    %c0_12 = arith.constant 0 : index
    %16 = vector.load %arg7[%c0_11, %c0_12] : memref<2x2048xf32, #tpu.memory_space<vmem>>, vector<2x2048xf32>
    tpu.vector_store %arg7[%c0_11, %c0_12], %15 {strides = array<i32>} : memref<2x2048xf32, #tpu.memory_space<vmem>>, vector<2x2048xf32>,
    %c1_i32 = arith.constant 1 : i32
    %17 = arith.cmpi eq, %arg1, %c1_i32 : i32
    %18 = arith.extui %17 : i1 to i32
    %c0_i32_13 = arith.constant 0 : i32
    %19 = arith.cmpi ne, %18, %c0_i32_13 : i32
    scf.if %19 {
      %c0_14 = arith.constant 0 : index
      %c0_15 = arith.constant 0 : index
      %20 = vector.load %arg7[%c0_14, %c0_15] : memref<2x2048xf32, #tpu.memory_space<vmem>>, vector<2x2048xf32>
      %cst_16 = arith.constant 3.906250e-03 : f32
      %21 = vector.broadcast %cst_16 : f32 to vector<2x2048xf32>
      %22 = arith.mulf %20, %21 : vector<2x2048xf32>
      %c0_17 = arith.constant 0 : index
      %c0_18 = arith.constant 0 : index
      %23 = vector.load %arg5[%c0_17, %c0_18] : memref<2x2048xf32, #tpu.memory_space<vmem>>, vector<2x2048xf32>
      tpu.vector_store %arg5[%c0_17, %c0_18], %22 {strides = array<i32>} : memref<2x2048xf32, #tpu.memory_space<vmem>>, vector<2x2048xf32>,
      %24 = arith.truncf %22 : vector<2x2048xf32> to vector<2x2048xbf16>
      %c0_19 = arith.constant 0 : index
      %c0_20 = arith.constant 0 : index
      %25 = vector.load %arg6[%c0_19, %c0_20] : memref<2x2048xbf16, #tpu.memory_space<vmem>>, vector<2x2048xbf16>
      tpu.vector_store %arg6[%c0_19, %c0_20], %24 {strides = array<i32>} : memref<2x2048xbf16, #tpu.memory_space<vmem>>, vector<2x2048xbf16>,
    } else {
    }
    return
  }
  func.func @transform_0(%arg0: i32, %arg1: i32) -> (i32, i32, i32) {
    %c0_i32 = arith.constant 0 : i32
    %c0_i32_0 = arith.constant 0 : i32
    return %arg0, %arg1, %c0_i32 : i32, i32, i32
  }
  func.func @transform_1(%arg0: i32, %arg1: i32) -> (i32, i32) {
    %c0_i32 = arith.constant 0 : i32
    %c0_i32_0 = arith.constant 0 : i32
    %c0_i32_1 = arith.constant 0 : i32
    return %c0_i32, %c0_i32_0 : i32, i32
  }
  func.func @transform_2(%arg0: i32, %arg1: i32) -> (i32, i32) {
    %c0_i32 = arith.constant 0 : i32
    %c0_i32_0 = arith.constant 0 : i32
    %c0_i32_1 = arith.constant 0 : i32
    return %c0_i32, %c0_i32_0 : i32, i32
  }
  func.func @transform_3(%arg0: i32, %arg1: i32) -> (i32, i32) {
    %c0_i32 = arith.constant 0 : i32
    %c0_i32_0 = arith.constant 0 : i32
    return %arg0, %c0_i32 : i32, i32
  }
  func.func @transform_4(%arg0: i32, %arg1: i32) -> (i32, i32) {
    %c0_i32 = arith.constant 0 : i32
    %c0_i32_0 = arith.constant 0 : i32
    return %arg0, %c0_i32 : i32, i32
  }
}

module attributes {stable_mosaic.version = 11 : i64} {
  func.func @classifier_kernel(%arg0: i32, %arg1: i32, %arg2: memref<2x2048xbf16, #tpu.memory_space<vmem>>, %arg3: memref<2048x512xbf16, #tpu.memory_space<vmem>>, %arg4: memref<1x512xf32, #tpu.memory_space<vmem>>, %arg5: memref<1x512xf32, #tpu.memory_space<vmem>>, %arg6: memref<512x128xbf16, #tpu.memory_space<vmem>>, %arg7: memref<1x128xf32, #tpu.memory_space<vmem>>, %arg8: memref<2x128xf32, #tpu.memory_space<vmem>>) attributes {dimension_semantics = [#tpu.dimension_semantics<parallel>, #tpu.dimension_semantics<parallel>], iteration_bounds = array<i64: 1, 1>, scalar_prefetch = 0 : i64, scratch_operands = 0 : i64, tpu.core_type = #tpu.core_type<tc>, window_params = [{transform_indices = @transform_0, window_bounds = array<i64: 2, 2048>}, {pipeline_mode = #tpu.pipeline_mode<synchronous>, transform_indices = @transform_1, window_bounds = array<i64: 2048, 512>}, {pipeline_mode = #tpu.pipeline_mode<synchronous>, transform_indices = @transform_2, window_bounds = array<i64: 1, 512>}, {pipeline_mode = #tpu.pipeline_mode<synchronous>, transform_indices = @transform_3, window_bounds = array<i64: 1, 512>}, {transform_indices = @transform_4, window_bounds = array<i64: 512, 128>}, {transform_indices = @transform_5, window_bounds = array<i64: 1, 128>}, {transform_indices = @transform_6, window_bounds = array<i64: 2, 128>}]} {
    %c0 = arith.constant 0 : index
    %c0_0 = arith.constant 0 : index
    %0 = vector.load %arg2[%c0, %c0_0] : memref<2x2048xbf16, #tpu.memory_space<vmem>>, vector<2x2048xbf16>
    %c0_1 = arith.constant 0 : index
    %c0_2 = arith.constant 0 : index
    %1 = vector.load %arg3[%c0_1, %c0_2] : memref<2048x512xbf16, #tpu.memory_space<vmem>>, vector<2048x512xbf16>
    %cst = arith.constant dense<0.000000e+00> : vector<2x512xf32>
    %2 = tpu.matmul %0, %1, %cst {dimension_numbers = #tpu.dot_dimension_numbers<[1], [0], [0], [1], [0, 0, 1, 1], [], []>} : vector<2x2048xbf16>, vector<2048x512xbf16>, vector<2x512xf32> -> vector<2x512xf32>
    %c0_3 = arith.constant 0 : index
    %c0_4 = arith.constant 0 : index
    %3 = vector.load %arg4[%c0_3, %c0_4] : memref<1x512xf32, #tpu.memory_space<vmem>>, vector<1x512xf32>
    %4 = vector.broadcast %3 : vector<1x512xf32> to vector<2x512xf32>
    %5 = arith.mulf %2, %4 : vector<2x512xf32>
    %c0_5 = arith.constant 0 : index
    %c0_6 = arith.constant 0 : index
    %6 = vector.load %arg5[%c0_5, %c0_6] : memref<1x512xf32, #tpu.memory_space<vmem>>, vector<1x512xf32>
    %7 = vector.broadcast %6 : vector<1x512xf32> to vector<2x512xf32>
    %8 = arith.addf %5, %7 : vector<2x512xf32>
    %cst_7 = arith.constant 0.000000e+00 : f32
    %9 = vector.broadcast %cst_7 : f32 to vector<2x512xf32>
    %10 = arith.cmpf oge, %8, %9 : vector<2x512xf32>
    %cst_8 = arith.constant 1.000000e-01 : f32
    %11 = vector.broadcast %cst_8 : f32 to vector<2x512xf32>
    %12 = arith.mulf %11, %8 : vector<2x512xf32>
    %13 = arith.select %10, %8, %12 : vector<2x512xi1>, vector<2x512xf32>
    %14 = arith.truncf %13 : vector<2x512xf32> to vector<2x512xbf16>
    %c0_9 = arith.constant 0 : index
    %c0_10 = arith.constant 0 : index
    %15 = vector.load %arg6[%c0_9, %c0_10] : memref<512x128xbf16, #tpu.memory_space<vmem>>, vector<512x128xbf16>
    %cst_11 = arith.constant dense<0.000000e+00> : vector<2x128xf32>
    %16 = tpu.matmul %14, %15, %cst_11 {dimension_numbers = #tpu.dot_dimension_numbers<[1], [0], [0], [1], [0, 0, 1, 1], [], []>} : vector<2x512xbf16>, vector<512x128xbf16>, vector<2x128xf32> -> vector<2x128xf32>
    %c0_12 = arith.constant 0 : index
    %c0_13 = arith.constant 0 : index
    %17 = vector.load %arg7[%c0_12, %c0_13] : memref<1x128xf32, #tpu.memory_space<vmem>>, vector<1x128xf32>
    %18 = vector.broadcast %17 : vector<1x128xf32> to vector<2x128xf32>
    %19 = arith.addf %16, %18 : vector<2x128xf32>
    %c0_14 = arith.constant 0 : index
    %c0_15 = arith.constant 0 : index
    %20 = vector.load %arg8[%c0_14, %c0_15] : memref<2x128xf32, #tpu.memory_space<vmem>>, vector<2x128xf32>
    tpu.vector_store %arg8[%c0_14, %c0_15], %19 {strides = array<i32>} : memref<2x128xf32, #tpu.memory_space<vmem>>, vector<2x128xf32>,
    return
  }
  func.func @transform_0(%arg0: i32, %arg1: i32) -> (i32, i32) {
    %c0_i32 = arith.constant 0 : i32
    %c0_i32_0 = arith.constant 0 : i32
    return %arg0, %c0_i32 : i32, i32
  }
  func.func @transform_1(%arg0: i32, %arg1: i32) -> (i32, i32) {
    %c0_i32 = arith.constant 0 : i32
    %c0_i32_0 = arith.constant 0 : i32
    %c0_i32_1 = arith.constant 0 : i32
    return %c0_i32, %c0_i32_0 : i32, i32
  }
  func.func @transform_2(%arg0: i32, %arg1: i32) -> (i32, i32) {
    %c0_i32 = arith.constant 0 : i32
    %c0_i32_0 = arith.constant 0 : i32
    %c0_i32_1 = arith.constant 0 : i32
    return %c0_i32, %c0_i32_0 : i32, i32
  }
  func.func @transform_3(%arg0: i32, %arg1: i32) -> (i32, i32) {
    %c0_i32 = arith.constant 0 : i32
    %c0_i32_0 = arith.constant 0 : i32
    %c0_i32_1 = arith.constant 0 : i32
    return %c0_i32, %c0_i32_0 : i32, i32
  }
  func.func @transform_4(%arg0: i32, %arg1: i32) -> (i32, i32) {
    %c0_i32 = arith.constant 0 : i32
    %c0_i32_0 = arith.constant 0 : i32
    return %c0_i32, %arg1 : i32, i32
  }
  func.func @transform_5(%arg0: i32, %arg1: i32) -> (i32, i32) {
    %c0_i32 = arith.constant 0 : i32
    %c0_i32_0 = arith.constant 0 : i32
    return %c0_i32, %arg1 : i32, i32
  }
  func.func @transform_6(%arg0: i32, %arg1: i32) -> (i32, i32) {
    %c0_i32 = arith.constant 0 : i32
    return %arg0, %arg1 : i32, i32
  }
}

</mosaic_0001>

<llo_original>
// kernel: ide_forward.2
$region0: #{ide_forward.2}
  #allocation0 [shape = 'u32[]', space=smem, size = 0x4, offset = 0x4, fixed_abs, tag = 'smem constant byte address 0x4 - core index']
  #allocation1 [shape = 'u32[72,128]{1,0:T(1,128)}', space=vmem, size = 0x9000, scoped, tag = 'internal scratch']
  #allocation2 [shape = 'f32[2,2048]{1,0:T(2,128)}', space=vmem, size = 0x4000, scoped, tag = 'scratch operand']
  %s0 = inlined_call_operand.vmem [shape: bf16[2,256,4], index: 0, kind: input, shape index: {}]
  %s1 = inlined_call_operand.vmem [shape: bf16[4,2048], index: 1, kind: input, shape index: {}]
  %s2 = inlined_call_operand.hbm [shape: f32[1,2048], index: 2, kind: input, shape index: {}]
  %s3 = inlined_call_operand.hbm [shape: f32[2,2048], index: 3, kind: output, shape index: {0}]
  %s4 = inlined_call_operand.vmem [shape: bf16[2,2048], index: 4, kind: output, shape index: {1}]
  %5 = xla_tuple %s3, %s4
  %s6 = sld [smem:[#allocation0]]
  $region106: #{ide_forward.2} parent=0
    _
  %s8 = ssub.s32 1, %s6
  %s9 = scalar_select 0, %s8, %s6
  $region1: #{ide_forward.2} parent=0
    #allocation3 [shape = 'u8[131072]{0}', space=vmem, size = 0x20000, scoped, tag = 'input window, operand 0']
    #allocation4 [shape = 'u8[8192]{0}', space=vmem, size = 0x2000, scoped, tag = 'input window, operand 2, single buffered']
    #allocation5 [shape = 's32[2]{0}', space=sflag, size = 0x8, scoped, tag = 'scoped memory for ide_forward.2']
    #allocation6 [shape = 's32[2]{0}', space=sflag, size = 0x8, scoped, tag = 'scoped memory for ide_forward.2']
    #allocation7 [shape = 'u8[16384]{0}', space=vmem, size = 0x4000, scoped, tag = 'output window, operand 0, single buffered']
    %10 = vsyncpa [#allocation5], 0
    %11 = vsyncpa [#allocation6], 0
    loop: start=0, step=1, limit=4
    $region2: #{ide_forward.2} parent=1 // loop_pre_header
      _
    $region3: #{ide_forward.2} parent=1 // loop_header
      %s13 = sphi 0, %s17
      %p14 = scmp.ge.s32.totalorder %s13, 4
      %s20 = sphi 0, %s32
      %s21 = sphi 0, %s28
      %s22 = sphi 0, %s20
      %s23 = sphi 0, %s21
      %s24 = sphi 0, %s22
      %s25 = sphi 0, %s23
      %s37 = sphi 0, %s39
      %s40 = sphi 0, %s37
      %s41 = sphi 0, %s40
      %s57 = sphi 0, %s41
      %s61 = sphi 0, %s61
      %s63 = sphi 0, %s61
      %s64 = sphi 0, %s63
      %s78 = sphi 0, %s64
      %s82 = sphi 0, %s82
      %s84 = sphi 0, %s82
      %s85 = sphi 0, %s84
      %s99 = sphi 0, %s85
      %s105 = sphi 0, %s107
      %s108 = sphi 0, %s105
      %s109 = sphi 0, %s108
      %s125 = sphi 0, %s109
      %s131 = sphi 0, %s133
      %s134 = sphi 0, %s131
      %s135 = sphi 0, %s134
      %s151 = sphi 0, %s135
    $region4: #{ide_forward.2} parent=1 // loop_header_branch
      %16 = sbr.rel (%p14) target = $region8
    $region5: #{ide_forward.2} parent=1 // loop_body
      %s18 = ssub.s32 %s13, 1
      %s19 = ssub.s32 %s13, 2
      %s26 = sadd.s32 1, %s21
      %p27 = scmp.ge.s32.totalorder %s26, 2
      %s28 = scalar_select %p27, 0, %s26
      %s29 = sadd.s32 1, %s20
      %s30 = scalar_select %p27, %s29, %s20
      %p31 = scmp.ge.s32.totalorder %s30, 1
      %s32 = scalar_select %p31, 0, %s30
      %s33 = ssub.s32 %s20, %s32
      %s34 = ssub.s32 %s21, %s28
      %s35 = sor.u32 %s33, %s34
      %p36 = scmp.eq.s32.totalorder %s35, 0
      %s38 = sadd.s32 %s37, 1
      %s39 = scalar_select %p36, %s37, %s38
      %p42 = pneg %p36
      %p43 = scmp.eq.s32.totalorder %s13, 1
      %p44 = por %p42, %p43
      %p45 = scmp.ne.s32.totalorder %s37, %s40
      %p46 = scmp.eq.s32.totalorder %s13, 0
      %p47 = por %p45, %p46
      %p48 = scmp.ne.s32.totalorder %s37, %s40
      %p49 = scmp.eq.s32.totalorder %s18, 1
      %p50 = por %p48, %p49
      %p51 = scmp.ne.s32.totalorder %s40, %s41
      %p52 = scmp.eq.s32.totalorder %s18, 0
      %p53 = por %p51, %p52
      %p54 = scmp.ne.s32.totalorder %s40, %s41
      %p55 = scmp.eq.s32.totalorder %s19, 1
      %p56 = por %p54, %p55
      %p58 = scmp.ne.s32.totalorder %s41, %s57
      %p59 = scmp.eq.s32.totalorder %s19, 0
      %p60 = por %p58, %p59
      %s62 = sadd.s32 %s61, 1
      %p65 = scmp.eq.s32.totalorder %s13, 1
      %p66 = scmp.ne.s32.totalorder %s61, %s63
      %p67 = scmp.eq.s32.totalorder %s13, 0
      %p68 = por %p66, %p67
      %p69 = scmp.ne.s32.totalorder %s61, %s63
      %p70 = scmp.eq.s32.totalorder %s18, 1
      %p71 = por %p69, %p70
      %p72 = scmp.ne.s32.totalorder %s63, %s64
      %p73 = scmp.eq.s32.totalorder %s18, 0
      %p74 = por %p72, %p73
      %p75 = scmp.ne.s32.totalorder %s63, %s64
      %p76 = scmp.eq.s32.totalorder %s19, 1
      %p77 = por %p75, %p76
      %p79 = scmp.ne.s32.totalorder %s64, %s78
      %p80 = scmp.eq.s32.totalorder %s19, 0
      %p81 = por %p79, %p80
      %s83 = sadd.s32 %s82, 1
      %p86 = scmp.eq.s32.totalorder %s13, 1
      %p87 = scmp.ne.s32.totalorder %s82, %s84
      %p88 = scmp.eq.s32.totalorder %s13, 0
      %p89 = por %p87, %p88
      %p90 = scmp.ne.s32.totalorder %s82, %s84
      %p91 = scmp.eq.s32.totalorder %s18, 1
      %p92 = por %p90, %p91
      %p93 = scmp.ne.s32.totalorder %s84, %s85
      %p94 = scmp.eq.s32.totalorder %s18, 0
      %p95 = por %p93, %p94
      %p96 = scmp.ne.s32.totalorder %s84, %s85
      %p97 = scmp.eq.s32.totalorder %s19, 1
      %p98 = por %p96, %p97
      %p100 = scmp.ne.s32.totalorder %s85, %s99
      %p101 = scmp.eq.s32.totalorder %s19, 0
      %p102 = por %p100, %p101
      %s103 = ssub.s32 %s20, %s32
      %p104 = scmp.eq.s32.totalorder %s103, 0
      %s106 = sadd.s32 %s105, 1
      %s107 = scalar_select %p104, %s105, %s106
      %p110 = pneg %p104
      %p111 = scmp.eq.s32.totalorder %s13, 1
      %p112 = por %p110, %p111
      %p113 = scmp.ne.s32.totalorder %s105, %s108
      %p114 = scmp.eq.s32.totalorder %s13, 0
      %p115 = por %p113, %p114
      %p116 = scmp.ne.s32.totalorder %s105, %s108
      %p117 = scmp.eq.s32.totalorder %s18, 1
      %p118 = por %p116, %p117
      %p119 = scmp.ne.s32.totalorder %s108, %s109
      %p120 = scmp.eq.s32.totalorder %s18, 0
      %p121 = por %p119, %p120
      %p122 = scmp.ne.s32.totalorder %s108, %s109
      %p123 = scmp.eq.s32.totalorder %s19, 1
      %p124 = por %p122, %p123
      %p126 = scmp.ne.s32.totalorder %s109, %s125
      %p127 = scmp.eq.s32.totalorder %s19, 0
      %p128 = por %p126, %p127
      %s129 = ssub.s32 %s20, %s32
      %p130 = scmp.eq.s32.totalorder %s129, 0
      %s132 = sadd.s32 %s131, 1
      %s133 = scalar_select %p130, %s131, %s132
      %p136 = pneg %p130
      %p137 = scmp.eq.s32.totalorder %s13, 1
      %p138 = por %p136, %p137
      %p139 = scmp.ne.s32.totalorder %s131, %s134
      %p140 = scmp.eq.s32.totalorder %s13, 0
      %p141 = por %p139, %p140
      %p142 = scmp.ne.s32.totalorder %s131, %s134
      %p143 = scmp.eq.s32.totalorder %s18, 1
      %p144 = por %p142, %p143
      %p145 = scmp.ne.s32.totalorder %s134, %s135
      %p146 = scmp.eq.s32.totalorder %s18, 0
      %p147 = por %p145, %p146
      %p148 = scmp.ne.s32.totalorder %s134, %s135
      %p149 = scmp.eq.s32.totalorder %s19, 1
      %p150 = por %p148, %p149
      %p152 = scmp.ne.s32.totalorder %s135, %s151
      %p153 = scmp.eq.s32.totalorder %s19, 0
      %p154 = por %p152, %p153
      %p155 = scmp.le.s32.totalorder 1, %s13
      %p156 = scmp.lt.s32.totalorder %s13, 3
      %p157 = pnand %p155, %p156
      %p158 = pneg %p157
      // Predicated region
      $region9: #{ide_forward.2} parent=5 // pred_check
        _
      $region10: #{ide_forward.2} parent=5 // pred_check_branch
        %160 = sbr.rel (%p157) target = $region12
      $region11: #{ide_forward.2} parent=5 // pred_region
        %s161 = ssub.s32 %s13, 1
        // Predicated region
        $region13: #{ide_forward.2} parent=11 // pred_check
          %p162 = pneg %p74
        $region14: #{ide_forward.2} parent=11 // pred_check_branch
          %164 = sbr.rel (%p162) target = $region16
        $region15: #{ide_forward.2} parent=11 // pred_region
          _
        $region16: #{ide_forward.2} parent=11 // pred_fallthru
          _
        // Predicated region
        $region17: #{ide_forward.2} parent=11 // pred_check
          %p165 = pneg %p95
        $region18: #{ide_forward.2} parent=11 // pred_check_branch
          %167 = sbr.rel (%p165) target = $region20
        $region19: #{ide_forward.2} parent=11 // pred_region
          %169 = vsyncadd [#allocation5], 0
          %s171 = sshll.u32 %s2, 4
          %s172 = int_to_ptr.hbm [resolvable:$true] %s171
          %s173 = sshll.u32 [#allocation4], 4
          %s174 = int_to_ptr.vmem [resolvable:$true] %s173
          %176 = dma.hbm_to_vmem [thread:$0]  %s172, 256, %s174, [#allocation5]
        $region20: #{ide_forward.2} parent=11 // pred_fallthru
          _
      $region12: #{ide_forward.2} parent=5 // pred_fallthru
        _
      %p177 = scmp.lt.s32.totalorder %s13, 2
      // Predicated region
      $region21: #{ide_forward.2} parent=5 // pred_check
        %p178 = pneg %p177
      $region22: #{ide_forward.2} parent=5 // pred_check_branch
        %180 = sbr.rel (%p178) target = $region24
      $region23: #{ide_forward.2} parent=5 // pred_region
        // Predicated region
        $region25: #{ide_forward.2} parent=23 // pred_check
          %p181 = pneg %p47
        $region26: #{ide_forward.2} parent=23 // pred_check_branch
          %183 = sbr.rel (%p181) target = $region28
        $region27: #{ide_forward.2} parent=23 // pred_region
          %s184 = sand.u32 %s37, 1
          %s185 = sand.u32 %s37, 1
          %s186 = smul.addr %s185, 128
          %s187 = scalar_lea.vmem [#allocation3], %s186
          %s188 = smul.u32 2, %s20
          %s189 = smul.u32 16, %s21
          %s190 = smul.addr %s188, 32
          %s191 = sadd.s32 %s189, %s190
          %s192 = smul.addr %s191, 4
          %s193 = scalar_lea.vmem %s0, %s192
          // Predicated region
          $region29: #{ide_forward.2} parent=27 // pred_check
            _
          $region30: #{ide_forward.2} parent=27 // pred_check_branch
            %195 = sbr.rel (0) target = $region32
          $region31: #{ide_forward.2} parent=27 // pred_region
            // Predicated region
            $region33: #{ide_forward.2} parent=31 // pred_check
              _
            $region34: #{ide_forward.2} parent=31 // pred_check_branch
              %197 = sbr.rel target = $region36
            $region35: #{ide_forward.2} parent=31 // pred_region
              // Predicated region
              $region48: #{ide_forward.2} parent=35 // pred_check
                _
              $region49: #{ide_forward.2} parent=35 // pred_check_branch
                %275 = sbr.rel (0) target = $region51
              $region50: #{ide_forward.2} parent=35 // pred_region
                loop: start=0, step=1, limit=1
                $region52: #{ide_forward.2} parent=50 // loop_pre_header
                  _
                $region53: #{ide_forward.2} parent=50 // loop_header
                  %s277 = sphi 0, %s281
                  %p278 = scmp.ge.s32.totalorder %s277, 1
                  %s282 = sphi %s193, %s193
                  %s283 = sphi %s187, %s187
                $region54: #{ide_forward.2} parent=50 // loop_header_branch
                  %280 = sbr.rel (%p278) target = $region58
                $region55: #{ide_forward.2} parent=50 // loop_body
                  _
                $region56: #{ide_forward.2} parent=50 // loop_footer
                  %s281 = sadd.s32 1, %s277
                $region57: #{ide_forward.2} parent=50 // loop_footer_branch
                  %276 = sbr.rel target = $region53
                $region58: #{ide_forward.2} parent=50 // loop_exit
                  _
                %s285 = ssub.s32 16, 1
                loop: start=0, step=1, limit=1
                $region59: #{ide_forward.2} parent=50 // loop_pre_header
                  _
                $region60: #{ide_forward.2} parent=50 // loop_header
                  %s287 = sphi 0, %s291
                  %p288 = scmp.ge.s32.totalorder %s287, 1
                  %s292 = sphi %s193, %s193
                  %s293 = sphi %s187, %s187
                $region61: #{ide_forward.2} parent=50 // loop_header_branch
                  %290 = sbr.rel (%p288) target = $region65
                $region62: #{ide_forward.2} parent=50 // loop_body
                  %v294 = vld [vmem:[%s292] sm:%s285]
                  %295 = vst [vmem:[%s293] sm:%s285] %v294
                  %v296 = vld [vmem:[%s292 + $0x4] sm:%s285]
                  %297 = vst [vmem:[%s293 + $0x4] sm:%s285] %v296
                  %v298 = vld [vmem:[%s292 + $0x8] sm:%s285]
                  %299 = vst [vmem:[%s293 + $0x8] sm:%s285] %v298
                  %v300 = vld [vmem:[%s292 + $0xc] sm:%s285]
                  %301 = vst [vmem:[%s293 + $0xc] sm:%s285] %v300
                  %v302 = vld [vmem:[%s292 + $0x10] sm:%s285]
                  %303 = vst [vmem:[%s293 + $0x10] sm:%s285] %v302
                  %v304 = vld [vmem:[%s292 + $0x14] sm:%s285]
                  %305 = vst [vmem:[%s293 + $0x14] sm:%s285] %v304
                  %v306 = vld [vmem:[%s292 + $0x18] sm:%s285]
                  %307 = vst [vmem:[%s293 + $0x18] sm:%s285] %v306
                  %v308 = vld [vmem:[%s292 + $0x1c] sm:%s285]
                  %309 = vst [vmem:[%s293 + $0x1c] sm:%s285] %v308
                  %v310 = vld [vmem:[%s292 + $0x20] sm:%s285]
                  %311 = vst [vmem:[%s293 + $0x20] sm:%s285] %v310
                  %v312 = vld [vmem:[%s292 + $0x24] sm:%s285]
                  %313 = vst [vmem:[%s293 + $0x24] sm:%s285] %v312
                  %v314 = vld [vmem:[%s292 + $0x28] sm:%s285]
                  %315 = vst [vmem:[%s293 + $0x28] sm:%s285] %v314
                  %v316 = vld [vmem:[%s292 + $0x2c] sm:%s285]
                  %317 = vst [vmem:[%s293 + $0x2c] sm:%s285] %v316
                  %v318 = vld [vmem:[%s292 + $0x30] sm:%s285]
                  %319 = vst [vmem:[%s293 + $0x30] sm:%s285] %v318
                  %v320 = vld [vmem:[%s292 + $0x34] sm:%s285]
                  %321 = vst [vmem:[%s293 + $0x34] sm:%s285] %v320
                  %v322 = vld [vmem:[%s292 + $0x38] sm:%s285]
                  %323 = vst [vmem:[%s293 + $0x38] sm:%s285] %v322
                  %v324 = vld [vmem:[%s292 + $0x3c] sm:%s285]
                  %325 = vst [vmem:[%s293 + $0x3c] sm:%s285] %v324
                  %v326 = vld [vmem:[%s292 + $0x80] sm:%s285]
                  %327 = vst [vmem:[%s293 + $0x40] sm:%s285] %v326
                  %v328 = vld [vmem:[%s292 + $0x84] sm:%s285]
                  %329 = vst [vmem:[%s293 + $0x44] sm:%s285] %v328
                  %v330 = vld [vmem:[%s292 + $0x88] sm:%s285]
                  %331 = vst [vmem:[%s293 + $0x48] sm:%s285] %v330
                  %v332 = vld [vmem:[%s292 + $0x8c] sm:%s285]
                  %333 = vst [vmem:[%s293 + $0x4c] sm:%s285] %v332
                  %v334 = vld [vmem:[%s292 + $0x90] sm:%s285]
                  %335 = vst [vmem:[%s293 + $0x50] sm:%s285] %v334
                  %v336 = vld [vmem:[%s292 + $0x94] sm:%s285]
                  %337 = vst [vmem:[%s293 + $0x54] sm:%s285] %v336
                  %v338 = vld [vmem:[%s292 + $0x98] sm:%s285]
                  %339 = vst [vmem:[%s293 + $0x58] sm:%s285] %v338
                  %v340 = vld [vmem:[%s292 + $0x9c] sm:%s285]
                  %341 = vst [vmem:[%s293 + $0x5c] sm:%s285] %v340
                  %v342 = vld [vmem:[%s292 + $0xa0] sm:%s285]
                  %343 = vst [vmem:[%s293 + $0x60] sm:%s285] %v342
                  %v344 = vld [vmem:[%s292 + $0xa4] sm:%s285]
                  %345 = vst [vmem:[%s293 + $0x64] sm:%s285] %v344
                  %v346 = vld [vmem:[%s292 + $0xa8] sm:%s285]
                  %347 = vst [vmem:[%s293 + $0x68] sm:%s285] %v346
                  %v348 = vld [vmem:[%s292 + $0xac] sm:%s285]
                  %349 = vst [vmem:[%s293 + $0x6c] sm:%s285] %v348
                  %v350 = vld [vmem:[%s292 + $0xb0] sm:%s285]
                  %351 = vst [vmem:[%s293 + $0x70] sm:%s285] %v350
                  %v352 = vld [vmem:[%s292 + $0xb4] sm:%s285]
                  %353 = vst [vmem:[%s293 + $0x74] sm:%s285] %v352
                  %v354 = vld [vmem:[%s292 + $0xb8] sm:%s285]
                  %355 = vst [vmem:[%s293 + $0x78] sm:%s285] %v354
                  %v356 = vld [vmem:[%s292 + $0xbc] sm:%s285]
                  %357 = vst [vmem:[%s293 + $0x7c] sm:%s285] %v356
                $region63: #{ide_forward.2} parent=50 // loop_footer
                  %s291 = sadd.s32 1, %s287
                $region64: #{ide_forward.2} parent=50 // loop_footer_branch
                  %286 = sbr.rel target = $region60
                $region65: #{ide_forward.2} parent=50 // loop_exit
                  _
              $region51: #{ide_forward.2} parent=35 // pred_fallthru
                _
            $region36: #{ide_forward.2} parent=31 // pred_fallthru
              _
            // Predicated region
            $region37: #{ide_forward.2} parent=31 // pred_check
              _
            $region38: #{ide_forward.2} parent=31 // pred_check_branch
              %199 = sbr.rel (0) target = $region40
            $region39: #{ide_forward.2} parent=31 // pred_region
              %s201 = ssub.s32 16, 1
              loop: start=0, step=1, limit=1
              $region41: #{ide_forward.2} parent=39 // loop_pre_header
                _
              $region42: #{ide_forward.2} parent=39 // loop_header
                %s203 = sphi 0, %s207
                %p204 = scmp.ge.s32.totalorder %s203, 1
                %s208 = sphi %s193, %s193
                %s209 = sphi %s187, %s187
              $region43: #{ide_forward.2} parent=39 // loop_header_branch
                %206 = sbr.rel (%p204) target = $region47
              $region44: #{ide_forward.2} parent=39 // loop_body
                %v210 = vld [vmem:[%s208] sm:%s201]
                %211 = vst [vmem:[%s209] sm:%s201] %v210
                %v212 = vld [vmem:[%s208 + $0x4] sm:%s201]
                %213 = vst [vmem:[%s209 + $0x4] sm:%s201] %v212
                %v214 = vld [vmem:[%s208 + $0x8] sm:%s201]
                %215 = vst [vmem:[%s209 + $0x8] sm:%s201] %v214
                %v216 = vld [vmem:[%s208 + $0xc] sm:%s201]
                %217 = vst [vmem:[%s209 + $0xc] sm:%s201] %v216
                %v218 = vld [vmem:[%s208 + $0x10] sm:%s201]
                %219 = vst [vmem:[%s209 + $0x10] sm:%s201] %v218
                %v220 = vld [vmem:[%s208 + $0x14] sm:%s201]
                %221 = vst [vmem:[%s209 + $0x14] sm:%s201] %v220
                %v222 = vld [vmem:[%s208 + $0x18] sm:%s201]
                %223 = vst [vmem:[%s209 + $0x18] sm:%s201] %v222
                %v224 = vld [vmem:[%s208 + $0x1c] sm:%s201]
                %225 = vst [vmem:[%s209 + $0x1c] sm:%s201] %v224
                %v226 = vld [vmem:[%s208 + $0x20] sm:%s201]
                %227 = vst [vmem:[%s209 + $0x20] sm:%s201] %v226
                %v228 = vld [vmem:[%s208 + $0x24] sm:%s201]
                %229 = vst [vmem:[%s209 + $0x24] sm:%s201] %v228
                %v230 = vld [vmem:[%s208 + $0x28] sm:%s201]
                %231 = vst [vmem:[%s209 + $0x28] sm:%s201] %v230
                %v232 = vld [vmem:[%s208 + $0x2c] sm:%s201]
                %233 = vst [vmem:[%s209 + $0x2c] sm:%s201] %v232
                %v234 = vld [vmem:[%s208 + $0x30] sm:%s201]
                %235 = vst [vmem:[%s209 + $0x30] sm:%s201] %v234
                %v236 = vld [vmem:[%s208 + $0x34] sm:%s201]
                %237 = vst [vmem:[%s209 + $0x34] sm:%s201] %v236
                %v238 = vld [vmem:[%s208 + $0x38] sm:%s201]
                %239 = vst [vmem:[%s209 + $0x38] sm:%s201] %v238
                %v240 = vld [vmem:[%s208 + $0x3c] sm:%s201]
                %241 = vst [vmem:[%s209 + $0x3c] sm:%s201] %v240
                %v242 = vld [vmem:[%s208 + $0x80] sm:%s201]
                %243 = vst [vmem:[%s209 + $0x40] sm:%s201] %v242
                %v244 = vld [vmem:[%s208 + $0x84] sm:%s201]
                %245 = vst [vmem:[%s209 + $0x44] sm:%s201] %v244
                %v246 = vld [vmem:[%s208 + $0x88] sm:%s201]
                %247 = vst [vmem:[%s209 + $0x48] sm:%s201] %v246
                %v248 = vld [vmem:[%s208 + $0x8c] sm:%s201]
                %249 = vst [vmem:[%s209 + $0x4c] sm:%s201] %v248
                %v250 = vld [vmem:[%s208 + $0x90] sm:%s201]
                %251 = vst [vmem:[%s209 + $0x50] sm:%s201] %v250
                %v252 = vld [vmem:[%s208 + $0x94] sm:%s201]
                %253 = vst [vmem:[%s209 + $0x54] sm:%s201] %v252
                %v254 = vld [vmem:[%s208 + $0x98] sm:%s201]
                %255 = vst [vmem:[%s209 + $0x58] sm:%s201] %v254
                %v256 = vld [vmem:[%s208 + $0x9c] sm:%s201]
                %257 = vst [vmem:[%s209 + $0x5c] sm:%s201] %v256
                %v258 = vld [vmem:[%s208 + $0xa0] sm:%s201]
                %259 = vst [vmem:[%s209 + $0x60] sm:%s201] %v258
                %v260 = vld [vmem:[%s208 + $0xa4] sm:%s201]
                %261 = vst [vmem:[%s209 + $0x64] sm:%s201] %v260
                %v262 = vld [vmem:[%s208 + $0xa8] sm:%s201]
                %263 = vst [vmem:[%s209 + $0x68] sm:%s201] %v262
                %v264 = vld [vmem:[%s208 + $0xac] sm:%s201]
                %265 = vst [vmem:[%s209 + $0x6c] sm:%s201] %v264
                %v266 = vld [vmem:[%s208 + $0xb0] sm:%s201]
                %267 = vst [vmem:[%s209 + $0x70] sm:%s201] %v266
                %v268 = vld [vmem:[%s208 + $0xb4] sm:%s201]
                %269 = vst [vmem:[%s209 + $0x74] sm:%s201] %v268
                %v270 = vld [vmem:[%s208 + $0xb8] sm:%s201]
                %271 = vst [vmem:[%s209 + $0x78] sm:%s201] %v270
                %v272 = vld [vmem:[%s208 + $0xbc] sm:%s201]
                %273 = vst [vmem:[%s209 + $0x7c] sm:%s201] %v272
              $region45: #{ide_forward.2} parent=39 // loop_footer
                %s207 = sadd.s32 1, %s203
              $region46: #{ide_forward.2} parent=39 // loop_footer_branch
                %202 = sbr.rel target = $region42
              $region47: #{ide_forward.2} parent=39 // loop_exit
                _
            $region40: #{ide_forward.2} parent=31 // pred_fallthru
              _
          $region32: #{ide_forward.2} parent=27 // pred_fallthru
            _
          %358 = vnop
        $region28: #{ide_forward.2} parent=23 // pred_fallthru
          _
      $region24: #{ide_forward.2} parent=5 // pred_fallthru
        _
      %p359 = scmp.le.s32.totalorder 1, %s13
      %p360 = scmp.lt.s32.totalorder %s13, 3
      %p361 = pnand %p359, %p360
      %p362 = pneg %p361
      // Predicated region
      $region66: #{ide_forward.2} parent=5 // pred_check
        _
      $region67: #{ide_forward.2} parent=5 // pred_check_branch
        %364 = sbr.rel (%p361) target = $region69
      $region68: #{ide_forward.2} parent=5 // pred_region
        %s365 = ssub.s32 %s13, 1
        %s366 = sand.u32 %s40, 1
        %s367 = sand.u32 %s40, 1
        %s368 = smul.addr %s367, 128
        %s369 = scalar_lea.vmem [#allocation3], %s368
        // Predicated region
        $region70: #{ide_forward.2} parent=68 // pred_check
          %p370 = pneg %p53
        $region71: #{ide_forward.2} parent=68 // pred_check_branch
          %372 = sbr.rel (%p370) target = $region73
        $region72: #{ide_forward.2} parent=68 // pred_region
          _
        $region73: #{ide_forward.2} parent=68 // pred_fallthru
          _
        // Predicated region
        $region74: #{ide_forward.2} parent=68 // pred_check
          %p373 = pneg %p95
        $region75: #{ide_forward.2} parent=68 // pred_check_branch
          %375 = sbr.rel (%p373) target = $region77
        $region76: #{ide_forward.2} parent=68 // pred_region
          %377 = dma.done [#allocation5], 256
        $region77: #{ide_forward.2} parent=68 // pred_fallthru
          _
        %s378 = sand.u32 %s40, 1
        %s379 = sand.u32 %s40, 1
        %s380 = smul.addr %s379, 128
        %s381 = scalar_lea.vmem [#allocation3], %s380
        %p382 = pneg %p53
        %p383 = pneg %p50
        %p384 = pneg %p74
        %p385 = pneg %p71
        %p386 = pneg %p95
        %p387 = pneg %p92
        %p388 = pneg %p121
        %p389 = pneg %p118
        %p390 = pneg %p147
        %p391 = pneg %p144
        %p392 = scmp.lt.s32.totalorder %s22, 0
        %s393 = scalar_select %p392, %s22, 0
        %s394 = smul.addr %s393, 16
        %s395 = scalar_lea.vmem %s4, %s394
        %s396 = smul.u32 2, %s22
        %s397 = smul.u32 16, %s23
        %p398 = scmp.lt.s32.totalorder %s22, 0
        %s399 = scalar_select %p398, %s22, 0
        %s400 = smul.addr %s399, 16
        %s401 = scalar_lea.vmem %s4, %s400
        %p403 = scmp.eq.s32.totalorder %s23, 0
        // Predicated region
        $region78: #{ide_forward.2} parent=68 // pred_check
          %p404 = pneg %p403
        $region79: #{ide_forward.2} parent=68 // pred_check_branch
          %406 = sbr.rel (%p404) target = $region81
        $region80: #{ide_forward.2} parent=68 // pred_region
          %407 = vst [vmem:[#allocation2] sm:$0xff] 0.0
          %408 = vst [vmem:[#allocation2 + $0x8] sm:$0xff] 0.0
          %409 = vst [vmem:[#allocation2 + $0x10] sm:$0xff] 0.0
          %410 = vst [vmem:[#allocation2 + $0x18] sm:$0xff] 0.0
        $region81: #{ide_forward.2} parent=68 // pred_fallthru
          _
        %v411 = vld [vmem:[%s369] sm:$0xf]
        %v412 = vld [vmem:[%s369 + $0x4] sm:$0xf]
        %v413 = vld [vmem:[%s369 + $0x8] sm:$0xf]
        %v414 = vld [vmem:[%s369 + $0xc] sm:$0xf]
        %v415 = vld [vmem:[%s369 + $0x10] sm:$0xf]
        %v416 = vld [vmem:[%s369 + $0x14] sm:$0xf]
        %v417 = vld [vmem:[%s369 + $0x18] sm:$0xf]
        %v418 = vld [vmem:[%s369 + $0x1c] sm:$0xf]
        %v419 = vld [vmem:[%s369 + $0x20] sm:$0xf]
        %v420 = vld [vmem:[%s369 + $0x24] sm:$0xf]
        %v421 = vld [vmem:[%s369 + $0x28] sm:$0xf]
        %v422 = vld [vmem:[%s369 + $0x2c] sm:$0xf]
        %v423 = vld [vmem:[%s369 + $0x30] sm:$0xf]
        %v424 = vld [vmem:[%s369 + $0x34] sm:$0xf]
        %v425 = vld [vmem:[%s369 + $0x38] sm:$0xf]
        %v426 = vld [vmem:[%s369 + $0x3c] sm:$0xf]
        %v427 = vld [vmem:[%s369 + $0x40] sm:$0xf]
        %v428 = vld [vmem:[%s369 + $0x44] sm:$0xf]
        %v429 = vld [vmem:[%s369 + $0x48] sm:$0xf]
        %v430 = vld [vmem:[%s369 + $0x4c] sm:$0xf]
        %v431 = vld [vmem:[%s369 + $0x50] sm:$0xf]
        %v432 = vld [vmem:[%s369 + $0x54] sm:$0xf]
        %v433 = vld [vmem:[%s369 + $0x58] sm:$0xf]
        %v434 = vld [vmem:[%s369 + $0x5c] sm:$0xf]
        %v435 = vld [vmem:[%s369 + $0x60] sm:$0xf]
        %v436 = vld [vmem:[%s369 + $0x64] sm:$0xf]
        %v437 = vld [vmem:[%s369 + $0x68] sm:$0xf]
        %v438 = vld [vmem:[%s369 + $0x6c] sm:$0xf]
        %v439 = vld [vmem:[%s369 + $0x70] sm:$0xf]
        %v440 = vld [vmem:[%s369 + $0x74] sm:$0xf]
        %v441 = vld [vmem:[%s369 + $0x78] sm:$0xf]
        %v442 = vld [vmem:[%s369 + $0x7c] sm:$0xf]
        %v443 = vld [vmem:[%s1] sm:$0xff]
        %v444 = vld [vmem:[%s1 + $0x8] sm:$0xff]
        %v445 = vld [vmem:[%s1 + $0x10] sm:$0xff]
        %v446 = vld [vmem:[%s1 + $0x18] sm:$0xff]
        %v447 = vld [vmem:[#allocation4] sm:$0xff]
        %v448 = vld [vmem:[#allocation4 + $0x8] sm:$0xff]
        %v451 = vperm.slane %v447, 0
        %v452 = vperm.slane %v447, 1
        %v453 = vperm.slane %v447, 2
        %v454 = vperm.slane %v447, 3
        %v455 = vperm.slane %v447, 4
        %v456 = vperm.slane %v447, 5
        %v457 = vperm.slane %v447, 6
        %v458 = vperm.slane %v447, 7
        %v459 = vperm.slane %v448, 0
        %v460 = vperm.slane %v448, 1
        %v461 = vperm.slane %v448, 2
        %v462 = vperm.slane %v448, 3
        %v463 = vperm.slane %v448, 4
        %v464 = vperm.slane %v448, 5
        %v465 = vperm.slane %v448, 6
        %v466 = vperm.slane %v448, 7
        %v515 = vunpack.c.l.b16 %v411
        %v516 = vunpack.c.l.b16 %v412
        %v517 = vunpack.c.l.b16 %v413
        %v518 = vunpack.c.l.b16 %v414
        %v519 = vunpack.c.l.b16 %v415
        %v520 = vunpack.c.l.b16 %v416
        %v521 = vunpack.c.l.b16 %v417
        %v522 = vunpack.c.l.b16 %v418
        %v523 = vunpack.c.l.b16 %v419
        %v524 = vunpack.c.l.b16 %v420
        %v525 = vunpack.c.l.b16 %v421
        %v526 = vunpack.c.l.b16 %v422
        %v527 = vunpack.c.l.b16 %v423
        %v528 = vunpack.c.l.b16 %v424
        %v529 = vunpack.c.l.b16 %v425
        %v530 = vunpack.c.l.b16 %v426
        %v531 = vunpack.c.l.b16 %v427
        %v532 = vunpack.c.l.b16 %v428
        %v533 = vunpack.c.l.b16 %v429
        %v534 = vunpack.c.l.b16 %v430
        %v535 = vunpack.c.l.b16 %v431
        %v536 = vunpack.c.l.b16 %v432
        %v537 = vunpack.c.l.b16 %v433
        %v538 = vunpack.c.l.b16 %v434
        %v539 = vunpack.c.l.b16 %v435
        %v540 = vunpack.c.l.b16 %v436
        %v541 = vunpack.c.l.b16 %v437
        %v542 = vunpack.c.l.b16 %v438
        %v543 = vunpack.c.l.b16 %v439
        %v544 = vunpack.c.l.b16 %v440
        %v545 = vunpack.c.l.b16 %v441
        %v546 = vunpack.c.l.b16 %v442
        %v547 = vpack.c.b16 %v516, %v515
        %v548 = vpack.c.b16 %v518, %v517
        %v549 = vpack.c.b16 %v520, %v519
        %v550 = vpack.c.b16 %v522, %v521
        %v551 = vpack.c.b16 %v524, %v523
        %v552 = vpack.c.b16 %v526, %v525
        %v553 = vpack.c.b16 %v528, %v527
        %v554 = vpack.c.b16 %v530, %v529
        %v555 = vpack.c.b16 %v532, %v531
        %v556 = vpack.c.b16 %v534, %v533
        %v557 = vpack.c.b16 %v536, %v535
        %v558 = vpack.c.b16 %v538, %v537
        %v559 = vpack.c.b16 %v540, %v539
        %v560 = vpack.c.b16 %v542, %v541
        %v561 = vpack.c.b16 %v544, %v543
        %v562 = vpack.c.b16 %v546, %v545
        %564 = vst [vmem:[#allocation1] ss:$4 sm:$0xff] %v443
        %s566 = scalar_lea.vmem [#allocation1], 32
        %567 = vst [vmem:[%s566] ss:$4 sm:$0xff] %v444
        %v568 = vld.sshfl [vmem:[#allocation1] sm:$0xff pattern:$0x73625140]
        %v569 = vld.sshfl [vmem:[#allocation1 + $0x8] sm:$0xff pattern:$0x73625140]
        %v570 = vld.sshfl [vmem:[#allocation1 + $0x10] sm:$0xff pattern:$0x73625140]
        %v571 = vld.sshfl [vmem:[#allocation1 + $0x18] sm:$0xff pattern:$0x73625140]
        %v572 = vld.sshfl [vmem:[#allocation1 + $0x20] sm:$0xff pattern:$0x73625140]
        %v573 = vld.sshfl [vmem:[#allocation1 + $0x28] sm:$0xff pattern:$0x73625140]
        %v574 = vld.sshfl [vmem:[#allocation1 + $0x30] sm:$0xff pattern:$0x73625140]
        %v575 = vld.sshfl [vmem:[#allocation1 + $0x38] sm:$0xff pattern:$0x73625140]
        %577 = vst [vmem:[#allocation1] ss:$4 sm:$0xff] %v445
        %579 = vst [vmem:[%s566] ss:$4 sm:$0xff] %v446
        %v580 = vld.sshfl [vmem:[#allocation1] sm:$0xff pattern:$0x73625140]
        %v581 = vld.sshfl [vmem:[#allocation1 + $0x8] sm:$0xff pattern:$0x73625140]
        %v582 = vld.sshfl [vmem:[#allocation1 + $0x10] sm:$0xff pattern:$0x73625140]
        %v583 = vld.sshfl [vmem:[#allocation1 + $0x18] sm:$0xff pattern:$0x73625140]
        %v584 = vld.sshfl [vmem:[#allocation1 + $0x20] sm:$0xff pattern:$0x73625140]
        %v585 = vld.sshfl [vmem:[#allocation1 + $0x28] sm:$0xff pattern:$0x73625140]
        %v586 = vld.sshfl [vmem:[#allocation1 + $0x30] sm:$0xff pattern:$0x73625140]
        %v587 = vld.sshfl [vmem:[#allocation1 + $0x38] sm:$0xff pattern:$0x73625140]
        %vm588 = vcmask 31744
        %v590 = vsel %vm588, %v547, 0
        %v593 = vsel %vm588, %v548, 0
        %v596 = vsel %vm588, %v549, 0
        %v599 = vsel %vm588, %v550, 0
        %v602 = vsel %vm588, %v551, 0
        %v605 = vsel %vm588, %v552, 0
        %v608 = vsel %vm588, %v553, 0
        %v611 = vsel %vm588, %v554, 0
        %v614 = vsel %vm588, %v555, 0
        %v617 = vsel %vm588, %v556, 0
        %v620 = vsel %vm588, %v557, 0
        %v623 = vsel %vm588, %v558, 0
        %v626 = vsel %vm588, %v559, 0
        %v629 = vsel %vm588, %v560, 0
        %v632 = vsel %vm588, %v561, 0
        %v635 = vsel %vm588, %v562, 0
        %vm637 = vcmask 1041408
        %v638 = vsel %vm637, %v568, 0
        %v640 = vsel %vm637, %v569, 0
        %v642 = vsel %vm637, %v570, 0
        %v644 = vsel %vm637, %v571, 0
        %v646 = vsel %vm637, %v572, 0
        %v648 = vsel %vm637, %v573, 0
        %v650 = vsel %vm637, %v574, 0
        %v652 = vsel %vm637, %v575, 0
        %v654 = vsel %vm637, %v580, 0
        %v656 = vsel %vm637, %v581, 0
        %v658 = vsel %vm637, %v582, 0
        %v660 = vsel %vm637, %v583, 0
        %v662 = vsel %vm637, %v584, 0
        %v664 = vsel %vm637, %v585, 0
        %v666 = vsel %vm637, %v586, 0
        %v668 = vsel %vm637, %v587, 0
        %670 = vmatpush.bf16.msra.mxu0 0
        %671 = vmatpush.bf16.msra.mxu0 0
        %672 = vmatpush.bf16.msra.mxu0 0
        %673 = vmatpush.bf16.msra.mxu0 0
        %674 = vmatpush.bf16.msra.mxu0 0
        %675 = vmatpush.bf16.msra.mxu0 0
        %676 = vmatpush.bf16.msra.mxu0 0
        %677 = vmatpush.bf16.msra.mxu0 %v638
        %678 = vmatmul.bf16.gmra.mxu0 %v590
        %v679 = vpop.f32.mrf.mxu0
        %v680 = vadd.f32 %v451, %v679
        %v681 = vpop.f32.mrf.mxu0
        %v682 = vadd.f32 %v451, %v681
        %683 = vmatmul.bf16.gmra.mxu0 %v593
        %v684 = vpop.f32.mrf.mxu0
        %v685 = vadd.f32 %v451, %v684
        %v686 = vpop.f32.mrf.mxu0
        %v687 = vadd.f32 %v451, %v686
        %688 = vmatmul.bf16.gmra.mxu0 %v596
        %v689 = vpop.f32.mrf.mxu0
        %v690 = vadd.f32 %v451, %v689
        %v691 = vpop.f32.mrf.mxu0
        %v692 = vadd.f32 %v451, %v691
        %693 = vmatmul.bf16.gmra.mxu0 %v599
        %v694 = vpop.f32.mrf.mxu0
        %v695 = vadd.f32 %v451, %v694
        %v696 = vpop.f32.mrf.mxu0
        %v697 = vadd.f32 %v451, %v696
        %698 = vmatmul.bf16.gmra.mxu0 %v602
        %v699 = vpop.f32.mrf.mxu0
        %v700 = vadd.f32 %v451, %v699
        %v701 = vpop.f32.mrf.mxu0
        %v702 = vadd.f32 %v451, %v701
        %703 = vmatmul.bf16.gmra.mxu0 %v605
        %v704 = vpop.f32.mrf.mxu0
        %v705 = vadd.f32 %v451, %v704
        %v706 = vpop.f32.mrf.mxu0
        %v707 = vadd.f32 %v451, %v706
        %708 = vmatmul.bf16.gmra.mxu0 %v608
        %v709 = vpop.f32.mrf.mxu0
        %v710 = vadd.f32 %v451, %v709
        %v711 = vpop.f32.mrf.mxu0
        %v712 = vadd.f32 %v451, %v711
        %713 = vmatmul.bf16.gmra.mxu0 %v611
        %v714 = vpop.f32.mrf.mxu0
        %v715 = vadd.f32 %v451, %v714
        %v716 = vpop.f32.mrf.mxu0
        %v717 = vadd.f32 %v451, %v716
        %718 = vmatmul.bf16.gmra.mxu0 %v614
        %v719 = vpop.f32.mrf.mxu0
        %v720 = vadd.f32 %v451, %v719
        %v721 = vpop.f32.mrf.mxu0
        %v722 = vadd.f32 %v451, %v721
        %723 = vmatmul.bf16.gmra.mxu0 %v617
        %v724 = vpop.f32.mrf.mxu0
        %v725 = vadd.f32 %v451, %v724
        %v726 = vpop.f32.mrf.mxu0
        %v727 = vadd.f32 %v451, %v726
        %728 = vmatmul.bf16.gmra.mxu0 %v620
        %v729 = vpop.f32.mrf.mxu0
        %v730 = vadd.f32 %v451, %v729
        %v731 = vpop.f32.mrf.mxu0
        %v732 = vadd.f32 %v451, %v731
        %733 = vmatmul.bf16.gmra.mxu0 %v623
        %v734 = vpop.f32.mrf.mxu0
        %v735 = vadd.f32 %v451, %v734
        %v736 = vpop.f32.mrf.mxu0
        %v737 = vadd.f32 %v451, %v736
        %738 = vmatmul.bf16.gmra.mxu0 %v626
        %v739 = vpop.f32.mrf.mxu0
        %v740 = vadd.f32 %v451, %v739
        %v741 = vpop.f32.mrf.mxu0
        %v742 = vadd.f32 %v451, %v741
        %743 = vmatmul.bf16.gmra.mxu0 %v629
        %v744 = vpop.f32.mrf.mxu0
        %v745 = vadd.f32 %v451, %v744
        %v746 = vpop.f32.mrf.mxu0
        %v747 = vadd.f32 %v451, %v746
        %748 = vmatmul.bf16.gmra.mxu0 %v632
        %v749 = vpop.f32.mrf.mxu0
        %v750 = vadd.f32 %v451, %v749
        %v751 = vpop.f32.mrf.mxu0
        %v752 = vadd.f32 %v451, %v751
        %753 = vmatmul.bf16.gmra.mxu0 %v635
        %v754 = vpop.f32.mrf.mxu0
        %v755 = vadd.f32 %v451, %v754
        %v756 = vpop.f32.mrf.mxu0
        %v757 = vadd.f32 %v451, %v756
        %758 = vdwg.mxu0
        %759 = vmatpush.bf16.msra.mxu0 0
        %760 = vmatpush.bf16.msra.mxu0 0
        %761 = vmatpush.bf16.msra.mxu0 0
        %762 = vmatpush.bf16.msra.mxu0 0
        %763 = vmatpush.bf16.msra.mxu0 0
        %764 = vmatpush.bf16.msra.mxu0 0
        %765 = vmatpush.bf16.msra.mxu0 0
        %766 = vmatpush.bf16.msra.mxu0 %v640
        %767 = vmatmul.bf16.gmra.mxu0 %v590
        %v768 = vpop.f32.mrf.mxu0
        %v769 = vadd.f32 %v452, %v768
        %v770 = vpop.f32.mrf.mxu0
        %v771 = vadd.f32 %v452, %v770
        %772 = vmatmul.bf16.gmra.mxu0 %v593
        %v773 = vpop.f32.mrf.mxu0
        %v774 = vadd.f32 %v452, %v773
        %v775 = vpop.f32.mrf.mxu0
        %v776 = vadd.f32 %v452, %v775
        %777 = vmatmul.bf16.gmra.mxu0 %v596
        %v778 = vpop.f32.mrf.mxu0
        %v779 = vadd.f32 %v452, %v778
        %v780 = vpop.f32.mrf.mxu0
        %v781 = vadd.f32 %v452, %v780
        %782 = vmatmul.bf16.gmra.mxu0 %v599
        %v783 = vpop.f32.mrf.mxu0
        %v784 = vadd.f32 %v452, %v783
        %v785 = vpop.f32.mrf.mxu0
        %v786 = vadd.f32 %v452, %v785
        %787 = vmatmul.bf16.gmra.mxu0 %v602
        %v788 = vpop.f32.mrf.mxu0
        %v789 = vadd.f32 %v452, %v788
        %v790 = vpop.f32.mrf.mxu0
        %v791 = vadd.f32 %v452, %v790
        %792 = vmatmul.bf16.gmra.mxu0 %v605
        %v793 = vpop.f32.mrf.mxu0
        %v794 = vadd.f32 %v452, %v793
        %v795 = vpop.f32.mrf.mxu0
        %v796 = vadd.f32 %v452, %v795
        %797 = vmatmul.bf16.gmra.mxu0 %v608
        %v798 = vpop.f32.mrf.mxu0
        %v799 = vadd.f32 %v452, %v798
        %v800 = vpop.f32.mrf.mxu0
        %v801 = vadd.f32 %v452, %v800
        %802 = vmatmul.bf16.gmra.mxu0 %v611
        %v803 = vpop.f32.mrf.mxu0
        %v804 = vadd.f32 %v452, %v803
        %v805 = vpop.f32.mrf.mxu0
        %v806 = vadd.f32 %v452, %v805
        %807 = vmatmul.bf16.gmra.mxu0 %v614
        %v808 = vpop.f32.mrf.mxu0
        %v809 = vadd.f32 %v452, %v808
        %v810 = vpop.f32.mrf.mxu0
        %v811 = vadd.f32 %v452, %v810
        %812 = vmatmul.bf16.gmra.mxu0 %v617
        %v813 = vpop.f32.mrf.mxu0
        %v814 = vadd.f32 %v452, %v813
        %v815 = vpop.f32.mrf.mxu0
        %v816 = vadd.f32 %v452, %v815
        %817 = vmatmul.bf16.gmra.mxu0 %v620
        %v818 = vpop.f32.mrf.mxu0
        %v819 = vadd.f32 %v452, %v818
        %v820 = vpop.f32.mrf.mxu0
        %v821 = vadd.f32 %v452, %v820
        %822 = vmatmul.bf16.gmra.mxu0 %v623
        %v823 = vpop.f32.mrf.mxu0
        %v824 = vadd.f32 %v452, %v823
        %v825 = vpop.f32.mrf.mxu0
        %v826 = vadd.f32 %v452, %v825
        %827 = vmatmul.bf16.gmra.mxu0 %v626
        %v828 = vpop.f32.mrf.mxu0
        %v829 = vadd.f32 %v452, %v828
        %v830 = vpop.f32.mrf.mxu0
        %v831 = vadd.f32 %v452, %v830
        %832 = vmatmul.bf16.gmra.mxu0 %v629
        %v833 = vpop.f32.mrf.mxu0
        %v834 = vadd.f32 %v452, %v833
        %v835 = vpop.f32.mrf.mxu0
        %v836 = vadd.f32 %v452, %v835
        %837 = vmatmul.bf16.gmra.mxu0 %v632
        %v838 = vpop.f32.mrf.mxu0
        %v839 = vadd.f32 %v452, %v838
        %v840 = vpop.f32.mrf.mxu0
        %v841 = vadd.f32 %v452, %v840
        %842 = vmatmul.bf16.gmra.mxu0 %v635
        %v843 = vpop.f32.mrf.mxu0
        %v844 = vadd.f32 %v452, %v843
        %v845 = vpop.f32.mrf.mxu0
        %v846 = vadd.f32 %v452, %v845
        %847 = vdwg.mxu0
        %848 = vmatpush.bf16.msra.mxu0 0
        %849 = vmatpush.bf16.msra.mxu0 0
        %850 = vmatpush.bf16.msra.mxu0 0
        %851 = vmatpush.bf16.msra.mxu0 0
        %852 = vmatpush.bf16.msra.mxu0 0
        %853 = vmatpush.bf16.msra.mxu0 0
        %854 = vmatpush.bf16.msra.mxu0 0
        %855 = vmatpush.bf16.msra.mxu0 %v642
        %856 = vmatmul.bf16.gmra.mxu0 %v590
        %v857 = vpop.f32.mrf.mxu0
        %v858 = vadd.f32 %v453, %v857
        %v859 = vpop.f32.mrf.mxu0
        %v860 = vadd.f32 %v453, %v859
        %861 = vmatmul.bf16.gmra.mxu0 %v593
        %v862 = vpop.f32.mrf.mxu0
        %v863 = vadd.f32 %v453, %v862
        %v864 = vpop.f32.mrf.mxu0
        %v865 = vadd.f32 %v453, %v864
        %866 = vmatmul.bf16.gmra.mxu0 %v596
        %v867 = vpop.f32.mrf.mxu0
        %v868 = vadd.f32 %v453, %v867
        %v869 = vpop.f32.mrf.mxu0
        %v870 = vadd.f32 %v453, %v869
        %871 = vmatmul.bf16.gmra.mxu0 %v599
        %v872 = vpop.f32.mrf.mxu0
        %v873 = vadd.f32 %v453, %v872
        %v874 = vpop.f32.mrf.mxu0
        %v875 = vadd.f32 %v453, %v874
        %876 = vmatmul.bf16.gmra.mxu0 %v602
        %v877 = vpop.f32.mrf.mxu0
        %v878 = vadd.f32 %v453, %v877
        %v879 = vpop.f32.mrf.mxu0
        %v880 = vadd.f32 %v453, %v879
        %881 = vmatmul.bf16.gmra.mxu0 %v605
        %v882 = vpop.f32.mrf.mxu0
        %v883 = vadd.f32 %v453, %v882
        %v884 = vpop.f32.mrf.mxu0
        %v885 = vadd.f32 %v453, %v884
        %886 = vmatmul.bf16.gmra.mxu0 %v608
        %v887 = vpop.f32.mrf.mxu0
        %v888 = vadd.f32 %v453, %v887
        %v889 = vpop.f32.mrf.mxu0
        %v890 = vadd.f32 %v453, %v889
        %891 = vmatmul.bf16.gmra.mxu0 %v611
        %v892 = vpop.f32.mrf.mxu0
        %v893 = vadd.f32 %v453, %v892
        %v894 = vpop.f32.mrf.mxu0
        %v895 = vadd.f32 %v453, %v894
        %896 = vmatmul.bf16.gmra.mxu0 %v614
        %v897 = vpop.f32.mrf.mxu0
        %v898 = vadd.f32 %v453, %v897
        %v899 = vpop.f32.mrf.mxu0
        %v900 = vadd.f32 %v453, %v899
        %901 = vmatmul.bf16.gmra.mxu0 %v617
        %v902 = vpop.f32.mrf.mxu0
        %v903 = vadd.f32 %v453, %v902
        %v904 = vpop.f32.mrf.mxu0
        %v905 = vadd.f32 %v453, %v904
        %906 = vmatmul.bf16.gmra.mxu0 %v620
        %v907 = vpop.f32.mrf.mxu0
        %v908 = vadd.f32 %v453, %v907
        %v909 = vpop.f32.mrf.mxu0
        %v910 = vadd.f32 %v453, %v909
        %911 = vmatmul.bf16.gmra.mxu0 %v623
        %v912 = vpop.f32.mrf.mxu0
        %v913 = vadd.f32 %v453, %v912
        %v914 = vpop.f32.mrf.mxu0
        %v915 = vadd.f32 %v453, %v914
        %916 = vmatmul.bf16.gmra.mxu0 %v626
        %v917 = vpop.f32.mrf.mxu0
        %v918 = vadd.f32 %v453, %v917
        %v919 = vpop.f32.mrf.mxu0
        %v920 = vadd.f32 %v453, %v919
        %921 = vmatmul.bf16.gmra.mxu0 %v629
        %v922 = vpop.f32.mrf.mxu0
        %v923 = vadd.f32 %v453, %v922
        %v924 = vpop.f32.mrf.mxu0
        %v925 = vadd.f32 %v453, %v924
        %926 = vmatmul.bf16.gmra.mxu0 %v632
        %v927 = vpop.f32.mrf.mxu0
        %v928 = vadd.f32 %v453, %v927
        %v929 = vpop.f32.mrf.mxu0
        %v930 = vadd.f32 %v453, %v929
        %931 = vmatmul.bf16.gmra.mxu0 %v635
        %v932 = vpop.f32.mrf.mxu0
        %v933 = vadd.f32 %v453, %v932
        %v934 = vpop.f32.mrf.mxu0
        %v935 = vadd.f32 %v453, %v934
        %936 = vdwg.mxu0
        %937 = vmatpush.bf16.msra.mxu0 0
        %938 = vmatpush.bf16.msra.mxu0 0
        %939 = vmatpush.bf16.msra.mxu0 0
        %940 = vmatpush.bf16.msra.mxu0 0
        %941 = vmatpush.bf16.msra.mxu0 0
        %942 = vmatpush.bf16.msra.mxu0 0
        %943 = vmatpush.bf16.msra.mxu0 0
        %944 = vmatpush.bf16.msra.mxu0 %v644
        %945 = vmatmul.bf16.gmra.mxu0 %v590
        %v946 = vpop.f32.mrf.mxu0
        %v947 = vadd.f32 %v454, %v946
        %v948 = vpop.f32.mrf.mxu0
        %v949 = vadd.f32 %v454, %v948
        %950 = vmatmul.bf16.gmra.mxu0 %v593
        %v951 = vpop.f32.mrf.mxu0
        %v952 = vadd.f32 %v454, %v951
        %v953 = vpop.f32.mrf.mxu0
        %v954 = vadd.f32 %v454, %v953
        %955 = vmatmul.bf16.gmra.mxu0 %v596
        %v956 = vpop.f32.mrf.mxu0
        %v957 = vadd.f32 %v454, %v956
        %v958 = vpop.f32.mrf.mxu0
        %v959 = vadd.f32 %v454, %v958
        %960 = vmatmul.bf16.gmra.mxu0 %v599
        %v961 = vpop.f32.mrf.mxu0
        %v962 = vadd.f32 %v454, %v961
        %v963 = vpop.f32.mrf.mxu0
        %v964 = vadd.f32 %v454, %v963
        %965 = vmatmul.bf16.gmra.mxu0 %v602
        %v966 = vpop.f32.mrf.mxu0
        %v967 = vadd.f32 %v454, %v966
        %v968 = vpop.f32.mrf.mxu0
        %v969 = vadd.f32 %v454, %v968
        %970 = vmatmul.bf16.gmra.mxu0 %v605
        %v971 = vpop.f32.mrf.mxu0
        %v972 = vadd.f32 %v454, %v971
        %v973 = vpop.f32.mrf.mxu0
        %v974 = vadd.f32 %v454, %v973
        %975 = vmatmul.bf16.gmra.mxu0 %v608
        %v976 = vpop.f32.mrf.mxu0
        %v977 = vadd.f32 %v454, %v976
        %v978 = vpop.f32.mrf.mxu0
        %v979 = vadd.f32 %v454, %v978
        %980 = vmatmul.bf16.gmra.mxu0 %v611
        %v981 = vpop.f32.mrf.mxu0
        %v982 = vadd.f32 %v454, %v981
        %v983 = vpop.f32.mrf.mxu0
        %v984 = vadd.f32 %v454, %v983
        %985 = vmatmul.bf16.gmra.mxu0 %v614
        %v986 = vpop.f32.mrf.mxu0
        %v987 = vadd.f32 %v454, %v986
        %v988 = vpop.f32.mrf.mxu0
        %v989 = vadd.f32 %v454, %v988
        %990 = vmatmul.bf16.gmra.mxu0 %v617
        %v991 = vpop.f32.mrf.mxu0
        %v992 = vadd.f32 %v454, %v991
        %v993 = vpop.f32.mrf.mxu0
        %v994 = vadd.f32 %v454, %v993
        %995 = vmatmul.bf16.gmra.mxu0 %v620
        %v996 = vpop.f32.mrf.mxu0
        %v997 = vadd.f32 %v454, %v996
        %v998 = vpop.f32.mrf.mxu0
        %v999 = vadd.f32 %v454, %v998
        %1000 = vmatmul.bf16.gmra.mxu0 %v623
        %v1001 = vpop.f32.mrf.mxu0
        %v1002 = vadd.f32 %v454, %v1001
        %v1003 = vpop.f32.mrf.mxu0
        %v1004 = vadd.f32 %v454, %v1003
        %1005 = vmatmul.bf16.gmra.mxu0 %v626
        %v1006 = vpop.f32.mrf.mxu0
        %v1007 = vadd.f32 %v454, %v1006
        %v1008 = vpop.f32.mrf.mxu0
        %v1009 = vadd.f32 %v454, %v1008
        %1010 = vmatmul.bf16.gmra.mxu0 %v629
        %v1011 = vpop.f32.mrf.mxu0
        %v1012 = vadd.f32 %v454, %v1011
        %v1013 = vpop.f32.mrf.mxu0
        %v1014 = vadd.f32 %v454, %v1013
        %1015 = vmatmul.bf16.gmra.mxu0 %v632
        %v1016 = vpop.f32.mrf.mxu0
        %v1017 = vadd.f32 %v454, %v1016
        %v1018 = vpop.f32.mrf.mxu0
        %v1019 = vadd.f32 %v454, %v1018
        %1020 = vmatmul.bf16.gmra.mxu0 %v635
        %v1021 = vpop.f32.mrf.mxu0
        %v1022 = vadd.f32 %v454, %v1021
        %v1023 = vpop.f32.mrf.mxu0
        %v1024 = vadd.f32 %v454, %v1023
        %1025 = vdwg.mxu0
        %1026 = vmatpush.bf16.msra.mxu0 0
        %1027 = vmatpush.bf16.msra.mxu0 0
        %1028 = vmatpush.bf16.msra.mxu0 0
        %1029 = vmatpush.bf16.msra.mxu0 0
        %1030 = vmatpush.bf16.msra.mxu0 0
        %1031 = vmatpush.bf16.msra.mxu0 0
        %1032 = vmatpush.bf16.msra.mxu0 0
        %1033 = vmatpush.bf16.msra.mxu0 %v646
        %1034 = vmatmul.bf16.gmra.mxu0 %v590
        %v1035 = vpop.f32.mrf.mxu0
        %v1036 = vadd.f32 %v455, %v1035
        %v1037 = vpop.f32.mrf.mxu0
        %v1038 = vadd.f32 %v455, %v1037
        %1039 = vmatmul.bf16.gmra.mxu0 %v593
        %v1040 = vpop.f32.mrf.mxu0
        %v1041 = vadd.f32 %v455, %v1040
        %v1042 = vpop.f32.mrf.mxu0
        %v1043 = vadd.f32 %v455, %v1042
        %1044 = vmatmul.bf16.gmra.mxu0 %v596
        %v1045 = vpop.f32.mrf.mxu0
        %v1046 = vadd.f32 %v455, %v1045
        %v1047 = vpop.f32.mrf.mxu0
        %v1048 = vadd.f32 %v455, %v1047
        %1049 = vmatmul.bf16.gmra.mxu0 %v599
        %v1050 = vpop.f32.mrf.mxu0
        %v1051 = vadd.f32 %v455, %v1050
        %v1052 = vpop.f32.mrf.mxu0
        %v1053 = vadd.f32 %v455, %v1052
        %1054 = vmatmul.bf16.gmra.mxu0 %v602
        %v1055 = vpop.f32.mrf.mxu0
        %v1056 = vadd.f32 %v455, %v1055
        %v1057 = vpop.f32.mrf.mxu0
        %v1058 = vadd.f32 %v455, %v1057
        %1059 = vmatmul.bf16.gmra.mxu0 %v605
        %v1060 = vpop.f32.mrf.mxu0
        %v1061 = vadd.f32 %v455, %v1060
        %v1062 = vpop.f32.mrf.mxu0
        %v1063 = vadd.f32 %v455, %v1062
        %1064 = vmatmul.bf16.gmra.mxu0 %v608
        %v1065 = vpop.f32.mrf.mxu0
        %v1066 = vadd.f32 %v455, %v1065
        %v1067 = vpop.f32.mrf.mxu0
        %v1068 = vadd.f32 %v455, %v1067
        %1069 = vmatmul.bf16.gmra.mxu0 %v611
        %v1070 = vpop.f32.mrf.mxu0
        %v1071 = vadd.f32 %v455, %v1070
        %v1072 = vpop.f32.mrf.mxu0
        %v1073 = vadd.f32 %v455, %v1072
        %1074 = vmatmul.bf16.gmra.mxu0 %v614
        %v1075 = vpop.f32.mrf.mxu0
        %v1076 = vadd.f32 %v455, %v1075
        %v1077 = vpop.f32.mrf.mxu0
        %v1078 = vadd.f32 %v455, %v1077
        %1079 = vmatmul.bf16.gmra.mxu0 %v617
        %v1080 = vpop.f32.mrf.mxu0
        %v1081 = vadd.f32 %v455, %v1080
        %v1082 = vpop.f32.mrf.mxu0
        %v1083 = vadd.f32 %v455, %v1082
        %1084 = vmatmul.bf16.gmra.mxu0 %v620
        %v1085 = vpop.f32.mrf.mxu0
        %v1086 = vadd.f32 %v455, %v1085
        %v1087 = vpop.f32.mrf.mxu0
        %v1088 = vadd.f32 %v455, %v1087
        %1089 = vmatmul.bf16.gmra.mxu0 %v623
        %v1090 = vpop.f32.mrf.mxu0
        %v1091 = vadd.f32 %v455, %v1090
        %v1092 = vpop.f32.mrf.mxu0
        %v1093 = vadd.f32 %v455, %v1092
        %1094 = vmatmul.bf16.gmra.mxu0 %v626
        %v1095 = vpop.f32.mrf.mxu0
        %v1096 = vadd.f32 %v455, %v1095
        %v1097 = vpop.f32.mrf.mxu0
        %v1098 = vadd.f32 %v455, %v1097
        %1099 = vmatmul.bf16.gmra.mxu0 %v629
        %v1100 = vpop.f32.mrf.mxu0
        %v1101 = vadd.f32 %v455, %v1100
        %v1102 = vpop.f32.mrf.mxu0
        %v1103 = vadd.f32 %v455, %v1102
        %1104 = vmatmul.bf16.gmra.mxu0 %v632
        %v1105 = vpop.f32.mrf.mxu0
        %v1106 = vadd.f32 %v455, %v1105
        %v1107 = vpop.f32.mrf.mxu0
        %v1108 = vadd.f32 %v455, %v1107
        %1109 = vmatmul.bf16.gmra.mxu0 %v635
        %v1110 = vpop.f32.mrf.mxu0
        %v1111 = vadd.f32 %v455, %v1110
        %v1112 = vpop.f32.mrf.mxu0
        %v1113 = vadd.f32 %v455, %v1112
        %1114 = vdwg.mxu0
        %1115 = vmatpush.bf16.msra.mxu0 0
        %1116 = vmatpush.bf16.msra.mxu0 0
        %1117 = vmatpush.bf16.msra.mxu0 0
        %1118 = vmatpush.bf16.msra.mxu0 0
        %1119 = vmatpush.bf16.msra.mxu0 0
        %1120 = vmatpush.bf16.msra.mxu0 0
        %1121 = vmatpush.bf16.msra.mxu0 0
        %1122 = vmatpush.bf16.msra.mxu0 %v648
        %1123 = vmatmul.bf16.gmra.mxu0 %v590
        %v1124 = vpop.f32.mrf.mxu0
        %v1125 = vadd.f32 %v456, %v1124
        %v1126 = vpop.f32.mrf.mxu0
        %v1127 = vadd.f32 %v456, %v1126
        %1128 = vmatmul.bf16.gmra.mxu0 %v593
        %v1129 = vpop.f32.mrf.mxu0
        %v1130 = vadd.f32 %v456, %v1129
        %v1131 = vpop.f32.mrf.mxu0
        %v1132 = vadd.f32 %v456, %v1131
        %1133 = vmatmul.bf16.gmra.mxu0 %v596
        %v1134 = vpop.f32.mrf.mxu0
        %v1135 = vadd.f32 %v456, %v1134
        %v1136 = vpop.f32.mrf.mxu0
        %v1137 = vadd.f32 %v456, %v1136
        %1138 = vmatmul.bf16.gmra.mxu0 %v599
        %v1139 = vpop.f32.mrf.mxu0
        %v1140 = vadd.f32 %v456, %v1139
        %v1141 = vpop.f32.mrf.mxu0
        %v1142 = vadd.f32 %v456, %v1141
        %1143 = vmatmul.bf16.gmra.mxu0 %v602
        %v1144 = vpop.f32.mrf.mxu0
        %v1145 = vadd.f32 %v456, %v1144
        %v1146 = vpop.f32.mrf.mxu0
        %v1147 = vadd.f32 %v456, %v1146
        %1148 = vmatmul.bf16.gmra.mxu0 %v605
        %v1149 = vpop.f32.mrf.mxu0
        %v1150 = vadd.f32 %v456, %v1149
        %v1151 = vpop.f32.mrf.mxu0
        %v1152 = vadd.f32 %v456, %v1151
        %1153 = vmatmul.bf16.gmra.mxu0 %v608
        %v1154 = vpop.f32.mrf.mxu0
        %v1155 = vadd.f32 %v456, %v1154
        %v1156 = vpop.f32.mrf.mxu0
        %v1157 = vadd.f32 %v456, %v1156
        %1158 = vmatmul.bf16.gmra.mxu0 %v611
        %v1159 = vpop.f32.mrf.mxu0
        %v1160 = vadd.f32 %v456, %v1159
        %v1161 = vpop.f32.mrf.mxu0
        %v1162 = vadd.f32 %v456, %v1161
        %1163 = vmatmul.bf16.gmra.mxu0 %v614
        %v1164 = vpop.f32.mrf.mxu0
        %v1165 = vadd.f32 %v456, %v1164
        %v1166 = vpop.f32.mrf.mxu0
        %v1167 = vadd.f32 %v456, %v1166
        %1168 = vmatmul.bf16.gmra.mxu0 %v617
        %v1169 = vpop.f32.mrf.mxu0
        %v1170 = vadd.f32 %v456, %v1169
        %v1171 = vpop.f32.mrf.mxu0
        %v1172 = vadd.f32 %v456, %v1171
        %1173 = vmatmul.bf16.gmra.mxu0 %v620
        %v1174 = vpop.f32.mrf.mxu0
        %v1175 = vadd.f32 %v456, %v1174
        %v1176 = vpop.f32.mrf.mxu0
        %v1177 = vadd.f32 %v456, %v1176
        %1178 = vmatmul.bf16.gmra.mxu0 %v623
        %v1179 = vpop.f32.mrf.mxu0
        %v1180 = vadd.f32 %v456, %v1179
        %v1181 = vpop.f32.mrf.mxu0
        %v1182 = vadd.f32 %v456, %v1181
        %1183 = vmatmul.bf16.gmra.mxu0 %v626
        %v1184 = vpop.f32.mrf.mxu0
        %v1185 = vadd.f32 %v456, %v1184
        %v1186 = vpop.f32.mrf.mxu0
        %v1187 = vadd.f32 %v456, %v1186
        %1188 = vmatmul.bf16.gmra.mxu0 %v629
        %v1189 = vpop.f32.mrf.mxu0
        %v1190 = vadd.f32 %v456, %v1189
        %v1191 = vpop.f32.mrf.mxu0
        %v1192 = vadd.f32 %v456, %v1191
        %1193 = vmatmul.bf16.gmra.mxu0 %v632
        %v1194 = vpop.f32.mrf.mxu0
        %v1195 = vadd.f32 %v456, %v1194
        %v1196 = vpop.f32.mrf.mxu0
        %v1197 = vadd.f32 %v456, %v1196
        %1198 = vmatmul.bf16.gmra.mxu0 %v635
        %v1199 = vpop.f32.mrf.mxu0
        %v1200 = vadd.f32 %v456, %v1199
        %v1201 = vpop.f32.mrf.mxu0
        %v1202 = vadd.f32 %v456, %v1201
        %1203 = vdwg.mxu0
        %1204 = vmatpush.bf16.msra.mxu0 0
        %1205 = vmatpush.bf16.msra.mxu0 0
        %1206 = vmatpush.bf16.msra.mxu0 0
        %1207 = vmatpush.bf16.msra.mxu0 0
        %1208 = vmatpush.bf16.msra.mxu0 0
        %1209 = vmatpush.bf16.msra.mxu0 0
        %1210 = vmatpush.bf16.msra.mxu0 0
        %1211 = vmatpush.bf16.msra.mxu0 %v650
        %1212 = vmatmul.bf16.gmra.mxu0 %v590
        %v1213 = vpop.f32.mrf.mxu0
        %v1214 = vadd.f32 %v457, %v1213
        %v1215 = vpop.f32.mrf.mxu0
        %v1216 = vadd.f32 %v457, %v1215
        %1217 = vmatmul.bf16.gmra.mxu0 %v593
        %v1218 = vpop.f32.mrf.mxu0
        %v1219 = vadd.f32 %v457, %v1218
        %v1220 = vpop.f32.mrf.mxu0
        %v1221 = vadd.f32 %v457, %v1220
        %1222 = vmatmul.bf16.gmra.mxu0 %v596
        %v1223 = vpop.f32.mrf.mxu0
        %v1224 = vadd.f32 %v457, %v1223
        %v1225 = vpop.f32.mrf.mxu0
        %v1226 = vadd.f32 %v457, %v1225
        %1227 = vmatmul.bf16.gmra.mxu0 %v599
        %v1228 = vpop.f32.mrf.mxu0
        %v1229 = vadd.f32 %v457, %v1228
        %v1230 = vpop.f32.mrf.mxu0
        %v1231 = vadd.f32 %v457, %v1230
        %1232 = vmatmul.bf16.gmra.mxu0 %v602
        %v1233 = vpop.f32.mrf.mxu0
        %v1234 = vadd.f32 %v457, %v1233
        %v1235 = vpop.f32.mrf.mxu0
        %v1236 = vadd.f32 %v457, %v1235
        %1237 = vmatmul.bf16.gmra.mxu0 %v605
        %v1238 = vpop.f32.mrf.mxu0
        %v1239 = vadd.f32 %v457, %v1238
        %v1240 = vpop.f32.mrf.mxu0
        %v1241 = vadd.f32 %v457, %v1240
        %1242 = vmatmul.bf16.gmra.mxu0 %v608
        %v1243 = vpop.f32.mrf.mxu0
        %v1244 = vadd.f32 %v457, %v1243
        %v1245 = vpop.f32.mrf.mxu0
        %v1246 = vadd.f32 %v457, %v1245
        %1247 = vmatmul.bf16.gmra.mxu0 %v611
        %v1248 = vpop.f32.mrf.mxu0
        %v1249 = vadd.f32 %v457, %v1248
        %v1250 = vpop.f32.mrf.mxu0
        %v1251 = vadd.f32 %v457, %v1250
        %1252 = vmatmul.bf16.gmra.mxu0 %v614
        %v1253 = vpop.f32.mrf.mxu0
        %v1254 = vadd.f32 %v457, %v1253
        %v1255 = vpop.f32.mrf.mxu0
        %v1256 = vadd.f32 %v457, %v1255
        %1257 = vmatmul.bf16.gmra.mxu0 %v617
        %v1258 = vpop.f32.mrf.mxu0
        %v1259 = vadd.f32 %v457, %v1258
        %v1260 = vpop.f32.mrf.mxu0
        %v1261 = vadd.f32 %v457, %v1260
        %1262 = vmatmul.bf16.gmra.mxu0 %v620
        %v1263 = vpop.f32.mrf.mxu0
        %v1264 = vadd.f32 %v457, %v1263
        %v1265 = vpop.f32.mrf.mxu0
        %v1266 = vadd.f32 %v457, %v1265
        %1267 = vmatmul.bf16.gmra.mxu0 %v623
        %v1268 = vpop.f32.mrf.mxu0
        %v1269 = vadd.f32 %v457, %v1268
        %v1270 = vpop.f32.mrf.mxu0
        %v1271 = vadd.f32 %v457, %v1270
        %1272 = vmatmul.bf16.gmra.mxu0 %v626
        %v1273 = vpop.f32.mrf.mxu0
        %v1274 = vadd.f32 %v457, %v1273
        %v1275 = vpop.f32.mrf.mxu0
        %v1276 = vadd.f32 %v457, %v1275
        %1277 = vmatmul.bf16.gmra.mxu0 %v629
        %v1278 = vpop.f32.mrf.mxu0
        %v1279 = vadd.f32 %v457, %v1278
        %v1280 = vpop.f32.mrf.mxu0
        %v1281 = vadd.f32 %v457, %v1280
        %1282 = vmatmul.bf16.gmra.mxu0 %v632
        %v1283 = vpop.f32.mrf.mxu0
        %v1284 = vadd.f32 %v457, %v1283
        %v1285 = vpop.f32.mrf.mxu0
        %v1286 = vadd.f32 %v457, %v1285
        %1287 = vmatmul.bf16.gmra.mxu0 %v635
        %v1288 = vpop.f32.mrf.mxu0
        %v1289 = vadd.f32 %v457, %v1288
        %v1290 = vpop.f32.mrf.mxu0
        %v1291 = vadd.f32 %v457, %v1290
        %1292 = vdwg.mxu0
        %1293 = vmatpush.bf16.msra.mxu0 0
        %1294 = vmatpush.bf16.msra.mxu0 0
        %1295 = vmatpush.bf16.msra.mxu0 0
        %1296 = vmatpush.bf16.msra.mxu0 0
        %1297 = vmatpush.bf16.msra.mxu0 0
        %1298 = vmatpush.bf16.msra.mxu0 0
        %1299 = vmatpush.bf16.msra.mxu0 0
        %1300 = vmatpush.bf16.msra.mxu0 %v652
        %1301 = vmatmul.bf16.gmra.mxu0 %v590
        %v1302 = vpop.f32.mrf.mxu0
        %v1303 = vadd.f32 %v458, %v1302
        %v1304 = vpop.f32.mrf.mxu0
        %v1305 = vadd.f32 %v458, %v1304
        %1306 = vmatmul.bf16.gmra.mxu0 %v593
        %v1307 = vpop.f32.mrf.mxu0
        %v1308 = vadd.f32 %v458, %v1307
        %v1309 = vpop.f32.mrf.mxu0
        %v1310 = vadd.f32 %v458, %v1309
        %1311 = vmatmul.bf16.gmra.mxu0 %v596
        %v1312 = vpop.f32.mrf.mxu0
        %v1313 = vadd.f32 %v458, %v1312
        %v1314 = vpop.f32.mrf.mxu0
        %v1315 = vadd.f32 %v458, %v1314
        %1316 = vmatmul.bf16.gmra.mxu0 %v599
        %v1317 = vpop.f32.mrf.mxu0
        %v1318 = vadd.f32 %v458, %v1317
        %v1319 = vpop.f32.mrf.mxu0
        %v1320 = vadd.f32 %v458, %v1319
        %1321 = vmatmul.bf16.gmra.mxu0 %v602
        %v1322 = vpop.f32.mrf.mxu0
        %v1323 = vadd.f32 %v458, %v1322
        %v1324 = vpop.f32.mrf.mxu0
        %v1325 = vadd.f32 %v458, %v1324
        %1326 = vmatmul.bf16.gmra.mxu0 %v605
        %v1327 = vpop.f32.mrf.mxu0
        %v1328 = vadd.f32 %v458, %v1327
        %v1329 = vpop.f32.mrf.mxu0
        %v1330 = vadd.f32 %v458, %v1329
        %1331 = vmatmul.bf16.gmra.mxu0 %v608
        %v1332 = vpop.f32.mrf.mxu0
        %v1333 = vadd.f32 %v458, %v1332
        %v1334 = vpop.f32.mrf.mxu0
        %v1335 = vadd.f32 %v458, %v1334
        %1336 = vmatmul.bf16.gmra.mxu0 %v611
        %v1337 = vpop.f32.mrf.mxu0
        %v1338 = vadd.f32 %v458, %v1337
        %v1339 = vpop.f32.mrf.mxu0
        %v1340 = vadd.f32 %v458, %v1339
        %1341 = vmatmul.bf16.gmra.mxu0 %v614
        %v1342 = vpop.f32.mrf.mxu0
        %v1343 = vadd.f32 %v458, %v1342
        %v1344 = vpop.f32.mrf.mxu0
        %v1345 = vadd.f32 %v458, %v1344
        %1346 = vmatmul.bf16.gmra.mxu0 %v617
        %v1347 = vpop.f32.mrf.mxu0
        %v1348 = vadd.f32 %v458, %v1347
        %v1349 = vpop.f32.mrf.mxu0
        %v1350 = vadd.f32 %v458, %v1349
        %1351 = vmatmul.bf16.gmra.mxu0 %v620
        %v1352 = vpop.f32.mrf.mxu0
        %v1353 = vadd.f32 %v458, %v1352
        %v1354 = vpop.f32.mrf.mxu0
        %v1355 = vadd.f32 %v458, %v1354
        %1356 = vmatmul.bf16.gmra.mxu0 %v623
        %v1357 = vpop.f32.mrf.mxu0
        %v1358 = vadd.f32 %v458, %v1357
        %v1359 = vpop.f32.mrf.mxu0
        %v1360 = vadd.f32 %v458, %v1359
        %1361 = vmatmul.bf16.gmra.mxu0 %v626
        %v1362 = vpop.f32.mrf.mxu0
        %v1363 = vadd.f32 %v458, %v1362
        %v1364 = vpop.f32.mrf.mxu0
        %v1365 = vadd.f32 %v458, %v1364
        %1366 = vmatmul.bf16.gmra.mxu0 %v629
        %v1367 = vpop.f32.mrf.mxu0
        %v1368 = vadd.f32 %v458, %v1367
        %v1369 = vpop.f32.mrf.mxu0
        %v1370 = vadd.f32 %v458, %v1369
        %1371 = vmatmul.bf16.gmra.mxu0 %v632
        %v1372 = vpop.f32.mrf.mxu0
        %v1373 = vadd.f32 %v458, %v1372
        %v1374 = vpop.f32.mrf.mxu0
        %v1375 = vadd.f32 %v458, %v1374
        %1376 = vmatmul.bf16.gmra.mxu0 %v635
        %v1377 = vpop.f32.mrf.mxu0
        %v1378 = vadd.f32 %v458, %v1377
        %v1379 = vpop.f32.mrf.mxu0
        %v1380 = vadd.f32 %v458, %v1379
        %1381 = vdwg.mxu0
        %1382 = vmatpush.bf16.msra.mxu0 0
        %1383 = vmatpush.bf16.msra.mxu0 0
        %1384 = vmatpush.bf16.msra.mxu0 0
        %1385 = vmatpush.bf16.msra.mxu0 0
        %1386 = vmatpush.bf16.msra.mxu0 0
        %1387 = vmatpush.bf16.msra.mxu0 0
        %1388 = vmatpush.bf16.msra.mxu0 0
        %1389 = vmatpush.bf16.msra.mxu0 %v654
        %1390 = vmatmul.bf16.gmra.mxu0 %v590
        %v1391 = vpop.f32.mrf.mxu0
        %v1392 = vadd.f32 %v459, %v1391
        %v1393 = vpop.f32.mrf.mxu0
        %v1394 = vadd.f32 %v459, %v1393
        %1395 = vmatmul.bf16.gmra.mxu0 %v593
        %v1396 = vpop.f32.mrf.mxu0
        %v1397 = vadd.f32 %v459, %v1396
        %v1398 = vpop.f32.mrf.mxu0
        %v1399 = vadd.f32 %v459, %v1398
        %1400 = vmatmul.bf16.gmra.mxu0 %v596
        %v1401 = vpop.f32.mrf.mxu0
        %v1402 = vadd.f32 %v459, %v1401
        %v1403 = vpop.f32.mrf.mxu0
        %v1404 = vadd.f32 %v459, %v1403
        %1405 = vmatmul.bf16.gmra.mxu0 %v599
        %v1406 = vpop.f32.mrf.mxu0
        %v1407 = vadd.f32 %v459, %v1406
        %v1408 = vpop.f32.mrf.mxu0
        %v1409 = vadd.f32 %v459, %v1408
        %1410 = vmatmul.bf16.gmra.mxu0 %v602
        %v1411 = vpop.f32.mrf.mxu0
        %v1412 = vadd.f32 %v459, %v1411
        %v1413 = vpop.f32.mrf.mxu0
        %v1414 = vadd.f32 %v459, %v1413
        %1415 = vmatmul.bf16.gmra.mxu0 %v605
        %v1416 = vpop.f32.mrf.mxu0
        %v1417 = vadd.f32 %v459, %v1416
        %v1418 = vpop.f32.mrf.mxu0
        %v1419 = vadd.f32 %v459, %v1418
        %1420 = vmatmul.bf16.gmra.mxu0 %v608
        %v1421 = vpop.f32.mrf.mxu0
        %v1422 = vadd.f32 %v459, %v1421
        %v1423 = vpop.f32.mrf.mxu0
        %v1424 = vadd.f32 %v459, %v1423
        %1425 = vmatmul.bf16.gmra.mxu0 %v611
        %v1426 = vpop.f32.mrf.mxu0
        %v1427 = vadd.f32 %v459, %v1426
        %v1428 = vpop.f32.mrf.mxu0
        %v1429 = vadd.f32 %v459, %v1428
        %1430 = vmatmul.bf16.gmra.mxu0 %v614
        %v1431 = vpop.f32.mrf.mxu0
        %v1432 = vadd.f32 %v459, %v1431
        %v1433 = vpop.f32.mrf.mxu0
        %v1434 = vadd.f32 %v459, %v1433
        %1435 = vmatmul.bf16.gmra.mxu0 %v617
        %v1436 = vpop.f32.mrf.mxu0
        %v1437 = vadd.f32 %v459, %v1436
        %v1438 = vpop.f32.mrf.mxu0
        %v1439 = vadd.f32 %v459, %v1438
        %1440 = vmatmul.bf16.gmra.mxu0 %v620
        %v1441 = vpop.f32.mrf.mxu0
        %v1442 = vadd.f32 %v459, %v1441
        %v1443 = vpop.f32.mrf.mxu0
        %v1444 = vadd.f32 %v459, %v1443
        %1445 = vmatmul.bf16.gmra.mxu0 %v623
        %v1446 = vpop.f32.mrf.mxu0
        %v1447 = vadd.f32 %v459, %v1446
        %v1448 = vpop.f32.mrf.mxu0
        %v1449 = vadd.f32 %v459, %v1448
        %1450 = vmatmul.bf16.gmra.mxu0 %v626
        %v1451 = vpop.f32.mrf.mxu0
        %v1452 = vadd.f32 %v459, %v1451
        %v1453 = vpop.f32.mrf.mxu0
        %v1454 = vadd.f32 %v459, %v1453
        %1455 = vmatmul.bf16.gmra.mxu0 %v629
        %v1456 = vpop.f32.mrf.mxu0
        %v1457 = vadd.f32 %v459, %v1456
        %v1458 = vpop.f32.mrf.mxu0
        %v1459 = vadd.f32 %v459, %v1458
        %1460 = vmatmul.bf16.gmra.mxu0 %v632
        %v1461 = vpop.f32.mrf.mxu0
        %v1462 = vadd.f32 %v459, %v1461
        %v1463 = vpop.f32.mrf.mxu0
        %v1464 = vadd.f32 %v459, %v1463
        %1465 = vmatmul.bf16.gmra.mxu0 %v635
        %v1466 = vpop.f32.mrf.mxu0
        %v1467 = vadd.f32 %v459, %v1466
        %v1468 = vpop.f32.mrf.mxu0
        %v1469 = vadd.f32 %v459, %v1468
        %1470 = vdwg.mxu0
        %1471 = vmatpush.bf16.msra.mxu0 0
        %1472 = vmatpush.bf16.msra.mxu0 0
        %1473 = vmatpush.bf16.msra.mxu0 0
        %1474 = vmatpush.bf16.msra.mxu0 0
        %1475 = vmatpush.bf16.msra.mxu0 0
        %1476 = vmatpush.bf16.msra.mxu0 0
        %1477 = vmatpush.bf16.msra.mxu0 0
        %1478 = vmatpush.bf16.msra.mxu0 %v656
        %1479 = vmatmul.bf16.gmra.mxu0 %v590
        %v1480 = vpop.f32.mrf.mxu0
        %v1481 = vadd.f32 %v460, %v1480
        %v1482 = vpop.f32.mrf.mxu0
        %v1483 = vadd.f32 %v460, %v1482
        %1484 = vmatmul.bf16.gmra.mxu0 %v593
        %v1485 = vpop.f32.mrf.mxu0
        %v1486 = vadd.f32 %v460, %v1485
        %v1487 = vpop.f32.mrf.mxu0
        %v1488 = vadd.f32 %v460, %v1487
        %1489 = vmatmul.bf16.gmra.mxu0 %v596
        %v1490 = vpop.f32.mrf.mxu0
        %v1491 = vadd.f32 %v460, %v1490
        %v1492 = vpop.f32.mrf.mxu0
        %v1493 = vadd.f32 %v460, %v1492
        %1494 = vmatmul.bf16.gmra.mxu0 %v599
        %v1495 = vpop.f32.mrf.mxu0
        %v1496 = vadd.f32 %v460, %v1495
        %v1497 = vpop.f32.mrf.mxu0
        %v1498 = vadd.f32 %v460, %v1497
        %1499 = vmatmul.bf16.gmra.mxu0 %v602
        %v1500 = vpop.f32.mrf.mxu0
        %v1501 = vadd.f32 %v460, %v1500
        %v1502 = vpop.f32.mrf.mxu0
        %v1503 = vadd.f32 %v460, %v1502
        %1504 = vmatmul.bf16.gmra.mxu0 %v605
        %v1505 = vpop.f32.mrf.mxu0
        %v1506 = vadd.f32 %v460, %v1505
        %v1507 = vpop.f32.mrf.mxu0
        %v1508 = vadd.f32 %v460, %v1507
        %1509 = vmatmul.bf16.gmra.mxu0 %v608
        %v1510 = vpop.f32.mrf.mxu0
        %v1511 = vadd.f32 %v460, %v1510
        %v1512 = vpop.f32.mrf.mxu0
        %v1513 = vadd.f32 %v460, %v1512
        %1514 = vmatmul.bf16.gmra.mxu0 %v611
        %v1515 = vpop.f32.mrf.mxu0
        %v1516 = vadd.f32 %v460, %v1515
        %v1517 = vpop.f32.mrf.mxu0
        %v1518 = vadd.f32 %v460, %v1517
        %1519 = vmatmul.bf16.gmra.mxu0 %v614
        %v1520 = vpop.f32.mrf.mxu0
        %v1521 = vadd.f32 %v460, %v1520
        %v1522 = vpop.f32.mrf.mxu0
        %v1523 = vadd.f32 %v460, %v1522
        %1524 = vmatmul.bf16.gmra.mxu0 %v617
        %v1525 = vpop.f32.mrf.mxu0
        %v1526 = vadd.f32 %v460, %v1525
        %v1527 = vpop.f32.mrf.mxu0
        %v1528 = vadd.f32 %v460, %v1527
        %1529 = vmatmul.bf16.gmra.mxu0 %v620
        %v1530 = vpop.f32.mrf.mxu0
        %v1531 = vadd.f32 %v460, %v1530
        %v1532 = vpop.f32.mrf.mxu0
        %v1533 = vadd.f32 %v460, %v1532
        %1534 = vmatmul.bf16.gmra.mxu0 %v623
        %v1535 = vpop.f32.mrf.mxu0
        %v1536 = vadd.f32 %v460, %v1535
        %v1537 = vpop.f32.mrf.mxu0
        %v1538 = vadd.f32 %v460, %v1537
        %1539 = vmatmul.bf16.gmra.mxu0 %v626
        %v1540 = vpop.f32.mrf.mxu0
        %v1541 = vadd.f32 %v460, %v1540
        %v1542 = vpop.f32.mrf.mxu0
        %v1543 = vadd.f32 %v460, %v1542
        %1544 = vmatmul.bf16.gmra.mxu0 %v629
        %v1545 = vpop.f32.mrf.mxu0
        %v1546 = vadd.f32 %v460, %v1545
        %v1547 = vpop.f32.mrf.mxu0
        %v1548 = vadd.f32 %v460, %v1547
        %1549 = vmatmul.bf16.gmra.mxu0 %v632
        %v1550 = vpop.f32.mrf.mxu0
        %v1551 = vadd.f32 %v460, %v1550
        %v1552 = vpop.f32.mrf.mxu0
        %v1553 = vadd.f32 %v460, %v1552
        %1554 = vmatmul.bf16.gmra.mxu0 %v635
        %v1555 = vpop.f32.mrf.mxu0
        %v1556 = vadd.f32 %v460, %v1555
        %v1557 = vpop.f32.mrf.mxu0
        %v1558 = vadd.f32 %v460, %v1557
        %1559 = vdwg.mxu0
        %1560 = vmatpush.bf16.msra.mxu0 0
        %1561 = vmatpush.bf16.msra.mxu0 0
        %1562 = vmatpush.bf16.msra.mxu0 0
        %1563 = vmatpush.bf16.msra.mxu0 0
        %1564 = vmatpush.bf16.msra.mxu0 0
        %1565 = vmatpush.bf16.msra.mxu0 0
        %1566 = vmatpush.bf16.msra.mxu0 0
        %1567 = vmatpush.bf16.msra.mxu0 %v658
        %1568 = vmatmul.bf16.gmra.mxu0 %v590
        %v1569 = vpop.f32.mrf.mxu0
        %v1570 = vadd.f32 %v461, %v1569
        %v1571 = vpop.f32.mrf.mxu0
        %v1572 = vadd.f32 %v461, %v1571
        %1573 = vmatmul.bf16.gmra.mxu0 %v593
        %v1574 = vpop.f32.mrf.mxu0
        %v1575 = vadd.f32 %v461, %v1574
        %v1576 = vpop.f32.mrf.mxu0
        %v1577 = vadd.f32 %v461, %v1576
        %1578 = vmatmul.bf16.gmra.mxu0 %v596
        %v1579 = vpop.f32.mrf.mxu0
        %v1580 = vadd.f32 %v461, %v1579
        %v1581 = vpop.f32.mrf.mxu0
        %v1582 = vadd.f32 %v461, %v1581
        %1583 = vmatmul.bf16.gmra.mxu0 %v599
        %v1584 = vpop.f32.mrf.mxu0
        %v1585 = vadd.f32 %v461, %v1584
        %v1586 = vpop.f32.mrf.mxu0
        %v1587 = vadd.f32 %v461, %v1586
        %1588 = vmatmul.bf16.gmra.mxu0 %v602
        %v1589 = vpop.f32.mrf.mxu0
        %v1590 = vadd.f32 %v461, %v1589
        %v1591 = vpop.f32.mrf.mxu0
        %v1592 = vadd.f32 %v461, %v1591
        %1593 = vmatmul.bf16.gmra.mxu0 %v605
        %v1594 = vpop.f32.mrf.mxu0
        %v1595 = vadd.f32 %v461, %v1594
        %v1596 = vpop.f32.mrf.mxu0
        %v1597 = vadd.f32 %v461, %v1596
        %1598 = vmatmul.bf16.gmra.mxu0 %v608
        %v1599 = vpop.f32.mrf.mxu0
        %v1600 = vadd.f32 %v461, %v1599
        %v1601 = vpop.f32.mrf.mxu0
        %v1602 = vadd.f32 %v461, %v1601
        %1603 = vmatmul.bf16.gmra.mxu0 %v611
        %v1604 = vpop.f32.mrf.mxu0
        %v1605 = vadd.f32 %v461, %v1604
        %v1606 = vpop.f32.mrf.mxu0
        %v1607 = vadd.f32 %v461, %v1606
        %1608 = vmatmul.bf16.gmra.mxu0 %v614
        %v1609 = vpop.f32.mrf.mxu0
        %v1610 = vadd.f32 %v461, %v1609
        %v1611 = vpop.f32.mrf.mxu0
        %v1612 = vadd.f32 %v461, %v1611
        %1613 = vmatmul.bf16.gmra.mxu0 %v617
        %v1614 = vpop.f32.mrf.mxu0
        %v1615 = vadd.f32 %v461, %v1614
        %v1616 = vpop.f32.mrf.mxu0
        %v1617 = vadd.f32 %v461, %v1616
        %1618 = vmatmul.bf16.gmra.mxu0 %v620
        %v1619 = vpop.f32.mrf.mxu0
        %v1620 = vadd.f32 %v461, %v1619
        %v1621 = vpop.f32.mrf.mxu0
        %v1622 = vadd.f32 %v461, %v1621
        %1623 = vmatmul.bf16.gmra.mxu0 %v623
        %v1624 = vpop.f32.mrf.mxu0
        %v1625 = vadd.f32 %v461, %v1624
        %v1626 = vpop.f32.mrf.mxu0
        %v1627 = vadd.f32 %v461, %v1626
        %1628 = vmatmul.bf16.gmra.mxu0 %v626
        %v1629 = vpop.f32.mrf.mxu0
        %v1630 = vadd.f32 %v461, %v1629
        %v1631 = vpop.f32.mrf.mxu0
        %v1632 = vadd.f32 %v461, %v1631
        %1633 = vmatmul.bf16.gmra.mxu0 %v629
        %v1634 = vpop.f32.mrf.mxu0
        %v1635 = vadd.f32 %v461, %v1634
        %v1636 = vpop.f32.mrf.mxu0
        %v1637 = vadd.f32 %v461, %v1636
        %1638 = vmatmul.bf16.gmra.mxu0 %v632
        %v1639 = vpop.f32.mrf.mxu0
        %v1640 = vadd.f32 %v461, %v1639
        %v1641 = vpop.f32.mrf.mxu0
        %v1642 = vadd.f32 %v461, %v1641
        %1643 = vmatmul.bf16.gmra.mxu0 %v635
        %v1644 = vpop.f32.mrf.mxu0
        %v1645 = vadd.f32 %v461, %v1644
        %v1646 = vpop.f32.mrf.mxu0
        %v1647 = vadd.f32 %v461, %v1646
        %1648 = vdwg.mxu0
        %1649 = vmatpush.bf16.msra.mxu0 0
        %1650 = vmatpush.bf16.msra.mxu0 0
        %1651 = vmatpush.bf16.msra.mxu0 0
        %1652 = vmatpush.bf16.msra.mxu0 0
        %1653 = vmatpush.bf16.msra.mxu0 0
        %1654 = vmatpush.bf16.msra.mxu0 0
        %1655 = vmatpush.bf16.msra.mxu0 0
        %1656 = vmatpush.bf16.msra.mxu0 %v660
        %1657 = vmatmul.bf16.gmra.mxu0 %v590
        %v1658 = vpop.f32.mrf.mxu0
        %v1659 = vadd.f32 %v462, %v1658
        %v1660 = vpop.f32.mrf.mxu0
        %v1661 = vadd.f32 %v462, %v1660
        %1662 = vmatmul.bf16.gmra.mxu0 %v593
        %v1663 = vpop.f32.mrf.mxu0
        %v1664 = vadd.f32 %v462, %v1663
        %v1665 = vpop.f32.mrf.mxu0
        %v1666 = vadd.f32 %v462, %v1665
        %1667 = vmatmul.bf16.gmra.mxu0 %v596
        %v1668 = vpop.f32.mrf.mxu0
        %v1669 = vadd.f32 %v462, %v1668
        %v1670 = vpop.f32.mrf.mxu0
        %v1671 = vadd.f32 %v462, %v1670
        %1672 = vmatmul.bf16.gmra.mxu0 %v599
        %v1673 = vpop.f32.mrf.mxu0
        %v1674 = vadd.f32 %v462, %v1673
        %v1675 = vpop.f32.mrf.mxu0
        %v1676 = vadd.f32 %v462, %v1675
        %1677 = vmatmul.bf16.gmra.mxu0 %v602
        %v1678 = vpop.f32.mrf.mxu0
        %v1679 = vadd.f32 %v462, %v1678
        %v1680 = vpop.f32.mrf.mxu0
        %v1681 = vadd.f32 %v462, %v1680
        %1682 = vmatmul.bf16.gmra.mxu0 %v605
        %v1683 = vpop.f32.mrf.mxu0
        %v1684 = vadd.f32 %v462, %v1683
        %v1685 = vpop.f32.mrf.mxu0
        %v1686 = vadd.f32 %v462, %v1685
        %1687 = vmatmul.bf16.gmra.mxu0 %v608
        %v1688 = vpop.f32.mrf.mxu0
        %v1689 = vadd.f32 %v462, %v1688
        %v1690 = vpop.f32.mrf.mxu0
        %v1691 = vadd.f32 %v462, %v1690
        %1692 = vmatmul.bf16.gmra.mxu0 %v611
        %v1693 = vpop.f32.mrf.mxu0
        %v1694 = vadd.f32 %v462, %v1693
        %v1695 = vpop.f32.mrf.mxu0
        %v1696 = vadd.f32 %v462, %v1695
        %1697 = vmatmul.bf16.gmra.mxu0 %v614
        %v1698 = vpop.f32.mrf.mxu0
        %v1699 = vadd.f32 %v462, %v1698
        %v1700 = vpop.f32.mrf.mxu0
        %v1701 = vadd.f32 %v462, %v1700
        %1702 = vmatmul.bf16.gmra.mxu0 %v617
        %v1703 = vpop.f32.mrf.mxu0
        %v1704 = vadd.f32 %v462, %v1703
        %v1705 = vpop.f32.mrf.mxu0
        %v1706 = vadd.f32 %v462, %v1705
        %1707 = vmatmul.bf16.gmra.mxu0 %v620
        %v1708 = vpop.f32.mrf.mxu0
        %v1709 = vadd.f32 %v462, %v1708
        %v1710 = vpop.f32.mrf.mxu0
        %v1711 = vadd.f32 %v462, %v1710
        %1712 = vmatmul.bf16.gmra.mxu0 %v623
        %v1713 = vpop.f32.mrf.mxu0
        %v1714 = vadd.f32 %v462, %v1713
        %v1715 = vpop.f32.mrf.mxu0
        %v1716 = vadd.f32 %v462, %v1715
        %1717 = vmatmul.bf16.gmra.mxu0 %v626
        %v1718 = vpop.f32.mrf.mxu0
        %v1719 = vadd.f32 %v462, %v1718
        %v1720 = vpop.f32.mrf.mxu0
        %v1721 = vadd.f32 %v462, %v1720
        %1722 = vmatmul.bf16.gmra.mxu0 %v629
        %v1723 = vpop.f32.mrf.mxu0
        %v1724 = vadd.f32 %v462, %v1723
        %v1725 = vpop.f32.mrf.mxu0
        %v1726 = vadd.f32 %v462, %v1725
        %1727 = vmatmul.bf16.gmra.mxu0 %v632
        %v1728 = vpop.f32.mrf.mxu0
        %v1729 = vadd.f32 %v462, %v1728
        %v1730 = vpop.f32.mrf.mxu0
        %v1731 = vadd.f32 %v462, %v1730
        %1732 = vmatmul.bf16.gmra.mxu0 %v635
        %v1733 = vpop.f32.mrf.mxu0
        %v1734 = vadd.f32 %v462, %v1733
        %v1735 = vpop.f32.mrf.mxu0
        %v1736 = vadd.f32 %v462, %v1735
        %1737 = vdwg.mxu0
        %1738 = vmatpush.bf16.msra.mxu0 0
        %1739 = vmatpush.bf16.msra.mxu0 0
        %1740 = vmatpush.bf16.msra.mxu0 0
        %1741 = vmatpush.bf16.msra.mxu0 0
        %1742 = vmatpush.bf16.msra.mxu0 0
        %1743 = vmatpush.bf16.msra.mxu0 0
        %1744 = vmatpush.bf16.msra.mxu0 0
        %1745 = vmatpush.bf16.msra.mxu0 %v662
        %1746 = vmatmul.bf16.gmra.mxu0 %v590
        %v1747 = vpop.f32.mrf.mxu0
        %v1748 = vadd.f32 %v463, %v1747
        %v1749 = vpop.f32.mrf.mxu0
        %v1750 = vadd.f32 %v463, %v1749
        %1751 = vmatmul.bf16.gmra.mxu0 %v593
        %v1752 = vpop.f32.mrf.mxu0
        %v1753 = vadd.f32 %v463, %v1752
        %v1754 = vpop.f32.mrf.mxu0
        %v1755 = vadd.f32 %v463, %v1754
        %1756 = vmatmul.bf16.gmra.mxu0 %v596
        %v1757 = vpop.f32.mrf.mxu0
        %v1758 = vadd.f32 %v463, %v1757
        %v1759 = vpop.f32.mrf.mxu0
        %v1760 = vadd.f32 %v463, %v1759
        %1761 = vmatmul.bf16.gmra.mxu0 %v599
        %v1762 = vpop.f32.mrf.mxu0
        %v1763 = vadd.f32 %v463, %v1762
        %v1764 = vpop.f32.mrf.mxu0
        %v1765 = vadd.f32 %v463, %v1764
        %1766 = vmatmul.bf16.gmra.mxu0 %v602
        %v1767 = vpop.f32.mrf.mxu0
        %v1768 = vadd.f32 %v463, %v1767
        %v1769 = vpop.f32.mrf.mxu0
        %v1770 = vadd.f32 %v463, %v1769
        %1771 = vmatmul.bf16.gmra.mxu0 %v605
        %v1772 = vpop.f32.mrf.mxu0
        %v1773 = vadd.f32 %v463, %v1772
        %v1774 = vpop.f32.mrf.mxu0
        %v1775 = vadd.f32 %v463, %v1774
        %1776 = vmatmul.bf16.gmra.mxu0 %v608
        %v1777 = vpop.f32.mrf.mxu0
        %v1778 = vadd.f32 %v463, %v1777
        %v1779 = vpop.f32.mrf.mxu0
        %v1780 = vadd.f32 %v463, %v1779
        %1781 = vmatmul.bf16.gmra.mxu0 %v611
        %v1782 = vpop.f32.mrf.mxu0
        %v1783 = vadd.f32 %v463, %v1782
        %v1784 = vpop.f32.mrf.mxu0
        %v1785 = vadd.f32 %v463, %v1784
        %1786 = vmatmul.bf16.gmra.mxu0 %v614
        %v1787 = vpop.f32.mrf.mxu0
        %v1788 = vadd.f32 %v463, %v1787
        %v1789 = vpop.f32.mrf.mxu0
        %v1790 = vadd.f32 %v463, %v1789
        %1791 = vmatmul.bf16.gmra.mxu0 %v617
        %v1792 = vpop.f32.mrf.mxu0
        %v1793 = vadd.f32 %v463, %v1792
        %v1794 = vpop.f32.mrf.mxu0
        %v1795 = vadd.f32 %v463, %v1794
        %1796 = vmatmul.bf16.gmra.mxu0 %v620
        %v1797 = vpop.f32.mrf.mxu0
        %v1798 = vadd.f32 %v463, %v1797
        %v1799 = vpop.f32.mrf.mxu0
        %v1800 = vadd.f32 %v463, %v1799
        %1801 = vmatmul.bf16.gmra.mxu0 %v623
        %v1802 = vpop.f32.mrf.mxu0
        %v1803 = vadd.f32 %v463, %v1802
        %v1804 = vpop.f32.mrf.mxu0
        %v1805 = vadd.f32 %v463, %v1804
        %1806 = vmatmul.bf16.gmra.mxu0 %v626
        %v1807 = vpop.f32.mrf.mxu0
        %v1808 = vadd.f32 %v463, %v1807
        %v1809 = vpop.f32.mrf.mxu0
        %v1810 = vadd.f32 %v463, %v1809
        %1811 = vmatmul.bf16.gmra.mxu0 %v629
        %v1812 = vpop.f32.mrf.mxu0
        %v1813 = vadd.f32 %v463, %v1812
        %v1814 = vpop.f32.mrf.mxu0
        %v1815 = vadd.f32 %v463, %v1814
        %1816 = vmatmul.bf16.gmra.mxu0 %v632
        %v1817 = vpop.f32.mrf.mxu0
        %v1818 = vadd.f32 %v463, %v1817
        %v1819 = vpop.f32.mrf.mxu0
        %v1820 = vadd.f32 %v463, %v1819
        %1821 = vmatmul.bf16.gmra.mxu0 %v635
        %v1822 = vpop.f32.mrf.mxu0
        %v1823 = vadd.f32 %v463, %v1822
        %v1824 = vpop.f32.mrf.mxu0
        %v1825 = vadd.f32 %v463, %v1824
        %1826 = vdwg.mxu0
        %1827 = vmatpush.bf16.msra.mxu0 0
        %1828 = vmatpush.bf16.msra.mxu0 0
        %1829 = vmatpush.bf16.msra.mxu0 0
        %1830 = vmatpush.bf16.msra.mxu0 0
        %1831 = vmatpush.bf16.msra.mxu0 0
        %1832 = vmatpush.bf16.msra.mxu0 0
        %1833 = vmatpush.bf16.msra.mxu0 0
        %1834 = vmatpush.bf16.msra.mxu0 %v664
        %1835 = vmatmul.bf16.gmra.mxu0 %v590
        %v1836 = vpop.f32.mrf.mxu0
        %v1837 = vadd.f32 %v464, %v1836
        %v1838 = vpop.f32.mrf.mxu0
        %v1839 = vadd.f32 %v464, %v1838
        %1840 = vmatmul.bf16.gmra.mxu0 %v593
        %v1841 = vpop.f32.mrf.mxu0
        %v1842 = vadd.f32 %v464, %v1841
        %v1843 = vpop.f32.mrf.mxu0
        %v1844 = vadd.f32 %v464, %v1843
        %1845 = vmatmul.bf16.gmra.mxu0 %v596
        %v1846 = vpop.f32.mrf.mxu0
        %v1847 = vadd.f32 %v464, %v1846
        %v1848 = vpop.f32.mrf.mxu0
        %v1849 = vadd.f32 %v464, %v1848
        %1850 = vmatmul.bf16.gmra.mxu0 %v599
        %v1851 = vpop.f32.mrf.mxu0
        %v1852 = vadd.f32 %v464, %v1851
        %v1853 = vpop.f32.mrf.mxu0
        %v1854 = vadd.f32 %v464, %v1853
        %1855 = vmatmul.bf16.gmra.mxu0 %v602
        %v1856 = vpop.f32.mrf.mxu0
        %v1857 = vadd.f32 %v464, %v1856
        %v1858 = vpop.f32.mrf.mxu0
        %v1859 = vadd.f32 %v464, %v1858
        %1860 = vmatmul.bf16.gmra.mxu0 %v605
        %v1861 = vpop.f32.mrf.mxu0
        %v1862 = vadd.f32 %v464, %v1861
        %v1863 = vpop.f32.mrf.mxu0
        %v1864 = vadd.f32 %v464, %v1863
        %1865 = vmatmul.bf16.gmra.mxu0 %v608
        %v1866 = vpop.f32.mrf.mxu0
        %v1867 = vadd.f32 %v464, %v1866
        %v1868 = vpop.f32.mrf.mxu0
        %v1869 = vadd.f32 %v464, %v1868
        %1870 = vmatmul.bf16.gmra.mxu0 %v611
        %v1871 = vpop.f32.mrf.mxu0
        %v1872 = vadd.f32 %v464, %v1871
        %v1873 = vpop.f32.mrf.mxu0
        %v1874 = vadd.f32 %v464, %v1873
        %1875 = vmatmul.bf16.gmra.mxu0 %v614
        %v1876 = vpop.f32.mrf.mxu0
        %v1877 = vadd.f32 %v464, %v1876
        %v1878 = vpop.f32.mrf.mxu0
        %v1879 = vadd.f32 %v464, %v1878
        %1880 = vmatmul.bf16.gmra.mxu0 %v617
        %v1881 = vpop.f32.mrf.mxu0
        %v1882 = vadd.f32 %v464, %v1881
        %v1883 = vpop.f32.mrf.mxu0
        %v1884 = vadd.f32 %v464, %v1883
        %1885 = vmatmul.bf16.gmra.mxu0 %v620
        %v1886 = vpop.f32.mrf.mxu0
        %v1887 = vadd.f32 %v464, %v1886
        %v1888 = vpop.f32.mrf.mxu0
        %v1889 = vadd.f32 %v464, %v1888
        %1890 = vmatmul.bf16.gmra.mxu0 %v623
        %v1891 = vpop.f32.mrf.mxu0
        %v1892 = vadd.f32 %v464, %v1891
        %v1893 = vpop.f32.mrf.mxu0
        %v1894 = vadd.f32 %v464, %v1893
        %1895 = vmatmul.bf16.gmra.mxu0 %v626
        %v1896 = vpop.f32.mrf.mxu0
        %v1897 = vadd.f32 %v464, %v1896
        %v1898 = vpop.f32.mrf.mxu0
        %v1899 = vadd.f32 %v464, %v1898
        %1900 = vmatmul.bf16.gmra.mxu0 %v629
        %v1901 = vpop.f32.mrf.mxu0
        %v1902 = vadd.f32 %v464, %v1901
        %v1903 = vpop.f32.mrf.mxu0
        %v1904 = vadd.f32 %v464, %v1903
        %1905 = vmatmul.bf16.gmra.mxu0 %v632
        %v1906 = vpop.f32.mrf.mxu0
        %v1907 = vadd.f32 %v464, %v1906
        %v1908 = vpop.f32.mrf.mxu0
        %v1909 = vadd.f32 %v464, %v1908
        %1910 = vmatmul.bf16.gmra.mxu0 %v635
        %v1911 = vpop.f32.mrf.mxu0
        %v1912 = vadd.f32 %v464, %v1911
        %v1913 = vpop.f32.mrf.mxu0
        %v1914 = vadd.f32 %v464, %v1913
        %1915 = vdwg.mxu0
        %1916 = vmatpush.bf16.msra.mxu0 0
        %1917 = vmatpush.bf16.msra.mxu0 0
        %1918 = vmatpush.bf16.msra.mxu0 0
        %1919 = vmatpush.bf16.msra.mxu0 0
        %1920 = vmatpush.bf16.msra.mxu0 0
        %1921 = vmatpush.bf16.msra.mxu0 0
        %1922 = vmatpush.bf16.msra.mxu0 0
        %1923 = vmatpush.bf16.msra.mxu0 %v666
        %1924 = vmatmul.bf16.gmra.mxu0 %v590
        %v1925 = vpop.f32.mrf.mxu0
        %v1926 = vadd.f32 %v465, %v1925
        %v1927 = vpop.f32.mrf.mxu0
        %v1928 = vadd.f32 %v465, %v1927
        %1929 = vmatmul.bf16.gmra.mxu0 %v593
        %v1930 = vpop.f32.mrf.mxu0
        %v1931 = vadd.f32 %v465, %v1930
        %v1932 = vpop.f32.mrf.mxu0
        %v1933 = vadd.f32 %v465, %v1932
        %1934 = vmatmul.bf16.gmra.mxu0 %v596
        %v1935 = vpop.f32.mrf.mxu0
        %v1936 = vadd.f32 %v465, %v1935
        %v1937 = vpop.f32.mrf.mxu0
        %v1938 = vadd.f32 %v465, %v1937
        %1939 = vmatmul.bf16.gmra.mxu0 %v599
        %v1940 = vpop.f32.mrf.mxu0
        %v1941 = vadd.f32 %v465, %v1940
        %v1942 = vpop.f32.mrf.mxu0
        %v1943 = vadd.f32 %v465, %v1942
        %1944 = vmatmul.bf16.gmra.mxu0 %v602
        %v1945 = vpop.f32.mrf.mxu0
        %v1946 = vadd.f32 %v465, %v1945
        %v1947 = vpop.f32.mrf.mxu0
        %v1948 = vadd.f32 %v465, %v1947
        %1949 = vmatmul.bf16.gmra.mxu0 %v605
        %v1950 = vpop.f32.mrf.mxu0
        %v1951 = vadd.f32 %v465, %v1950
        %v1952 = vpop.f32.mrf.mxu0
        %v1953 = vadd.f32 %v465, %v1952
        %1954 = vmatmul.bf16.gmra.mxu0 %v608
        %v1955 = vpop.f32.mrf.mxu0
        %v1956 = vadd.f32 %v465, %v1955
        %v1957 = vpop.f32.mrf.mxu0
        %v1958 = vadd.f32 %v465, %v1957
        %1959 = vmatmul.bf16.gmra.mxu0 %v611
        %v1960 = vpop.f32.mrf.mxu0
        %v1961 = vadd.f32 %v465, %v1960
        %v1962 = vpop.f32.mrf.mxu0
        %v1963 = vadd.f32 %v465, %v1962
        %1964 = vmatmul.bf16.gmra.mxu0 %v614
        %v1965 = vpop.f32.mrf.mxu0
        %v1966 = vadd.f32 %v465, %v1965
        %v1967 = vpop.f32.mrf.mxu0
        %v1968 = vadd.f32 %v465, %v1967
        %1969 = vmatmul.bf16.gmra.mxu0 %v617
        %v1970 = vpop.f32.mrf.mxu0
        %v1971 = vadd.f32 %v465, %v1970
        %v1972 = vpop.f32.mrf.mxu0
        %v1973 = vadd.f32 %v465, %v1972
        %1974 = vmatmul.bf16.gmra.mxu0 %v620
        %v1975 = vpop.f32.mrf.mxu0
        %v1976 = vadd.f32 %v465, %v1975
        %v1977 = vpop.f32.mrf.mxu0
        %v1978 = vadd.f32 %v465, %v1977
        %1979 = vmatmul.bf16.gmra.mxu0 %v623
        %v1980 = vpop.f32.mrf.mxu0
        %v1981 = vadd.f32 %v465, %v1980
        %v1982 = vpop.f32.mrf.mxu0
        %v1983 = vadd.f32 %v465, %v1982
        %1984 = vmatmul.bf16.gmra.mxu0 %v626
        %v1985 = vpop.f32.mrf.mxu0
        %v1986 = vadd.f32 %v465, %v1985
        %v1987 = vpop.f32.mrf.mxu0
        %v1988 = vadd.f32 %v465, %v1987
        %1989 = vmatmul.bf16.gmra.mxu0 %v629
        %v1990 = vpop.f32.mrf.mxu0
        %v1991 = vadd.f32 %v465, %v1990
        %v1992 = vpop.f32.mrf.mxu0
        %v1993 = vadd.f32 %v465, %v1992
        %1994 = vmatmul.bf16.gmra.mxu0 %v632
        %v1995 = vpop.f32.mrf.mxu0
        %v1996 = vadd.f32 %v465, %v1995
        %v1997 = vpop.f32.mrf.mxu0
        %v1998 = vadd.f32 %v465, %v1997
        %1999 = vmatmul.bf16.gmra.mxu0 %v635
        %v2000 = vpop.f32.mrf.mxu0
        %v2001 = vadd.f32 %v465, %v2000
        %v2002 = vpop.f32.mrf.mxu0
        %v2003 = vadd.f32 %v465, %v2002
        %2004 = vdwg.mxu0
        %2005 = vmatpush.bf16.msra.mxu0 0
        %2006 = vmatpush.bf16.msra.mxu0 0
        %2007 = vmatpush.bf16.msra.mxu0 0
        %2008 = vmatpush.bf16.msra.mxu0 0
        %2009 = vmatpush.bf16.msra.mxu0 0
        %2010 = vmatpush.bf16.msra.mxu0 0
        %2011 = vmatpush.bf16.msra.mxu0 0
        %2012 = vmatpush.bf16.msra.mxu0 %v668
        %2013 = vmatmul.bf16.gmra.mxu0 %v590
        %v2014 = vpop.f32.mrf.mxu0
        %v2015 = vadd.f32 %v466, %v2014
        %v2016 = vpop.f32.mrf.mxu0
        %v2017 = vadd.f32 %v466, %v2016
        %2018 = vmatmul.bf16.gmra.mxu0 %v593
        %v2019 = vpop.f32.mrf.mxu0
        %v2020 = vadd.f32 %v466, %v2019
        %v2021 = vpop.f32.mrf.mxu0
        %v2022 = vadd.f32 %v466, %v2021
        %2023 = vmatmul.bf16.gmra.mxu0 %v596
        %v2024 = vpop.f32.mrf.mxu0
        %v2025 = vadd.f32 %v466, %v2024
        %v2026 = vpop.f32.mrf.mxu0
        %v2027 = vadd.f32 %v466, %v2026
        %2028 = vmatmul.bf16.gmra.mxu0 %v599
        %v2029 = vpop.f32.mrf.mxu0
        %v2030 = vadd.f32 %v466, %v2029
        %v2031 = vpop.f32.mrf.mxu0
        %v2032 = vadd.f32 %v466, %v2031
        %2033 = vmatmul.bf16.gmra.mxu0 %v602
        %v2034 = vpop.f32.mrf.mxu0
        %v2035 = vadd.f32 %v466, %v2034
        %v2036 = vpop.f32.mrf.mxu0
        %v2037 = vadd.f32 %v466, %v2036
        %2038 = vmatmul.bf16.gmra.mxu0 %v605
        %v2039 = vpop.f32.mrf.mxu0
        %v2040 = vadd.f32 %v466, %v2039
        %v2041 = vpop.f32.mrf.mxu0
        %v2042 = vadd.f32 %v466, %v2041
        %2043 = vmatmul.bf16.gmra.mxu0 %v608
        %v2044 = vpop.f32.mrf.mxu0
        %v2045 = vadd.f32 %v466, %v2044
        %v2046 = vpop.f32.mrf.mxu0
        %v2047 = vadd.f32 %v466, %v2046
        %2048 = vmatmul.bf16.gmra.mxu0 %v611
        %v2049 = vpop.f32.mrf.mxu0
        %v2050 = vadd.f32 %v466, %v2049
        %v2051 = vpop.f32.mrf.mxu0
        %v2052 = vadd.f32 %v466, %v2051
        %2053 = vmatmul.bf16.gmra.mxu0 %v614
        %v2054 = vpop.f32.mrf.mxu0
        %v2055 = vadd.f32 %v466, %v2054
        %v2056 = vpop.f32.mrf.mxu0
        %v2057 = vadd.f32 %v466, %v2056
        %2058 = vmatmul.bf16.gmra.mxu0 %v617
        %v2059 = vpop.f32.mrf.mxu0
        %v2060 = vadd.f32 %v466, %v2059
        %v2061 = vpop.f32.mrf.mxu0
        %v2062 = vadd.f32 %v466, %v2061
        %2063 = vmatmul.bf16.gmra.mxu0 %v620
        %v2064 = vpop.f32.mrf.mxu0
        %v2065 = vadd.f32 %v466, %v2064
        %v2066 = vpop.f32.mrf.mxu0
        %v2067 = vadd.f32 %v466, %v2066
        %2068 = vmatmul.bf16.gmra.mxu0 %v623
        %v2069 = vpop.f32.mrf.mxu0
        %v2070 = vadd.f32 %v466, %v2069
        %v2071 = vpop.f32.mrf.mxu0
        %v2072 = vadd.f32 %v466, %v2071
        %2073 = vmatmul.bf16.gmra.mxu0 %v626
        %v2074 = vpop.f32.mrf.mxu0
        %v2075 = vadd.f32 %v466, %v2074
        %v2076 = vpop.f32.mrf.mxu0
        %v2077 = vadd.f32 %v466, %v2076
        %2078 = vmatmul.bf16.gmra.mxu0 %v629
        %v2079 = vpop.f32.mrf.mxu0
        %v2080 = vadd.f32 %v466, %v2079
        %v2081 = vpop.f32.mrf.mxu0
        %v2082 = vadd.f32 %v466, %v2081
        %2083 = vmatmul.bf16.gmra.mxu0 %v632
        %v2084 = vpop.f32.mrf.mxu0
        %v2085 = vadd.f32 %v466, %v2084
        %v2086 = vpop.f32.mrf.mxu0
        %v2087 = vadd.f32 %v466, %v2086
        %2088 = vmatmul.bf16.gmra.mxu0 %v635
        %v2089 = vpop.f32.mrf.mxu0
        %v2090 = vadd.f32 %v466, %v2089
        %v2091 = vpop.f32.mrf.mxu0
        %v2092 = vadd.f32 %v466, %v2091
        %2093 = vdwg.mxu0
        %v2094 = vmax.f32 %v680, 0.0
        %v2095 = vmax.f32 %v769, 0.0
        %v2096 = vmax.f32 %v858, 0.0
        %v2097 = vmax.f32 %v947, 0.0
        %v2098 = vmax.f32 %v1036, 0.0
        %v2099 = vmax.f32 %v1125, 0.0
        %v2100 = vmax.f32 %v1214, 0.0
        %v2101 = vmax.f32 %v1303, 0.0
        %v2102 = vmax.f32 %v1392, 0.0
        %v2103 = vmax.f32 %v1481, 0.0
        %v2104 = vmax.f32 %v1570, 0.0
        %v2105 = vmax.f32 %v1659, 0.0
        %v2106 = vmax.f32 %v1748, 0.0
        %v2107 = vmax.f32 %v1837, 0.0
        %v2108 = vmax.f32 %v1926, 0.0
        %v2109 = vmax.f32 %v2015, 0.0
        %v2110 = vmax.f32 %v682, 0.0
        %v2111 = vmax.f32 %v771, 0.0
        %v2112 = vmax.f32 %v860, 0.0
        %v2113 = vmax.f32 %v949, 0.0
        %v2114 = vmax.f32 %v1038, 0.0
        %v2115 = vmax.f32 %v1127, 0.0
        %v2116 = vmax.f32 %v1216, 0.0
        %v2117 = vmax.f32 %v1305, 0.0
        %v2118 = vmax.f32 %v1394, 0.0
        %v2119 = vmax.f32 %v1483, 0.0
        %v2120 = vmax.f32 %v1572, 0.0
        %v2121 = vmax.f32 %v1661, 0.0
        %v2122 = vmax.f32 %v1750, 0.0
        %v2123 = vmax.f32 %v1839, 0.0
        %v2124 = vmax.f32 %v1928, 0.0
        %v2125 = vmax.f32 %v2017, 0.0
        %v2126 = vmax.f32 %v685, 0.0
        %v2127 = vmax.f32 %v774, 0.0
        %v2128 = vmax.f32 %v863, 0.0
        %v2129 = vmax.f32 %v952, 0.0
        %v2130 = vmax.f32 %v1041, 0.0
        %v2131 = vmax.f32 %v1130, 0.0
        %v2132 = vmax.f32 %v1219, 0.0
        %v2133 = vmax.f32 %v1308, 0.0
        %v2134 = vmax.f32 %v1397, 0.0
        %v2135 = vmax.f32 %v1486, 0.0
        %v2136 = vmax.f32 %v1575, 0.0
        %v2137 = vmax.f32 %v1664, 0.0
        %v2138 = vmax.f32 %v1753, 0.0
        %v2139 = vmax.f32 %v1842, 0.0
        %v2140 = vmax.f32 %v1931, 0.0
        %v2141 = vmax.f32 %v2020, 0.0
        %v2142 = vmax.f32 %v687, 0.0
        %v2143 = vmax.f32 %v776, 0.0
        %v2144 = vmax.f32 %v865, 0.0
        %v2145 = vmax.f32 %v954, 0.0
        %v2146 = vmax.f32 %v1043, 0.0
        %v2147 = vmax.f32 %v1132, 0.0
        %v2148 = vmax.f32 %v1221, 0.0
        %v2149 = vmax.f32 %v1310, 0.0
        %v2150 = vmax.f32 %v1399, 0.0
        %v2151 = vmax.f32 %v1488, 0.0
        %v2152 = vmax.f32 %v1577, 0.0
        %v2153 = vmax.f32 %v1666, 0.0
        %v2154 = vmax.f32 %v1755, 0.0
        %v2155 = vmax.f32 %v1844, 0.0
        %v2156 = vmax.f32 %v1933, 0.0
        %v2157 = vmax.f32 %v2022, 0.0
        %v2158 = vmax.f32 %v690, 0.0
        %v2159 = vmax.f32 %v779, 0.0
        %v2160 = vmax.f32 %v868, 0.0
        %v2161 = vmax.f32 %v957, 0.0
        %v2162 = vmax.f32 %v1046, 0.0
        %v2163 = vmax.f32 %v1135, 0.0
        %v2164 = vmax.f32 %v1224, 0.0
        %v2165 = vmax.f32 %v1313, 0.0
        %v2166 = vmax.f32 %v1402, 0.0
        %v2167 = vmax.f32 %v1491, 0.0
        %v2168 = vmax.f32 %v1580, 0.0
        %v2169 = vmax.f32 %v1669, 0.0
        %v2170 = vmax.f32 %v1758, 0.0
        %v2171 = vmax.f32 %v1847, 0.0
        %v2172 = vmax.f32 %v1936, 0.0
        %v2173 = vmax.f32 %v2025, 0.0
        %v2174 = vmax.f32 %v692, 0.0
        %v2175 = vmax.f32 %v781, 0.0
        %v2176 = vmax.f32 %v870, 0.0
        %v2177 = vmax.f32 %v959, 0.0
        %v2178 = vmax.f32 %v1048, 0.0
        %v2179 = vmax.f32 %v1137, 0.0
        %v2180 = vmax.f32 %v1226, 0.0
        %v2181 = vmax.f32 %v1315, 0.0
        %v2182 = vmax.f32 %v1404, 0.0
        %v2183 = vmax.f32 %v1493, 0.0
        %v2184 = vmax.f32 %v1582, 0.0
        %v2185 = vmax.f32 %v1671, 0.0
        %v2186 = vmax.f32 %v1760, 0.0
        %v2187 = vmax.f32 %v1849, 0.0
        %v2188 = vmax.f32 %v1938, 0.0
        %v2189 = vmax.f32 %v2027, 0.0
        %v2190 = vmax.f32 %v695, 0.0
        %v2191 = vmax.f32 %v784, 0.0
        %v2192 = vmax.f32 %v873, 0.0
        %v2193 = vmax.f32 %v962, 0.0
        %v2194 = vmax.f32 %v1051, 0.0
        %v2195 = vmax.f32 %v1140, 0.0
        %v2196 = vmax.f32 %v1229, 0.0
        %v2197 = vmax.f32 %v1318, 0.0
        %v2198 = vmax.f32 %v1407, 0.0
        %v2199 = vmax.f32 %v1496, 0.0
        %v2200 = vmax.f32 %v1585, 0.0
        %v2201 = vmax.f32 %v1674, 0.0
        %v2202 = vmax.f32 %v1763, 0.0
        %v2203 = vmax.f32 %v1852, 0.0
        %v2204 = vmax.f32 %v1941, 0.0
        %v2205 = vmax.f32 %v2030, 0.0
        %v2206 = vmax.f32 %v697, 0.0
        %v2207 = vmax.f32 %v786, 0.0
        %v2208 = vmax.f32 %v875, 0.0
        %v2209 = vmax.f32 %v964, 0.0
        %v2210 = vmax.f32 %v1053, 0.0
        %v2211 = vmax.f32 %v1142, 0.0
        %v2212 = vmax.f32 %v1231, 0.0
        %v2213 = vmax.f32 %v1320, 0.0
        %v2214 = vmax.f32 %v1409, 0.0
        %v2215 = vmax.f32 %v1498, 0.0
        %v2216 = vmax.f32 %v1587, 0.0
        %v2217 = vmax.f32 %v1676, 0.0
        %v2218 = vmax.f32 %v1765, 0.0
        %v2219 = vmax.f32 %v1854, 0.0
        %v2220 = vmax.f32 %v1943, 0.0
        %v2221 = vmax.f32 %v2032, 0.0
        %v2222 = vmax.f32 %v700, 0.0
        %v2223 = vmax.f32 %v789, 0.0
        %v2224 = vmax.f32 %v878, 0.0
        %v2225 = vmax.f32 %v967, 0.0
        %v2226 = vmax.f32 %v1056, 0.0
        %v2227 = vmax.f32 %v1145, 0.0
        %v2228 = vmax.f32 %v1234, 0.0
        %v2229 = vmax.f32 %v1323, 0.0
        %v2230 = vmax.f32 %v1412, 0.0
        %v2231 = vmax.f32 %v1501, 0.0
        %v2232 = vmax.f32 %v1590, 0.0
        %v2233 = vmax.f32 %v1679, 0.0
        %v2234 = vmax.f32 %v1768, 0.0
        %v2235 = vmax.f32 %v1857, 0.0
        %v2236 = vmax.f32 %v1946, 0.0
        %v2237 = vmax.f32 %v2035, 0.0
        %v2238 = vmax.f32 %v702, 0.0
        %v2239 = vmax.f32 %v791, 0.0
        %v2240 = vmax.f32 %v880, 0.0
        %v2241 = vmax.f32 %v969, 0.0
        %v2242 = vmax.f32 %v1058, 0.0
        %v2243 = vmax.f32 %v1147, 0.0
        %v2244 = vmax.f32 %v1236, 0.0
        %v2245 = vmax.f32 %v1325, 0.0
        %v2246 = vmax.f32 %v1414, 0.0
        %v2247 = vmax.f32 %v1503, 0.0
        %v2248 = vmax.f32 %v1592, 0.0
        %v2249 = vmax.f32 %v1681, 0.0
        %v2250 = vmax.f32 %v1770, 0.0
        %v2251 = vmax.f32 %v1859, 0.0
        %v2252 = vmax.f32 %v1948, 0.0
        %v2253 = vmax.f32 %v2037, 0.0
        %v2254 = vmax.f32 %v705, 0.0
        %v2255 = vmax.f32 %v794, 0.0
        %v2256 = vmax.f32 %v883, 0.0
        %v2257 = vmax.f32 %v972, 0.0
        %v2258 = vmax.f32 %v1061, 0.0
        %v2259 = vmax.f32 %v1150, 0.0
        %v2260 = vmax.f32 %v1239, 0.0
        %v2261 = vmax.f32 %v1328, 0.0
        %v2262 = vmax.f32 %v1417, 0.0
        %v2263 = vmax.f32 %v1506, 0.0
        %v2264 = vmax.f32 %v1595, 0.0
        %v2265 = vmax.f32 %v1684, 0.0
        %v2266 = vmax.f32 %v1773, 0.0
        %v2267 = vmax.f32 %v1862, 0.0
        %v2268 = vmax.f32 %v1951, 0.0
        %v2269 = vmax.f32 %v2040, 0.0
        %v2270 = vmax.f32 %v707, 0.0
        %v2271 = vmax.f32 %v796, 0.0
        %v2272 = vmax.f32 %v885, 0.0
        %v2273 = vmax.f32 %v974, 0.0
        %v2274 = vmax.f32 %v1063, 0.0
        %v2275 = vmax.f32 %v1152, 0.0
        %v2276 = vmax.f32 %v1241, 0.0
        %v2277 = vmax.f32 %v1330, 0.0
        %v2278 = vmax.f32 %v1419, 0.0
        %v2279 = vmax.f32 %v1508, 0.0
        %v2280 = vmax.f32 %v1597, 0.0
        %v2281 = vmax.f32 %v1686, 0.0
        %v2282 = vmax.f32 %v1775, 0.0
        %v2283 = vmax.f32 %v1864, 0.0
        %v2284 = vmax.f32 %v1953, 0.0
        %v2285 = vmax.f32 %v2042, 0.0
        %v2286 = vmax.f32 %v710, 0.0
        %v2287 = vmax.f32 %v799, 0.0
        %v2288 = vmax.f32 %v888, 0.0
        %v2289 = vmax.f32 %v977, 0.0
        %v2290 = vmax.f32 %v1066, 0.0
        %v2291 = vmax.f32 %v1155, 0.0
        %v2292 = vmax.f32 %v1244, 0.0
        %v2293 = vmax.f32 %v1333, 0.0
        %v2294 = vmax.f32 %v1422, 0.0
        %v2295 = vmax.f32 %v1511, 0.0
        %v2296 = vmax.f32 %v1600, 0.0
        %v2297 = vmax.f32 %v1689, 0.0
        %v2298 = vmax.f32 %v1778, 0.0
        %v2299 = vmax.f32 %v1867, 0.0
        %v2300 = vmax.f32 %v1956, 0.0
        %v2301 = vmax.f32 %v2045, 0.0
        %v2302 = vmax.f32 %v712, 0.0
        %v2303 = vmax.f32 %v801, 0.0
        %v2304 = vmax.f32 %v890, 0.0
        %v2305 = vmax.f32 %v979, 0.0
        %v2306 = vmax.f32 %v1068, 0.0
        %v2307 = vmax.f32 %v1157, 0.0
        %v2308 = vmax.f32 %v1246, 0.0
        %v2309 = vmax.f32 %v1335, 0.0
        %v2310 = vmax.f32 %v1424, 0.0
        %v2311 = vmax.f32 %v1513, 0.0
        %v2312 = vmax.f32 %v1602, 0.0
        %v2313 = vmax.f32 %v1691, 0.0
        %v2314 = vmax.f32 %v1780, 0.0
        %v2315 = vmax.f32 %v1869, 0.0
        %v2316 = vmax.f32 %v1958, 0.0
        %v2317 = vmax.f32 %v2047, 0.0
        %v2318 = vmax.f32 %v715, 0.0
        %v2319 = vmax.f32 %v804, 0.0
        %v2320 = vmax.f32 %v893, 0.0
        %v2321 = vmax.f32 %v982, 0.0
        %v2322 = vmax.f32 %v1071, 0.0
        %v2323 = vmax.f32 %v1160, 0.0
        %v2324 = vmax.f32 %v1249, 0.0
        %v2325 = vmax.f32 %v1338, 0.0
        %v2326 = vmax.f32 %v1427, 0.0
        %v2327 = vmax.f32 %v1516, 0.0
        %v2328 = vmax.f32 %v1605, 0.0
        %v2329 = vmax.f32 %v1694, 0.0
        %v2330 = vmax.f32 %v1783, 0.0
        %v2331 = vmax.f32 %v1872, 0.0
        %v2332 = vmax.f32 %v1961, 0.0
        %v2333 = vmax.f32 %v2050, 0.0
        %v2334 = vmax.f32 %v717, 0.0
        %v2335 = vmax.f32 %v806, 0.0
        %v2336 = vmax.f32 %v895, 0.0
        %v2337 = vmax.f32 %v984, 0.0
        %v2338 = vmax.f32 %v1073, 0.0
        %v2339 = vmax.f32 %v1162, 0.0
        %v2340 = vmax.f32 %v1251, 0.0
        %v2341 = vmax.f32 %v1340, 0.0
        %v2342 = vmax.f32 %v1429, 0.0
        %v2343 = vmax.f32 %v1518, 0.0
        %v2344 = vmax.f32 %v1607, 0.0
        %v2345 = vmax.f32 %v1696, 0.0
        %v2346 = vmax.f32 %v1785, 0.0
        %v2347 = vmax.f32 %v1874, 0.0
        %v2348 = vmax.f32 %v1963, 0.0
        %v2349 = vmax.f32 %v2052, 0.0
        %v2350 = vmax.f32 %v720, 0.0
        %v2351 = vmax.f32 %v809, 0.0
        %v2352 = vmax.f32 %v898, 0.0
        %v2353 = vmax.f32 %v987, 0.0
        %v2354 = vmax.f32 %v1076, 0.0
        %v2355 = vmax.f32 %v1165, 0.0
        %v2356 = vmax.f32 %v1254, 0.0
        %v2357 = vmax.f32 %v1343, 0.0
        %v2358 = vmax.f32 %v1432, 0.0
        %v2359 = vmax.f32 %v1521, 0.0
        %v2360 = vmax.f32 %v1610, 0.0
        %v2361 = vmax.f32 %v1699, 0.0
        %v2362 = vmax.f32 %v1788, 0.0
        %v2363 = vmax.f32 %v1877, 0.0
        %v2364 = vmax.f32 %v1966, 0.0
        %v2365 = vmax.f32 %v2055, 0.0
        %v2366 = vmax.f32 %v722, 0.0
        %v2367 = vmax.f32 %v811, 0.0
        %v2368 = vmax.f32 %v900, 0.0
        %v2369 = vmax.f32 %v989, 0.0
        %v2370 = vmax.f32 %v1078, 0.0
        %v2371 = vmax.f32 %v1167, 0.0
        %v2372 = vmax.f32 %v1256, 0.0
        %v2373 = vmax.f32 %v1345, 0.0
        %v2374 = vmax.f32 %v1434, 0.0
        %v2375 = vmax.f32 %v1523, 0.0
        %v2376 = vmax.f32 %v1612, 0.0
        %v2377 = vmax.f32 %v1701, 0.0
        %v2378 = vmax.f32 %v1790, 0.0
        %v2379 = vmax.f32 %v1879, 0.0
        %v2380 = vmax.f32 %v1968, 0.0
        %v2381 = vmax.f32 %v2057, 0.0
        %v2382 = vmax.f32 %v725, 0.0
        %v2383 = vmax.f32 %v814, 0.0
        %v2384 = vmax.f32 %v903, 0.0
        %v2385 = vmax.f32 %v992, 0.0
        %v2386 = vmax.f32 %v1081, 0.0
        %v2387 = vmax.f32 %v1170, 0.0
        %v2388 = vmax.f32 %v1259, 0.0
        %v2389 = vmax.f32 %v1348, 0.0
        %v2390 = vmax.f32 %v1437, 0.0
        %v2391 = vmax.f32 %v1526, 0.0
        %v2392 = vmax.f32 %v1615, 0.0
        %v2393 = vmax.f32 %v1704, 0.0
        %v2394 = vmax.f32 %v1793, 0.0
        %v2395 = vmax.f32 %v1882, 0.0
        %v2396 = vmax.f32 %v1971, 0.0
        %v2397 = vmax.f32 %v2060, 0.0
        %v2398 = vmax.f32 %v727, 0.0
        %v2399 = vmax.f32 %v816, 0.0
        %v2400 = vmax.f32 %v905, 0.0
        %v2401 = vmax.f32 %v994, 0.0
        %v2402 = vmax.f32 %v1083, 0.0
        %v2403 = vmax.f32 %v1172, 0.0
        %v2404 = vmax.f32 %v1261, 0.0
        %v2405 = vmax.f32 %v1350, 0.0
        %v2406 = vmax.f32 %v1439, 0.0
        %v2407 = vmax.f32 %v1528, 0.0
        %v2408 = vmax.f32 %v1617, 0.0
        %v2409 = vmax.f32 %v1706, 0.0
        %v2410 = vmax.f32 %v1795, 0.0
        %v2411 = vmax.f32 %v1884, 0.0
        %v2412 = vmax.f32 %v1973, 0.0
        %v2413 = vmax.f32 %v2062, 0.0
        %v2414 = vmax.f32 %v730, 0.0
        %v2415 = vmax.f32 %v819, 0.0
        %v2416 = vmax.f32 %v908, 0.0
        %v2417 = vmax.f32 %v997, 0.0
        %v2418 = vmax.f32 %v1086, 0.0
        %v2419 = vmax.f32 %v1175, 0.0
        %v2420 = vmax.f32 %v1264, 0.0
        %v2421 = vmax.f32 %v1353, 0.0
        %v2422 = vmax.f32 %v1442, 0.0
        %v2423 = vmax.f32 %v1531, 0.0
        %v2424 = vmax.f32 %v1620, 0.0
        %v2425 = vmax.f32 %v1709, 0.0
        %v2426 = vmax.f32 %v1798, 0.0
        %v2427 = vmax.f32 %v1887, 0.0
        %v2428 = vmax.f32 %v1976, 0.0
        %v2429 = vmax.f32 %v2065, 0.0
        %v2430 = vmax.f32 %v732, 0.0
        %v2431 = vmax.f32 %v821, 0.0
        %v2432 = vmax.f32 %v910, 0.0
        %v2433 = vmax.f32 %v999, 0.0
        %v2434 = vmax.f32 %v1088, 0.0
        %v2435 = vmax.f32 %v1177, 0.0
        %v2436 = vmax.f32 %v1266, 0.0
        %v2437 = vmax.f32 %v1355, 0.0
        %v2438 = vmax.f32 %v1444, 0.0
        %v2439 = vmax.f32 %v1533, 0.0
        %v2440 = vmax.f32 %v1622, 0.0
        %v2441 = vmax.f32 %v1711, 0.0
        %v2442 = vmax.f32 %v1800, 0.0
        %v2443 = vmax.f32 %v1889, 0.0
        %v2444 = vmax.f32 %v1978, 0.0
        %v2445 = vmax.f32 %v2067, 0.0
        %v2446 = vmax.f32 %v735, 0.0
        %v2447 = vmax.f32 %v824, 0.0
        %v2448 = vmax.f32 %v913, 0.0
        %v2449 = vmax.f32 %v1002, 0.0
        %v2450 = vmax.f32 %v1091, 0.0
        %v2451 = vmax.f32 %v1180, 0.0
        %v2452 = vmax.f32 %v1269, 0.0
        %v2453 = vmax.f32 %v1358, 0.0
        %v2454 = vmax.f32 %v1447, 0.0
        %v2455 = vmax.f32 %v1536, 0.0
        %v2456 = vmax.f32 %v1625, 0.0
        %v2457 = vmax.f32 %v1714, 0.0
        %v2458 = vmax.f32 %v1803, 0.0
        %v2459 = vmax.f32 %v1892, 0.0
        %v2460 = vmax.f32 %v1981, 0.0
        %v2461 = vmax.f32 %v2070, 0.0
        %v2462 = vmax.f32 %v737, 0.0
        %v2463 = vmax.f32 %v826, 0.0
        %v2464 = vmax.f32 %v915, 0.0
        %v2465 = vmax.f32 %v1004, 0.0
        %v2466 = vmax.f32 %v1093, 0.0
        %v2467 = vmax.f32 %v1182, 0.0
        %v2468 = vmax.f32 %v1271, 0.0
        %v2469 = vmax.f32 %v1360, 0.0
        %v2470 = vmax.f32 %v1449, 0.0
        %v2471 = vmax.f32 %v1538, 0.0
        %v2472 = vmax.f32 %v1627, 0.0
        %v2473 = vmax.f32 %v1716, 0.0
        %v2474 = vmax.f32 %v1805, 0.0
        %v2475 = vmax.f32 %v1894, 0.0
        %v2476 = vmax.f32 %v1983, 0.0
        %v2477 = vmax.f32 %v2072, 0.0
        %v2478 = vmax.f32 %v740, 0.0
        %v2479 = vmax.f32 %v829, 0.0
        %v2480 = vmax.f32 %v918, 0.0
        %v2481 = vmax.f32 %v1007, 0.0
        %v2482 = vmax.f32 %v1096, 0.0
        %v2483 = vmax.f32 %v1185, 0.0
        %v2484 = vmax.f32 %v1274, 0.0
        %v2485 = vmax.f32 %v1363, 0.0
        %v2486 = vmax.f32 %v1452, 0.0
        %v2487 = vmax.f32 %v1541, 0.0
        %v2488 = vmax.f32 %v1630, 0.0
        %v2489 = vmax.f32 %v1719, 0.0
        %v2490 = vmax.f32 %v1808, 0.0
        %v2491 = vmax.f32 %v1897, 0.0
        %v2492 = vmax.f32 %v1986, 0.0
        %v2493 = vmax.f32 %v2075, 0.0
        %v2494 = vmax.f32 %v742, 0.0
        %v2495 = vmax.f32 %v831, 0.0
        %v2496 = vmax.f32 %v920, 0.0
        %v2497 = vmax.f32 %v1009, 0.0
        %v2498 = vmax.f32 %v1098, 0.0
        %v2499 = vmax.f32 %v1187, 0.0
        %v2500 = vmax.f32 %v1276, 0.0
        %v2501 = vmax.f32 %v1365, 0.0
        %v2502 = vmax.f32 %v1454, 0.0
        %v2503 = vmax.f32 %v1543, 0.0
        %v2504 = vmax.f32 %v1632, 0.0
        %v2505 = vmax.f32 %v1721, 0.0
        %v2506 = vmax.f32 %v1810, 0.0
        %v2507 = vmax.f32 %v1899, 0.0
        %v2508 = vmax.f32 %v1988, 0.0
        %v2509 = vmax.f32 %v2077, 0.0
        %v2510 = vmax.f32 %v745, 0.0
        %v2511 = vmax.f32 %v834, 0.0
        %v2512 = vmax.f32 %v923, 0.0
        %v2513 = vmax.f32 %v1012, 0.0
        %v2514 = vmax.f32 %v1101, 0.0
        %v2515 = vmax.f32 %v1190, 0.0
        %v2516 = vmax.f32 %v1279, 0.0
        %v2517 = vmax.f32 %v1368, 0.0
        %v2518 = vmax.f32 %v1457, 0.0
        %v2519 = vmax.f32 %v1546, 0.0
        %v2520 = vmax.f32 %v1635, 0.0
        %v2521 = vmax.f32 %v1724, 0.0
        %v2522 = vmax.f32 %v1813, 0.0
        %v2523 = vmax.f32 %v1902, 0.0
        %v2524 = vmax.f32 %v1991, 0.0
        %v2525 = vmax.f32 %v2080, 0.0
        %v2526 = vmax.f32 %v747, 0.0
        %v2527 = vmax.f32 %v836, 0.0
        %v2528 = vmax.f32 %v925, 0.0
        %v2529 = vmax.f32 %v1014, 0.0
        %v2530 = vmax.f32 %v1103, 0.0
        %v2531 = vmax.f32 %v1192, 0.0
        %v2532 = vmax.f32 %v1281, 0.0
        %v2533 = vmax.f32 %v1370, 0.0
        %v2534 = vmax.f32 %v1459, 0.0
        %v2535 = vmax.f32 %v1548, 0.0
        %v2536 = vmax.f32 %v1637, 0.0
        %v2537 = vmax.f32 %v1726, 0.0
        %v2538 = vmax.f32 %v1815, 0.0
        %v2539 = vmax.f32 %v1904, 0.0
        %v2540 = vmax.f32 %v1993, 0.0
        %v2541 = vmax.f32 %v2082, 0.0
        %v2542 = vmax.f32 %v750, 0.0
        %v2543 = vmax.f32 %v839, 0.0
        %v2544 = vmax.f32 %v928, 0.0
        %v2545 = vmax.f32 %v1017, 0.0
        %v2546 = vmax.f32 %v1106, 0.0
        %v2547 = vmax.f32 %v1195, 0.0
        %v2548 = vmax.f32 %v1284, 0.0
        %v2549 = vmax.f32 %v1373, 0.0
        %v2550 = vmax.f32 %v1462, 0.0
        %v2551 = vmax.f32 %v1551, 0.0
        %v2552 = vmax.f32 %v1640, 0.0
        %v2553 = vmax.f32 %v1729, 0.0
        %v2554 = vmax.f32 %v1818, 0.0
        %v2555 = vmax.f32 %v1907, 0.0
        %v2556 = vmax.f32 %v1996, 0.0
        %v2557 = vmax.f32 %v2085, 0.0
        %v2558 = vmax.f32 %v752, 0.0
        %v2559 = vmax.f32 %v841, 0.0
        %v2560 = vmax.f32 %v930, 0.0
        %v2561 = vmax.f32 %v1019, 0.0
        %v2562 = vmax.f32 %v1108, 0.0
        %v2563 = vmax.f32 %v1197, 0.0
        %v2564 = vmax.f32 %v1286, 0.0
        %v2565 = vmax.f32 %v1375, 0.0
        %v2566 = vmax.f32 %v1464, 0.0
        %v2567 = vmax.f32 %v1553, 0.0
        %v2568 = vmax.f32 %v1642, 0.0
        %v2569 = vmax.f32 %v1731, 0.0
        %v2570 = vmax.f32 %v1820, 0.0
        %v2571 = vmax.f32 %v1909, 0.0
        %v2572 = vmax.f32 %v1998, 0.0
        %v2573 = vmax.f32 %v2087, 0.0
        %v2574 = vmax.f32 %v755, 0.0
        %v2575 = vmax.f32 %v844, 0.0
        %v2576 = vmax.f32 %v933, 0.0
        %v2577 = vmax.f32 %v1022, 0.0
        %v2578 = vmax.f32 %v1111, 0.0
        %v2579 = vmax.f32 %v1200, 0.0
        %v2580 = vmax.f32 %v1289, 0.0
        %v2581 = vmax.f32 %v1378, 0.0
        %v2582 = vmax.f32 %v1467, 0.0
        %v2583 = vmax.f32 %v1556, 0.0
        %v2584 = vmax.f32 %v1645, 0.0
        %v2585 = vmax.f32 %v1734, 0.0
        %v2586 = vmax.f32 %v1823, 0.0
        %v2587 = vmax.f32 %v1912, 0.0
        %v2588 = vmax.f32 %v2001, 0.0
        %v2589 = vmax.f32 %v2090, 0.0
        %v2590 = vmax.f32 %v757, 0.0
        %v2591 = vmax.f32 %v846, 0.0
        %v2592 = vmax.f32 %v935, 0.0
        %v2593 = vmax.f32 %v1024, 0.0
        %v2594 = vmax.f32 %v1113, 0.0
        %v2595 = vmax.f32 %v1202, 0.0
        %v2596 = vmax.f32 %v1291, 0.0
        %v2597 = vmax.f32 %v1380, 0.0
        %v2598 = vmax.f32 %v1469, 0.0
        %v2599 = vmax.f32 %v1558, 0.0
        %v2600 = vmax.f32 %v1647, 0.0
        %v2601 = vmax.f32 %v1736, 0.0
        %v2602 = vmax.f32 %v1825, 0.0
        %v2603 = vmax.f32 %v1914, 0.0
        %v2604 = vmax.f32 %v2003, 0.0
        %v2605 = vmax.f32 %v2092, 0.0
        %v2606 = vadd.f32 %v2094, %v2110
        %v2607 = vadd.f32 %v2606, %v2126
        %v2608 = vadd.f32 %v2607, %v2142
        %v2609 = vadd.f32 %v2608, %v2158
        %v2610 = vadd.f32 %v2609, %v2174
        %v2611 = vadd.f32 %v2610, %v2190
        %v2612 = vadd.f32 %v2611, %v2206
        %v2613 = vadd.f32 %v2612, %v2222
        %v2614 = vadd.f32 %v2613, %v2238
        %v2615 = vadd.f32 %v2614, %v2254
        %v2616 = vadd.f32 %v2615, %v2270
        %v2617 = vadd.f32 %v2616, %v2286
        %v2618 = vadd.f32 %v2617, %v2302
        %v2619 = vadd.f32 %v2618, %v2318
        %v2620 = vadd.f32 %v2619, %v2334
        %v2621 = vrot.slane %v2620, 4
        %v2622 = vadd.f32 %v2620, %v2621
        %v2623 = vrot.slane %v2622, 2
        %v2624 = vadd.f32 %v2622, %v2623
        %v2625 = vrot.slane %v2624, 1
        %v2626 = vadd.f32 %v2624, %v2625
        %v2627 = vadd.f32 %v2095, %v2111
        %v2628 = vadd.f32 %v2627, %v2127
        %v2629 = vadd.f32 %v2628, %v2143
        %v2630 = vadd.f32 %v2629, %v2159
        %v2631 = vadd.f32 %v2630, %v2175
        %v2632 = vadd.f32 %v2631, %v2191
        %v2633 = vadd.f32 %v2632, %v2207
        %v2634 = vadd.f32 %v2633, %v2223
        %v2635 = vadd.f32 %v2634, %v2239
        %v2636 = vadd.f32 %v2635, %v2255
        %v2637 = vadd.f32 %v2636, %v2271
        %v2638 = vadd.f32 %v2637, %v2287
        %v2639 = vadd.f32 %v2638, %v2303
        %v2640 = vadd.f32 %v2639, %v2319
        %v2641 = vadd.f32 %v2640, %v2335
        %v2642 = vrot.slane %v2641, 4
        %v2643 = vadd.f32 %v2641, %v2642
        %v2644 = vrot.slane %v2643, 2
        %v2645 = vadd.f32 %v2643, %v2644
        %v2646 = vrot.slane %v2645, 1
        %v2647 = vadd.f32 %v2645, %v2646
        %v2648 = vadd.f32 %v2096, %v2112
        %v2649 = vadd.f32 %v2648, %v2128
        %v2650 = vadd.f32 %v2649, %v2144
        %v2651 = vadd.f32 %v2650, %v2160
        %v2652 = vadd.f32 %v2651, %v2176
        %v2653 = vadd.f32 %v2652, %v2192
        %v2654 = vadd.f32 %v2653, %v2208
        %v2655 = vadd.f32 %v2654, %v2224
        %v2656 = vadd.f32 %v2655, %v2240
        %v2657 = vadd.f32 %v2656, %v2256
        %v2658 = vadd.f32 %v2657, %v2272
        %v2659 = vadd.f32 %v2658, %v2288
        %v2660 = vadd.f32 %v2659, %v2304
        %v2661 = vadd.f32 %v2660, %v2320
        %v2662 = vadd.f32 %v2661, %v2336
        %v2663 = vrot.slane %v2662, 4
        %v2664 = vadd.f32 %v2662, %v2663
        %v2665 = vrot.slane %v2664, 2
        %v2666 = vadd.f32 %v2664, %v2665
        %v2667 = vrot.slane %v2666, 1
        %v2668 = vadd.f32 %v2666, %v2667
        %v2669 = vadd.f32 %v2097, %v2113
        %v2670 = vadd.f32 %v2669, %v2129
        %v2671 = vadd.f32 %v2670, %v2145
        %v2672 = vadd.f32 %v2671, %v2161
        %v2673 = vadd.f32 %v2672, %v2177
        %v2674 = vadd.f32 %v2673, %v2193
        %v2675 = vadd.f32 %v2674, %v2209
        %v2676 = vadd.f32 %v2675, %v2225
        %v2677 = vadd.f32 %v2676, %v2241
        %v2678 = vadd.f32 %v2677, %v2257
        %v2679 = vadd.f32 %v2678, %v2273
        %v2680 = vadd.f32 %v2679, %v2289
        %v2681 = vadd.f32 %v2680, %v2305
        %v2682 = vadd.f32 %v2681, %v2321
        %v2683 = vadd.f32 %v2682, %v2337
        %v2684 = vrot.slane %v2683, 4
        %v2685 = vadd.f32 %v2683, %v2684
        %v2686 = vrot.slane %v2685, 2
        %v2687 = vadd.f32 %v2685, %v2686
        %v2688 = vrot.slane %v2687, 1
        %v2689 = vadd.f32 %v2687, %v2688
        %v2690 = vadd.f32 %v2098, %v2114
        %v2691 = vadd.f32 %v2690, %v2130
        %v2692 = vadd.f32 %v2691, %v2146
        %v2693 = vadd.f32 %v2692, %v2162
        %v2694 = vadd.f32 %v2693, %v2178
        %v2695 = vadd.f32 %v2694, %v2194
        %v2696 = vadd.f32 %v2695, %v2210
        %v2697 = vadd.f32 %v2696, %v2226
        %v2698 = vadd.f32 %v2697, %v2242
        %v2699 = vadd.f32 %v2698, %v2258
        %v2700 = vadd.f32 %v2699, %v2274
        %v2701 = vadd.f32 %v2700, %v2290
        %v2702 = vadd.f32 %v2701, %v2306
        %v2703 = vadd.f32 %v2702, %v2322
        %v2704 = vadd.f32 %v2703, %v2338
        %v2705 = vrot.slane %v2704, 4
        %v2706 = vadd.f32 %v2704, %v2705
        %v2707 = vrot.slane %v2706, 2
        %v2708 = vadd.f32 %v2706, %v2707
        %v2709 = vrot.slane %v2708, 1
        %v2710 = vadd.f32 %v2708, %v2709
        %v2711 = vadd.f32 %v2099, %v2115
        %v2712 = vadd.f32 %v2711, %v2131
        %v2713 = vadd.f32 %v2712, %v2147
        %v2714 = vadd.f32 %v2713, %v2163
        %v2715 = vadd.f32 %v2714, %v2179
        %v2716 = vadd.f32 %v2715, %v2195
        %v2717 = vadd.f32 %v2716, %v2211
        %v2718 = vadd.f32 %v2717, %v2227
        %v2719 = vadd.f32 %v2718, %v2243
        %v2720 = vadd.f32 %v2719, %v2259
        %v2721 = vadd.f32 %v2720, %v2275
        %v2722 = vadd.f32 %v2721, %v2291
        %v2723 = vadd.f32 %v2722, %v2307
        %v2724 = vadd.f32 %v2723, %v2323
        %v2725 = vadd.f32 %v2724, %v2339
        %v2726 = vrot.slane %v2725, 4
        %v2727 = vadd.f32 %v2725, %v2726
        %v2728 = vrot.slane %v2727, 2
        %v2729 = vadd.f32 %v2727, %v2728
        %v2730 = vrot.slane %v2729, 1
        %v2731 = vadd.f32 %v2729, %v2730
        %v2732 = vadd.f32 %v2100, %v2116
        %v2733 = vadd.f32 %v2732, %v2132
        %v2734 = vadd.f32 %v2733, %v2148
        %v2735 = vadd.f32 %v2734, %v2164
        %v2736 = vadd.f32 %v2735, %v2180
        %v2737 = vadd.f32 %v2736, %v2196
        %v2738 = vadd.f32 %v2737, %v2212
        %v2739 = vadd.f32 %v2738, %v2228
        %v2740 = vadd.f32 %v2739, %v2244
        %v2741 = vadd.f32 %v2740, %v2260
        %v2742 = vadd.f32 %v2741, %v2276
        %v2743 = vadd.f32 %v2742, %v2292
        %v2744 = vadd.f32 %v2743, %v2308
        %v2745 = vadd.f32 %v2744, %v2324
        %v2746 = vadd.f32 %v2745, %v2340
        %v2747 = vrot.slane %v2746, 4
        %v2748 = vadd.f32 %v2746, %v2747
        %v2749 = vrot.slane %v2748, 2
        %v2750 = vadd.f32 %v2748, %v2749
        %v2751 = vrot.slane %v2750, 1
        %v2752 = vadd.f32 %v2750, %v2751
        %v2753 = vadd.f32 %v2101, %v2117
        %v2754 = vadd.f32 %v2753, %v2133
        %v2755 = vadd.f32 %v2754, %v2149
        %v2756 = vadd.f32 %v2755, %v2165
        %v2757 = vadd.f32 %v2756, %v2181
        %v2758 = vadd.f32 %v2757, %v2197
        %v2759 = vadd.f32 %v2758, %v2213
        %v2760 = vadd.f32 %v2759, %v2229
        %v2761 = vadd.f32 %v2760, %v2245
        %v2762 = vadd.f32 %v2761, %v2261
        %v2763 = vadd.f32 %v2762, %v2277
        %v2764 = vadd.f32 %v2763, %v2293
        %v2765 = vadd.f32 %v2764, %v2309
        %v2766 = vadd.f32 %v2765, %v2325
        %v2767 = vadd.f32 %v2766, %v2341
        %v2768 = vrot.slane %v2767, 4
        %v2769 = vadd.f32 %v2767, %v2768
        %v2770 = vrot.slane %v2769, 2
        %v2771 = vadd.f32 %v2769, %v2770
        %v2772 = vrot.slane %v2771, 1
        %v2773 = vadd.f32 %v2771, %v2772
        %v2774 = vadd.f32 %v2102, %v2118
        %v2775 = vadd.f32 %v2774, %v2134
        %v2776 = vadd.f32 %v2775, %v2150
        %v2777 = vadd.f32 %v2776, %v2166
        %v2778 = vadd.f32 %v2777, %v2182
        %v2779 = vadd.f32 %v2778, %v2198
        %v2780 = vadd.f32 %v2779, %v2214
        %v2781 = vadd.f32 %v2780, %v2230
        %v2782 = vadd.f32 %v2781, %v2246
        %v2783 = vadd.f32 %v2782, %v2262
        %v2784 = vadd.f32 %v2783, %v2278
        %v2785 = vadd.f32 %v2784, %v2294
        %v2786 = vadd.f32 %v2785, %v2310
        %v2787 = vadd.f32 %v2786, %v2326
        %v2788 = vadd.f32 %v2787, %v2342
        %v2789 = vrot.slane %v2788, 4
        %v2790 = vadd.f32 %v2788, %v2789
        %v2791 = vrot.slane %v2790, 2
        %v2792 = vadd.f32 %v2790, %v2791
        %v2793 = vrot.slane %v2792, 1
        %v2794 = vadd.f32 %v2792, %v2793
        %v2795 = vadd.f32 %v2103, %v2119
        %v2796 = vadd.f32 %v2795, %v2135
        %v2797 = vadd.f32 %v2796, %v2151
        %v2798 = vadd.f32 %v2797, %v2167
        %v2799 = vadd.f32 %v2798, %v2183
        %v2800 = vadd.f32 %v2799, %v2199
        %v2801 = vadd.f32 %v2800, %v2215
        %v2802 = vadd.f32 %v2801, %v2231
        %v2803 = vadd.f32 %v2802, %v2247
        %v2804 = vadd.f32 %v2803, %v2263
        %v2805 = vadd.f32 %v2804, %v2279
        %v2806 = vadd.f32 %v2805, %v2295
        %v2807 = vadd.f32 %v2806, %v2311
        %v2808 = vadd.f32 %v2807, %v2327
        %v2809 = vadd.f32 %v2808, %v2343
        %v2810 = vrot.slane %v2809, 4
        %v2811 = vadd.f32 %v2809, %v2810
        %v2812 = vrot.slane %v2811, 2
        %v2813 = vadd.f32 %v2811, %v2812
        %v2814 = vrot.slane %v2813, 1
        %v2815 = vadd.f32 %v2813, %v2814
        %v2816 = vadd.f32 %v2104, %v2120
        %v2817 = vadd.f32 %v2816, %v2136
        %v2818 = vadd.f32 %v2817, %v2152
        %v2819 = vadd.f32 %v2818, %v2168
        %v2820 = vadd.f32 %v2819, %v2184
        %v2821 = vadd.f32 %v2820, %v2200
        %v2822 = vadd.f32 %v2821, %v2216
        %v2823 = vadd.f32 %v2822, %v2232
        %v2824 = vadd.f32 %v2823, %v2248
        %v2825 = vadd.f32 %v2824, %v2264
        %v2826 = vadd.f32 %v2825, %v2280
        %v2827 = vadd.f32 %v2826, %v2296
        %v2828 = vadd.f32 %v2827, %v2312
        %v2829 = vadd.f32 %v2828, %v2328
        %v2830 = vadd.f32 %v2829, %v2344
        %v2831 = vrot.slane %v2830, 4
        %v2832 = vadd.f32 %v2830, %v2831
        %v2833 = vrot.slane %v2832, 2
        %v2834 = vadd.f32 %v2832, %v2833
        %v2835 = vrot.slane %v2834, 1
        %v2836 = vadd.f32 %v2834, %v2835
        %v2837 = vadd.f32 %v2105, %v2121
        %v2838 = vadd.f32 %v2837, %v2137
        %v2839 = vadd.f32 %v2838, %v2153
        %v2840 = vadd.f32 %v2839, %v2169
        %v2841 = vadd.f32 %v2840, %v2185
        %v2842 = vadd.f32 %v2841, %v2201
        %v2843 = vadd.f32 %v2842, %v2217
        %v2844 = vadd.f32 %v2843, %v2233
        %v2845 = vadd.f32 %v2844, %v2249
        %v2846 = vadd.f32 %v2845, %v2265
        %v2847 = vadd.f32 %v2846, %v2281
        %v2848 = vadd.f32 %v2847, %v2297
        %v2849 = vadd.f32 %v2848, %v2313
        %v2850 = vadd.f32 %v2849, %v2329
        %v2851 = vadd.f32 %v2850, %v2345
        %v2852 = vrot.slane %v2851, 4
        %v2853 = vadd.f32 %v2851, %v2852
        %v2854 = vrot.slane %v2853, 2
        %v2855 = vadd.f32 %v2853, %v2854
        %v2856 = vrot.slane %v2855, 1
        %v2857 = vadd.f32 %v2855, %v2856
        %v2858 = vadd.f32 %v2106, %v2122
        %v2859 = vadd.f32 %v2858, %v2138
        %v2860 = vadd.f32 %v2859, %v2154
        %v2861 = vadd.f32 %v2860, %v2170
        %v2862 = vadd.f32 %v2861, %v2186
        %v2863 = vadd.f32 %v2862, %v2202
        %v2864 = vadd.f32 %v2863, %v2218
        %v2865 = vadd.f32 %v2864, %v2234
        %v2866 = vadd.f32 %v2865, %v2250
        %v2867 = vadd.f32 %v2866, %v2266
        %v2868 = vadd.f32 %v2867, %v2282
        %v2869 = vadd.f32 %v2868, %v2298
        %v2870 = vadd.f32 %v2869, %v2314
        %v2871 = vadd.f32 %v2870, %v2330
        %v2872 = vadd.f32 %v2871, %v2346
        %v2873 = vrot.slane %v2872, 4
        %v2874 = vadd.f32 %v2872, %v2873
        %v2875 = vrot.slane %v2874, 2
        %v2876 = vadd.f32 %v2874, %v2875
        %v2877 = vrot.slane %v2876, 1
        %v2878 = vadd.f32 %v2876, %v2877
        %v2879 = vadd.f32 %v2107, %v2123
        %v2880 = vadd.f32 %v2879, %v2139
        %v2881 = vadd.f32 %v2880, %v2155
        %v2882 = vadd.f32 %v2881, %v2171
        %v2883 = vadd.f32 %v2882, %v2187
        %v2884 = vadd.f32 %v2883, %v2203
        %v2885 = vadd.f32 %v2884, %v2219
        %v2886 = vadd.f32 %v2885, %v2235
        %v2887 = vadd.f32 %v2886, %v2251
        %v2888 = vadd.f32 %v2887, %v2267
        %v2889 = vadd.f32 %v2888, %v2283
        %v2890 = vadd.f32 %v2889, %v2299
        %v2891 = vadd.f32 %v2890, %v2315
        %v2892 = vadd.f32 %v2891, %v2331
        %v2893 = vadd.f32 %v2892, %v2347
        %v2894 = vrot.slane %v2893, 4
        %v2895 = vadd.f32 %v2893, %v2894
        %v2896 = vrot.slane %v2895, 2
        %v2897 = vadd.f32 %v2895, %v2896
        %v2898 = vrot.slane %v2897, 1
        %v2899 = vadd.f32 %v2897, %v2898
        %v2900 = vadd.f32 %v2108, %v2124
        %v2901 = vadd.f32 %v2900, %v2140
        %v2902 = vadd.f32 %v2901, %v2156
        %v2903 = vadd.f32 %v2902, %v2172
        %v2904 = vadd.f32 %v2903, %v2188
        %v2905 = vadd.f32 %v2904, %v2204
        %v2906 = vadd.f32 %v2905, %v2220
        %v2907 = vadd.f32 %v2906, %v2236
        %v2908 = vadd.f32 %v2907, %v2252
        %v2909 = vadd.f32 %v2908, %v2268
        %v2910 = vadd.f32 %v2909, %v2284
        %v2911 = vadd.f32 %v2910, %v2300
        %v2912 = vadd.f32 %v2911, %v2316
        %v2913 = vadd.f32 %v2912, %v2332
        %v2914 = vadd.f32 %v2913, %v2348
        %v2915 = vrot.slane %v2914, 4
        %v2916 = vadd.f32 %v2914, %v2915
        %v2917 = vrot.slane %v2916, 2
        %v2918 = vadd.f32 %v2916, %v2917
        %v2919 = vrot.slane %v2918, 1
        %v2920 = vadd.f32 %v2918, %v2919
        %v2921 = vadd.f32 %v2109, %v2125
        %v2922 = vadd.f32 %v2921, %v2141
        %v2923 = vadd.f32 %v2922, %v2157
        %v2924 = vadd.f32 %v2923, %v2173
        %v2925 = vadd.f32 %v2924, %v2189
        %v2926 = vadd.f32 %v2925, %v2205
        %v2927 = vadd.f32 %v2926, %v2221
        %v2928 = vadd.f32 %v2927, %v2237
        %v2929 = vadd.f32 %v2928, %v2253
        %v2930 = vadd.f32 %v2929, %v2269
        %v2931 = vadd.f32 %v2930, %v2285
        %v2932 = vadd.f32 %v2931, %v2301
        %v2933 = vadd.f32 %v2932, %v2317
        %v2934 = vadd.f32 %v2933, %v2333
        %v2935 = vadd.f32 %v2934, %v2349
        %v2936 = vrot.slane %v2935, 4
        %v2937 = vadd.f32 %v2935, %v2936
        %v2938 = vrot.slane %v2937, 2
        %v2939 = vadd.f32 %v2937, %v2938
        %v2940 = vrot.slane %v2939, 1
        %v2941 = vadd.f32 %v2939, %v2940
        %v2942 = vadd.f32 %v2350, %v2366
        %v2943 = vadd.f32 %v2942, %v2382
        %v2944 = vadd.f32 %v2943, %v2398
        %v2945 = vadd.f32 %v2944, %v2414
        %v2946 = vadd.f32 %v2945, %v2430
        %v2947 = vadd.f32 %v2946, %v2446
        %v2948 = vadd.f32 %v2947, %v2462
        %v2949 = vadd.f32 %v2948, %v2478
        %v2950 = vadd.f32 %v2949, %v2494
        %v2951 = vadd.f32 %v2950, %v2510
        %v2952 = vadd.f32 %v2951, %v2526
        %v2953 = vadd.f32 %v2952, %v2542
        %v2954 = vadd.f32 %v2953, %v2558
        %v2955 = vadd.f32 %v2954, %v2574
        %v2956 = vadd.f32 %v2955, %v2590
        %v2957 = vrot.slane %v2956, 4
        %v2958 = vadd.f32 %v2956, %v2957
        %v2959 = vrot.slane %v2958, 2
        %v2960 = vadd.f32 %v2958, %v2959
        %v2961 = vrot.slane %v2960, 1
        %v2962 = vadd.f32 %v2960, %v2961
        %v2963 = vadd.f32 %v2351, %v2367
        %v2964 = vadd.f32 %v2963, %v2383
        %v2965 = vadd.f32 %v2964, %v2399
        %v2966 = vadd.f32 %v2965, %v2415
        %v2967 = vadd.f32 %v2966, %v2431
        %v2968 = vadd.f32 %v2967, %v2447
        %v2969 = vadd.f32 %v2968, %v2463
        %v2970 = vadd.f32 %v2969, %v2479
        %v2971 = vadd.f32 %v2970, %v2495
        %v2972 = vadd.f32 %v2971, %v2511
        %v2973 = vadd.f32 %v2972, %v2527
        %v2974 = vadd.f32 %v2973, %v2543
        %v2975 = vadd.f32 %v2974, %v2559
        %v2976 = vadd.f32 %v2975, %v2575
        %v2977 = vadd.f32 %v2976, %v2591
        %v2978 = vrot.slane %v2977, 4
        %v2979 = vadd.f32 %v2977, %v2978
        %v2980 = vrot.slane %v2979, 2
        %v2981 = vadd.f32 %v2979, %v2980
        %v2982 = vrot.slane %v2981, 1
        %v2983 = vadd.f32 %v2981, %v2982
        %v2984 = vadd.f32 %v2352, %v2368
        %v2985 = vadd.f32 %v2984, %v2384
        %v2986 = vadd.f32 %v2985, %v2400
        %v2987 = vadd.f32 %v2986, %v2416
        %v2988 = vadd.f32 %v2987, %v2432
        %v2989 = vadd.f32 %v2988, %v2448
        %v2990 = vadd.f32 %v2989, %v2464
        %v2991 = vadd.f32 %v2990, %v2480
        %v2992 = vadd.f32 %v2991, %v2496
        %v2993 = vadd.f32 %v2992, %v2512
        %v2994 = vadd.f32 %v2993, %v2528
        %v2995 = vadd.f32 %v2994, %v2544
        %v2996 = vadd.f32 %v2995, %v2560
        %v2997 = vadd.f32 %v2996, %v2576
        %v2998 = vadd.f32 %v2997, %v2592
        %v2999 = vrot.slane %v2998, 4
        %v3000 = vadd.f32 %v2998, %v2999
        %v3001 = vrot.slane %v3000, 2
        %v3002 = vadd.f32 %v3000, %v3001
        %v3003 = vrot.slane %v3002, 1
        %v3004 = vadd.f32 %v3002, %v3003
        %v3005 = vadd.f32 %v2353, %v2369
        %v3006 = vadd.f32 %v3005, %v2385
        %v3007 = vadd.f32 %v3006, %v2401
        %v3008 = vadd.f32 %v3007, %v2417
        %v3009 = vadd.f32 %v3008, %v2433
        %v3010 = vadd.f32 %v3009, %v2449
        %v3011 = vadd.f32 %v3010, %v2465
        %v3012 = vadd.f32 %v3011, %v2481
        %v3013 = vadd.f32 %v3012, %v2497
        %v3014 = vadd.f32 %v3013, %v2513
        %v3015 = vadd.f32 %v3014, %v2529
        %v3016 = vadd.f32 %v3015, %v2545
        %v3017 = vadd.f32 %v3016, %v2561
        %v3018 = vadd.f32 %v3017, %v2577
        %v3019 = vadd.f32 %v3018, %v2593
        %v3020 = vrot.slane %v3019, 4
        %v3021 = vadd.f32 %v3019, %v3020
        %v3022 = vrot.slane %v3021, 2
        %v3023 = vadd.f32 %v3021, %v3022
        %v3024 = vrot.slane %v3023, 1
        %v3025 = vadd.f32 %v3023, %v3024
        %v3026 = vadd.f32 %v2354, %v2370
        %v3027 = vadd.f32 %v3026, %v2386
        %v3028 = vadd.f32 %v3027, %v2402
        %v3029 = vadd.f32 %v3028, %v2418
        %v3030 = vadd.f32 %v3029, %v2434
        %v3031 = vadd.f32 %v3030, %v2450
        %v3032 = vadd.f32 %v3031, %v2466
        %v3033 = vadd.f32 %v3032, %v2482
        %v3034 = vadd.f32 %v3033, %v2498
        %v3035 = vadd.f32 %v3034, %v2514
        %v3036 = vadd.f32 %v3035, %v2530
        %v3037 = vadd.f32 %v3036, %v2546
        %v3038 = vadd.f32 %v3037, %v2562
        %v3039 = vadd.f32 %v3038, %v2578
        %v3040 = vadd.f32 %v3039, %v2594
        %v3041 = vrot.slane %v3040, 4
        %v3042 = vadd.f32 %v3040, %v3041
        %v3043 = vrot.slane %v3042, 2
        %v3044 = vadd.f32 %v3042, %v3043
        %v3045 = vrot.slane %v3044, 1
        %v3046 = vadd.f32 %v3044, %v3045
        %v3047 = vadd.f32 %v2355, %v2371
        %v3048 = vadd.f32 %v3047, %v2387
        %v3049 = vadd.f32 %v3048, %v2403
        %v3050 = vadd.f32 %v3049, %v2419
        %v3051 = vadd.f32 %v3050, %v2435
        %v3052 = vadd.f32 %v3051, %v2451
        %v3053 = vadd.f32 %v3052, %v2467
        %v3054 = vadd.f32 %v3053, %v2483
        %v3055 = vadd.f32 %v3054, %v2499
        %v3056 = vadd.f32 %v3055, %v2515
        %v3057 = vadd.f32 %v3056, %v2531
        %v3058 = vadd.f32 %v3057, %v2547
        %v3059 = vadd.f32 %v3058, %v2563
        %v3060 = vadd.f32 %v3059, %v2579
        %v3061 = vadd.f32 %v3060, %v2595
        %v3062 = vrot.slane %v3061, 4
        %v3063 = vadd.f32 %v3061, %v3062
        %v3064 = vrot.slane %v3063, 2
        %v3065 = vadd.f32 %v3063, %v3064
        %v3066 = vrot.slane %v3065, 1
        %v3067 = vadd.f32 %v3065, %v3066
        %v3068 = vadd.f32 %v2356, %v2372
        %v3069 = vadd.f32 %v3068, %v2388
        %v3070 = vadd.f32 %v3069, %v2404
        %v3071 = vadd.f32 %v3070, %v2420
        %v3072 = vadd.f32 %v3071, %v2436
        %v3073 = vadd.f32 %v3072, %v2452
        %v3074 = vadd.f32 %v3073, %v2468
        %v3075 = vadd.f32 %v3074, %v2484
        %v3076 = vadd.f32 %v3075, %v2500
        %v3077 = vadd.f32 %v3076, %v2516
        %v3078 = vadd.f32 %v3077, %v2532
        %v3079 = vadd.f32 %v3078, %v2548
        %v3080 = vadd.f32 %v3079, %v2564
        %v3081 = vadd.f32 %v3080, %v2580
        %v3082 = vadd.f32 %v3081, %v2596
        %v3083 = vrot.slane %v3082, 4
        %v3084 = vadd.f32 %v3082, %v3083
        %v3085 = vrot.slane %v3084, 2
        %v3086 = vadd.f32 %v3084, %v3085
        %v3087 = vrot.slane %v3086, 1
        %v3088 = vadd.f32 %v3086, %v3087
        %v3089 = vadd.f32 %v2357, %v2373
        %v3090 = vadd.f32 %v3089, %v2389
        %v3091 = vadd.f32 %v3090, %v2405
        %v3092 = vadd.f32 %v3091, %v2421
        %v3093 = vadd.f32 %v3092, %v2437
        %v3094 = vadd.f32 %v3093, %v2453
        %v3095 = vadd.f32 %v3094, %v2469
        %v3096 = vadd.f32 %v3095, %v2485
        %v3097 = vadd.f32 %v3096, %v2501
        %v3098 = vadd.f32 %v3097, %v2517
        %v3099 = vadd.f32 %v3098, %v2533
        %v3100 = vadd.f32 %v3099, %v2549
        %v3101 = vadd.f32 %v3100, %v2565
        %v3102 = vadd.f32 %v3101, %v2581
        %v3103 = vadd.f32 %v3102, %v2597
        %v3104 = vrot.slane %v3103, 4
        %v3105 = vadd.f32 %v3103, %v3104
        %v3106 = vrot.slane %v3105, 2
        %v3107 = vadd.f32 %v3105, %v3106
        %v3108 = vrot.slane %v3107, 1
        %v3109 = vadd.f32 %v3107, %v3108
        %v3110 = vadd.f32 %v2358, %v2374
        %v3111 = vadd.f32 %v3110, %v2390
        %v3112 = vadd.f32 %v3111, %v2406
        %v3113 = vadd.f32 %v3112, %v2422
        %v3114 = vadd.f32 %v3113, %v2438
        %v3115 = vadd.f32 %v3114, %v2454
        %v3116 = vadd.f32 %v3115, %v2470
        %v3117 = vadd.f32 %v3116, %v2486
        %v3118 = vadd.f32 %v3117, %v2502
        %v3119 = vadd.f32 %v3118, %v2518
        %v3120 = vadd.f32 %v3119, %v2534
        %v3121 = vadd.f32 %v3120, %v2550
        %v3122 = vadd.f32 %v3121, %v2566
        %v3123 = vadd.f32 %v3122, %v2582
        %v3124 = vadd.f32 %v3123, %v2598
        %v3125 = vrot.slane %v3124, 4
        %v3126 = vadd.f32 %v3124, %v3125
        %v3127 = vrot.slane %v3126, 2
        %v3128 = vadd.f32 %v3126, %v3127
        %v3129 = vrot.slane %v3128, 1
        %v3130 = vadd.f32 %v3128, %v3129
        %v3131 = vadd.f32 %v2359, %v2375
        %v3132 = vadd.f32 %v3131, %v2391
        %v3133 = vadd.f32 %v3132, %v2407
        %v3134 = vadd.f32 %v3133, %v2423
        %v3135 = vadd.f32 %v3134, %v2439
        %v3136 = vadd.f32 %v3135, %v2455
        %v3137 = vadd.f32 %v3136, %v2471
        %v3138 = vadd.f32 %v3137, %v2487
        %v3139 = vadd.f32 %v3138, %v2503
        %v3140 = vadd.f32 %v3139, %v2519
        %v3141 = vadd.f32 %v3140, %v2535
        %v3142 = vadd.f32 %v3141, %v2551
        %v3143 = vadd.f32 %v3142, %v2567
        %v3144 = vadd.f32 %v3143, %v2583
        %v3145 = vadd.f32 %v3144, %v2599
        %v3146 = vrot.slane %v3145, 4
        %v3147 = vadd.f32 %v3145, %v3146
        %v3148 = vrot.slane %v3147, 2
        %v3149 = vadd.f32 %v3147, %v3148
        %v3150 = vrot.slane %v3149, 1
        %v3151 = vadd.f32 %v3149, %v3150
        %v3152 = vadd.f32 %v2360, %v2376
        %v3153 = vadd.f32 %v3152, %v2392
        %v3154 = vadd.f32 %v3153, %v2408
        %v3155 = vadd.f32 %v3154, %v2424
        %v3156 = vadd.f32 %v3155, %v2440
        %v3157 = vadd.f32 %v3156, %v2456
        %v3158 = vadd.f32 %v3157, %v2472
        %v3159 = vadd.f32 %v3158, %v2488
        %v3160 = vadd.f32 %v3159, %v2504
        %v3161 = vadd.f32 %v3160, %v2520
        %v3162 = vadd.f32 %v3161, %v2536
        %v3163 = vadd.f32 %v3162, %v2552
        %v3164 = vadd.f32 %v3163, %v2568
        %v3165 = vadd.f32 %v3164, %v2584
        %v3166 = vadd.f32 %v3165, %v2600
        %v3167 = vrot.slane %v3166, 4
        %v3168 = vadd.f32 %v3166, %v3167
        %v3169 = vrot.slane %v3168, 2
        %v3170 = vadd.f32 %v3168, %v3169
        %v3171 = vrot.slane %v3170, 1
        %v3172 = vadd.f32 %v3170, %v3171
        %v3173 = vadd.f32 %v2361, %v2377
        %v3174 = vadd.f32 %v3173, %v2393
        %v3175 = vadd.f32 %v3174, %v2409
        %v3176 = vadd.f32 %v3175, %v2425
        %v3177 = vadd.f32 %v3176, %v2441
        %v3178 = vadd.f32 %v3177, %v2457
        %v3179 = vadd.f32 %v3178, %v2473
        %v3180 = vadd.f32 %v3179, %v2489
        %v3181 = vadd.f32 %v3180, %v2505
        %v3182 = vadd.f32 %v3181, %v2521
        %v3183 = vadd.f32 %v3182, %v2537
        %v3184 = vadd.f32 %v3183, %v2553
        %v3185 = vadd.f32 %v3184, %v2569
        %v3186 = vadd.f32 %v3185, %v2585
        %v3187 = vadd.f32 %v3186, %v2601
        %v3188 = vrot.slane %v3187, 4
        %v3189 = vadd.f32 %v3187, %v3188
        %v3190 = vrot.slane %v3189, 2
        %v3191 = vadd.f32 %v3189, %v3190
        %v3192 = vrot.slane %v3191, 1
        %v3193 = vadd.f32 %v3191, %v3192
        %v3194 = vadd.f32 %v2362, %v2378
        %v3195 = vadd.f32 %v3194, %v2394
        %v3196 = vadd.f32 %v3195, %v2410
        %v3197 = vadd.f32 %v3196, %v2426
        %v3198 = vadd.f32 %v3197, %v2442
        %v3199 = vadd.f32 %v3198, %v2458
        %v3200 = vadd.f32 %v3199, %v2474
        %v3201 = vadd.f32 %v3200, %v2490
        %v3202 = vadd.f32 %v3201, %v2506
        %v3203 = vadd.f32 %v3202, %v2522
        %v3204 = vadd.f32 %v3203, %v2538
        %v3205 = vadd.f32 %v3204, %v2554
        %v3206 = vadd.f32 %v3205, %v2570
        %v3207 = vadd.f32 %v3206, %v2586
        %v3208 = vadd.f32 %v3207, %v2602
        %v3209 = vrot.slane %v3208, 4
        %v3210 = vadd.f32 %v3208, %v3209
        %v3211 = vrot.slane %v3210, 2
        %v3212 = vadd.f32 %v3210, %v3211
        %v3213 = vrot.slane %v3212, 1
        %v3214 = vadd.f32 %v3212, %v3213
        %v3215 = vadd.f32 %v2363, %v2379
        %v3216 = vadd.f32 %v3215, %v2395
        %v3217 = vadd.f32 %v3216, %v2411
        %v3218 = vadd.f32 %v3217, %v2427
        %v3219 = vadd.f32 %v3218, %v2443
        %v3220 = vadd.f32 %v3219, %v2459
        %v3221 = vadd.f32 %v3220, %v2475
        %v3222 = vadd.f32 %v3221, %v2491
        %v3223 = vadd.f32 %v3222, %v2507
        %v3224 = vadd.f32 %v3223, %v2523
        %v3225 = vadd.f32 %v3224, %v2539
        %v3226 = vadd.f32 %v3225, %v2555
        %v3227 = vadd.f32 %v3226, %v2571
        %v3228 = vadd.f32 %v3227, %v2587
        %v3229 = vadd.f32 %v3228, %v2603
        %v3230 = vrot.slane %v3229, 4
        %v3231 = vadd.f32 %v3229, %v3230
        %v3232 = vrot.slane %v3231, 2
        %v3233 = vadd.f32 %v3231, %v3232
        %v3234 = vrot.slane %v3233, 1
        %v3235 = vadd.f32 %v3233, %v3234
        %v3236 = vadd.f32 %v2364, %v2380
        %v3237 = vadd.f32 %v3236, %v2396
        %v3238 = vadd.f32 %v3237, %v2412
        %v3239 = vadd.f32 %v3238, %v2428
        %v3240 = vadd.f32 %v3239, %v2444
        %v3241 = vadd.f32 %v3240, %v2460
        %v3242 = vadd.f32 %v3241, %v2476
        %v3243 = vadd.f32 %v3242, %v2492
        %v3244 = vadd.f32 %v3243, %v2508
        %v3245 = vadd.f32 %v3244, %v2524
        %v3246 = vadd.f32 %v3245, %v2540
        %v3247 = vadd.f32 %v3246, %v2556
        %v3248 = vadd.f32 %v3247, %v2572
        %v3249 = vadd.f32 %v3248, %v2588
        %v3250 = vadd.f32 %v3249, %v2604
        %v3251 = vrot.slane %v3250, 4
        %v3252 = vadd.f32 %v3250, %v3251
        %v3253 = vrot.slane %v3252, 2
        %v3254 = vadd.f32 %v3252, %v3253
        %v3255 = vrot.slane %v3254, 1
        %v3256 = vadd.f32 %v3254, %v3255
        %v3257 = vadd.f32 %v2365, %v2381
        %v3258 = vadd.f32 %v3257, %v2397
        %v3259 = vadd.f32 %v3258, %v2413
        %v3260 = vadd.f32 %v3259, %v2429
        %v3261 = vadd.f32 %v3260, %v2445
        %v3262 = vadd.f32 %v3261, %v2461
        %v3263 = vadd.f32 %v3262, %v2477
        %v3264 = vadd.f32 %v3263, %v2493
        %v3265 = vadd.f32 %v3264, %v2509
        %v3266 = vadd.f32 %v3265, %v2525
        %v3267 = vadd.f32 %v3266, %v2541
        %v3268 = vadd.f32 %v3267, %v2557
        %v3269 = vadd.f32 %v3268, %v2573
        %v3270 = vadd.f32 %v3269, %v2589
        %v3271 = vadd.f32 %v3270, %v2605
        %v3272 = vrot.slane %v3271, 4
        %v3273 = vadd.f32 %v3271, %v3272
        %v3274 = vrot.slane %v3273, 2
        %v3275 = vadd.f32 %v3273, %v3274
        %v3276 = vrot.slane %v3275, 1
        %v3277 = vadd.f32 %v3275, %v3276
        %v3278 = vld [vmem:[#allocation2] sm:$0xff]
        %v3279 = vld [vmem:[#allocation2 + $0x8] sm:$0xff]
        %v3280 = vld [vmem:[#allocation2 + $0x10] sm:$0xff]
        %v3281 = vld [vmem:[#allocation2 + $0x18] sm:$0xff]
        %v3314 = vrot.slane %v2647, 6
        %v3315 = vrot.slane %v2668, 4
        %v3316 = vrot.slane %v2689, 2
        %v3317 = vrot.slane %v2731, 6
        %v3318 = vrot.slane %v2752, 4
        %v3319 = vrot.slane %v2773, 2
        %v3320 = vrot.slane %v2815, 6
        %v3321 = vrot.slane %v2836, 4
        %v3322 = vrot.slane %v2857, 2
        %v3323 = vrot.slane %v2899, 6
        %v3324 = vrot.slane %v2920, 4
        %v3325 = vrot.slane %v2941, 2
        %v3326 = vrot.slane %v2983, 6
        %v3327 = vrot.slane %v3004, 4
        %v3328 = vrot.slane %v3025, 2
        %v3329 = vrot.slane %v3067, 6
        %v3330 = vrot.slane %v3088, 4
        %v3331 = vrot.slane %v3109, 2
        %v3332 = vrot.slane %v3151, 6
        %v3333 = vrot.slane %v3172, 4
        %v3334 = vrot.slane %v3193, 2
        %v3335 = vrot.slane %v3235, 6
        %v3336 = vrot.slane %v3256, 4
        %v3337 = vrot.slane %v3277, 2
        %v3338 = vsel %vm637, %v2626, %v3314
        %vm3339 = vcmask 1045508
        %v3340 = vsel %vm3339, %v3315, %v3316
        %vm3341 = vcmask 1043456
        %v3342 = vsel %vm3341, %v3338, %v3340
        %v3343 = vsel %vm637, %v2710, %v3317
        %v3344 = vsel %vm3339, %v3318, %v3319
        %v3345 = vsel %vm3341, %v3343, %v3344
        %v3346 = vsel %vm637, %v2794, %v3320
        %v3347 = vsel %vm3339, %v3321, %v3322
        %v3348 = vsel %vm3341, %v3346, %v3347
        %v3349 = vsel %vm637, %v2878, %v3323
        %v3350 = vsel %vm3339, %v3324, %v3325
        %v3351 = vsel %vm3341, %v3349, %v3350
        %v3352 = vsel %vm637, %v2962, %v3326
        %v3353 = vsel %vm3339, %v3327, %v3328
        %v3354 = vsel %vm3341, %v3352, %v3353
        %v3355 = vsel %vm637, %v3046, %v3329
        %v3356 = vsel %vm3339, %v3330, %v3331
        %v3357 = vsel %vm3341, %v3355, %v3356
        %v3358 = vsel %vm637, %v3130, %v3332
        %v3359 = vsel %vm3339, %v3333, %v3334
        %v3360 = vsel %vm3341, %v3358, %v3359
        %v3361 = vsel %vm637, %v3214, %v3335
        %v3362 = vsel %vm3339, %v3336, %v3337
        %v3363 = vsel %vm3341, %v3361, %v3362
        %vm3364 = vcmask 1042434
        %vm3365 = vcmask 1044484
        %v3366 = vsel %vm3365, %v3342, %v3342
        %vm3367 = vcmask 1046534
        %v3368 = vsel %vm3367, %v3342, %v3366
        %v3369 = vrot.slane %v3354, 7
        %vm3370 = vcmask 1041409
        %v3371 = vsel %vm3370, %v3369, %v3368
        %vm3372 = vcmask 1043459
        %v3373 = vsel %vm3372, %v3369, %v3371
        %vm3374 = vcmask 1045509
        %v3375 = vsel %vm3374, %v3369, %v3373
        %vm3376 = vcmask 1047559
        %v3377 = vsel %vm3376, %v3369, %v3375
        %v3378 = vsel %vm3365, %v3345, %v3345
        %v3379 = vsel %vm3367, %v3345, %v3378
        %v3380 = vrot.slane %v3357, 7
        %v3381 = vsel %vm3370, %v3380, %v3379
        %v3382 = vsel %vm3372, %v3380, %v3381
        %v3383 = vsel %vm3374, %v3380, %v3382
        %v3384 = vsel %vm3376, %v3380, %v3383
        %v3385 = vsel %vm3365, %v3348, %v3348
        %v3386 = vsel %vm3367, %v3348, %v3385
        %v3387 = vrot.slane %v3360, 7
        %v3388 = vsel %vm3370, %v3387, %v3386
        %v3389 = vsel %vm3372, %v3387, %v3388
        %v3390 = vsel %vm3374, %v3387, %v3389
        %v3391 = vsel %vm3376, %v3387, %v3390
        %v3392 = vsel %vm3365, %v3351, %v3351
        %v3393 = vsel %vm3367, %v3351, %v3392
        %v3394 = vrot.slane %v3363, 7
        %v3395 = vsel %vm3370, %v3394, %v3393
        %v3396 = vsel %vm3372, %v3394, %v3395
        %v3397 = vsel %vm3374, %v3394, %v3396
        %v3398 = vsel %vm3376, %v3394, %v3397
        %v3403 = vadd.f32 %v3278, %v3377
        %v3404 = vadd.f32 %v3279, %v3384
        %v3405 = vadd.f32 %v3280, %v3391
        %v3406 = vadd.f32 %v3281, %v3398
        %3407 = vst [vmem:[#allocation2] sm:$0xff] %v3403
        %3408 = vst [vmem:[#allocation2 + $0x8] sm:$0xff] %v3404
        %3409 = vst [vmem:[#allocation2 + $0x10] sm:$0xff] %v3405
        %3410 = vst [vmem:[#allocation2 + $0x18] sm:$0xff] %v3406
        %p3411 = scmp.eq.s32.totalorder %s23, 1
        // Predicated region
        $region82: #{ide_forward.2} parent=68 // pred_check
          %p3412 = pneg %p3411
        $region83: #{ide_forward.2} parent=68 // pred_check_branch
          %3414 = sbr.rel (%p3412) target = $region85
        $region84: #{ide_forward.2} parent=68 // pred_region
          %v3415 = vld [vmem:[#allocation2] sm:$0xff]
          %v3416 = vld [vmem:[#allocation2 + $0x8] sm:$0xff]
          %v3417 = vld [vmem:[#allocation2 + $0x10] sm:$0xff]
          %v3418 = vld [vmem:[#allocation2 + $0x18] sm:$0xff]
          %v3419 = vmul.f32 %v3415, 0.00390625
          %v3420 = vmul.f32 %v3416, 0.00390625
          %v3421 = vmul.f32 %v3417, 0.00390625
          %v3422 = vmul.f32 %v3418, 0.00390625
          %3423 = vst [vmem:[#allocation7] sm:$0xff] %v3419
          %3424 = vst [vmem:[#allocation7 + $0x8] sm:$0xff] %v3420
          %3425 = vst [vmem:[#allocation7 + $0x10] sm:$0xff] %v3421
          %3426 = vst [vmem:[#allocation7 + $0x18] sm:$0xff] %v3422
          %3431 = vst [vmem:[#allocation1] ss:$4 sm:$0xff] %v3419
          %s3432 = scalar_lea.vmem [#allocation1], 32
          %3433 = vst [vmem:[%s3432] ss:$4 sm:$0xff] %v3420
          %v3434 = vld.sshfl [vmem:[#allocation1] sm:$0xff pattern:$0x73625140]
          %v3435 = vld.sshfl [vmem:[#allocation1 + $0x8] sm:$0xff pattern:$0x73625140]
          %v3436 = vld.sshfl [vmem:[#allocation1 + $0x10] sm:$0xff pattern:$0x73625140]
          %v3437 = vld.sshfl [vmem:[#allocation1 + $0x18] sm:$0xff pattern:$0x73625140]
          %v3438 = vld.sshfl [vmem:[#allocation1 + $0x20] sm:$0xff pattern:$0x73625140]
          %v3439 = vld.sshfl [vmem:[#allocation1 + $0x28] sm:$0xff pattern:$0x73625140]
          %v3440 = vld.sshfl [vmem:[#allocation1 + $0x30] sm:$0xff pattern:$0x73625140]
          %v3441 = vld.sshfl [vmem:[#allocation1 + $0x38] sm:$0xff pattern:$0x73625140]
          %3442 = vst [vmem:[#allocation1] ss:$4 sm:$0xff] %v3421
          %3443 = vst [vmem:[%s3432] ss:$4 sm:$0xff] %v3422
          %v3444 = vld.sshfl [vmem:[#allocation1] sm:$0xff pattern:$0x73625140]
          %v3445 = vld.sshfl [vmem:[#allocation1 + $0x8] sm:$0xff pattern:$0x73625140]
          %v3446 = vld.sshfl [vmem:[#allocation1 + $0x10] sm:$0xff pattern:$0x73625140]
          %v3447 = vld.sshfl [vmem:[#allocation1 + $0x18] sm:$0xff pattern:$0x73625140]
          %v3448 = vld.sshfl [vmem:[#allocation1 + $0x20] sm:$0xff pattern:$0x73625140]
          %v3449 = vld.sshfl [vmem:[#allocation1 + $0x28] sm:$0xff pattern:$0x73625140]
          %v3450 = vld.sshfl [vmem:[#allocation1 + $0x30] sm:$0xff pattern:$0x73625140]
          %v3451 = vld.sshfl [vmem:[#allocation1 + $0x38] sm:$0xff pattern:$0x73625140]
          %v3468 = vpack.c.bf16 %v3435, %v3434
          %v3469 = vpack.c.bf16 %v3437, %v3436
          %v3470 = vpack.c.bf16 %v3439, %v3438
          %v3471 = vpack.c.bf16 %v3441, %v3440
          %v3472 = vpack.c.bf16 %v3445, %v3444
          %v3473 = vpack.c.bf16 %v3447, %v3446
          %v3474 = vpack.c.bf16 %v3449, %v3448
          %v3475 = vpack.c.bf16 %v3451, %v3450
          %v3484 = vrot.slane %v3468, 3
          %v3485 = vrot.slane %v3469, 6
          %v3486 = vrot.slane %v3469, 1
          %v3487 = vrot.slane %v3470, 4
          %v3488 = vrot.slane %v3470, 7
          %v3489 = vrot.slane %v3471, 2
          %v3490 = vrot.slane %v3471, 5
          %v3491 = vrot.slane %v3472, 3
          %v3492 = vrot.slane %v3473, 6
          %v3493 = vrot.slane %v3473, 1
          %v3494 = vrot.slane %v3474, 4
          %v3495 = vrot.slane %v3474, 7
          %v3496 = vrot.slane %v3475, 2
          %v3497 = vrot.slane %v3475, 5
          %vm3498 = vcmask 1040384
          %v3501 = vsel %vm3498, %v3468, %v3484
          %v3504 = vsel %vm3364, %v3485, %v3486
          %v3505 = vsel %vm637, %v3501, %v3504
          %v3508 = vsel %vm3365, %v3487, %v3488
          %v3511 = vsel %vm3367, %v3489, %v3490
          %v3512 = vsel %vm3339, %v3508, %v3511
          %v3513 = vsel %vm3341, %v3505, %v3512
          %v3516 = vsel %vm3498, %v3472, %v3491
          %v3519 = vsel %vm3364, %v3492, %v3493
          %v3520 = vsel %vm637, %v3516, %v3519
          %v3523 = vsel %vm3365, %v3494, %v3495
          %v3526 = vsel %vm3367, %v3496, %v3497
          %v3527 = vsel %vm3339, %v3523, %v3526
          %v3528 = vsel %vm3341, %v3520, %v3527
          %3531 = vst [vmem:[%s401] sm:$0xff] %v3513
          %3532 = vst [vmem:[%s401 + $0x8] sm:$0xff] %v3528
        $region85: #{ide_forward.2} parent=68 // pred_fallthru
          _
        %p3533 = scmp.lt.s32.totalorder %s22, 0
        %s3534 = scalar_select %p3533, %s22, 0
        %s3535 = smul.addr %s3534, 16
        %s3536 = scalar_lea.vmem %s4, %s3535
        // Predicated region
        $region86: #{ide_forward.2} parent=68 // pred_check
          %p3537 = pneg %p118
        $region87: #{ide_forward.2} parent=68 // pred_check_branch
          %3539 = sbr.rel (%p3537) target = $region89
        $region88: #{ide_forward.2} parent=68 // pred_region
          %3541 = vsyncadd [#allocation6], 0
          %s3542 = smul.addr %s22, 16
          %s3543 = smul.addr %s3542, 2
          %s3544 = scalar_lea.hbm %s3, %s3543
          %s3546 = sshll.u32 [#allocation7], 4
          %s3547 = int_to_ptr.vmem [resolvable:$true] %s3546
          %s3548 = sshll.u32 %s3544, 4
          %s3549 = int_to_ptr.hbm [resolvable:$true] %s3548
          %3551 = dma.vmem_to_hbm [thread:$0]  %s3547, 512, %s3549, [#allocation6]
        $region89: #{ide_forward.2} parent=68 // pred_fallthru
          _
        // Predicated region
        $region90: #{ide_forward.2} parent=68 // pred_check
          %p3552 = pneg %p144
        $region91: #{ide_forward.2} parent=68 // pred_check_branch
          %3554 = sbr.rel (%p3552) target = $region93
        $region92: #{ide_forward.2} parent=68 // pred_region
          _
        $region93: #{ide_forward.2} parent=68 // pred_fallthru
          _
        // Predicated region
        $region94: #{ide_forward.2} parent=68 // pred_check
          %p3555 = pneg %p118
        $region95: #{ide_forward.2} parent=68 // pred_check_branch
          %3557 = sbr.rel (%p3555) target = $region97
        $region96: #{ide_forward.2} parent=68 // pred_region
          %3559 = dma.done [#allocation6], 512
        $region97: #{ide_forward.2} parent=68 // pred_fallthru
          _
        // Predicated region
        $region98: #{ide_forward.2} parent=68 // pred_check
          %p3560 = pneg %p144
        $region99: #{ide_forward.2} parent=68 // pred_check_branch
          %3562 = sbr.rel (%p3560) target = $region101
        $region100: #{ide_forward.2} parent=68 // pred_region
          %p3563 = scmp.lt.s32.totalorder %s22, 0
          %s3564 = scalar_select %p3563, %s22, 0
          %s3565 = smul.addr %s3564, 16
          %s3566 = scalar_lea.vmem %s4, %s3565
        $region101: #{ide_forward.2} parent=68 // pred_fallthru
          _
      $region69: #{ide_forward.2} parent=5 // pred_fallthru
        _
      %p3567 = scmp.le.s32.totalorder 2, %s13
      // Predicated region
      $region102: #{ide_forward.2} parent=5 // pred_check
        %p3568 = pneg %p3567
      $region103: #{ide_forward.2} parent=5 // pred_check_branch
        %3570 = sbr.rel (%p3568) target = $region105
      $region104: #{ide_forward.2} parent=5 // pred_region
        %s3571 = ssub.s32 %s13, 2
      $region105: #{ide_forward.2} parent=5 // pred_fallthru
        _
    $region6: #{ide_forward.2} parent=1 // loop_footer
      %s17 = sadd.s32 1, %s13
    $region7: #{ide_forward.2} parent=1 // loop_footer_branch
      %12 = sbr.rel target = $region3
    $region8: #{ide_forward.2} parent=1 // loop_exit
      _
    %3572 = vsyncpa [#allocation5], 1
    %s3573 = scalar_lea.sflag [#allocation5], 1
    %3574 = vsyncpa %s3573, 1
    %3575 = vsyncpa [#allocation6], 1
    %s3576 = scalar_lea.sflag [#allocation6], 1
    %3577 = vsyncpa %s3576, 1

// kernel: ide_forward.3
$region0: #{ide_forward.3}
  #allocation0 [shape = 'u32[]', space=smem, size = 0x4, offset = 0x4, fixed_abs, tag = 'smem constant byte address 0x4 - core index']
  #allocation1 [shape = 'u32[72,128]{1,0:T(1,128)}', space=vmem, size = 0x9000, scoped, tag = 'internal scratch']
  %s0 = inlined_call_operand.vmem [shape: bf16[2,2048], index: 0, kind: input, shape index: {}]
  %s1 = inlined_call_operand.vmem [shape: bf16[2048,512], index: 1, kind: input, shape index: {}]
  %s2 = inlined_call_operand.vmem [shape: f32[1,512], index: 2, kind: input, shape index: {}]
  %s3 = inlined_call_operand.vmem [shape: f32[1,512], index: 3, kind: input, shape index: {}]
  %s4 = inlined_call_operand.vmem [shape: bf16[512,128], index: 4, kind: input, shape index: {}]
  %s5 = inlined_call_operand.vmem [shape: f32[1,128], index: 5, kind: input, shape index: {}]
  %s6 = inlined_call_operand.hbm [shape: f32[2,128], index: 6, kind: output, shape index: {}]
  %s7 = sld [smem:[#allocation0]]
  $region34: #{ide_forward.3} parent=0
    _
  %s9 = ssub.s32 1, %s7
  %s10 = scalar_select 0, %s9, %s7
  $region1: #{ide_forward.3} parent=0
    #allocation2 [shape = 'u8[1024]{0}', space=vmem, size = 0x400, scoped, tag = 'output window, operand 0, single buffered']
    #allocation3 [shape = 's32[1]{0}', space=sflag, size = 0x4, scoped, tag = 'scoped memory for ide_forward.3']
    %11 = vsyncpa [#allocation3], 0
    // Predicated region
    $region2: #{ide_forward.3} parent=1 // pred_check
      _
    $region3: #{ide_forward.3} parent=1 // pred_check_branch
      %13 = sbr.rel (0) target = $region5
    $region4: #{ide_forward.3} parent=1 // pred_region
      _
    $region5: #{ide_forward.3} parent=1 // pred_fallthru
      _
    // Predicated region
    $region6: #{ide_forward.3} parent=1 // pred_check
      _
    $region7: #{ide_forward.3} parent=1 // pred_check_branch
      %15 = sbr.rel (0) target = $region9
    $region8: #{ide_forward.3} parent=1 // pred_region
      _
    $region9: #{ide_forward.3} parent=1 // pred_fallthru
      _
    // Predicated region
    $region10: #{ide_forward.3} parent=1 // pred_check
      _
    $region11: #{ide_forward.3} parent=1 // pred_check_branch
      %17 = sbr.rel (0) target = $region13
    $region12: #{ide_forward.3} parent=1 // pred_region
      _
    $region13: #{ide_forward.3} parent=1 // pred_fallthru
      _
    // Predicated region
    $region14: #{ide_forward.3} parent=1 // pred_check
      _
    $region15: #{ide_forward.3} parent=1 // pred_check_branch
      %19 = sbr.rel (0) target = $region17
    $region16: #{ide_forward.3} parent=1 // pred_region
      _
    $region17: #{ide_forward.3} parent=1 // pred_fallthru
      _
    // Predicated region
    $region18: #{ide_forward.3} parent=1 // pred_check
      _
    $region19: #{ide_forward.3} parent=1 // pred_check_branch
      %21 = sbr.rel (0) target = $region21
    $region20: #{ide_forward.3} parent=1 // pred_region
      _
    $region21: #{ide_forward.3} parent=1 // pred_fallthru
      _
    // Predicated region
    $region22: #{ide_forward.3} parent=1 // pred_check
      _
    $region23: #{ide_forward.3} parent=1 // pred_check_branch
      %23 = sbr.rel (0) target = $region25
    $region24: #{ide_forward.3} parent=1 // pred_region
      _
    $region25: #{ide_forward.3} parent=1 // pred_fallthru
      _
    %v24 = vld [vmem:[%s0] sm:$0xff]
    %v25 = vld [vmem:[%s0 + $0x8] sm:$0xff]
    %v26 = vld [vmem:[%s1] sm:$0xff]
    %v27 = vld [vmem:[%s1 + $0x8] sm:$0xff]
    %v28 = vld [vmem:[%s1 + $0x10] sm:$0xff]
    %v29 = vld [vmem:[%s1 + $0x18] sm:$0xff]
    %v30 = vld [vmem:[%s1 + $0x20] sm:$0xff]
    %v31 = vld [vmem:[%s1 + $0x28] sm:$0xff]
    %v32 = vld [vmem:[%s1 + $0x30] sm:$0xff]
    %v33 = vld [vmem:[%s1 + $0x38] sm:$0xff]
    %v34 = vld [vmem:[%s1 + $0x40] sm:$0xff]
    %v35 = vld [vmem:[%s1 + $0x48] sm:$0xff]
    %v36 = vld [vmem:[%s1 + $0x50] sm:$0xff]
    %v37 = vld [vmem:[%s1 + $0x58] sm:$0xff]
    %v38 = vld [vmem:[%s1 + $0x60] sm:$0xff]
    %v39 = vld [vmem:[%s1 + $0x68] sm:$0xff]
    %v40 = vld [vmem:[%s1 + $0x70] sm:$0xff]
    %v41 = vld [vmem:[%s1 + $0x78] sm:$0xff]
    %v42 = vld [vmem:[%s1 + $0x80] sm:$0xff]
    %v43 = vld [vmem:[%s1 + $0x88] sm:$0xff]
    %v44 = vld [vmem:[%s1 + $0x90] sm:$0xff]
    %v45 = vld [vmem:[%s1 + $0x98] sm:$0xff]
    %v46 = vld [vmem:[%s1 + $0xa0] sm:$0xff]
    %v47 = vld [vmem:[%s1 + $0xa8] sm:$0xff]
    %v48 = vld [vmem:[%s1 + $0xb0] sm:$0xff]
    %v49 = vld [vmem:[%s1 + $0xb8] sm:$0xff]
    %v50 = vld [vmem:[%s1 + $0xc0] sm:$0xff]
    %v51 = vld [vmem:[%s1 + $0xc8] sm:$0xff]
    %v52 = vld [vmem:[%s1 + $0xd0] sm:$0xff]
    %v53 = vld [vmem:[%s1 + $0xd8] sm:$0xff]
    %v54 = vld [vmem:[%s1 + $0xe0] sm:$0xff]
    %v55 = vld [vmem:[%s1 + $0xe8] sm:$0xff]
    %v56 = vld [vmem:[%s1 + $0xf0] sm:$0xff]
    %v57 = vld [vmem:[%s1 + $0xf8] sm:$0xff]
    %v58 = vld [vmem:[%s1 + $0x100] sm:$0xff]
    %v59 = vld [vmem:[%s1 + $0x108] sm:$0xff]
    %v60 = vld [vmem:[%s1 + $0x110] sm:$0xff]
    %v61 = vld [vmem:[%s1 + $0x118] sm:$0xff]
    %v62 = vld [vmem:[%s1 + $0x120] sm:$0xff]
    %v63 = vld [vmem:[%s1 + $0x128] sm:$0xff]
    %v64 = vld [vmem:[%s1 + $0x130] sm:$0xff]
    %v65 = vld [vmem:[%s1 + $0x138] sm:$0xff]
    %v66 = vld [vmem:[%s1 + $0x140] sm:$0xff]
    %v67 = vld [vmem:[%s1 + $0x148] sm:$0xff]
    %v68 = vld [vmem:[%s1 + $0x150] sm:$0xff]
    %v69 = vld [vmem:[%s1 + $0x158] sm:$0xff]
    %v70 = vld [vmem:[%s1 + $0x160] sm:$0xff]
    %v71 = vld [vmem:[%s1 + $0x168] sm:$0xff]
    %v72 = vld [vmem:[%s1 + $0x170] sm:$0xff]
    %v73 = vld [vmem:[%s1 + $0x178] sm:$0xff]
    %v74 = vld [vmem:[%s1 + $0x180] sm:$0xff]
    %v75 = vld [vmem:[%s1 + $0x188] sm:$0xff]
    %v76 = vld [vmem:[%s1 + $0x190] sm:$0xff]
    %v77 = vld [vmem:[%s1 + $0x198] sm:$0xff]
    %v78 = vld [vmem:[%s1 + $0x1a0] sm:$0xff]
    %v79 = vld [vmem:[%s1 + $0x1a8] sm:$0xff]
    %v80 = vld [vmem:[%s1 + $0x1b0] sm:$0xff]
    %v81 = vld [vmem:[%s1 + $0x1b8] sm:$0xff]
    %v82 = vld [vmem:[%s1 + $0x1c0] sm:$0xff]
    %v83 = vld [vmem:[%s1 + $0x1c8] sm:$0xff]
    %v84 = vld [vmem:[%s1 + $0x1d0] sm:$0xff]
    %v85 = vld [vmem:[%s1 + $0x1d8] sm:$0xff]
    %v86 = vld [vmem:[%s1 + $0x1e0] sm:$0xff]
    %v87 = vld [vmem:[%s1 + $0x1e8] sm:$0xff]
    %v88 = vld [vmem:[%s1 + $0x1f0] sm:$0xff]
    %v89 = vld [vmem:[%s1 + $0x1f8] sm:$0xff]
    %v90 = vld [vmem:[%s1 + $0x200] sm:$0xff]
    %v91 = vld [vmem:[%s1 + $0x208] sm:$0xff]
    %v92 = vld [vmem:[%s1 + $0x210] sm:$0xff]
    %v93 = vld [vmem:[%s1 + $0x218] sm:$0xff]
    %v94 = vld [vmem:[%s1 + $0x220] sm:$0xff]
    %v95 = vld [vmem:[%s1 + $0x228] sm:$0xff]
    %v96 = vld [vmem:[%s1 + $0x230] sm:$0xff]
    %v97 = vld [vmem:[%s1 + $0x238] sm:$0xff]
    %v98 = vld [vmem:[%s1 + $0x240] sm:$0xff]
    %v99 = vld [vmem:[%s1 + $0x248] sm:$0xff]
    %v100 = vld [vmem:[%s1 + $0x250] sm:$0xff]
    %v101 = vld [vmem:[%s1 + $0x258] sm:$0xff]
    %v102 = vld [vmem:[%s1 + $0x260] sm:$0xff]
    %v103 = vld [vmem:[%s1 + $0x268] sm:$0xff]
    %v104 = vld [vmem:[%s1 + $0x270] sm:$0xff]
    %v105 = vld [vmem:[%s1 + $0x278] sm:$0xff]
    %v106 = vld [vmem:[%s1 + $0x280] sm:$0xff]
    %v107 = vld [vmem:[%s1 + $0x288] sm:$0xff]
    %v108 = vld [vmem:[%s1 + $0x290] sm:$0xff]
    %v109 = vld [vmem:[%s1 + $0x298] sm:$0xff]
    %v110 = vld [vmem:[%s1 + $0x2a0] sm:$0xff]
    %v111 = vld [vmem:[%s1 + $0x2a8] sm:$0xff]
    %v112 = vld [vmem:[%s1 + $0x2b0] sm:$0xff]
    %v113 = vld [vmem:[%s1 + $0x2b8] sm:$0xff]
    %v114 = vld [vmem:[%s1 + $0x2c0] sm:$0xff]
    %v115 = vld [vmem:[%s1 + $0x2c8] sm:$0xff]
    %v116 = vld [vmem:[%s1 + $0x2d0] sm:$0xff]
    %v117 = vld [vmem:[%s1 + $0x2d8] sm:$0xff]
    %v118 = vld [vmem:[%s1 + $0x2e0] sm:$0xff]
    %v119 = vld [vmem:[%s1 + $0x2e8] sm:$0xff]
    %v120 = vld [vmem:[%s1 + $0x2f0] sm:$0xff]
    %v121 = vld [vmem:[%s1 + $0x2f8] sm:$0xff]
    %v122 = vld [vmem:[%s1 + $0x300] sm:$0xff]
    %v123 = vld [vmem:[%s1 + $0x308] sm:$0xff]
    %v124 = vld [vmem:[%s1 + $0x310] sm:$0xff]
    %v125 = vld [vmem:[%s1 + $0x318] sm:$0xff]
    %v126 = vld [vmem:[%s1 + $0x320] sm:$0xff]
    %v127 = vld [vmem:[%s1 + $0x328] sm:$0xff]
    %v128 = vld [vmem:[%s1 + $0x330] sm:$0xff]
    %v129 = vld [vmem:[%s1 + $0x338] sm:$0xff]
    %v130 = vld [vmem:[%s1 + $0x340] sm:$0xff]
    %v131 = vld [vmem:[%s1 + $0x348] sm:$0xff]
    %v132 = vld [vmem:[%s1 + $0x350] sm:$0xff]
    %v133 = vld [vmem:[%s1 + $0x358] sm:$0xff]
    %v134 = vld [vmem:[%s1 + $0x360] sm:$0xff]
    %v135 = vld [vmem:[%s1 + $0x368] sm:$0xff]
    %v136 = vld [vmem:[%s1 + $0x370] sm:$0xff]
    %v137 = vld [vmem:[%s1 + $0x378] sm:$0xff]
    %v138 = vld [vmem:[%s1 + $0x380] sm:$0xff]
    %v139 = vld [vmem:[%s1 + $0x388] sm:$0xff]
    %v140 = vld [vmem:[%s1 + $0x390] sm:$0xff]
    %v141 = vld [vmem:[%s1 + $0x398] sm:$0xff]
    %v142 = vld [vmem:[%s1 + $0x3a0] sm:$0xff]
    %v143 = vld [vmem:[%s1 + $0x3a8] sm:$0xff]
    %v144 = vld [vmem:[%s1 + $0x3b0] sm:$0xff]
    %v145 = vld [vmem:[%s1 + $0x3b8] sm:$0xff]
    %v146 = vld [vmem:[%s1 + $0x3c0] sm:$0xff]
    %v147 = vld [vmem:[%s1 + $0x3c8] sm:$0xff]
    %v148 = vld [vmem:[%s1 + $0x3d0] sm:$0xff]
    %v149 = vld [vmem:[%s1 + $0x3d8] sm:$0xff]
    %v150 = vld [vmem:[%s1 + $0x3e0] sm:$0xff]
    %v151 = vld [vmem:[%s1 + $0x3e8] sm:$0xff]
    %v152 = vld [vmem:[%s1 + $0x3f0] sm:$0xff]
    %v153 = vld [vmem:[%s1 + $0x3f8] sm:$0xff]
    %v154 = vld [vmem:[%s1 + $0x400] sm:$0xff]
    %v155 = vld [vmem:[%s1 + $0x408] sm:$0xff]
    %v156 = vld [vmem:[%s1 + $0x410] sm:$0xff]
    %v157 = vld [vmem:[%s1 + $0x418] sm:$0xff]
    %v158 = vld [vmem:[%s1 + $0x420] sm:$0xff]
    %v159 = vld [vmem:[%s1 + $0x428] sm:$0xff]
    %v160 = vld [vmem:[%s1 + $0x430] sm:$0xff]
    %v161 = vld [vmem:[%s1 + $0x438] sm:$0xff]
    %v162 = vld [vmem:[%s1 + $0x440] sm:$0xff]
    %v163 = vld [vmem:[%s1 + $0x448] sm:$0xff]
    %v164 = vld [vmem:[%s1 + $0x450] sm:$0xff]
    %v165 = vld [vmem:[%s1 + $0x458] sm:$0xff]
    %v166 = vld [vmem:[%s1 + $0x460] sm:$0xff]
    %v167 = vld [vmem:[%s1 + $0x468] sm:$0xff]
    %v168 = vld [vmem:[%s1 + $0x470] sm:$0xff]
    %v169 = vld [vmem:[%s1 + $0x478] sm:$0xff]
    %v170 = vld [vmem:[%s1 + $0x480] sm:$0xff]
    %v171 = vld [vmem:[%s1 + $0x488] sm:$0xff]
    %v172 = vld [vmem:[%s1 + $0x490] sm:$0xff]
    %v173 = vld [vmem:[%s1 + $0x498] sm:$0xff]
    %v174 = vld [vmem:[%s1 + $0x4a0] sm:$0xff]
    %v175 = vld [vmem:[%s1 + $0x4a8] sm:$0xff]
    %v176 = vld [vmem:[%s1 + $0x4b0] sm:$0xff]
    %v177 = vld [vmem:[%s1 + $0x4b8] sm:$0xff]
    %v178 = vld [vmem:[%s1 + $0x4c0] sm:$0xff]
    %v179 = vld [vmem:[%s1 + $0x4c8] sm:$0xff]
    %v180 = vld [vmem:[%s1 + $0x4d0] sm:$0xff]
    %v181 = vld [vmem:[%s1 + $0x4d8] sm:$0xff]
    %v182 = vld [vmem:[%s1 + $0x4e0] sm:$0xff]
    %v183 = vld [vmem:[%s1 + $0x4e8] sm:$0xff]
    %v184 = vld [vmem:[%s1 + $0x4f0] sm:$0xff]
    %v185 = vld [vmem:[%s1 + $0x4f8] sm:$0xff]
    %v186 = vld [vmem:[%s1 + $0x500] sm:$0xff]
    %v187 = vld [vmem:[%s1 + $0x508] sm:$0xff]
    %v188 = vld [vmem:[%s1 + $0x510] sm:$0xff]
    %v189 = vld [vmem:[%s1 + $0x518] sm:$0xff]
    %v190 = vld [vmem:[%s1 + $0x520] sm:$0xff]
    %v191 = vld [vmem:[%s1 + $0x528] sm:$0xff]
    %v192 = vld [vmem:[%s1 + $0x530] sm:$0xff]
    %v193 = vld [vmem:[%s1 + $0x538] sm:$0xff]
    %v194 = vld [vmem:[%s1 + $0x540] sm:$0xff]
    %v195 = vld [vmem:[%s1 + $0x548] sm:$0xff]
    %v196 = vld [vmem:[%s1 + $0x550] sm:$0xff]
    %v197 = vld [vmem:[%s1 + $0x558] sm:$0xff]
    %v198 = vld [vmem:[%s1 + $0x560] sm:$0xff]
    %v199 = vld [vmem:[%s1 + $0x568] sm:$0xff]
    %v200 = vld [vmem:[%s1 + $0x570] sm:$0xff]
    %v201 = vld [vmem:[%s1 + $0x578] sm:$0xff]
    %v202 = vld [vmem:[%s1 + $0x580] sm:$0xff]
    %v203 = vld [vmem:[%s1 + $0x588] sm:$0xff]
    %v204 = vld [vmem:[%s1 + $0x590] sm:$0xff]
    %v205 = vld [vmem:[%s1 + $0x598] sm:$0xff]
    %v206 = vld [vmem:[%s1 + $0x5a0] sm:$0xff]
    %v207 = vld [vmem:[%s1 + $0x5a8] sm:$0xff]
    %v208 = vld [vmem:[%s1 + $0x5b0] sm:$0xff]
    %v209 = vld [vmem:[%s1 + $0x5b8] sm:$0xff]
    %v210 = vld [vmem:[%s1 + $0x5c0] sm:$0xff]
    %v211 = vld [vmem:[%s1 + $0x5c8] sm:$0xff]
    %v212 = vld [vmem:[%s1 + $0x5d0] sm:$0xff]
    %v213 = vld [vmem:[%s1 + $0x5d8] sm:$0xff]
    %v214 = vld [vmem:[%s1 + $0x5e0] sm:$0xff]
    %v215 = vld [vmem:[%s1 + $0x5e8] sm:$0xff]
    %v216 = vld [vmem:[%s1 + $0x5f0] sm:$0xff]
    %v217 = vld [vmem:[%s1 + $0x5f8] sm:$0xff]
    %v218 = vld [vmem:[%s1 + $0x600] sm:$0xff]
    %v219 = vld [vmem:[%s1 + $0x608] sm:$0xff]
    %v220 = vld [vmem:[%s1 + $0x610] sm:$0xff]
    %v221 = vld [vmem:[%s1 + $0x618] sm:$0xff]
    %v222 = vld [vmem:[%s1 + $0x620] sm:$0xff]
    %v223 = vld [vmem:[%s1 + $0x628] sm:$0xff]
    %v224 = vld [vmem:[%s1 + $0x630] sm:$0xff]
    %v225 = vld [vmem:[%s1 + $0x638] sm:$0xff]
    %v226 = vld [vmem:[%s1 + $0x640] sm:$0xff]
    %v227 = vld [vmem:[%s1 + $0x648] sm:$0xff]
    %v228 = vld [vmem:[%s1 + $0x650] sm:$0xff]
    %v229 = vld [vmem:[%s1 + $0x658] sm:$0xff]
    %v230 = vld [vmem:[%s1 + $0x660] sm:$0xff]
    %v231 = vld [vmem:[%s1 + $0x668] sm:$0xff]
    %v232 = vld [vmem:[%s1 + $0x670] sm:$0xff]
    %v233 = vld [vmem:[%s1 + $0x678] sm:$0xff]
    %v234 = vld [vmem:[%s1 + $0x680] sm:$0xff]
    %v235 = vld [vmem:[%s1 + $0x688] sm:$0xff]
    %v236 = vld [vmem:[%s1 + $0x690] sm:$0xff]
    %v237 = vld [vmem:[%s1 + $0x698] sm:$0xff]
    %v238 = vld [vmem:[%s1 + $0x6a0] sm:$0xff]
    %v239 = vld [vmem:[%s1 + $0x6a8] sm:$0xff]
    %v240 = vld [vmem:[%s1 + $0x6b0] sm:$0xff]
    %v241 = vld [vmem:[%s1 + $0x6b8] sm:$0xff]
    %v242 = vld [vmem:[%s1 + $0x6c0] sm:$0xff]
    %v243 = vld [vmem:[%s1 + $0x6c8] sm:$0xff]
    %v244 = vld [vmem:[%s1 + $0x6d0] sm:$0xff]
    %v245 = vld [vmem:[%s1 + $0x6d8] sm:$0xff]
    %v246 = vld [vmem:[%s1 + $0x6e0] sm:$0xff]
    %v247 = vld [vmem:[%s1 + $0x6e8] sm:$0xff]
    %v248 = vld [vmem:[%s1 + $0x6f0] sm:$0xff]
    %v249 = vld [vmem:[%s1 + $0x6f8] sm:$0xff]
    %v250 = vld [vmem:[%s1 + $0x700] sm:$0xff]
    %v251 = vld [vmem:[%s1 + $0x708] sm:$0xff]
    %v252 = vld [vmem:[%s1 + $0x710] sm:$0xff]
    %v253 = vld [vmem:[%s1 + $0x718] sm:$0xff]
    %v254 = vld [vmem:[%s1 + $0x720] sm:$0xff]
    %v255 = vld [vmem:[%s1 + $0x728] sm:$0xff]
    %v256 = vld [vmem:[%s1 + $0x730] sm:$0xff]
    %v257 = vld [vmem:[%s1 + $0x738] sm:$0xff]
    %v258 = vld [vmem:[%s1 + $0x740] sm:$0xff]
    %v259 = vld [vmem:[%s1 + $0x748] sm:$0xff]
    %v260 = vld [vmem:[%s1 + $0x750] sm:$0xff]
    %v261 = vld [vmem:[%s1 + $0x758] sm:$0xff]
    %v262 = vld [vmem:[%s1 + $0x760] sm:$0xff]
    %v263 = vld [vmem:[%s1 + $0x768] sm:$0xff]
    %v264 = vld [vmem:[%s1 + $0x770] sm:$0xff]
    %v265 = vld [vmem:[%s1 + $0x778] sm:$0xff]
    %v266 = vld [vmem:[%s1 + $0x780] sm:$0xff]
    %v267 = vld [vmem:[%s1 + $0x788] sm:$0xff]
    %v268 = vld [vmem:[%s1 + $0x790] sm:$0xff]
    %v269 = vld [vmem:[%s1 + $0x798] sm:$0xff]
    %v270 = vld [vmem:[%s1 + $0x7a0] sm:$0xff]
    %v271 = vld [vmem:[%s1 + $0x7a8] sm:$0xff]
    %v272 = vld [vmem:[%s1 + $0x7b0] sm:$0xff]
    %v273 = vld [vmem:[%s1 + $0x7b8] sm:$0xff]
    %v274 = vld [vmem:[%s1 + $0x7c0] sm:$0xff]
    %v275 = vld [vmem:[%s1 + $0x7c8] sm:$0xff]
    %v276 = vld [vmem:[%s1 + $0x7d0] sm:$0xff]
    %v277 = vld [vmem:[%s1 + $0x7d8] sm:$0xff]
    %v278 = vld [vmem:[%s1 + $0x7e0] sm:$0xff]
    %v279 = vld [vmem:[%s1 + $0x7e8] sm:$0xff]
    %v280 = vld [vmem:[%s1 + $0x7f0] sm:$0xff]
    %v281 = vld [vmem:[%s1 + $0x7f8] sm:$0xff]
    %v282 = vld [vmem:[%s1 + $0x800] sm:$0xff]
    %v283 = vld [vmem:[%s1 + $0x808] sm:$0xff]
    %v284 = vld [vmem:[%s1 + $0x810] sm:$0xff]
    %v285 = vld [vmem:[%s1 + $0x818] sm:$0xff]
    %v286 = vld [vmem:[%s1 + $0x820] sm:$0xff]
    %v287 = vld [vmem:[%s1 + $0x828] sm:$0xff]
    %v288 = vld [vmem:[%s1 + $0x830] sm:$0xff]
    %v289 = vld [vmem:[%s1 + $0x838] sm:$0xff]
    %v290 = vld [vmem:[%s1 + $0x840] sm:$0xff]
    %v291 = vld [vmem:[%s1 + $0x848] sm:$0xff]
    %v292 = vld [vmem:[%s1 + $0x850] sm:$0xff]
    %v293 = vld [vmem:[%s1 + $0x858] sm:$0xff]
    %v294 = vld [vmem:[%s1 + $0x860] sm:$0xff]
    %v295 = vld [vmem:[%s1 + $0x868] sm:$0xff]
    %v296 = vld [vmem:[%s1 + $0x870] sm:$0xff]
    %v297 = vld [vmem:[%s1 + $0x878] sm:$0xff]
    %v298 = vld [vmem:[%s1 + $0x880] sm:$0xff]
    %v299 = vld [vmem:[%s1 + $0x888] sm:$0xff]
    %v300 = vld [vmem:[%s1 + $0x890] sm:$0xff]
    %v301 = vld [vmem:[%s1 + $0x898] sm:$0xff]
    %v302 = vld [vmem:[%s1 + $0x8a0] sm:$0xff]
    %v303 = vld [vmem:[%s1 + $0x8a8] sm:$0xff]
    %v304 = vld [vmem:[%s1 + $0x8b0] sm:$0xff]
    %v305 = vld [vmem:[%s1 + $0x8b8] sm:$0xff]
    %v306 = vld [vmem:[%s1 + $0x8c0] sm:$0xff]
    %v307 = vld [vmem:[%s1 + $0x8c8] sm:$0xff]
    %v308 = vld [vmem:[%s1 + $0x8d0] sm:$0xff]
    %v309 = vld [vmem:[%s1 + $0x8d8] sm:$0xff]
    %v310 = vld [vmem:[%s1 + $0x8e0] sm:$0xff]
    %v311 = vld [vmem:[%s1 + $0x8e8] sm:$0xff]
    %v312 = vld [vmem:[%s1 + $0x8f0] sm:$0xff]
    %v313 = vld [vmem:[%s1 + $0x8f8] sm:$0xff]
    %v314 = vld [vmem:[%s1 + $0x900] sm:$0xff]
    %v315 = vld [vmem:[%s1 + $0x908] sm:$0xff]
    %v316 = vld [vmem:[%s1 + $0x910] sm:$0xff]
    %v317 = vld [vmem:[%s1 + $0x918] sm:$0xff]
    %v318 = vld [vmem:[%s1 + $0x920] sm:$0xff]
    %v319 = vld [vmem:[%s1 + $0x928] sm:$0xff]
    %v320 = vld [vmem:[%s1 + $0x930] sm:$0xff]
    %v321 = vld [vmem:[%s1 + $0x938] sm:$0xff]
    %v322 = vld [vmem:[%s1 + $0x940] sm:$0xff]
    %v323 = vld [vmem:[%s1 + $0x948] sm:$0xff]
    %v324 = vld [vmem:[%s1 + $0x950] sm:$0xff]
    %v325 = vld [vmem:[%s1 + $0x958] sm:$0xff]
    %v326 = vld [vmem:[%s1 + $0x960] sm:$0xff]
    %v327 = vld [vmem:[%s1 + $0x968] sm:$0xff]
    %v328 = vld [vmem:[%s1 + $0x970] sm:$0xff]
    %v329 = vld [vmem:[%s1 + $0x978] sm:$0xff]
    %v330 = vld [vmem:[%s1 + $0x980] sm:$0xff]
    %v331 = vld [vmem:[%s1 + $0x988] sm:$0xff]
    %v332 = vld [vmem:[%s1 + $0x990] sm:$0xff]
    %v333 = vld [vmem:[%s1 + $0x998] sm:$0xff]
    %v334 = vld [vmem:[%s1 + $0x9a0] sm:$0xff]
    %v335 = vld [vmem:[%s1 + $0x9a8] sm:$0xff]
    %v336 = vld [vmem:[%s1 + $0x9b0] sm:$0xff]
    %v337 = vld [vmem:[%s1 + $0x9b8] sm:$0xff]
    %v338 = vld [vmem:[%s1 + $0x9c0] sm:$0xff]
    %v339 = vld [vmem:[%s1 + $0x9c8] sm:$0xff]
    %v340 = vld [vmem:[%s1 + $0x9d0] sm:$0xff]
    %v341 = vld [vmem:[%s1 + $0x9d8] sm:$0xff]
    %v342 = vld [vmem:[%s1 + $0x9e0] sm:$0xff]
    %v343 = vld [vmem:[%s1 + $0x9e8] sm:$0xff]
    %v344 = vld [vmem:[%s1 + $0x9f0] sm:$0xff]
    %v345 = vld [vmem:[%s1 + $0x9f8] sm:$0xff]
    %v346 = vld [vmem:[%s1 + $0xa00] sm:$0xff]
    %v347 = vld [vmem:[%s1 + $0xa08] sm:$0xff]
    %v348 = vld [vmem:[%s1 + $0xa10] sm:$0xff]
    %v349 = vld [vmem:[%s1 + $0xa18] sm:$0xff]
    %v350 = vld [vmem:[%s1 + $0xa20] sm:$0xff]
    %v351 = vld [vmem:[%s1 + $0xa28] sm:$0xff]
    %v352 = vld [vmem:[%s1 + $0xa30] sm:$0xff]
    %v353 = vld [vmem:[%s1 + $0xa38] sm:$0xff]
    %v354 = vld [vmem:[%s1 + $0xa40] sm:$0xff]
    %v355 = vld [vmem:[%s1 + $0xa48] sm:$0xff]
    %v356 = vld [vmem:[%s1 + $0xa50] sm:$0xff]
    %v357 = vld [vmem:[%s1 + $0xa58] sm:$0xff]
    %v358 = vld [vmem:[%s1 + $0xa60] sm:$0xff]
    %v359 = vld [vmem:[%s1 + $0xa68] sm:$0xff]
    %v360 = vld [vmem:[%s1 + $0xa70] sm:$0xff]
    %v361 = vld [vmem:[%s1 + $0xa78] sm:$0xff]
    %v362 = vld [vmem:[%s1 + $0xa80] sm:$0xff]
    %v363 = vld [vmem:[%s1 + $0xa88] sm:$0xff]
    %v364 = vld [vmem:[%s1 + $0xa90] sm:$0xff]
    %v365 = vld [vmem:[%s1 + $0xa98] sm:$0xff]
    %v366 = vld [vmem:[%s1 + $0xaa0] sm:$0xff]
    %v367 = vld [vmem:[%s1 + $0xaa8] sm:$0xff]
    %v368 = vld [vmem:[%s1 + $0xab0] sm:$0xff]
    %v369 = vld [vmem:[%s1 + $0xab8] sm:$0xff]
    %v370 = vld [vmem:[%s1 + $0xac0] sm:$0xff]
    %v371 = vld [vmem:[%s1 + $0xac8] sm:$0xff]
    %v372 = vld [vmem:[%s1 + $0xad0] sm:$0xff]
    %v373 = vld [vmem:[%s1 + $0xad8] sm:$0xff]
    %v374 = vld [vmem:[%s1 + $0xae0] sm:$0xff]
    %v375 = vld [vmem:[%s1 + $0xae8] sm:$0xff]
    %v376 = vld [vmem:[%s1 + $0xaf0] sm:$0xff]
    %v377 = vld [vmem:[%s1 + $0xaf8] sm:$0xff]
    %v378 = vld [vmem:[%s1 + $0xb00] sm:$0xff]
    %v379 = vld [vmem:[%s1 + $0xb08] sm:$0xff]
    %v380 = vld [vmem:[%s1 + $0xb10] sm:$0xff]
    %v381 = vld [vmem:[%s1 + $0xb18] sm:$0xff]
    %v382 = vld [vmem:[%s1 + $0xb20] sm:$0xff]
    %v383 = vld [vmem:[%s1 + $0xb28] sm:$0xff]
    %v384 = vld [vmem:[%s1 + $0xb30] sm:$0xff]
    %v385 = vld [vmem:[%s1 + $0xb38] sm:$0xff]
    %v386 = vld [vmem:[%s1 + $0xb40] sm:$0xff]
    %v387 = vld [vmem:[%s1 + $0xb48] sm:$0xff]
    %v388 = vld [vmem:[%s1 + $0xb50] sm:$0xff]
    %v389 = vld [vmem:[%s1 + $0xb58] sm:$0xff]
    %v390 = vld [vmem:[%s1 + $0xb60] sm:$0xff]
    %v391 = vld [vmem:[%s1 + $0xb68] sm:$0xff]
    %v392 = vld [vmem:[%s1 + $0xb70] sm:$0xff]
    %v393 = vld [vmem:[%s1 + $0xb78] sm:$0xff]
    %v394 = vld [vmem:[%s1 + $0xb80] sm:$0xff]
    %v395 = vld [vmem:[%s1 + $0xb88] sm:$0xff]
    %v396 = vld [vmem:[%s1 + $0xb90] sm:$0xff]
    %v397 = vld [vmem:[%s1 + $0xb98] sm:$0xff]
    %v398 = vld [vmem:[%s1 + $0xba0] sm:$0xff]
    %v399 = vld [vmem:[%s1 + $0xba8] sm:$0xff]
    %v400 = vld [vmem:[%s1 + $0xbb0] sm:$0xff]
    %v401 = vld [vmem:[%s1 + $0xbb8] sm:$0xff]
    %v402 = vld [vmem:[%s1 + $0xbc0] sm:$0xff]
    %v403 = vld [vmem:[%s1 + $0xbc8] sm:$0xff]
    %v404 = vld [vmem:[%s1 + $0xbd0] sm:$0xff]
    %v405 = vld [vmem:[%s1 + $0xbd8] sm:$0xff]
    %v406 = vld [vmem:[%s1 + $0xbe0] sm:$0xff]
    %v407 = vld [vmem:[%s1 + $0xbe8] sm:$0xff]
    %v408 = vld [vmem:[%s1 + $0xbf0] sm:$0xff]
    %v409 = vld [vmem:[%s1 + $0xbf8] sm:$0xff]
    %v410 = vld [vmem:[%s1 + $0xc00] sm:$0xff]
    %v411 = vld [vmem:[%s1 + $0xc08] sm:$0xff]
    %v412 = vld [vmem:[%s1 + $0xc10] sm:$0xff]
    %v413 = vld [vmem:[%s1 + $0xc18] sm:$0xff]
    %v414 = vld [vmem:[%s1 + $0xc20] sm:$0xff]
    %v415 = vld [vmem:[%s1 + $0xc28] sm:$0xff]
    %v416 = vld [vmem:[%s1 + $0xc30] sm:$0xff]
    %v417 = vld [vmem:[%s1 + $0xc38] sm:$0xff]
    %v418 = vld [vmem:[%s1 + $0xc40] sm:$0xff]
    %v419 = vld [vmem:[%s1 + $0xc48] sm:$0xff]
    %v420 = vld [vmem:[%s1 + $0xc50] sm:$0xff]
    %v421 = vld [vmem:[%s1 + $0xc58] sm:$0xff]
    %v422 = vld [vmem:[%s1 + $0xc60] sm:$0xff]
    %v423 = vld [vmem:[%s1 + $0xc68] sm:$0xff]
    %v424 = vld [vmem:[%s1 + $0xc70] sm:$0xff]
    %v425 = vld [vmem:[%s1 + $0xc78] sm:$0xff]
    %v426 = vld [vmem:[%s1 + $0xc80] sm:$0xff]
    %v427 = vld [vmem:[%s1 + $0xc88] sm:$0xff]
    %v428 = vld [vmem:[%s1 + $0xc90] sm:$0xff]
    %v429 = vld [vmem:[%s1 + $0xc98] sm:$0xff]
    %v430 = vld [vmem:[%s1 + $0xca0] sm:$0xff]
    %v431 = vld [vmem:[%s1 + $0xca8] sm:$0xff]
    %v432 = vld [vmem:[%s1 + $0xcb0] sm:$0xff]
    %v433 = vld [vmem:[%s1 + $0xcb8] sm:$0xff]
    %v434 = vld [vmem:[%s1 + $0xcc0] sm:$0xff]
    %v435 = vld [vmem:[%s1 + $0xcc8] sm:$0xff]
    %v436 = vld [vmem:[%s1 + $0xcd0] sm:$0xff]
    %v437 = vld [vmem:[%s1 + $0xcd8] sm:$0xff]
    %v438 = vld [vmem:[%s1 + $0xce0] sm:$0xff]
    %v439 = vld [vmem:[%s1 + $0xce8] sm:$0xff]
    %v440 = vld [vmem:[%s1 + $0xcf0] sm:$0xff]
    %v441 = vld [vmem:[%s1 + $0xcf8] sm:$0xff]
    %v442 = vld [vmem:[%s1 + $0xd00] sm:$0xff]
    %v443 = vld [vmem:[%s1 + $0xd08] sm:$0xff]
    %v444 = vld [vmem:[%s1 + $0xd10] sm:$0xff]
    %v445 = vld [vmem:[%s1 + $0xd18] sm:$0xff]
    %v446 = vld [vmem:[%s1 + $0xd20] sm:$0xff]
    %v447 = vld [vmem:[%s1 + $0xd28] sm:$0xff]
    %v448 = vld [vmem:[%s1 + $0xd30] sm:$0xff]
    %v449 = vld [vmem:[%s1 + $0xd38] sm:$0xff]
    %v450 = vld [vmem:[%s1 + $0xd40] sm:$0xff]
    %v451 = vld [vmem:[%s1 + $0xd48] sm:$0xff]
    %v452 = vld [vmem:[%s1 + $0xd50] sm:$0xff]
    %v453 = vld [vmem:[%s1 + $0xd58] sm:$0xff]
    %v454 = vld [vmem:[%s1 + $0xd60] sm:$0xff]
    %v455 = vld [vmem:[%s1 + $0xd68] sm:$0xff]
    %v456 = vld [vmem:[%s1 + $0xd70] sm:$0xff]
    %v457 = vld [vmem:[%s1 + $0xd78] sm:$0xff]
    %v458 = vld [vmem:[%s1 + $0xd80] sm:$0xff]
    %v459 = vld [vmem:[%s1 + $0xd88] sm:$0xff]
    %v460 = vld [vmem:[%s1 + $0xd90] sm:$0xff]
    %v461 = vld [vmem:[%s1 + $0xd98] sm:$0xff]
    %v462 = vld [vmem:[%s1 + $0xda0] sm:$0xff]
    %v463 = vld [vmem:[%s1 + $0xda8] sm:$0xff]
    %v464 = vld [vmem:[%s1 + $0xdb0] sm:$0xff]
    %v465 = vld [vmem:[%s1 + $0xdb8] sm:$0xff]
    %v466 = vld [vmem:[%s1 + $0xdc0] sm:$0xff]
    %v467 = vld [vmem:[%s1 + $0xdc8] sm:$0xff]
    %v468 = vld [vmem:[%s1 + $0xdd0] sm:$0xff]
    %v469 = vld [vmem:[%s1 + $0xdd8] sm:$0xff]
    %v470 = vld [vmem:[%s1 + $0xde0] sm:$0xff]
    %v471 = vld [vmem:[%s1 + $0xde8] sm:$0xff]
    %v472 = vld [vmem:[%s1 + $0xdf0] sm:$0xff]
    %v473 = vld [vmem:[%s1 + $0xdf8] sm:$0xff]
    %v474 = vld [vmem:[%s1 + $0xe00] sm:$0xff]
    %v475 = vld [vmem:[%s1 + $0xe08] sm:$0xff]
    %v476 = vld [vmem:[%s1 + $0xe10] sm:$0xff]
    %v477 = vld [vmem:[%s1 + $0xe18] sm:$0xff]
    %v478 = vld [vmem:[%s1 + $0xe20] sm:$0xff]
    %v479 = vld [vmem:[%s1 + $0xe28] sm:$0xff]
    %v480 = vld [vmem:[%s1 + $0xe30] sm:$0xff]
    %v481 = vld [vmem:[%s1 + $0xe38] sm:$0xff]
    %v482 = vld [vmem:[%s1 + $0xe40] sm:$0xff]
    %v483 = vld [vmem:[%s1 + $0xe48] sm:$0xff]
    %v484 = vld [vmem:[%s1 + $0xe50] sm:$0xff]
    %v485 = vld [vmem:[%s1 + $0xe58] sm:$0xff]
    %v486 = vld [vmem:[%s1 + $0xe60] sm:$0xff]
    %v487 = vld [vmem:[%s1 + $0xe68] sm:$0xff]
    %v488 = vld [vmem:[%s1 + $0xe70] sm:$0xff]
    %v489 = vld [vmem:[%s1 + $0xe78] sm:$0xff]
    %v490 = vld [vmem:[%s1 + $0xe80] sm:$0xff]
    %v491 = vld [vmem:[%s1 + $0xe88] sm:$0xff]
    %v492 = vld [vmem:[%s1 + $0xe90] sm:$0xff]
    %v493 = vld [vmem:[%s1 + $0xe98] sm:$0xff]
    %v494 = vld [vmem:[%s1 + $0xea0] sm:$0xff]
    %v495 = vld [vmem:[%s1 + $0xea8] sm:$0xff]
    %v496 = vld [vmem:[%s1 + $0xeb0] sm:$0xff]
    %v497 = vld [vmem:[%s1 + $0xeb8] sm:$0xff]
    %v498 = vld [vmem:[%s1 + $0xec0] sm:$0xff]
    %v499 = vld [vmem:[%s1 + $0xec8] sm:$0xff]
    %v500 = vld [vmem:[%s1 + $0xed0] sm:$0xff]
    %v501 = vld [vmem:[%s1 + $0xed8] sm:$0xff]
    %v502 = vld [vmem:[%s1 + $0xee0] sm:$0xff]
    %v503 = vld [vmem:[%s1 + $0xee8] sm:$0xff]
    %v504 = vld [vmem:[%s1 + $0xef0] sm:$0xff]
    %v505 = vld [vmem:[%s1 + $0xef8] sm:$0xff]
    %v506 = vld [vmem:[%s1 + $0xf00] sm:$0xff]
    %v507 = vld [vmem:[%s1 + $0xf08] sm:$0xff]
    %v508 = vld [vmem:[%s1 + $0xf10] sm:$0xff]
    %v509 = vld [vmem:[%s1 + $0xf18] sm:$0xff]
    %v510 = vld [vmem:[%s1 + $0xf20] sm:$0xff]
    %v511 = vld [vmem:[%s1 + $0xf28] sm:$0xff]
    %v512 = vld [vmem:[%s1 + $0xf30] sm:$0xff]
    %v513 = vld [vmem:[%s1 + $0xf38] sm:$0xff]
    %v514 = vld [vmem:[%s1 + $0xf40] sm:$0xff]
    %v515 = vld [vmem:[%s1 + $0xf48] sm:$0xff]
    %v516 = vld [vmem:[%s1 + $0xf50] sm:$0xff]
    %v517 = vld [vmem:[%s1 + $0xf58] sm:$0xff]
    %v518 = vld [vmem:[%s1 + $0xf60] sm:$0xff]
    %v519 = vld [vmem:[%s1 + $0xf68] sm:$0xff]
    %v520 = vld [vmem:[%s1 + $0xf70] sm:$0xff]
    %v521 = vld [vmem:[%s1 + $0xf78] sm:$0xff]
    %v522 = vld [vmem:[%s1 + $0xf80] sm:$0xff]
    %v523 = vld [vmem:[%s1 + $0xf88] sm:$0xff]
    %v524 = vld [vmem:[%s1 + $0xf90] sm:$0xff]
    %v525 = vld [vmem:[%s1 + $0xf98] sm:$0xff]
    %v526 = vld [vmem:[%s1 + $0xfa0] sm:$0xff]
    %v527 = vld [vmem:[%s1 + $0xfa8] sm:$0xff]
    %v528 = vld [vmem:[%s1 + $0xfb0] sm:$0xff]
    %v529 = vld [vmem:[%s1 + $0xfb8] sm:$0xff]
    %v530 = vld [vmem:[%s1 + $0xfc0] sm:$0xff]
    %v531 = vld [vmem:[%s1 + $0xfc8] sm:$0xff]
    %v532 = vld [vmem:[%s1 + $0xfd0] sm:$0xff]
    %v533 = vld [vmem:[%s1 + $0xfd8] sm:$0xff]
    %v534 = vld [vmem:[%s1 + $0xfe0] sm:$0xff]
    %v535 = vld [vmem:[%s1 + $0xfe8] sm:$0xff]
    %v536 = vld [vmem:[%s1 + $0xff0] sm:$0xff]
    %v537 = vld [vmem:[%s1 + $0xff8] sm:$0xff]
    %539 = vst [vmem:[#allocation1] ss:$9 sm:$0xff] %v24
    %v540 = vld [vmem:[#allocation1] sm:$0xff]
    %v541 = vld [vmem:[#allocation1 + $0x9] sm:$0xff]
    %v542 = vld [vmem:[#allocation1 + $0x12] sm:$0xff]
    %v543 = vld [vmem:[#allocation1 + $0x1b] sm:$0xff]
    %v544 = vld [vmem:[#allocation1 + $0x24] sm:$0xff]
    %v545 = vld [vmem:[#allocation1 + $0x2d] sm:$0xff]
    %v546 = vld [vmem:[#allocation1 + $0x36] sm:$0xff]
    %v547 = vld [vmem:[#allocation1 + $0x3f] sm:$0xff]
    %549 = vst [vmem:[#allocation1] ss:$9 sm:$0xff] %v25
    %v550 = vld [vmem:[#allocation1] sm:$0xff]
    %v551 = vld [vmem:[#allocation1 + $0x9] sm:$0xff]
    %v552 = vld [vmem:[#allocation1 + $0x12] sm:$0xff]
    %v553 = vld [vmem:[#allocation1 + $0x1b] sm:$0xff]
    %v554 = vld [vmem:[#allocation1 + $0x24] sm:$0xff]
    %v555 = vld [vmem:[#allocation1 + $0x2d] sm:$0xff]
    %v556 = vld [vmem:[#allocation1 + $0x36] sm:$0xff]
    %v557 = vld [vmem:[#allocation1 + $0x3f] sm:$0xff]
    %v1086 = vunpack.c.l.b16 %v26
    %v1087 = vunpack.c.h.b16 %v26
    %v1088 = vunpack.c.l.b16 %v27
    %v1089 = vunpack.c.h.b16 %v27
    %v1090 = vunpack.c.l.b16 %v28
    %v1091 = vunpack.c.h.b16 %v28
    %v1092 = vunpack.c.l.b16 %v29
    %v1093 = vunpack.c.h.b16 %v29
    %v1094 = vunpack.c.l.b16 %v30
    %v1095 = vunpack.c.h.b16 %v30
    %v1096 = vunpack.c.l.b16 %v31
    %v1097 = vunpack.c.h.b16 %v31
    %v1098 = vunpack.c.l.b16 %v32
    %v1099 = vunpack.c.h.b16 %v32
    %v1100 = vunpack.c.l.b16 %v33
    %v1101 = vunpack.c.h.b16 %v33
    %v1102 = vunpack.c.l.b16 %v34
    %v1103 = vunpack.c.h.b16 %v34
    %v1104 = vunpack.c.l.b16 %v35
    %v1105 = vunpack.c.h.b16 %v35
    %v1106 = vunpack.c.l.b16 %v36
    %v1107 = vunpack.c.h.b16 %v36
    %v1108 = vunpack.c.l.b16 %v37
    %v1109 = vunpack.c.h.b16 %v37
    %v1110 = vunpack.c.l.b16 %v38
    %v1111 = vunpack.c.h.b16 %v38
    %v1112 = vunpack.c.l.b16 %v39
    %v1113 = vunpack.c.h.b16 %v39
    %v1114 = vunpack.c.l.b16 %v40
    %v1115 = vunpack.c.h.b16 %v40
    %v1116 = vunpack.c.l.b16 %v41
    %v1117 = vunpack.c.h.b16 %v41
    %v1118 = vunpack.c.l.b16 %v42
    %v1119 = vunpack.c.h.b16 %v42
    %v1120 = vunpack.c.l.b16 %v43
    %v1121 = vunpack.c.h.b16 %v43
    %v1122 = vunpack.c.l.b16 %v44
    %v1123 = vunpack.c.h.b16 %v44
    %v1124 = vunpack.c.l.b16 %v45
    %v1125 = vunpack.c.h.b16 %v45
    %v1126 = vunpack.c.l.b16 %v46
    %v1127 = vunpack.c.h.b16 %v46
    %v1128 = vunpack.c.l.b16 %v47
    %v1129 = vunpack.c.h.b16 %v47
    %v1130 = vunpack.c.l.b16 %v48
    %v1131 = vunpack.c.h.b16 %v48
    %v1132 = vunpack.c.l.b16 %v49
    %v1133 = vunpack.c.h.b16 %v49
    %v1134 = vunpack.c.l.b16 %v50
    %v1135 = vunpack.c.h.b16 %v50
    %v1136 = vunpack.c.l.b16 %v51
    %v1137 = vunpack.c.h.b16 %v51
    %v1138 = vunpack.c.l.b16 %v52
    %v1139 = vunpack.c.h.b16 %v52
    %v1140 = vunpack.c.l.b16 %v53
    %v1141 = vunpack.c.h.b16 %v53
    %v1142 = vunpack.c.l.b16 %v54
    %v1143 = vunpack.c.h.b16 %v54
    %v1144 = vunpack.c.l.b16 %v55
    %v1145 = vunpack.c.h.b16 %v55
    %v1146 = vunpack.c.l.b16 %v56
    %v1147 = vunpack.c.h.b16 %v56
    %v1148 = vunpack.c.l.b16 %v57
    %v1149 = vunpack.c.h.b16 %v57
    %v1150 = vunpack.c.l.b16 %v58
    %v1151 = vunpack.c.h.b16 %v58
    %v1152 = vunpack.c.l.b16 %v59
    %v1153 = vunpack.c.h.b16 %v59
    %v1154 = vunpack.c.l.b16 %v60
    %v1155 = vunpack.c.h.b16 %v60
    %v1156 = vunpack.c.l.b16 %v61
    %v1157 = vunpack.c.h.b16 %v61
    %v1158 = vunpack.c.l.b16 %v62
    %v1159 = vunpack.c.h.b16 %v62
    %v1160 = vunpack.c.l.b16 %v63
    %v1161 = vunpack.c.h.b16 %v63
    %v1162 = vunpack.c.l.b16 %v64
    %v1163 = vunpack.c.h.b16 %v64
    %v1164 = vunpack.c.l.b16 %v65
    %v1165 = vunpack.c.h.b16 %v65
    %v1166 = vunpack.c.l.b16 %v66
    %v1167 = vunpack.c.h.b16 %v66
    %v1168 = vunpack.c.l.b16 %v67
    %v1169 = vunpack.c.h.b16 %v67
    %v1170 = vunpack.c.l.b16 %v68
    %v1171 = vunpack.c.h.b16 %v68
    %v1172 = vunpack.c.l.b16 %v69
    %v1173 = vunpack.c.h.b16 %v69
    %v1174 = vunpack.c.l.b16 %v70
    %v1175 = vunpack.c.h.b16 %v70
    %v1176 = vunpack.c.l.b16 %v71
    %v1177 = vunpack.c.h.b16 %v71
    %v1178 = vunpack.c.l.b16 %v72
    %v1179 = vunpack.c.h.b16 %v72
    %v1180 = vunpack.c.l.b16 %v73
    %v1181 = vunpack.c.h.b16 %v73
    %v1182 = vunpack.c.l.b16 %v74
    %v1183 = vunpack.c.h.b16 %v74
    %v1184 = vunpack.c.l.b16 %v75
    %v1185 = vunpack.c.h.b16 %v75
    %v1186 = vunpack.c.l.b16 %v76
    %v1187 = vunpack.c.h.b16 %v76
    %v1188 = vunpack.c.l.b16 %v77
    %v1189 = vunpack.c.h.b16 %v77
    %v1190 = vunpack.c.l.b16 %v78
    %v1191 = vunpack.c.h.b16 %v78
    %v1192 = vunpack.c.l.b16 %v79
    %v1193 = vunpack.c.h.b16 %v79
    %v1194 = vunpack.c.l.b16 %v80
    %v1195 = vunpack.c.h.b16 %v80
    %v1196 = vunpack.c.l.b16 %v81
    %v1197 = vunpack.c.h.b16 %v81
    %v1198 = vunpack.c.l.b16 %v82
    %v1199 = vunpack.c.h.b16 %v82
    %v1200 = vunpack.c.l.b16 %v83
    %v1201 = vunpack.c.h.b16 %v83
    %v1202 = vunpack.c.l.b16 %v84
    %v1203 = vunpack.c.h.b16 %v84
    %v1204 = vunpack.c.l.b16 %v85
    %v1205 = vunpack.c.h.b16 %v85
    %v1206 = vunpack.c.l.b16 %v86
    %v1207 = vunpack.c.h.b16 %v86
    %v1208 = vunpack.c.l.b16 %v87
    %v1209 = vunpack.c.h.b16 %v87
    %v1210 = vunpack.c.l.b16 %v88
    %v1211 = vunpack.c.h.b16 %v88
    %v1212 = vunpack.c.l.b16 %v89
    %v1213 = vunpack.c.h.b16 %v89
    %v1214 = vunpack.c.l.b16 %v90
    %v1215 = vunpack.c.h.b16 %v90
    %v1216 = vunpack.c.l.b16 %v91
    %v1217 = vunpack.c.h.b16 %v91
    %v1218 = vunpack.c.l.b16 %v92
    %v1219 = vunpack.c.h.b16 %v92
    %v1220 = vunpack.c.l.b16 %v93
    %v1221 = vunpack.c.h.b16 %v93
    %v1222 = vunpack.c.l.b16 %v94
    %v1223 = vunpack.c.h.b16 %v94
    %v1224 = vunpack.c.l.b16 %v95
    %v1225 = vunpack.c.h.b16 %v95
    %v1226 = vunpack.c.l.b16 %v96
    %v1227 = vunpack.c.h.b16 %v96
    %v1228 = vunpack.c.l.b16 %v97
    %v1229 = vunpack.c.h.b16 %v97
    %v1230 = vunpack.c.l.b16 %v98
    %v1231 = vunpack.c.h.b16 %v98
    %v1232 = vunpack.c.l.b16 %v99
    %v1233 = vunpack.c.h.b16 %v99
    %v1234 = vunpack.c.l.b16 %v100
    %v1235 = vunpack.c.h.b16 %v100
    %v1236 = vunpack.c.l.b16 %v101
    %v1237 = vunpack.c.h.b16 %v101
    %v1238 = vunpack.c.l.b16 %v102
    %v1239 = vunpack.c.h.b16 %v102
    %v1240 = vunpack.c.l.b16 %v103
    %v1241 = vunpack.c.h.b16 %v103
    %v1242 = vunpack.c.l.b16 %v104
    %v1243 = vunpack.c.h.b16 %v104
    %v1244 = vunpack.c.l.b16 %v105
    %v1245 = vunpack.c.h.b16 %v105
    %v1246 = vunpack.c.l.b16 %v106
    %v1247 = vunpack.c.h.b16 %v106
    %v1248 = vunpack.c.l.b16 %v107
    %v1249 = vunpack.c.h.b16 %v107
    %v1250 = vunpack.c.l.b16 %v108
    %v1251 = vunpack.c.h.b16 %v108
    %v1252 = vunpack.c.l.b16 %v109
    %v1253 = vunpack.c.h.b16 %v109
    %v1254 = vunpack.c.l.b16 %v110
    %v1255 = vunpack.c.h.b16 %v110
    %v1256 = vunpack.c.l.b16 %v111
    %v1257 = vunpack.c.h.b16 %v111
    %v1258 = vunpack.c.l.b16 %v112
    %v1259 = vunpack.c.h.b16 %v112
    %v1260 = vunpack.c.l.b16 %v113
    %v1261 = vunpack.c.h.b16 %v113
    %v1262 = vunpack.c.l.b16 %v114
    %v1263 = vunpack.c.h.b16 %v114
    %v1264 = vunpack.c.l.b16 %v115
    %v1265 = vunpack.c.h.b16 %v115
    %v1266 = vunpack.c.l.b16 %v116
    %v1267 = vunpack.c.h.b16 %v116
    %v1268 = vunpack.c.l.b16 %v117
    %v1269 = vunpack.c.h.b16 %v117
    %v1270 = vunpack.c.l.b16 %v118
    %v1271 = vunpack.c.h.b16 %v118
    %v1272 = vunpack.c.l.b16 %v119
    %v1273 = vunpack.c.h.b16 %v119
    %v1274 = vunpack.c.l.b16 %v120
    %v1275 = vunpack.c.h.b16 %v120
    %v1276 = vunpack.c.l.b16 %v121
    %v1277 = vunpack.c.h.b16 %v121
    %v1278 = vunpack.c.l.b16 %v122
    %v1279 = vunpack.c.h.b16 %v122
    %v1280 = vunpack.c.l.b16 %v123
    %v1281 = vunpack.c.h.b16 %v123
    %v1282 = vunpack.c.l.b16 %v124
    %v1283 = vunpack.c.h.b16 %v124
    %v1284 = vunpack.c.l.b16 %v125
    %v1285 = vunpack.c.h.b16 %v125
    %v1286 = vunpack.c.l.b16 %v126
    %v1287 = vunpack.c.h.b16 %v126
    %v1288 = vunpack.c.l.b16 %v127
    %v1289 = vunpack.c.h.b16 %v127
    %v1290 = vunpack.c.l.b16 %v128
    %v1291 = vunpack.c.h.b16 %v128
    %v1292 = vunpack.c.l.b16 %v129
    %v1293 = vunpack.c.h.b16 %v129
    %v1294 = vunpack.c.l.b16 %v130
    %v1295 = vunpack.c.h.b16 %v130
    %v1296 = vunpack.c.l.b16 %v131
    %v1297 = vunpack.c.h.b16 %v131
    %v1298 = vunpack.c.l.b16 %v132
    %v1299 = vunpack.c.h.b16 %v132
    %v1300 = vunpack.c.l.b16 %v133
    %v1301 = vunpack.c.h.b16 %v133
    %v1302 = vunpack.c.l.b16 %v134
    %v1303 = vunpack.c.h.b16 %v134
    %v1304 = vunpack.c.l.b16 %v135
    %v1305 = vunpack.c.h.b16 %v135
    %v1306 = vunpack.c.l.b16 %v136
    %v1307 = vunpack.c.h.b16 %v136
    %v1308 = vunpack.c.l.b16 %v137
    %v1309 = vunpack.c.h.b16 %v137
    %v1310 = vunpack.c.l.b16 %v138
    %v1311 = vunpack.c.h.b16 %v138
    %v1312 = vunpack.c.l.b16 %v139
    %v1313 = vunpack.c.h.b16 %v139
    %v1314 = vunpack.c.l.b16 %v140
    %v1315 = vunpack.c.h.b16 %v140
    %v1316 = vunpack.c.l.b16 %v141
    %v1317 = vunpack.c.h.b16 %v141
    %v1318 = vunpack.c.l.b16 %v142
    %v1319 = vunpack.c.h.b16 %v142
    %v1320 = vunpack.c.l.b16 %v143
    %v1321 = vunpack.c.h.b16 %v143
    %v1322 = vunpack.c.l.b16 %v144
    %v1323 = vunpack.c.h.b16 %v144
    %v1324 = vunpack.c.l.b16 %v145
    %v1325 = vunpack.c.h.b16 %v145
    %v1326 = vunpack.c.l.b16 %v146
    %v1327 = vunpack.c.h.b16 %v146
    %v1328 = vunpack.c.l.b16 %v147
    %v1329 = vunpack.c.h.b16 %v147
    %v1330 = vunpack.c.l.b16 %v148
    %v1331 = vunpack.c.h.b16 %v148
    %v1332 = vunpack.c.l.b16 %v149
    %v1333 = vunpack.c.h.b16 %v149
    %v1334 = vunpack.c.l.b16 %v150
    %v1335 = vunpack.c.h.b16 %v150
    %v1336 = vunpack.c.l.b16 %v151
    %v1337 = vunpack.c.h.b16 %v151
    %v1338 = vunpack.c.l.b16 %v152
    %v1339 = vunpack.c.h.b16 %v152
    %v1340 = vunpack.c.l.b16 %v153
    %v1341 = vunpack.c.h.b16 %v153
    %v1342 = vunpack.c.l.b16 %v154
    %v1343 = vunpack.c.h.b16 %v154
    %v1344 = vunpack.c.l.b16 %v155
    %v1345 = vunpack.c.h.b16 %v155
    %v1346 = vunpack.c.l.b16 %v156
    %v1347 = vunpack.c.h.b16 %v156
    %v1348 = vunpack.c.l.b16 %v157
    %v1349 = vunpack.c.h.b16 %v157
    %v1350 = vunpack.c.l.b16 %v158
    %v1351 = vunpack.c.h.b16 %v158
    %v1352 = vunpack.c.l.b16 %v159
    %v1353 = vunpack.c.h.b16 %v159
    %v1354 = vunpack.c.l.b16 %v160
    %v1355 = vunpack.c.h.b16 %v160
    %v1356 = vunpack.c.l.b16 %v161
    %v1357 = vunpack.c.h.b16 %v161
    %v1358 = vunpack.c.l.b16 %v162
    %v1359 = vunpack.c.h.b16 %v162
    %v1360 = vunpack.c.l.b16 %v163
    %v1361 = vunpack.c.h.b16 %v163
    %v1362 = vunpack.c.l.b16 %v164
    %v1363 = vunpack.c.h.b16 %v164
    %v1364 = vunpack.c.l.b16 %v165
    %v1365 = vunpack.c.h.b16 %v165
    %v1366 = vunpack.c.l.b16 %v166
    %v1367 = vunpack.c.h.b16 %v166
    %v1368 = vunpack.c.l.b16 %v167
    %v1369 = vunpack.c.h.b16 %v167
    %v1370 = vunpack.c.l.b16 %v168
    %v1371 = vunpack.c.h.b16 %v168
    %v1372 = vunpack.c.l.b16 %v169
    %v1373 = vunpack.c.h.b16 %v169
    %v1374 = vunpack.c.l.b16 %v170
    %v1375 = vunpack.c.h.b16 %v170
    %v1376 = vunpack.c.l.b16 %v171
    %v1377 = vunpack.c.h.b16 %v171
    %v1378 = vunpack.c.l.b16 %v172
    %v1379 = vunpack.c.h.b16 %v172
    %v1380 = vunpack.c.l.b16 %v173
    %v1381 = vunpack.c.h.b16 %v173
    %v1382 = vunpack.c.l.b16 %v174
    %v1383 = vunpack.c.h.b16 %v174
    %v1384 = vunpack.c.l.b16 %v175
    %v1385 = vunpack.c.h.b16 %v175
    %v1386 = vunpack.c.l.b16 %v176
    %v1387 = vunpack.c.h.b16 %v176
    %v1388 = vunpack.c.l.b16 %v177
    %v1389 = vunpack.c.h.b16 %v177
    %v1390 = vunpack.c.l.b16 %v178
    %v1391 = vunpack.c.h.b16 %v178
    %v1392 = vunpack.c.l.b16 %v179
    %v1393 = vunpack.c.h.b16 %v179
    %v1394 = vunpack.c.l.b16 %v180
    %v1395 = vunpack.c.h.b16 %v180
    %v1396 = vunpack.c.l.b16 %v181
    %v1397 = vunpack.c.h.b16 %v181
    %v1398 = vunpack.c.l.b16 %v182
    %v1399 = vunpack.c.h.b16 %v182
    %v1400 = vunpack.c.l.b16 %v183
    %v1401 = vunpack.c.h.b16 %v183
    %v1402 = vunpack.c.l.b16 %v184
    %v1403 = vunpack.c.h.b16 %v184
    %v1404 = vunpack.c.l.b16 %v185
    %v1405 = vunpack.c.h.b16 %v185
    %v1406 = vunpack.c.l.b16 %v186
    %v1407 = vunpack.c.h.b16 %v186
    %v1408 = vunpack.c.l.b16 %v187
    %v1409 = vunpack.c.h.b16 %v187
    %v1410 = vunpack.c.l.b16 %v188
    %v1411 = vunpack.c.h.b16 %v188
    %v1412 = vunpack.c.l.b16 %v189
    %v1413 = vunpack.c.h.b16 %v189
    %v1414 = vunpack.c.l.b16 %v190
    %v1415 = vunpack.c.h.b16 %v190
    %v1416 = vunpack.c.l.b16 %v191
    %v1417 = vunpack.c.h.b16 %v191
    %v1418 = vunpack.c.l.b16 %v192
    %v1419 = vunpack.c.h.b16 %v192
    %v1420 = vunpack.c.l.b16 %v193
    %v1421 = vunpack.c.h.b16 %v193
    %v1422 = vunpack.c.l.b16 %v194
    %v1423 = vunpack.c.h.b16 %v194
    %v1424 = vunpack.c.l.b16 %v195
    %v1425 = vunpack.c.h.b16 %v195
    %v1426 = vunpack.c.l.b16 %v196
    %v1427 = vunpack.c.h.b16 %v196
    %v1428 = vunpack.c.l.b16 %v197
    %v1429 = vunpack.c.h.b16 %v197
    %v1430 = vunpack.c.l.b16 %v198
    %v1431 = vunpack.c.h.b16 %v198
    %v1432 = vunpack.c.l.b16 %v199
    %v1433 = vunpack.c.h.b16 %v199
    %v1434 = vunpack.c.l.b16 %v200
    %v1435 = vunpack.c.h.b16 %v200
    %v1436 = vunpack.c.l.b16 %v201
    %v1437 = vunpack.c.h.b16 %v201
    %v1438 = vunpack.c.l.b16 %v202
    %v1439 = vunpack.c.h.b16 %v202
    %v1440 = vunpack.c.l.b16 %v203
    %v1441 = vunpack.c.h.b16 %v203
    %v1442 = vunpack.c.l.b16 %v204
    %v1443 = vunpack.c.h.b16 %v204
    %v1444 = vunpack.c.l.b16 %v205
    %v1445 = vunpack.c.h.b16 %v205
    %v1446 = vunpack.c.l.b16 %v206
    %v1447 = vunpack.c.h.b16 %v206
    %v1448 = vunpack.c.l.b16 %v207
    %v1449 = vunpack.c.h.b16 %v207
    %v1450 = vunpack.c.l.b16 %v208
    %v1451 = vunpack.c.h.b16 %v208
    %v1452 = vunpack.c.l.b16 %v209
    %v1453 = vunpack.c.h.b16 %v209
    %v1454 = vunpack.c.l.b16 %v210
    %v1455 = vunpack.c.h.b16 %v210
    %v1456 = vunpack.c.l.b16 %v211
    %v1457 = vunpack.c.h.b16 %v211
    %v1458 = vunpack.c.l.b16 %v212
    %v1459 = vunpack.c.h.b16 %v212
    %v1460 = vunpack.c.l.b16 %v213
    %v1461 = vunpack.c.h.b16 %v213
    %v1462 = vunpack.c.l.b16 %v214
    %v1463 = vunpack.c.h.b16 %v214
    %v1464 = vunpack.c.l.b16 %v215
    %v1465 = vunpack.c.h.b16 %v215
    %v1466 = vunpack.c.l.b16 %v216
    %v1467 = vunpack.c.h.b16 %v216
    %v1468 = vunpack.c.l.b16 %v217
    %v1469 = vunpack.c.h.b16 %v217
    %v1470 = vunpack.c.l.b16 %v218
    %v1471 = vunpack.c.h.b16 %v218
    %v1472 = vunpack.c.l.b16 %v219
    %v1473 = vunpack.c.h.b16 %v219
    %v1474 = vunpack.c.l.b16 %v220
    %v1475 = vunpack.c.h.b16 %v220
    %v1476 = vunpack.c.l.b16 %v221
    %v1477 = vunpack.c.h.b16 %v221
    %v1478 = vunpack.c.l.b16 %v222
    %v1479 = vunpack.c.h.b16 %v222
    %v1480 = vunpack.c.l.b16 %v223
    %v1481 = vunpack.c.h.b16 %v223
    %v1482 = vunpack.c.l.b16 %v224
    %v1483 = vunpack.c.h.b16 %v224
    %v1484 = vunpack.c.l.b16 %v225
    %v1485 = vunpack.c.h.b16 %v225
    %v1486 = vunpack.c.l.b16 %v226
    %v1487 = vunpack.c.h.b16 %v226
    %v1488 = vunpack.c.l.b16 %v227
    %v1489 = vunpack.c.h.b16 %v227
    %v1490 = vunpack.c.l.b16 %v228
    %v1491 = vunpack.c.h.b16 %v228
    %v1492 = vunpack.c.l.b16 %v229
    %v1493 = vunpack.c.h.b16 %v229
    %v1494 = vunpack.c.l.b16 %v230
    %v1495 = vunpack.c.h.b16 %v230
    %v1496 = vunpack.c.l.b16 %v231
    %v1497 = vunpack.c.h.b16 %v231
    %v1498 = vunpack.c.l.b16 %v232
    %v1499 = vunpack.c.h.b16 %v232
    %v1500 = vunpack.c.l.b16 %v233
    %v1501 = vunpack.c.h.b16 %v233
    %v1502 = vunpack.c.l.b16 %v234
    %v1503 = vunpack.c.h.b16 %v234
    %v1504 = vunpack.c.l.b16 %v235
    %v1505 = vunpack.c.h.b16 %v235
    %v1506 = vunpack.c.l.b16 %v236
    %v1507 = vunpack.c.h.b16 %v236
    %v1508 = vunpack.c.l.b16 %v237
    %v1509 = vunpack.c.h.b16 %v237
    %v1510 = vunpack.c.l.b16 %v238
    %v1511 = vunpack.c.h.b16 %v238
    %v1512 = vunpack.c.l.b16 %v239
    %v1513 = vunpack.c.h.b16 %v239
    %v1514 = vunpack.c.l.b16 %v240
    %v1515 = vunpack.c.h.b16 %v240
    %v1516 = vunpack.c.l.b16 %v241
    %v1517 = vunpack.c.h.b16 %v241
    %v1518 = vunpack.c.l.b16 %v242
    %v1519 = vunpack.c.h.b16 %v242
    %v1520 = vunpack.c.l.b16 %v243
    %v1521 = vunpack.c.h.b16 %v243
    %v1522 = vunpack.c.l.b16 %v244
    %v1523 = vunpack.c.h.b16 %v244
    %v1524 = vunpack.c.l.b16 %v245
    %v1525 = vunpack.c.h.b16 %v245
    %v1526 = vunpack.c.l.b16 %v246
    %v1527 = vunpack.c.h.b16 %v246
    %v1528 = vunpack.c.l.b16 %v247
    %v1529 = vunpack.c.h.b16 %v247
    %v1530 = vunpack.c.l.b16 %v248
    %v1531 = vunpack.c.h.b16 %v248
    %v1532 = vunpack.c.l.b16 %v249
    %v1533 = vunpack.c.h.b16 %v249
    %v1534 = vunpack.c.l.b16 %v250
    %v1535 = vunpack.c.h.b16 %v250
    %v1536 = vunpack.c.l.b16 %v251
    %v1537 = vunpack.c.h.b16 %v251
    %v1538 = vunpack.c.l.b16 %v252
    %v1539 = vunpack.c.h.b16 %v252
    %v1540 = vunpack.c.l.b16 %v253
    %v1541 = vunpack.c.h.b16 %v253
    %v1542 = vunpack.c.l.b16 %v254
    %v1543 = vunpack.c.h.b16 %v254
    %v1544 = vunpack.c.l.b16 %v255
    %v1545 = vunpack.c.h.b16 %v255
    %v1546 = vunpack.c.l.b16 %v256
    %v1547 = vunpack.c.h.b16 %v256
    %v1548 = vunpack.c.l.b16 %v257
    %v1549 = vunpack.c.h.b16 %v257
    %v1550 = vunpack.c.l.b16 %v258
    %v1551 = vunpack.c.h.b16 %v258
    %v1552 = vunpack.c.l.b16 %v259
    %v1553 = vunpack.c.h.b16 %v259
    %v1554 = vunpack.c.l.b16 %v260
    %v1555 = vunpack.c.h.b16 %v260
    %v1556 = vunpack.c.l.b16 %v261
    %v1557 = vunpack.c.h.b16 %v261
    %v1558 = vunpack.c.l.b16 %v262
    %v1559 = vunpack.c.h.b16 %v262
    %v1560 = vunpack.c.l.b16 %v263
    %v1561 = vunpack.c.h.b16 %v263
    %v1562 = vunpack.c.l.b16 %v264
    %v1563 = vunpack.c.h.b16 %v264
    %v1564 = vunpack.c.l.b16 %v265
    %v1565 = vunpack.c.h.b16 %v265
    %v1566 = vunpack.c.l.b16 %v266
    %v1567 = vunpack.c.h.b16 %v266
    %v1568 = vunpack.c.l.b16 %v267
    %v1569 = vunpack.c.h.b16 %v267
    %v1570 = vunpack.c.l.b16 %v268
    %v1571 = vunpack.c.h.b16 %v268
    %v1572 = vunpack.c.l.b16 %v269
    %v1573 = vunpack.c.h.b16 %v269
    %v1574 = vunpack.c.l.b16 %v270
    %v1575 = vunpack.c.h.b16 %v270
    %v1576 = vunpack.c.l.b16 %v271
    %v1577 = vunpack.c.h.b16 %v271
    %v1578 = vunpack.c.l.b16 %v272
    %v1579 = vunpack.c.h.b16 %v272
    %v1580 = vunpack.c.l.b16 %v273
    %v1581 = vunpack.c.h.b16 %v273
    %v1582 = vunpack.c.l.b16 %v274
    %v1583 = vunpack.c.h.b16 %v274
    %v1584 = vunpack.c.l.b16 %v275
    %v1585 = vunpack.c.h.b16 %v275
    %v1586 = vunpack.c.l.b16 %v276
    %v1587 = vunpack.c.h.b16 %v276
    %v1588 = vunpack.c.l.b16 %v277
    %v1589 = vunpack.c.h.b16 %v277
    %v1590 = vunpack.c.l.b16 %v278
    %v1591 = vunpack.c.h.b16 %v278
    %v1592 = vunpack.c.l.b16 %v279
    %v1593 = vunpack.c.h.b16 %v279
    %v1594 = vunpack.c.l.b16 %v280
    %v1595 = vunpack.c.h.b16 %v280
    %v1596 = vunpack.c.l.b16 %v281
    %v1597 = vunpack.c.h.b16 %v281
    %v1598 = vunpack.c.l.b16 %v282
    %v1599 = vunpack.c.h.b16 %v282
    %v1600 = vunpack.c.l.b16 %v283
    %v1601 = vunpack.c.h.b16 %v283
    %v1602 = vunpack.c.l.b16 %v284
    %v1603 = vunpack.c.h.b16 %v284
    %v1604 = vunpack.c.l.b16 %v285
    %v1605 = vunpack.c.h.b16 %v285
    %v1606 = vunpack.c.l.b16 %v286
    %v1607 = vunpack.c.h.b16 %v286
    %v1608 = vunpack.c.l.b16 %v287
    %v1609 = vunpack.c.h.b16 %v287
    %v1610 = vunpack.c.l.b16 %v288
    %v1611 = vunpack.c.h.b16 %v288
    %v1612 = vunpack.c.l.b16 %v289
    %v1613 = vunpack.c.h.b16 %v289
    %v1614 = vunpack.c.l.b16 %v290
    %v1615 = vunpack.c.h.b16 %v290
    %v1616 = vunpack.c.l.b16 %v291
    %v1617 = vunpack.c.h.b16 %v291
    %v1618 = vunpack.c.l.b16 %v292
    %v1619 = vunpack.c.h.b16 %v292
    %v1620 = vunpack.c.l.b16 %v293
    %v1621 = vunpack.c.h.b16 %v293
    %v1622 = vunpack.c.l.b16 %v294
    %v1623 = vunpack.c.h.b16 %v294
    %v1624 = vunpack.c.l.b16 %v295
    %v1625 = vunpack.c.h.b16 %v295
    %v1626 = vunpack.c.l.b16 %v296
    %v1627 = vunpack.c.h.b16 %v296
    %v1628 = vunpack.c.l.b16 %v297
    %v1629 = vunpack.c.h.b16 %v297
    %v1630 = vunpack.c.l.b16 %v298
    %v1631 = vunpack.c.h.b16 %v298
    %v1632 = vunpack.c.l.b16 %v299
    %v1633 = vunpack.c.h.b16 %v299
    %v1634 = vunpack.c.l.b16 %v300
    %v1635 = vunpack.c.h.b16 %v300
    %v1636 = vunpack.c.l.b16 %v301
    %v1637 = vunpack.c.h.b16 %v301
    %v1638 = vunpack.c.l.b16 %v302
    %v1639 = vunpack.c.h.b16 %v302
    %v1640 = vunpack.c.l.b16 %v303
    %v1641 = vunpack.c.h.b16 %v303
    %v1642 = vunpack.c.l.b16 %v304
    %v1643 = vunpack.c.h.b16 %v304
    %v1644 = vunpack.c.l.b16 %v305
    %v1645 = vunpack.c.h.b16 %v305
    %v1646 = vunpack.c.l.b16 %v306
    %v1647 = vunpack.c.h.b16 %v306
    %v1648 = vunpack.c.l.b16 %v307
    %v1649 = vunpack.c.h.b16 %v307
    %v1650 = vunpack.c.l.b16 %v308
    %v1651 = vunpack.c.h.b16 %v308
    %v1652 = vunpack.c.l.b16 %v309
    %v1653 = vunpack.c.h.b16 %v309
    %v1654 = vunpack.c.l.b16 %v310
    %v1655 = vunpack.c.h.b16 %v310
    %v1656 = vunpack.c.l.b16 %v311
    %v1657 = vunpack.c.h.b16 %v311
    %v1658 = vunpack.c.l.b16 %v312
    %v1659 = vunpack.c.h.b16 %v312
    %v1660 = vunpack.c.l.b16 %v313
    %v1661 = vunpack.c.h.b16 %v313
    %v1662 = vunpack.c.l.b16 %v314
    %v1663 = vunpack.c.h.b16 %v314
    %v1664 = vunpack.c.l.b16 %v315
    %v1665 = vunpack.c.h.b16 %v315
    %v1666 = vunpack.c.l.b16 %v316
    %v1667 = vunpack.c.h.b16 %v316
    %v1668 = vunpack.c.l.b16 %v317
    %v1669 = vunpack.c.h.b16 %v317
    %v1670 = vunpack.c.l.b16 %v318
    %v1671 = vunpack.c.h.b16 %v318
    %v1672 = vunpack.c.l.b16 %v319
    %v1673 = vunpack.c.h.b16 %v319
    %v1674 = vunpack.c.l.b16 %v320
    %v1675 = vunpack.c.h.b16 %v320
    %v1676 = vunpack.c.l.b16 %v321
    %v1677 = vunpack.c.h.b16 %v321
    %v1678 = vunpack.c.l.b16 %v322
    %v1679 = vunpack.c.h.b16 %v322
    %v1680 = vunpack.c.l.b16 %v323
    %v1681 = vunpack.c.h.b16 %v323
    %v1682 = vunpack.c.l.b16 %v324
    %v1683 = vunpack.c.h.b16 %v324
    %v1684 = vunpack.c.l.b16 %v325
    %v1685 = vunpack.c.h.b16 %v325
    %v1686 = vunpack.c.l.b16 %v326
    %v1687 = vunpack.c.h.b16 %v326
    %v1688 = vunpack.c.l.b16 %v327
    %v1689 = vunpack.c.h.b16 %v327
    %v1690 = vunpack.c.l.b16 %v328
    %v1691 = vunpack.c.h.b16 %v328
    %v1692 = vunpack.c.l.b16 %v329
    %v1693 = vunpack.c.h.b16 %v329
    %v1694 = vunpack.c.l.b16 %v330
    %v1695 = vunpack.c.h.b16 %v330
    %v1696 = vunpack.c.l.b16 %v331
    %v1697 = vunpack.c.h.b16 %v331
    %v1698 = vunpack.c.l.b16 %v332
    %v1699 = vunpack.c.h.b16 %v332
    %v1700 = vunpack.c.l.b16 %v333
    %v1701 = vunpack.c.h.b16 %v333
    %v1702 = vunpack.c.l.b16 %v334
    %v1703 = vunpack.c.h.b16 %v334
    %v1704 = vunpack.c.l.b16 %v335
    %v1705 = vunpack.c.h.b16 %v335
    %v1706 = vunpack.c.l.b16 %v336
    %v1707 = vunpack.c.h.b16 %v336
    %v1708 = vunpack.c.l.b16 %v337
    %v1709 = vunpack.c.h.b16 %v337
    %v1710 = vunpack.c.l.b16 %v338
    %v1711 = vunpack.c.h.b16 %v338
    %v1712 = vunpack.c.l.b16 %v339
    %v1713 = vunpack.c.h.b16 %v339
    %v1714 = vunpack.c.l.b16 %v340
    %v1715 = vunpack.c.h.b16 %v340
    %v1716 = vunpack.c.l.b16 %v341
    %v1717 = vunpack.c.h.b16 %v341
    %v1718 = vunpack.c.l.b16 %v342
    %v1719 = vunpack.c.h.b16 %v342
    %v1720 = vunpack.c.l.b16 %v343
    %v1721 = vunpack.c.h.b16 %v343
    %v1722 = vunpack.c.l.b16 %v344
    %v1723 = vunpack.c.h.b16 %v344
    %v1724 = vunpack.c.l.b16 %v345
    %v1725 = vunpack.c.h.b16 %v345
    %v1726 = vunpack.c.l.b16 %v346
    %v1727 = vunpack.c.h.b16 %v346
    %v1728 = vunpack.c.l.b16 %v347
    %v1729 = vunpack.c.h.b16 %v347
    %v1730 = vunpack.c.l.b16 %v348
    %v1731 = vunpack.c.h.b16 %v348
    %v1732 = vunpack.c.l.b16 %v349
    %v1733 = vunpack.c.h.b16 %v349
    %v1734 = vunpack.c.l.b16 %v350
    %v1735 = vunpack.c.h.b16 %v350
    %v1736 = vunpack.c.l.b16 %v351
    %v1737 = vunpack.c.h.b16 %v351
    %v1738 = vunpack.c.l.b16 %v352
    %v1739 = vunpack.c.h.b16 %v352
    %v1740 = vunpack.c.l.b16 %v353
    %v1741 = vunpack.c.h.b16 %v353
    %v1742 = vunpack.c.l.b16 %v354
    %v1743 = vunpack.c.h.b16 %v354
    %v1744 = vunpack.c.l.b16 %v355
    %v1745 = vunpack.c.h.b16 %v355
    %v1746 = vunpack.c.l.b16 %v356
    %v1747 = vunpack.c.h.b16 %v356
    %v1748 = vunpack.c.l.b16 %v357
    %v1749 = vunpack.c.h.b16 %v357
    %v1750 = vunpack.c.l.b16 %v358
    %v1751 = vunpack.c.h.b16 %v358
    %v1752 = vunpack.c.l.b16 %v359
    %v1753 = vunpack.c.h.b16 %v359
    %v1754 = vunpack.c.l.b16 %v360
    %v1755 = vunpack.c.h.b16 %v360
    %v1756 = vunpack.c.l.b16 %v361
    %v1757 = vunpack.c.h.b16 %v361
    %v1758 = vunpack.c.l.b16 %v362
    %v1759 = vunpack.c.h.b16 %v362
    %v1760 = vunpack.c.l.b16 %v363
    %v1761 = vunpack.c.h.b16 %v363
    %v1762 = vunpack.c.l.b16 %v364
    %v1763 = vunpack.c.h.b16 %v364
    %v1764 = vunpack.c.l.b16 %v365
    %v1765 = vunpack.c.h.b16 %v365
    %v1766 = vunpack.c.l.b16 %v366
    %v1767 = vunpack.c.h.b16 %v366
    %v1768 = vunpack.c.l.b16 %v367
    %v1769 = vunpack.c.h.b16 %v367
    %v1770 = vunpack.c.l.b16 %v368
    %v1771 = vunpack.c.h.b16 %v368
    %v1772 = vunpack.c.l.b16 %v369
    %v1773 = vunpack.c.h.b16 %v369
    %v1774 = vunpack.c.l.b16 %v370
    %v1775 = vunpack.c.h.b16 %v370
    %v1776 = vunpack.c.l.b16 %v371
    %v1777 = vunpack.c.h.b16 %v371
    %v1778 = vunpack.c.l.b16 %v372
    %v1779 = vunpack.c.h.b16 %v372
    %v1780 = vunpack.c.l.b16 %v373
    %v1781 = vunpack.c.h.b16 %v373
    %v1782 = vunpack.c.l.b16 %v374
    %v1783 = vunpack.c.h.b16 %v374
    %v1784 = vunpack.c.l.b16 %v375
    %v1785 = vunpack.c.h.b16 %v375
    %v1786 = vunpack.c.l.b16 %v376
    %v1787 = vunpack.c.h.b16 %v376
    %v1788 = vunpack.c.l.b16 %v377
    %v1789 = vunpack.c.h.b16 %v377
    %v1790 = vunpack.c.l.b16 %v378
    %v1791 = vunpack.c.h.b16 %v378
    %v1792 = vunpack.c.l.b16 %v379
    %v1793 = vunpack.c.h.b16 %v379
    %v1794 = vunpack.c.l.b16 %v380
    %v1795 = vunpack.c.h.b16 %v380
    %v1796 = vunpack.c.l.b16 %v381
    %v1797 = vunpack.c.h.b16 %v381
    %v1798 = vunpack.c.l.b16 %v382
    %v1799 = vunpack.c.h.b16 %v382
    %v1800 = vunpack.c.l.b16 %v383
    %v1801 = vunpack.c.h.b16 %v383
    %v1802 = vunpack.c.l.b16 %v384
    %v1803 = vunpack.c.h.b16 %v384
    %v1804 = vunpack.c.l.b16 %v385
    %v1805 = vunpack.c.h.b16 %v385
    %v1806 = vunpack.c.l.b16 %v386
    %v1807 = vunpack.c.h.b16 %v386
    %v1808 = vunpack.c.l.b16 %v387
    %v1809 = vunpack.c.h.b16 %v387
    %v1810 = vunpack.c.l.b16 %v388
    %v1811 = vunpack.c.h.b16 %v388
    %v1812 = vunpack.c.l.b16 %v389
    %v1813 = vunpack.c.h.b16 %v389
    %v1814 = vunpack.c.l.b16 %v390
    %v1815 = vunpack.c.h.b16 %v390
    %v1816 = vunpack.c.l.b16 %v391
    %v1817 = vunpack.c.h.b16 %v391
    %v1818 = vunpack.c.l.b16 %v392
    %v1819 = vunpack.c.h.b16 %v392
    %v1820 = vunpack.c.l.b16 %v393
    %v1821 = vunpack.c.h.b16 %v393
    %v1822 = vunpack.c.l.b16 %v394
    %v1823 = vunpack.c.h.b16 %v394
    %v1824 = vunpack.c.l.b16 %v395
    %v1825 = vunpack.c.h.b16 %v395
    %v1826 = vunpack.c.l.b16 %v396
    %v1827 = vunpack.c.h.b16 %v396
    %v1828 = vunpack.c.l.b16 %v397
    %v1829 = vunpack.c.h.b16 %v397
    %v1830 = vunpack.c.l.b16 %v398
    %v1831 = vunpack.c.h.b16 %v398
    %v1832 = vunpack.c.l.b16 %v399
    %v1833 = vunpack.c.h.b16 %v399
    %v1834 = vunpack.c.l.b16 %v400
    %v1835 = vunpack.c.h.b16 %v400
    %v1836 = vunpack.c.l.b16 %v401
    %v1837 = vunpack.c.h.b16 %v401
    %v1838 = vunpack.c.l.b16 %v402
    %v1839 = vunpack.c.h.b16 %v402
    %v1840 = vunpack.c.l.b16 %v403
    %v1841 = vunpack.c.h.b16 %v403
    %v1842 = vunpack.c.l.b16 %v404
    %v1843 = vunpack.c.h.b16 %v404
    %v1844 = vunpack.c.l.b16 %v405
    %v1845 = vunpack.c.h.b16 %v405
    %v1846 = vunpack.c.l.b16 %v406
    %v1847 = vunpack.c.h.b16 %v406
    %v1848 = vunpack.c.l.b16 %v407
    %v1849 = vunpack.c.h.b16 %v407
    %v1850 = vunpack.c.l.b16 %v408
    %v1851 = vunpack.c.h.b16 %v408
    %v1852 = vunpack.c.l.b16 %v409
    %v1853 = vunpack.c.h.b16 %v409
    %v1854 = vunpack.c.l.b16 %v410
    %v1855 = vunpack.c.h.b16 %v410
    %v1856 = vunpack.c.l.b16 %v411
    %v1857 = vunpack.c.h.b16 %v411
    %v1858 = vunpack.c.l.b16 %v412
    %v1859 = vunpack.c.h.b16 %v412
    %v1860 = vunpack.c.l.b16 %v413
    %v1861 = vunpack.c.h.b16 %v413
    %v1862 = vunpack.c.l.b16 %v414
    %v1863 = vunpack.c.h.b16 %v414
    %v1864 = vunpack.c.l.b16 %v415
    %v1865 = vunpack.c.h.b16 %v415
    %v1866 = vunpack.c.l.b16 %v416
    %v1867 = vunpack.c.h.b16 %v416
    %v1868 = vunpack.c.l.b16 %v417
    %v1869 = vunpack.c.h.b16 %v417
    %v1870 = vunpack.c.l.b16 %v418
    %v1871 = vunpack.c.h.b16 %v418
    %v1872 = vunpack.c.l.b16 %v419
    %v1873 = vunpack.c.h.b16 %v419
    %v1874 = vunpack.c.l.b16 %v420
    %v1875 = vunpack.c.h.b16 %v420
    %v1876 = vunpack.c.l.b16 %v421
    %v1877 = vunpack.c.h.b16 %v421
    %v1878 = vunpack.c.l.b16 %v422
    %v1879 = vunpack.c.h.b16 %v422
    %v1880 = vunpack.c.l.b16 %v423
    %v1881 = vunpack.c.h.b16 %v423
    %v1882 = vunpack.c.l.b16 %v424
    %v1883 = vunpack.c.h.b16 %v424
    %v1884 = vunpack.c.l.b16 %v425
    %v1885 = vunpack.c.h.b16 %v425
    %v1886 = vunpack.c.l.b16 %v426
    %v1887 = vunpack.c.h.b16 %v426
    %v1888 = vunpack.c.l.b16 %v427
    %v1889 = vunpack.c.h.b16 %v427
    %v1890 = vunpack.c.l.b16 %v428
    %v1891 = vunpack.c.h.b16 %v428
    %v1892 = vunpack.c.l.b16 %v429
    %v1893 = vunpack.c.h.b16 %v429
    %v1894 = vunpack.c.l.b16 %v430
    %v1895 = vunpack.c.h.b16 %v430
    %v1896 = vunpack.c.l.b16 %v431
    %v1897 = vunpack.c.h.b16 %v431
    %v1898 = vunpack.c.l.b16 %v432
    %v1899 = vunpack.c.h.b16 %v432
    %v1900 = vunpack.c.l.b16 %v433
    %v1901 = vunpack.c.h.b16 %v433
    %v1902 = vunpack.c.l.b16 %v434
    %v1903 = vunpack.c.h.b16 %v434
    %v1904 = vunpack.c.l.b16 %v435
    %v1905 = vunpack.c.h.b16 %v435
    %v1906 = vunpack.c.l.b16 %v436
    %v1907 = vunpack.c.h.b16 %v436
    %v1908 = vunpack.c.l.b16 %v437
    %v1909 = vunpack.c.h.b16 %v437
    %v1910 = vunpack.c.l.b16 %v438
    %v1911 = vunpack.c.h.b16 %v438
    %v1912 = vunpack.c.l.b16 %v439
    %v1913 = vunpack.c.h.b16 %v439
    %v1914 = vunpack.c.l.b16 %v440
    %v1915 = vunpack.c.h.b16 %v440
    %v1916 = vunpack.c.l.b16 %v441
    %v1917 = vunpack.c.h.b16 %v441
    %v1918 = vunpack.c.l.b16 %v442
    %v1919 = vunpack.c.h.b16 %v442
    %v1920 = vunpack.c.l.b16 %v443
    %v1921 = vunpack.c.h.b16 %v443
    %v1922 = vunpack.c.l.b16 %v444
    %v1923 = vunpack.c.h.b16 %v444
    %v1924 = vunpack.c.l.b16 %v445
    %v1925 = vunpack.c.h.b16 %v445
    %v1926 = vunpack.c.l.b16 %v446
    %v1927 = vunpack.c.h.b16 %v446
    %v1928 = vunpack.c.l.b16 %v447
    %v1929 = vunpack.c.h.b16 %v447
    %v1930 = vunpack.c.l.b16 %v448
    %v1931 = vunpack.c.h.b16 %v448
    %v1932 = vunpack.c.l.b16 %v449
    %v1933 = vunpack.c.h.b16 %v449
    %v1934 = vunpack.c.l.b16 %v450
    %v1935 = vunpack.c.h.b16 %v450
    %v1936 = vunpack.c.l.b16 %v451
    %v1937 = vunpack.c.h.b16 %v451
    %v1938 = vunpack.c.l.b16 %v452
    %v1939 = vunpack.c.h.b16 %v452
    %v1940 = vunpack.c.l.b16 %v453
    %v1941 = vunpack.c.h.b16 %v453
    %v1942 = vunpack.c.l.b16 %v454
    %v1943 = vunpack.c.h.b16 %v454
    %v1944 = vunpack.c.l.b16 %v455
    %v1945 = vunpack.c.h.b16 %v455
    %v1946 = vunpack.c.l.b16 %v456
    %v1947 = vunpack.c.h.b16 %v456
    %v1948 = vunpack.c.l.b16 %v457
    %v1949 = vunpack.c.h.b16 %v457
    %v1950 = vunpack.c.l.b16 %v458
    %v1951 = vunpack.c.h.b16 %v458
    %v1952 = vunpack.c.l.b16 %v459
    %v1953 = vunpack.c.h.b16 %v459
    %v1954 = vunpack.c.l.b16 %v460
    %v1955 = vunpack.c.h.b16 %v460
    %v1956 = vunpack.c.l.b16 %v461
    %v1957 = vunpack.c.h.b16 %v461
    %v1958 = vunpack.c.l.b16 %v462
    %v1959 = vunpack.c.h.b16 %v462
    %v1960 = vunpack.c.l.b16 %v463
    %v1961 = vunpack.c.h.b16 %v463
    %v1962 = vunpack.c.l.b16 %v464
    %v1963 = vunpack.c.h.b16 %v464
    %v1964 = vunpack.c.l.b16 %v465
    %v1965 = vunpack.c.h.b16 %v465
    %v1966 = vunpack.c.l.b16 %v466
    %v1967 = vunpack.c.h.b16 %v466
    %v1968 = vunpack.c.l.b16 %v467
    %v1969 = vunpack.c.h.b16 %v467
    %v1970 = vunpack.c.l.b16 %v468
    %v1971 = vunpack.c.h.b16 %v468
    %v1972 = vunpack.c.l.b16 %v469
    %v1973 = vunpack.c.h.b16 %v469
    %v1974 = vunpack.c.l.b16 %v470
    %v1975 = vunpack.c.h.b16 %v470
    %v1976 = vunpack.c.l.b16 %v471
    %v1977 = vunpack.c.h.b16 %v471
    %v1978 = vunpack.c.l.b16 %v472
    %v1979 = vunpack.c.h.b16 %v472
    %v1980 = vunpack.c.l.b16 %v473
    %v1981 = vunpack.c.h.b16 %v473
    %v1982 = vunpack.c.l.b16 %v474
    %v1983 = vunpack.c.h.b16 %v474
    %v1984 = vunpack.c.l.b16 %v475
    %v1985 = vunpack.c.h.b16 %v475
    %v1986 = vunpack.c.l.b16 %v476
    %v1987 = vunpack.c.h.b16 %v476
    %v1988 = vunpack.c.l.b16 %v477
    %v1989 = vunpack.c.h.b16 %v477
    %v1990 = vunpack.c.l.b16 %v478
    %v1991 = vunpack.c.h.b16 %v478
    %v1992 = vunpack.c.l.b16 %v479
    %v1993 = vunpack.c.h.b16 %v479
    %v1994 = vunpack.c.l.b16 %v480
    %v1995 = vunpack.c.h.b16 %v480
    %v1996 = vunpack.c.l.b16 %v481
    %v1997 = vunpack.c.h.b16 %v481
    %v1998 = vunpack.c.l.b16 %v482
    %v1999 = vunpack.c.h.b16 %v482
    %v2000 = vunpack.c.l.b16 %v483
    %v2001 = vunpack.c.h.b16 %v483
    %v2002 = vunpack.c.l.b16 %v484
    %v2003 = vunpack.c.h.b16 %v484
    %v2004 = vunpack.c.l.b16 %v485
    %v2005 = vunpack.c.h.b16 %v485
    %v2006 = vunpack.c.l.b16 %v486
    %v2007 = vunpack.c.h.b16 %v486
    %v2008 = vunpack.c.l.b16 %v487
    %v2009 = vunpack.c.h.b16 %v487
    %v2010 = vunpack.c.l.b16 %v488
    %v2011 = vunpack.c.h.b16 %v488
    %v2012 = vunpack.c.l.b16 %v489
    %v2013 = vunpack.c.h.b16 %v489
    %v2014 = vunpack.c.l.b16 %v490
    %v2015 = vunpack.c.h.b16 %v490
    %v2016 = vunpack.c.l.b16 %v491
    %v2017 = vunpack.c.h.b16 %v491
    %v2018 = vunpack.c.l.b16 %v492
    %v2019 = vunpack.c.h.b16 %v492
    %v2020 = vunpack.c.l.b16 %v493
    %v2021 = vunpack.c.h.b16 %v493
    %v2022 = vunpack.c.l.b16 %v494
    %v2023 = vunpack.c.h.b16 %v494
    %v2024 = vunpack.c.l.b16 %v495
    %v2025 = vunpack.c.h.b16 %v495
    %v2026 = vunpack.c.l.b16 %v496
    %v2027 = vunpack.c.h.b16 %v496
    %v2028 = vunpack.c.l.b16 %v497
    %v2029 = vunpack.c.h.b16 %v497
    %v2030 = vunpack.c.l.b16 %v498
    %v2031 = vunpack.c.h.b16 %v498
    %v2032 = vunpack.c.l.b16 %v499
    %v2033 = vunpack.c.h.b16 %v499
    %v2034 = vunpack.c.l.b16 %v500
    %v2035 = vunpack.c.h.b16 %v500
    %v2036 = vunpack.c.l.b16 %v501
    %v2037 = vunpack.c.h.b16 %v501
    %v2038 = vunpack.c.l.b16 %v502
    %v2039 = vunpack.c.h.b16 %v502
    %v2040 = vunpack.c.l.b16 %v503
    %v2041 = vunpack.c.h.b16 %v503
    %v2042 = vunpack.c.l.b16 %v504
    %v2043 = vunpack.c.h.b16 %v504
    %v2044 = vunpack.c.l.b16 %v505
    %v2045 = vunpack.c.h.b16 %v505
    %v2046 = vunpack.c.l.b16 %v506
    %v2047 = vunpack.c.h.b16 %v506
    %v2048 = vunpack.c.l.b16 %v507
    %v2049 = vunpack.c.h.b16 %v507
    %v2050 = vunpack.c.l.b16 %v508
    %v2051 = vunpack.c.h.b16 %v508
    %v2052 = vunpack.c.l.b16 %v509
    %v2053 = vunpack.c.h.b16 %v509
    %v2054 = vunpack.c.l.b16 %v510
    %v2055 = vunpack.c.h.b16 %v510
    %v2056 = vunpack.c.l.b16 %v511
    %v2057 = vunpack.c.h.b16 %v511
    %v2058 = vunpack.c.l.b16 %v512
    %v2059 = vunpack.c.h.b16 %v512
    %v2060 = vunpack.c.l.b16 %v513
    %v2061 = vunpack.c.h.b16 %v513
    %v2062 = vunpack.c.l.b16 %v514
    %v2063 = vunpack.c.h.b16 %v514
    %v2064 = vunpack.c.l.b16 %v515
    %v2065 = vunpack.c.h.b16 %v515
    %v2066 = vunpack.c.l.b16 %v516
    %v2067 = vunpack.c.h.b16 %v516
    %v2068 = vunpack.c.l.b16 %v517
    %v2069 = vunpack.c.h.b16 %v517
    %v2070 = vunpack.c.l.b16 %v518
    %v2071 = vunpack.c.h.b16 %v518
    %v2072 = vunpack.c.l.b16 %v519
    %v2073 = vunpack.c.h.b16 %v519
    %v2074 = vunpack.c.l.b16 %v520
    %v2075 = vunpack.c.h.b16 %v520
    %v2076 = vunpack.c.l.b16 %v521
    %v2077 = vunpack.c.h.b16 %v521
    %v2078 = vunpack.c.l.b16 %v522
    %v2079 = vunpack.c.h.b16 %v522
    %v2080 = vunpack.c.l.b16 %v523
    %v2081 = vunpack.c.h.b16 %v523
    %v2082 = vunpack.c.l.b16 %v524
    %v2083 = vunpack.c.h.b16 %v524
    %v2084 = vunpack.c.l.b16 %v525
    %v2085 = vunpack.c.h.b16 %v525
    %v2086 = vunpack.c.l.b16 %v526
    %v2087 = vunpack.c.h.b16 %v526
    %v2088 = vunpack.c.l.b16 %v527
    %v2089 = vunpack.c.h.b16 %v527
    %v2090 = vunpack.c.l.b16 %v528
    %v2091 = vunpack.c.h.b16 %v528
    %v2092 = vunpack.c.l.b16 %v529
    %v2093 = vunpack.c.h.b16 %v529
    %v2094 = vunpack.c.l.b16 %v530
    %v2095 = vunpack.c.h.b16 %v530
    %v2096 = vunpack.c.l.b16 %v531
    %v2097 = vunpack.c.h.b16 %v531
    %v2098 = vunpack.c.l.b16 %v532
    %v2099 = vunpack.c.h.b16 %v532
    %v2100 = vunpack.c.l.b16 %v533
    %v2101 = vunpack.c.h.b16 %v533
    %v2102 = vunpack.c.l.b16 %v534
    %v2103 = vunpack.c.h.b16 %v534
    %v2104 = vunpack.c.l.b16 %v535
    %v2105 = vunpack.c.h.b16 %v535
    %v2106 = vunpack.c.l.b16 %v536
    %v2107 = vunpack.c.h.b16 %v536
    %v2108 = vunpack.c.l.b16 %v537
    %v2109 = vunpack.c.h.b16 %v537
    %v2110 = vpack.c.b16 %v1090, %v1086
    %v2111 = vpack.c.b16 %v1091, %v1087
    %v2112 = vpack.c.b16 %v1092, %v1088
    %v2113 = vpack.c.b16 %v1093, %v1089
    %v2114 = vpack.c.b16 %v1098, %v1094
    %v2115 = vpack.c.b16 %v1099, %v1095
    %v2116 = vpack.c.b16 %v1100, %v1096
    %v2117 = vpack.c.b16 %v1101, %v1097
    %v2118 = vpack.c.b16 %v1106, %v1102
    %v2119 = vpack.c.b16 %v1107, %v1103
    %v2120 = vpack.c.b16 %v1108, %v1104
    %v2121 = vpack.c.b16 %v1109, %v1105
    %v2122 = vpack.c.b16 %v1114, %v1110
    %v2123 = vpack.c.b16 %v1115, %v1111
    %v2124 = vpack.c.b16 %v1116, %v1112
    %v2125 = vpack.c.b16 %v1117, %v1113
    %v2126 = vpack.c.b16 %v1122, %v1118
    %v2127 = vpack.c.b16 %v1123, %v1119
    %v2128 = vpack.c.b16 %v1124, %v1120
    %v2129 = vpack.c.b16 %v1125, %v1121
    %v2130 = vpack.c.b16 %v1130, %v1126
    %v2131 = vpack.c.b16 %v1131, %v1127
    %v2132 = vpack.c.b16 %v1132, %v1128
    %v2133 = vpack.c.b16 %v1133, %v1129
    %v2134 = vpack.c.b16 %v1138, %v1134
    %v2135 = vpack.c.b16 %v1139, %v1135
    %v2136 = vpack.c.b16 %v1140, %v1136
    %v2137 = vpack.c.b16 %v1141, %v1137
    %v2138 = vpack.c.b16 %v1146, %v1142
    %v2139 = vpack.c.b16 %v1147, %v1143
    %v2140 = vpack.c.b16 %v1148, %v1144
    %v2141 = vpack.c.b16 %v1149, %v1145
    %v2142 = vpack.c.b16 %v1154, %v1150
    %v2143 = vpack.c.b16 %v1155, %v1151
    %v2144 = vpack.c.b16 %v1156, %v1152
    %v2145 = vpack.c.b16 %v1157, %v1153
    %v2146 = vpack.c.b16 %v1162, %v1158
    %v2147 = vpack.c.b16 %v1163, %v1159
    %v2148 = vpack.c.b16 %v1164, %v1160
    %v2149 = vpack.c.b16 %v1165, %v1161
    %v2150 = vpack.c.b16 %v1170, %v1166
    %v2151 = vpack.c.b16 %v1171, %v1167
    %v2152 = vpack.c.b16 %v1172, %v1168
    %v2153 = vpack.c.b16 %v1173, %v1169
    %v2154 = vpack.c.b16 %v1178, %v1174
    %v2155 = vpack.c.b16 %v1179, %v1175
    %v2156 = vpack.c.b16 %v1180, %v1176
    %v2157 = vpack.c.b16 %v1181, %v1177
    %v2158 = vpack.c.b16 %v1186, %v1182
    %v2159 = vpack.c.b16 %v1187, %v1183
    %v2160 = vpack.c.b16 %v1188, %v1184
    %v2161 = vpack.c.b16 %v1189, %v1185
    %v2162 = vpack.c.b16 %v1194, %v1190
    %v2163 = vpack.c.b16 %v1195, %v1191
    %v2164 = vpack.c.b16 %v1196, %v1192
    %v2165 = vpack.c.b16 %v1197, %v1193
    %v2166 = vpack.c.b16 %v1202, %v1198
    %v2167 = vpack.c.b16 %v1203, %v1199
    %v2168 = vpack.c.b16 %v1204, %v1200
    %v2169 = vpack.c.b16 %v1205, %v1201
    %v2170 = vpack.c.b16 %v1210, %v1206
    %v2171 = vpack.c.b16 %v1211, %v1207
    %v2172 = vpack.c.b16 %v1212, %v1208
    %v2173 = vpack.c.b16 %v1213, %v1209
    %v2174 = vpack.c.b16 %v1218, %v1214
    %v2175 = vpack.c.b16 %v1219, %v1215
    %v2176 = vpack.c.b16 %v1220, %v1216
    %v2177 = vpack.c.b16 %v1221, %v1217
    %v2178 = vpack.c.b16 %v1226, %v1222
    %v2179 = vpack.c.b16 %v1227, %v1223
    %v2180 = vpack.c.b16 %v1228, %v1224
    %v2181 = vpack.c.b16 %v1229, %v1225
    %v2182 = vpack.c.b16 %v1234, %v1230
    %v2183 = vpack.c.b16 %v1235, %v1231
    %v2184 = vpack.c.b16 %v1236, %v1232
    %v2185 = vpack.c.b16 %v1237, %v1233
    %v2186 = vpack.c.b16 %v1242, %v1238
    %v2187 = vpack.c.b16 %v1243, %v1239
    %v2188 = vpack.c.b16 %v1244, %v1240
    %v2189 = vpack.c.b16 %v1245, %v1241
    %v2190 = vpack.c.b16 %v1250, %v1246
    %v2191 = vpack.c.b16 %v1251, %v1247
    %v2192 = vpack.c.b16 %v1252, %v1248
    %v2193 = vpack.c.b16 %v1253, %v1249
    %v2194 = vpack.c.b16 %v1258, %v1254
    %v2195 = vpack.c.b16 %v1259, %v1255
    %v2196 = vpack.c.b16 %v1260, %v1256
    %v2197 = vpack.c.b16 %v1261, %v1257
    %v2198 = vpack.c.b16 %v1266, %v1262
    %v2199 = vpack.c.b16 %v1267, %v1263
    %v2200 = vpack.c.b16 %v1268, %v1264
    %v2201 = vpack.c.b16 %v1269, %v1265
    %v2202 = vpack.c.b16 %v1274, %v1270
    %v2203 = vpack.c.b16 %v1275, %v1271
    %v2204 = vpack.c.b16 %v1276, %v1272
    %v2205 = vpack.c.b16 %v1277, %v1273
    %v2206 = vpack.c.b16 %v1282, %v1278
    %v2207 = vpack.c.b16 %v1283, %v1279
    %v2208 = vpack.c.b16 %v1284, %v1280
    %v2209 = vpack.c.b16 %v1285, %v1281
    %v2210 = vpack.c.b16 %v1290, %v1286
    %v2211 = vpack.c.b16 %v1291, %v1287
    %v2212 = vpack.c.b16 %v1292, %v1288
    %v2213 = vpack.c.b16 %v1293, %v1289
    %v2214 = vpack.c.b16 %v1298, %v1294
    %v2215 = vpack.c.b16 %v1299, %v1295
    %v2216 = vpack.c.b16 %v1300, %v1296
    %v2217 = vpack.c.b16 %v1301, %v1297
    %v2218 = vpack.c.b16 %v1306, %v1302
    %v2219 = vpack.c.b16 %v1307, %v1303
    %v2220 = vpack.c.b16 %v1308, %v1304
    %v2221 = vpack.c.b16 %v1309, %v1305
    %v2222 = vpack.c.b16 %v1314, %v1310
    %v2223 = vpack.c.b16 %v1315, %v1311
    %v2224 = vpack.c.b16 %v1316, %v1312
    %v2225 = vpack.c.b16 %v1317, %v1313
    %v2226 = vpack.c.b16 %v1322, %v1318
    %v2227 = vpack.c.b16 %v1323, %v1319
    %v2228 = vpack.c.b16 %v1324, %v1320
    %v2229 = vpack.c.b16 %v1325, %v1321
    %v2230 = vpack.c.b16 %v1330, %v1326
    %v2231 = vpack.c.b16 %v1331, %v1327
    %v2232 = vpack.c.b16 %v1332, %v1328
    %v2233 = vpack.c.b16 %v1333, %v1329
    %v2234 = vpack.c.b16 %v1338, %v1334
    %v2235 = vpack.c.b16 %v1339, %v1335
    %v2236 = vpack.c.b16 %v1340, %v1336
    %v2237 = vpack.c.b16 %v1341, %v1337
    %v2238 = vpack.c.b16 %v1346, %v1342
    %v2239 = vpack.c.b16 %v1347, %v1343
    %v2240 = vpack.c.b16 %v1348, %v1344
    %v2241 = vpack.c.b16 %v1349, %v1345
    %v2242 = vpack.c.b16 %v1354, %v1350
    %v2243 = vpack.c.b16 %v1355, %v1351
    %v2244 = vpack.c.b16 %v1356, %v1352
    %v2245 = vpack.c.b16 %v1357, %v1353
    %v2246 = vpack.c.b16 %v1362, %v1358
    %v2247 = vpack.c.b16 %v1363, %v1359
    %v2248 = vpack.c.b16 %v1364, %v1360
    %v2249 = vpack.c.b16 %v1365, %v1361
    %v2250 = vpack.c.b16 %v1370, %v1366
    %v2251 = vpack.c.b16 %v1371, %v1367
    %v2252 = vpack.c.b16 %v1372, %v1368
    %v2253 = vpack.c.b16 %v1373, %v1369
    %v2254 = vpack.c.b16 %v1378, %v1374
    %v2255 = vpack.c.b16 %v1379, %v1375
    %v2256 = vpack.c.b16 %v1380, %v1376
    %v2257 = vpack.c.b16 %v1381, %v1377
    %v2258 = vpack.c.b16 %v1386, %v1382
    %v2259 = vpack.c.b16 %v1387, %v1383
    %v2260 = vpack.c.b16 %v1388, %v1384
    %v2261 = vpack.c.b16 %v1389, %v1385
    %v2262 = vpack.c.b16 %v1394, %v1390
    %v2263 = vpack.c.b16 %v1395, %v1391
    %v2264 = vpack.c.b16 %v1396, %v1392
    %v2265 = vpack.c.b16 %v1397, %v1393
    %v2266 = vpack.c.b16 %v1402, %v1398
    %v2267 = vpack.c.b16 %v1403, %v1399
    %v2268 = vpack.c.b16 %v1404, %v1400
    %v2269 = vpack.c.b16 %v1405, %v1401
    %v2270 = vpack.c.b16 %v1410, %v1406
    %v2271 = vpack.c.b16 %v1411, %v1407
    %v2272 = vpack.c.b16 %v1412, %v1408
    %v2273 = vpack.c.b16 %v1413, %v1409
    %v2274 = vpack.c.b16 %v1418, %v1414
    %v2275 = vpack.c.b16 %v1419, %v1415
    %v2276 = vpack.c.b16 %v1420, %v1416
    %v2277 = vpack.c.b16 %v1421, %v1417
    %v2278 = vpack.c.b16 %v1426, %v1422
    %v2279 = vpack.c.b16 %v1427, %v1423
    %v2280 = vpack.c.b16 %v1428, %v1424
    %v2281 = vpack.c.b16 %v1429, %v1425
    %v2282 = vpack.c.b16 %v1434, %v1430
    %v2283 = vpack.c.b16 %v1435, %v1431
    %v2284 = vpack.c.b16 %v1436, %v1432
    %v2285 = vpack.c.b16 %v1437, %v1433
    %v2286 = vpack.c.b16 %v1442, %v1438
    %v2287 = vpack.c.b16 %v1443, %v1439
    %v2288 = vpack.c.b16 %v1444, %v1440
    %v2289 = vpack.c.b16 %v1445, %v1441
    %v2290 = vpack.c.b16 %v1450, %v1446
    %v2291 = vpack.c.b16 %v1451, %v1447
    %v2292 = vpack.c.b16 %v1452, %v1448
    %v2293 = vpack.c.b16 %v1453, %v1449
    %v2294 = vpack.c.b16 %v1458, %v1454
    %v2295 = vpack.c.b16 %v1459, %v1455
    %v2296 = vpack.c.b16 %v1460, %v1456
    %v2297 = vpack.c.b16 %v1461, %v1457
    %v2298 = vpack.c.b16 %v1466, %v1462
    %v2299 = vpack.c.b16 %v1467, %v1463
    %v2300 = vpack.c.b16 %v1468, %v1464
    %v2301 = vpack.c.b16 %v1469, %v1465
    %v2302 = vpack.c.b16 %v1474, %v1470
    %v2303 = vpack.c.b16 %v1475, %v1471
    %v2304 = vpack.c.b16 %v1476, %v1472
    %v2305 = vpack.c.b16 %v1477, %v1473
    %v2306 = vpack.c.b16 %v1482, %v1478
    %v2307 = vpack.c.b16 %v1483, %v1479
    %v2308 = vpack.c.b16 %v1484, %v1480
    %v2309 = vpack.c.b16 %v1485, %v1481
    %v2310 = vpack.c.b16 %v1490, %v1486
    %v2311 = vpack.c.b16 %v1491, %v1487
    %v2312 = vpack.c.b16 %v1492, %v1488
    %v2313 = vpack.c.b16 %v1493, %v1489
    %v2314 = vpack.c.b16 %v1498, %v1494
    %v2315 = vpack.c.b16 %v1499, %v1495
    %v2316 = vpack.c.b16 %v1500, %v1496
    %v2317 = vpack.c.b16 %v1501, %v1497
    %v2318 = vpack.c.b16 %v1506, %v1502
    %v2319 = vpack.c.b16 %v1507, %v1503
    %v2320 = vpack.c.b16 %v1508, %v1504
    %v2321 = vpack.c.b16 %v1509, %v1505
    %v2322 = vpack.c.b16 %v1514, %v1510
    %v2323 = vpack.c.b16 %v1515, %v1511
    %v2324 = vpack.c.b16 %v1516, %v1512
    %v2325 = vpack.c.b16 %v1517, %v1513
    %v2326 = vpack.c.b16 %v1522, %v1518
    %v2327 = vpack.c.b16 %v1523, %v1519
    %v2328 = vpack.c.b16 %v1524, %v1520
    %v2329 = vpack.c.b16 %v1525, %v1521
    %v2330 = vpack.c.b16 %v1530, %v1526
    %v2331 = vpack.c.b16 %v1531, %v1527
    %v2332 = vpack.c.b16 %v1532, %v1528
    %v2333 = vpack.c.b16 %v1533, %v1529
    %v2334 = vpack.c.b16 %v1538, %v1534
    %v2335 = vpack.c.b16 %v1539, %v1535
    %v2336 = vpack.c.b16 %v1540, %v1536
    %v2337 = vpack.c.b16 %v1541, %v1537
    %v2338 = vpack.c.b16 %v1546, %v1542
    %v2339 = vpack.c.b16 %v1547, %v1543
    %v2340 = vpack.c.b16 %v1548, %v1544
    %v2341 = vpack.c.b16 %v1549, %v1545
    %v2342 = vpack.c.b16 %v1554, %v1550
    %v2343 = vpack.c.b16 %v1555, %v1551
    %v2344 = vpack.c.b16 %v1556, %v1552
    %v2345 = vpack.c.b16 %v1557, %v1553
    %v2346 = vpack.c.b16 %v1562, %v1558
    %v2347 = vpack.c.b16 %v1563, %v1559
    %v2348 = vpack.c.b16 %v1564, %v1560
    %v2349 = vpack.c.b16 %v1565, %v1561
    %v2350 = vpack.c.b16 %v1570, %v1566
    %v2351 = vpack.c.b16 %v1571, %v1567
    %v2352 = vpack.c.b16 %v1572, %v1568
    %v2353 = vpack.c.b16 %v1573, %v1569
    %v2354 = vpack.c.b16 %v1578, %v1574
    %v2355 = vpack.c.b16 %v1579, %v1575
    %v2356 = vpack.c.b16 %v1580, %v1576
    %v2357 = vpack.c.b16 %v1581, %v1577
    %v2358 = vpack.c.b16 %v1586, %v1582
    %v2359 = vpack.c.b16 %v1587, %v1583
    %v2360 = vpack.c.b16 %v1588, %v1584
    %v2361 = vpack.c.b16 %v1589, %v1585
    %v2362 = vpack.c.b16 %v1594, %v1590
    %v2363 = vpack.c.b16 %v1595, %v1591
    %v2364 = vpack.c.b16 %v1596, %v1592
    %v2365 = vpack.c.b16 %v1597, %v1593
    %v2366 = vpack.c.b16 %v1602, %v1598
    %v2367 = vpack.c.b16 %v1603, %v1599
    %v2368 = vpack.c.b16 %v1604, %v1600
    %v2369 = vpack.c.b16 %v1605, %v1601
    %v2370 = vpack.c.b16 %v1610, %v1606
    %v2371 = vpack.c.b16 %v1611, %v1607
    %v2372 = vpack.c.b16 %v1612, %v1608
    %v2373 = vpack.c.b16 %v1613, %v1609
    %v2374 = vpack.c.b16 %v1618, %v1614
    %v2375 = vpack.c.b16 %v1619, %v1615
    %v2376 = vpack.c.b16 %v1620, %v1616
    %v2377 = vpack.c.b16 %v1621, %v1617
    %v2378 = vpack.c.b16 %v1626, %v1622
    %v2379 = vpack.c.b16 %v1627, %v1623
    %v2380 = vpack.c.b16 %v1628, %v1624
    %v2381 = vpack.c.b16 %v1629, %v1625
    %v2382 = vpack.c.b16 %v1634, %v1630
    %v2383 = vpack.c.b16 %v1635, %v1631
    %v2384 = vpack.c.b16 %v1636, %v1632
    %v2385 = vpack.c.b16 %v1637, %v1633
    %v2386 = vpack.c.b16 %v1642, %v1638
    %v2387 = vpack.c.b16 %v1643, %v1639
    %v2388 = vpack.c.b16 %v1644, %v1640
    %v2389 = vpack.c.b16 %v1645, %v1641
    %v2390 = vpack.c.b16 %v1650, %v1646
    %v2391 = vpack.c.b16 %v1651, %v1647
    %v2392 = vpack.c.b16 %v1652, %v1648
    %v2393 = vpack.c.b16 %v1653, %v1649
    %v2394 = vpack.c.b16 %v1658, %v1654
    %v2395 = vpack.c.b16 %v1659, %v1655
    %v2396 = vpack.c.b16 %v1660, %v1656
    %v2397 = vpack.c.b16 %v1661, %v1657
    %v2398 = vpack.c.b16 %v1666, %v1662
    %v2399 = vpack.c.b16 %v1667, %v1663
    %v2400 = vpack.c.b16 %v1668, %v1664
    %v2401 = vpack.c.b16 %v1669, %v1665
    %v2402 = vpack.c.b16 %v1674, %v1670
    %v2403 = vpack.c.b16 %v1675, %v1671
    %v2404 = vpack.c.b16 %v1676, %v1672
    %v2405 = vpack.c.b16 %v1677, %v1673
    %v2406 = vpack.c.b16 %v1682, %v1678
    %v2407 = vpack.c.b16 %v1683, %v1679
    %v2408 = vpack.c.b16 %v1684, %v1680
    %v2409 = vpack.c.b16 %v1685, %v1681
    %v2410 = vpack.c.b16 %v1690, %v1686
    %v2411 = vpack.c.b16 %v1691, %v1687
    %v2412 = vpack.c.b16 %v1692, %v1688
    %v2413 = vpack.c.b16 %v1693, %v1689
    %v2414 = vpack.c.b16 %v1698, %v1694
    %v2415 = vpack.c.b16 %v1699, %v1695
    %v2416 = vpack.c.b16 %v1700, %v1696
    %v2417 = vpack.c.b16 %v1701, %v1697
    %v2418 = vpack.c.b16 %v1706, %v1702
    %v2419 = vpack.c.b16 %v1707, %v1703
    %v2420 = vpack.c.b16 %v1708, %v1704
    %v2421 = vpack.c.b16 %v1709, %v1705
    %v2422 = vpack.c.b16 %v1714, %v1710
    %v2423 = vpack.c.b16 %v1715, %v1711
    %v2424 = vpack.c.b16 %v1716, %v1712
    %v2425 = vpack.c.b16 %v1717, %v1713
    %v2426 = vpack.c.b16 %v1722, %v1718
    %v2427 = vpack.c.b16 %v1723, %v1719
    %v2428 = vpack.c.b16 %v1724, %v1720
    %v2429 = vpack.c.b16 %v1725, %v1721
    %v2430 = vpack.c.b16 %v1730, %v1726
    %v2431 = vpack.c.b16 %v1731, %v1727
    %v2432 = vpack.c.b16 %v1732, %v1728
    %v2433 = vpack.c.b16 %v1733, %v1729
    %v2434 = vpack.c.b16 %v1738, %v1734
    %v2435 = vpack.c.b16 %v1739, %v1735
    %v2436 = vpack.c.b16 %v1740, %v1736
    %v2437 = vpack.c.b16 %v1741, %v1737
    %v2438 = vpack.c.b16 %v1746, %v1742
    %v2439 = vpack.c.b16 %v1747, %v1743
    %v2440 = vpack.c.b16 %v1748, %v1744
    %v2441 = vpack.c.b16 %v1749, %v1745
    %v2442 = vpack.c.b16 %v1754, %v1750
    %v2443 = vpack.c.b16 %v1755, %v1751
    %v2444 = vpack.c.b16 %v1756, %v1752
    %v2445 = vpack.c.b16 %v1757, %v1753
    %v2446 = vpack.c.b16 %v1762, %v1758
    %v2447 = vpack.c.b16 %v1763, %v1759
    %v2448 = vpack.c.b16 %v1764, %v1760
    %v2449 = vpack.c.b16 %v1765, %v1761
    %v2450 = vpack.c.b16 %v1770, %v1766
    %v2451 = vpack.c.b16 %v1771, %v1767
    %v2452 = vpack.c.b16 %v1772, %v1768
    %v2453 = vpack.c.b16 %v1773, %v1769
    %v2454 = vpack.c.b16 %v1778, %v1774
    %v2455 = vpack.c.b16 %v1779, %v1775
    %v2456 = vpack.c.b16 %v1780, %v1776
    %v2457 = vpack.c.b16 %v1781, %v1777
    %v2458 = vpack.c.b16 %v1786, %v1782
    %v2459 = vpack.c.b16 %v1787, %v1783
    %v2460 = vpack.c.b16 %v1788, %v1784
    %v2461 = vpack.c.b16 %v1789, %v1785
    %v2462 = vpack.c.b16 %v1794, %v1790
    %v2463 = vpack.c.b16 %v1795, %v1791
    %v2464 = vpack.c.b16 %v1796, %v1792
    %v2465 = vpack.c.b16 %v1797, %v1793
    %v2466 = vpack.c.b16 %v1802, %v1798
    %v2467 = vpack.c.b16 %v1803, %v1799
    %v2468 = vpack.c.b16 %v1804, %v1800
    %v2469 = vpack.c.b16 %v1805, %v1801
    %v2470 = vpack.c.b16 %v1810, %v1806
    %v2471 = vpack.c.b16 %v1811, %v1807
    %v2472 = vpack.c.b16 %v1812, %v1808
    %v2473 = vpack.c.b16 %v1813, %v1809
    %v2474 = vpack.c.b16 %v1818, %v1814
    %v2475 = vpack.c.b16 %v1819, %v1815
    %v2476 = vpack.c.b16 %v1820, %v1816
    %v2477 = vpack.c.b16 %v1821, %v1817
    %v2478 = vpack.c.b16 %v1826, %v1822
    %v2479 = vpack.c.b16 %v1827, %v1823
    %v2480 = vpack.c.b16 %v1828, %v1824
    %v2481 = vpack.c.b16 %v1829, %v1825
    %v2482 = vpack.c.b16 %v1834, %v1830
    %v2483 = vpack.c.b16 %v1835, %v1831
    %v2484 = vpack.c.b16 %v1836, %v1832
    %v2485 = vpack.c.b16 %v1837, %v1833
    %v2486 = vpack.c.b16 %v1842, %v1838
    %v2487 = vpack.c.b16 %v1843, %v1839
    %v2488 = vpack.c.b16 %v1844, %v1840
    %v2489 = vpack.c.b16 %v1845, %v1841
    %v2490 = vpack.c.b16 %v1850, %v1846
    %v2491 = vpack.c.b16 %v1851, %v1847
    %v2492 = vpack.c.b16 %v1852, %v1848
    %v2493 = vpack.c.b16 %v1853, %v1849
    %v2494 = vpack.c.b16 %v1858, %v1854
    %v2495 = vpack.c.b16 %v1859, %v1855
    %v2496 = vpack.c.b16 %v1860, %v1856
    %v2497 = vpack.c.b16 %v1861, %v1857
    %v2498 = vpack.c.b16 %v1866, %v1862
    %v2499 = vpack.c.b16 %v1867, %v1863
    %v2500 = vpack.c.b16 %v1868, %v1864
    %v2501 = vpack.c.b16 %v1869, %v1865
    %v2502 = vpack.c.b16 %v1874, %v1870
    %v2503 = vpack.c.b16 %v1875, %v1871
    %v2504 = vpack.c.b16 %v1876, %v1872
    %v2505 = vpack.c.b16 %v1877, %v1873
    %v2506 = vpack.c.b16 %v1882, %v1878
    %v2507 = vpack.c.b16 %v1883, %v1879
    %v2508 = vpack.c.b16 %v1884, %v1880
    %v2509 = vpack.c.b16 %v1885, %v1881
    %v2510 = vpack.c.b16 %v1890, %v1886
    %v2511 = vpack.c.b16 %v1891, %v1887
    %v2512 = vpack.c.b16 %v1892, %v1888
    %v2513 = vpack.c.b16 %v1893, %v1889
    %v2514 = vpack.c.b16 %v1898, %v1894
    %v2515 = vpack.c.b16 %v1899, %v1895
    %v2516 = vpack.c.b16 %v1900, %v1896
    %v2517 = vpack.c.b16 %v1901, %v1897
    %v2518 = vpack.c.b16 %v1906, %v1902
    %v2519 = vpack.c.b16 %v1907, %v1903
    %v2520 = vpack.c.b16 %v1908, %v1904
    %v2521 = vpack.c.b16 %v1909, %v1905
    %v2522 = vpack.c.b16 %v1914, %v1910
    %v2523 = vpack.c.b16 %v1915, %v1911
    %v2524 = vpack.c.b16 %v1916, %v1912
    %v2525 = vpack.c.b16 %v1917, %v1913
    %v2526 = vpack.c.b16 %v1922, %v1918
    %v2527 = vpack.c.b16 %v1923, %v1919
    %v2528 = vpack.c.b16 %v1924, %v1920
    %v2529 = vpack.c.b16 %v1925, %v1921
    %v2530 = vpack.c.b16 %v1930, %v1926
    %v2531 = vpack.c.b16 %v1931, %v1927
    %v2532 = vpack.c.b16 %v1932, %v1928
    %v2533 = vpack.c.b16 %v1933, %v1929
    %v2534 = vpack.c.b16 %v1938, %v1934
    %v2535 = vpack.c.b16 %v1939, %v1935
    %v2536 = vpack.c.b16 %v1940, %v1936
    %v2537 = vpack.c.b16 %v1941, %v1937
    %v2538 = vpack.c.b16 %v1946, %v1942
    %v2539 = vpack.c.b16 %v1947, %v1943
    %v2540 = vpack.c.b16 %v1948, %v1944
    %v2541 = vpack.c.b16 %v1949, %v1945
    %v2542 = vpack.c.b16 %v1954, %v1950
    %v2543 = vpack.c.b16 %v1955, %v1951
    %v2544 = vpack.c.b16 %v1956, %v1952
    %v2545 = vpack.c.b16 %v1957, %v1953
    %v2546 = vpack.c.b16 %v1962, %v1958
    %v2547 = vpack.c.b16 %v1963, %v1959
    %v2548 = vpack.c.b16 %v1964, %v1960
    %v2549 = vpack.c.b16 %v1965, %v1961
    %v2550 = vpack.c.b16 %v1970, %v1966
    %v2551 = vpack.c.b16 %v1971, %v1967
    %v2552 = vpack.c.b16 %v1972, %v1968
    %v2553 = vpack.c.b16 %v1973, %v1969
    %v2554 = vpack.c.b16 %v1978, %v1974
    %v2555 = vpack.c.b16 %v1979, %v1975
    %v2556 = vpack.c.b16 %v1980, %v1976
    %v2557 = vpack.c.b16 %v1981, %v1977
    %v2558 = vpack.c.b16 %v1986, %v1982
    %v2559 = vpack.c.b16 %v1987, %v1983
    %v2560 = vpack.c.b16 %v1988, %v1984
    %v2561 = vpack.c.b16 %v1989, %v1985
    %v2562 = vpack.c.b16 %v1994, %v1990
    %v2563 = vpack.c.b16 %v1995, %v1991
    %v2564 = vpack.c.b16 %v1996, %v1992
    %v2565 = vpack.c.b16 %v1997, %v1993
    %v2566 = vpack.c.b16 %v2002, %v1998
    %v2567 = vpack.c.b16 %v2003, %v1999
    %v2568 = vpack.c.b16 %v2004, %v2000
    %v2569 = vpack.c.b16 %v2005, %v2001
    %v2570 = vpack.c.b16 %v2010, %v2006
    %v2571 = vpack.c.b16 %v2011, %v2007
    %v2572 = vpack.c.b16 %v2012, %v2008
    %v2573 = vpack.c.b16 %v2013, %v2009
    %v2574 = vpack.c.b16 %v2018, %v2014
    %v2575 = vpack.c.b16 %v2019, %v2015
    %v2576 = vpack.c.b16 %v2020, %v2016
    %v2577 = vpack.c.b16 %v2021, %v2017
    %v2578 = vpack.c.b16 %v2026, %v2022
    %v2579 = vpack.c.b16 %v2027, %v2023
    %v2580 = vpack.c.b16 %v2028, %v2024
    %v2581 = vpack.c.b16 %v2029, %v2025
    %v2582 = vpack.c.b16 %v2034, %v2030
    %v2583 = vpack.c.b16 %v2035, %v2031
    %v2584 = vpack.c.b16 %v2036, %v2032
    %v2585 = vpack.c.b16 %v2037, %v2033
    %v2586 = vpack.c.b16 %v2042, %v2038
    %v2587 = vpack.c.b16 %v2043, %v2039
    %v2588 = vpack.c.b16 %v2044, %v2040
    %v2589 = vpack.c.b16 %v2045, %v2041
    %v2590 = vpack.c.b16 %v2050, %v2046
    %v2591 = vpack.c.b16 %v2051, %v2047
    %v2592 = vpack.c.b16 %v2052, %v2048
    %v2593 = vpack.c.b16 %v2053, %v2049
    %v2594 = vpack.c.b16 %v2058, %v2054
    %v2595 = vpack.c.b16 %v2059, %v2055
    %v2596 = vpack.c.b16 %v2060, %v2056
    %v2597 = vpack.c.b16 %v2061, %v2057
    %v2598 = vpack.c.b16 %v2066, %v2062
    %v2599 = vpack.c.b16 %v2067, %v2063
    %v2600 = vpack.c.b16 %v2068, %v2064
    %v2601 = vpack.c.b16 %v2069, %v2065
    %v2602 = vpack.c.b16 %v2074, %v2070
    %v2603 = vpack.c.b16 %v2075, %v2071
    %v2604 = vpack.c.b16 %v2076, %v2072
    %v2605 = vpack.c.b16 %v2077, %v2073
    %v2606 = vpack.c.b16 %v2082, %v2078
    %v2607 = vpack.c.b16 %v2083, %v2079
    %v2608 = vpack.c.b16 %v2084, %v2080
    %v2609 = vpack.c.b16 %v2085, %v2081
    %v2610 = vpack.c.b16 %v2090, %v2086
    %v2611 = vpack.c.b16 %v2091, %v2087
    %v2612 = vpack.c.b16 %v2092, %v2088
    %v2613 = vpack.c.b16 %v2093, %v2089
    %v2614 = vpack.c.b16 %v2098, %v2094
    %v2615 = vpack.c.b16 %v2099, %v2095
    %v2616 = vpack.c.b16 %v2100, %v2096
    %v2617 = vpack.c.b16 %v2101, %v2097
    %v2618 = vpack.c.b16 %v2106, %v2102
    %v2619 = vpack.c.b16 %v2107, %v2103
    %v2620 = vpack.c.b16 %v2108, %v2104
    %v2621 = vpack.c.b16 %v2109, %v2105
    %3134 = vmatpush.bf16.msra.mxu0 %v2138
    %3135 = vmatpush.bf16.msra.mxu0 %v2134
    %3136 = vmatpush.bf16.msra.mxu0 %v2130
    %3137 = vmatpush.bf16.msra.mxu0 %v2126
    %3138 = vmatpush.bf16.msra.mxu0 %v2122
    %3139 = vmatpush.bf16.msra.mxu0 %v2118
    %3140 = vmatpush.bf16.msra.mxu0 %v2114
    %3141 = vmatpush.bf16.msra.mxu0 %v2110
    %3142 = vmatmul.bf16.gmra.mxu0 %v540
    %v3143 = vpop.f32.mrf.mxu0
    %v3144 = vadd.f32 0.0, %v3143
    %v3145 = vpop.f32.mrf.mxu0
    %3146 = vdwg.mxu0
    %3147 = vmatpush.bf16.msra.mxu0 %v2170
    %3148 = vmatpush.bf16.msra.mxu0 %v2166
    %3149 = vmatpush.bf16.msra.mxu0 %v2162
    %3150 = vmatpush.bf16.msra.mxu0 %v2158
    %3151 = vmatpush.bf16.msra.mxu0 %v2154
    %3152 = vmatpush.bf16.msra.mxu0 %v2150
    %3153 = vmatpush.bf16.msra.mxu0 %v2146
    %3154 = vmatpush.bf16.msra.mxu0 %v2142
    %3155 = vmatmul.bf16.gmra.mxu0 %v541
    %v3156 = vpop.f32.mrf.mxu0
    %v3157 = vadd.f32 %v3144, %v3156
    %v3158 = vpop.f32.mrf.mxu0
    %3159 = vdwg.mxu0
    %3160 = vmatpush.bf16.msra.mxu0 %v2202
    %3161 = vmatpush.bf16.msra.mxu0 %v2198
    %3162 = vmatpush.bf16.msra.mxu0 %v2194
    %3163 = vmatpush.bf16.msra.mxu0 %v2190
    %3164 = vmatpush.bf16.msra.mxu0 %v2186
    %3165 = vmatpush.bf16.msra.mxu0 %v2182
    %3166 = vmatpush.bf16.msra.mxu0 %v2178
    %3167 = vmatpush.bf16.msra.mxu0 %v2174
    %3168 = vmatmul.bf16.gmra.mxu0 %v542
    %v3169 = vpop.f32.mrf.mxu0
    %v3170 = vadd.f32 %v3157, %v3169
    %v3171 = vpop.f32.mrf.mxu0
    %3172 = vdwg.mxu0
    %3173 = vmatpush.bf16.msra.mxu0 %v2234
    %3174 = vmatpush.bf16.msra.mxu0 %v2230
    %3175 = vmatpush.bf16.msra.mxu0 %v2226
    %3176 = vmatpush.bf16.msra.mxu0 %v2222
    %3177 = vmatpush.bf16.msra.mxu0 %v2218
    %3178 = vmatpush.bf16.msra.mxu0 %v2214
    %3179 = vmatpush.bf16.msra.mxu0 %v2210
    %3180 = vmatpush.bf16.msra.mxu0 %v2206
    %3181 = vmatmul.bf16.gmra.mxu0 %v543
    %v3182 = vpop.f32.mrf.mxu0
    %v3183 = vadd.f32 %v3170, %v3182
    %v3184 = vpop.f32.mrf.mxu0
    %3185 = vdwg.mxu0
    %3186 = vmatpush.bf16.msra.mxu0 %v2266
    %3187 = vmatpush.bf16.msra.mxu0 %v2262
    %3188 = vmatpush.bf16.msra.mxu0 %v2258
    %3189 = vmatpush.bf16.msra.mxu0 %v2254
    %3190 = vmatpush.bf16.msra.mxu0 %v2250
    %3191 = vmatpush.bf16.msra.mxu0 %v2246
    %3192 = vmatpush.bf16.msra.mxu0 %v2242
    %3193 = vmatpush.bf16.msra.mxu0 %v2238
    %3194 = vmatmul.bf16.gmra.mxu0 %v544
    %v3195 = vpop.f32.mrf.mxu0
    %v3196 = vadd.f32 %v3183, %v3195
    %v3197 = vpop.f32.mrf.mxu0
    %3198 = vdwg.mxu0
    %3199 = vmatpush.bf16.msra.mxu0 %v2298
    %3200 = vmatpush.bf16.msra.mxu0 %v2294
    %3201 = vmatpush.bf16.msra.mxu0 %v2290
    %3202 = vmatpush.bf16.msra.mxu0 %v2286
    %3203 = vmatpush.bf16.msra.mxu0 %v2282
    %3204 = vmatpush.bf16.msra.mxu0 %v2278
    %3205 = vmatpush.bf16.msra.mxu0 %v2274
    %3206 = vmatpush.bf16.msra.mxu0 %v2270
    %3207 = vmatmul.bf16.gmra.mxu0 %v545
    %v3208 = vpop.f32.mrf.mxu0
    %v3209 = vadd.f32 %v3196, %v3208
    %v3210 = vpop.f32.mrf.mxu0
    %3211 = vdwg.mxu0
    %3212 = vmatpush.bf16.msra.mxu0 %v2330
    %3213 = vmatpush.bf16.msra.mxu0 %v2326
    %3214 = vmatpush.bf16.msra.mxu0 %v2322
    %3215 = vmatpush.bf16.msra.mxu0 %v2318
    %3216 = vmatpush.bf16.msra.mxu0 %v2314
    %3217 = vmatpush.bf16.msra.mxu0 %v2310
    %3218 = vmatpush.bf16.msra.mxu0 %v2306
    %3219 = vmatpush.bf16.msra.mxu0 %v2302
    %3220 = vmatmul.bf16.gmra.mxu0 %v546
    %v3221 = vpop.f32.mrf.mxu0
    %v3222 = vadd.f32 %v3209, %v3221
    %v3223 = vpop.f32.mrf.mxu0
    %3224 = vdwg.mxu0
    %3225 = vmatpush.bf16.msra.mxu0 %v2362
    %3226 = vmatpush.bf16.msra.mxu0 %v2358
    %3227 = vmatpush.bf16.msra.mxu0 %v2354
    %3228 = vmatpush.bf16.msra.mxu0 %v2350
    %3229 = vmatpush.bf16.msra.mxu0 %v2346
    %3230 = vmatpush.bf16.msra.mxu0 %v2342
    %3231 = vmatpush.bf16.msra.mxu0 %v2338
    %3232 = vmatpush.bf16.msra.mxu0 %v2334
    %3233 = vmatmul.bf16.gmra.mxu0 %v547
    %v3234 = vpop.f32.mrf.mxu0
    %v3235 = vadd.f32 %v3222, %v3234
    %v3236 = vpop.f32.mrf.mxu0
    %3237 = vdwg.mxu0
    %3238 = vmatpush.bf16.msra.mxu0 %v2394
    %3239 = vmatpush.bf16.msra.mxu0 %v2390
    %3240 = vmatpush.bf16.msra.mxu0 %v2386
    %3241 = vmatpush.bf16.msra.mxu0 %v2382
    %3242 = vmatpush.bf16.msra.mxu0 %v2378
    %3243 = vmatpush.bf16.msra.mxu0 %v2374
    %3244 = vmatpush.bf16.msra.mxu0 %v2370
    %3245 = vmatpush.bf16.msra.mxu0 %v2366
    %3246 = vmatmul.bf16.gmra.mxu0 %v550
    %v3247 = vpop.f32.mrf.mxu0
    %v3248 = vadd.f32 %v3235, %v3247
    %v3249 = vpop.f32.mrf.mxu0
    %3250 = vdwg.mxu0
    %3251 = vmatpush.bf16.msra.mxu0 %v2426
    %3252 = vmatpush.bf16.msra.mxu0 %v2422
    %3253 = vmatpush.bf16.msra.mxu0 %v2418
    %3254 = vmatpush.bf16.msra.mxu0 %v2414
    %3255 = vmatpush.bf16.msra.mxu0 %v2410
    %3256 = vmatpush.bf16.msra.mxu0 %v2406
    %3257 = vmatpush.bf16.msra.mxu0 %v2402
    %3258 = vmatpush.bf16.msra.mxu0 %v2398
    %3259 = vmatmul.bf16.gmra.mxu0 %v551
    %v3260 = vpop.f32.mrf.mxu0
    %v3261 = vadd.f32 %v3248, %v3260
    %v3262 = vpop.f32.mrf.mxu0
    %3263 = vdwg.mxu0
    %3264 = vmatpush.bf16.msra.mxu0 %v2458
    %3265 = vmatpush.bf16.msra.mxu0 %v2454
    %3266 = vmatpush.bf16.msra.mxu0 %v2450
    %3267 = vmatpush.bf16.msra.mxu0 %v2446
    %3268 = vmatpush.bf16.msra.mxu0 %v2442
    %3269 = vmatpush.bf16.msra.mxu0 %v2438
    %3270 = vmatpush.bf16.msra.mxu0 %v2434
    %3271 = vmatpush.bf16.msra.mxu0 %v2430
    %3272 = vmatmul.bf16.gmra.mxu0 %v552
    %v3273 = vpop.f32.mrf.mxu0
    %v3274 = vadd.f32 %v3261, %v3273
    %v3275 = vpop.f32.mrf.mxu0
    %3276 = vdwg.mxu0
    %3277 = vmatpush.bf16.msra.mxu0 %v2490
    %3278 = vmatpush.bf16.msra.mxu0 %v2486
    %3279 = vmatpush.bf16.msra.mxu0 %v2482
    %3280 = vmatpush.bf16.msra.mxu0 %v2478
    %3281 = vmatpush.bf16.msra.mxu0 %v2474
    %3282 = vmatpush.bf16.msra.mxu0 %v2470
    %3283 = vmatpush.bf16.msra.mxu0 %v2466
    %3284 = vmatpush.bf16.msra.mxu0 %v2462
    %3285 = vmatmul.bf16.gmra.mxu0 %v553
    %v3286 = vpop.f32.mrf.mxu0
    %v3287 = vadd.f32 %v3274, %v3286
    %v3288 = vpop.f32.mrf.mxu0
    %3289 = vdwg.mxu0
    %3290 = vmatpush.bf16.msra.mxu0 %v2522
    %3291 = vmatpush.bf16.msra.mxu0 %v2518
    %3292 = vmatpush.bf16.msra.mxu0 %v2514
    %3293 = vmatpush.bf16.msra.mxu0 %v2510
    %3294 = vmatpush.bf16.msra.mxu0 %v2506
    %3295 = vmatpush.bf16.msra.mxu0 %v2502
    %3296 = vmatpush.bf16.msra.mxu0 %v2498
    %3297 = vmatpush.bf16.msra.mxu0 %v2494
    %3298 = vmatmul.bf16.gmra.mxu0 %v554
    %v3299 = vpop.f32.mrf.mxu0
    %v3300 = vadd.f32 %v3287, %v3299
    %v3301 = vpop.f32.mrf.mxu0
    %3302 = vdwg.mxu0
    %3303 = vmatpush.bf16.msra.mxu0 %v2554
    %3304 = vmatpush.bf16.msra.mxu0 %v2550
    %3305 = vmatpush.bf16.msra.mxu0 %v2546
    %3306 = vmatpush.bf16.msra.mxu0 %v2542
    %3307 = vmatpush.bf16.msra.mxu0 %v2538
    %3308 = vmatpush.bf16.msra.mxu0 %v2534
    %3309 = vmatpush.bf16.msra.mxu0 %v2530
    %3310 = vmatpush.bf16.msra.mxu0 %v2526
    %3311 = vmatmul.bf16.gmra.mxu0 %v555
    %v3312 = vpop.f32.mrf.mxu0
    %v3313 = vadd.f32 %v3300, %v3312
    %v3314 = vpop.f32.mrf.mxu0
    %3315 = vdwg.mxu0
    %3316 = vmatpush.bf16.msra.mxu0 %v2586
    %3317 = vmatpush.bf16.msra.mxu0 %v2582
    %3318 = vmatpush.bf16.msra.mxu0 %v2578
    %3319 = vmatpush.bf16.msra.mxu0 %v2574
    %3320 = vmatpush.bf16.msra.mxu0 %v2570
    %3321 = vmatpush.bf16.msra.mxu0 %v2566
    %3322 = vmatpush.bf16.msra.mxu0 %v2562
    %3323 = vmatpush.bf16.msra.mxu0 %v2558
    %3324 = vmatmul.bf16.gmra.mxu0 %v556
    %v3325 = vpop.f32.mrf.mxu0
    %v3326 = vadd.f32 %v3313, %v3325
    %v3327 = vpop.f32.mrf.mxu0
    %3328 = vdwg.mxu0
    %3329 = vmatpush.bf16.msra.mxu0 %v2618
    %3330 = vmatpush.bf16.msra.mxu0 %v2614
    %3331 = vmatpush.bf16.msra.mxu0 %v2610
    %3332 = vmatpush.bf16.msra.mxu0 %v2606
    %3333 = vmatpush.bf16.msra.mxu0 %v2602
    %3334 = vmatpush.bf16.msra.mxu0 %v2598
    %3335 = vmatpush.bf16.msra.mxu0 %v2594
    %3336 = vmatpush.bf16.msra.mxu0 %v2590
    %3337 = vmatmul.bf16.gmra.mxu0 %v557
    %v3338 = vpop.f32.mrf.mxu0
    %v3339 = vadd.f32 %v3326, %v3338
    %v3340 = vpop.f32.mrf.mxu0
    %3341 = vdwg.mxu0
    %3342 = vmatpush.bf16.msra.mxu0 %v2139
    %3343 = vmatpush.bf16.msra.mxu0 %v2135
    %3344 = vmatpush.bf16.msra.mxu0 %v2131
    %3345 = vmatpush.bf16.msra.mxu0 %v2127
    %3346 = vmatpush.bf16.msra.mxu0 %v2123
    %3347 = vmatpush.bf16.msra.mxu0 %v2119
    %3348 = vmatpush.bf16.msra.mxu0 %v2115
    %3349 = vmatpush.bf16.msra.mxu0 %v2111
    %3350 = vmatmul.bf16.gmra.mxu0 %v540
    %v3351 = vpop.f32.mrf.mxu0
    %v3352 = vadd.f32 0.0, %v3351
    %v3353 = vpop.f32.mrf.mxu0
    %3354 = vdwg.mxu0
    %3355 = vmatpush.bf16.msra.mxu0 %v2171
    %3356 = vmatpush.bf16.msra.mxu0 %v2167
    %3357 = vmatpush.bf16.msra.mxu0 %v2163
    %3358 = vmatpush.bf16.msra.mxu0 %v2159
    %3359 = vmatpush.bf16.msra.mxu0 %v2155
    %3360 = vmatpush.bf16.msra.mxu0 %v2151
    %3361 = vmatpush.bf16.msra.mxu0 %v2147
    %3362 = vmatpush.bf16.msra.mxu0 %v2143
    %3363 = vmatmul.bf16.gmra.mxu0 %v541
    %v3364 = vpop.f32.mrf.mxu0
    %v3365 = vadd.f32 %v3352, %v3364
    %v3366 = vpop.f32.mrf.mxu0
    %3367 = vdwg.mxu0
    %3368 = vmatpush.bf16.msra.mxu0 %v2203
    %3369 = vmatpush.bf16.msra.mxu0 %v2199
    %3370 = vmatpush.bf16.msra.mxu0 %v2195
    %3371 = vmatpush.bf16.msra.mxu0 %v2191
    %3372 = vmatpush.bf16.msra.mxu0 %v2187
    %3373 = vmatpush.bf16.msra.mxu0 %v2183
    %3374 = vmatpush.bf16.msra.mxu0 %v2179
    %3375 = vmatpush.bf16.msra.mxu0 %v2175
    %3376 = vmatmul.bf16.gmra.mxu0 %v542
    %v3377 = vpop.f32.mrf.mxu0
    %v3378 = vadd.f32 %v3365, %v3377
    %v3379 = vpop.f32.mrf.mxu0
    %3380 = vdwg.mxu0
    %3381 = vmatpush.bf16.msra.mxu0 %v2235
    %3382 = vmatpush.bf16.msra.mxu0 %v2231
    %3383 = vmatpush.bf16.msra.mxu0 %v2227
    %3384 = vmatpush.bf16.msra.mxu0 %v2223
    %3385 = vmatpush.bf16.msra.mxu0 %v2219
    %3386 = vmatpush.bf16.msra.mxu0 %v2215
    %3387 = vmatpush.bf16.msra.mxu0 %v2211
    %3388 = vmatpush.bf16.msra.mxu0 %v2207
    %3389 = vmatmul.bf16.gmra.mxu0 %v543
    %v3390 = vpop.f32.mrf.mxu0
    %v3391 = vadd.f32 %v3378, %v3390
    %v3392 = vpop.f32.mrf.mxu0
    %3393 = vdwg.mxu0
    %3394 = vmatpush.bf16.msra.mxu0 %v2267
    %3395 = vmatpush.bf16.msra.mxu0 %v2263
    %3396 = vmatpush.bf16.msra.mxu0 %v2259
    %3397 = vmatpush.bf16.msra.mxu0 %v2255
    %3398 = vmatpush.bf16.msra.mxu0 %v2251
    %3399 = vmatpush.bf16.msra.mxu0 %v2247
    %3400 = vmatpush.bf16.msra.mxu0 %v2243
    %3401 = vmatpush.bf16.msra.mxu0 %v2239
    %3402 = vmatmul.bf16.gmra.mxu0 %v544
    %v3403 = vpop.f32.mrf.mxu0
    %v3404 = vadd.f32 %v3391, %v3403
    %v3405 = vpop.f32.mrf.mxu0
    %3406 = vdwg.mxu0
    %3407 = vmatpush.bf16.msra.mxu0 %v2299
    %3408 = vmatpush.bf16.msra.mxu0 %v2295
    %3409 = vmatpush.bf16.msra.mxu0 %v2291
    %3410 = vmatpush.bf16.msra.mxu0 %v2287
    %3411 = vmatpush.bf16.msra.mxu0 %v2283
    %3412 = vmatpush.bf16.msra.mxu0 %v2279
    %3413 = vmatpush.bf16.msra.mxu0 %v2275
    %3414 = vmatpush.bf16.msra.mxu0 %v2271
    %3415 = vmatmul.bf16.gmra.mxu0 %v545
    %v3416 = vpop.f32.mrf.mxu0
    %v3417 = vadd.f32 %v3404, %v3416
    %v3418 = vpop.f32.mrf.mxu0
    %3419 = vdwg.mxu0
    %3420 = vmatpush.bf16.msra.mxu0 %v2331
    %3421 = vmatpush.bf16.msra.mxu0 %v2327
    %3422 = vmatpush.bf16.msra.mxu0 %v2323
    %3423 = vmatpush.bf16.msra.mxu0 %v2319
    %3424 = vmatpush.bf16.msra.mxu0 %v2315
    %3425 = vmatpush.bf16.msra.mxu0 %v2311
    %3426 = vmatpush.bf16.msra.mxu0 %v2307
    %3427 = vmatpush.bf16.msra.mxu0 %v2303
    %3428 = vmatmul.bf16.gmra.mxu0 %v546
    %v3429 = vpop.f32.mrf.mxu0
    %v3430 = vadd.f32 %v3417, %v3429
    %v3431 = vpop.f32.mrf.mxu0
    %3432 = vdwg.mxu0
    %3433 = vmatpush.bf16.msra.mxu0 %v2363
    %3434 = vmatpush.bf16.msra.mxu0 %v2359
    %3435 = vmatpush.bf16.msra.mxu0 %v2355
    %3436 = vmatpush.bf16.msra.mxu0 %v2351
    %3437 = vmatpush.bf16.msra.mxu0 %v2347
    %3438 = vmatpush.bf16.msra.mxu0 %v2343
    %3439 = vmatpush.bf16.msra.mxu0 %v2339
    %3440 = vmatpush.bf16.msra.mxu0 %v2335
    %3441 = vmatmul.bf16.gmra.mxu0 %v547
    %v3442 = vpop.f32.mrf.mxu0
    %v3443 = vadd.f32 %v3430, %v3442
    %v3444 = vpop.f32.mrf.mxu0
    %3445 = vdwg.mxu0
    %3446 = vmatpush.bf16.msra.mxu0 %v2395
    %3447 = vmatpush.bf16.msra.mxu0 %v2391
    %3448 = vmatpush.bf16.msra.mxu0 %v2387
    %3449 = vmatpush.bf16.msra.mxu0 %v2383
    %3450 = vmatpush.bf16.msra.mxu0 %v2379
    %3451 = vmatpush.bf16.msra.mxu0 %v2375
    %3452 = vmatpush.bf16.msra.mxu0 %v2371
    %3453 = vmatpush.bf16.msra.mxu0 %v2367
    %3454 = vmatmul.bf16.gmra.mxu0 %v550
    %v3455 = vpop.f32.mrf.mxu0
    %v3456 = vadd.f32 %v3443, %v3455
    %v3457 = vpop.f32.mrf.mxu0
    %3458 = vdwg.mxu0
    %3459 = vmatpush.bf16.msra.mxu0 %v2427
    %3460 = vmatpush.bf16.msra.mxu0 %v2423
    %3461 = vmatpush.bf16.msra.mxu0 %v2419
    %3462 = vmatpush.bf16.msra.mxu0 %v2415
    %3463 = vmatpush.bf16.msra.mxu0 %v2411
    %3464 = vmatpush.bf16.msra.mxu0 %v2407
    %3465 = vmatpush.bf16.msra.mxu0 %v2403
    %3466 = vmatpush.bf16.msra.mxu0 %v2399
    %3467 = vmatmul.bf16.gmra.mxu0 %v551
    %v3468 = vpop.f32.mrf.mxu0
    %v3469 = vadd.f32 %v3456, %v3468
    %v3470 = vpop.f32.mrf.mxu0
    %3471 = vdwg.mxu0
    %3472 = vmatpush.bf16.msra.mxu0 %v2459
    %3473 = vmatpush.bf16.msra.mxu0 %v2455
    %3474 = vmatpush.bf16.msra.mxu0 %v2451
    %3475 = vmatpush.bf16.msra.mxu0 %v2447
    %3476 = vmatpush.bf16.msra.mxu0 %v2443
    %3477 = vmatpush.bf16.msra.mxu0 %v2439
    %3478 = vmatpush.bf16.msra.mxu0 %v2435
    %3479 = vmatpush.bf16.msra.mxu0 %v2431
    %3480 = vmatmul.bf16.gmra.mxu0 %v552
    %v3481 = vpop.f32.mrf.mxu0
    %v3482 = vadd.f32 %v3469, %v3481
    %v3483 = vpop.f32.mrf.mxu0
    %3484 = vdwg.mxu0
    %3485 = vmatpush.bf16.msra.mxu0 %v2491
    %3486 = vmatpush.bf16.msra.mxu0 %v2487
    %3487 = vmatpush.bf16.msra.mxu0 %v2483
    %3488 = vmatpush.bf16.msra.mxu0 %v2479
    %3489 = vmatpush.bf16.msra.mxu0 %v2475
    %3490 = vmatpush.bf16.msra.mxu0 %v2471
    %3491 = vmatpush.bf16.msra.mxu0 %v2467
    %3492 = vmatpush.bf16.msra.mxu0 %v2463
    %3493 = vmatmul.bf16.gmra.mxu0 %v553
    %v3494 = vpop.f32.mrf.mxu0
    %v3495 = vadd.f32 %v3482, %v3494
    %v3496 = vpop.f32.mrf.mxu0
    %3497 = vdwg.mxu0
    %3498 = vmatpush.bf16.msra.mxu0 %v2523
    %3499 = vmatpush.bf16.msra.mxu0 %v2519
    %3500 = vmatpush.bf16.msra.mxu0 %v2515
    %3501 = vmatpush.bf16.msra.mxu0 %v2511
    %3502 = vmatpush.bf16.msra.mxu0 %v2507
    %3503 = vmatpush.bf16.msra.mxu0 %v2503
    %3504 = vmatpush.bf16.msra.mxu0 %v2499
    %3505 = vmatpush.bf16.msra.mxu0 %v2495
    %3506 = vmatmul.bf16.gmra.mxu0 %v554
    %v3507 = vpop.f32.mrf.mxu0
    %v3508 = vadd.f32 %v3495, %v3507
    %v3509 = vpop.f32.mrf.mxu0
    %3510 = vdwg.mxu0
    %3511 = vmatpush.bf16.msra.mxu0 %v2555
    %3512 = vmatpush.bf16.msra.mxu0 %v2551
    %3513 = vmatpush.bf16.msra.mxu0 %v2547
    %3514 = vmatpush.bf16.msra.mxu0 %v2543
    %3515 = vmatpush.bf16.msra.mxu0 %v2539
    %3516 = vmatpush.bf16.msra.mxu0 %v2535
    %3517 = vmatpush.bf16.msra.mxu0 %v2531
    %3518 = vmatpush.bf16.msra.mxu0 %v2527
    %3519 = vmatmul.bf16.gmra.mxu0 %v555
    %v3520 = vpop.f32.mrf.mxu0
    %v3521 = vadd.f32 %v3508, %v3520
    %v3522 = vpop.f32.mrf.mxu0
    %3523 = vdwg.mxu0
    %3524 = vmatpush.bf16.msra.mxu0 %v2587
    %3525 = vmatpush.bf16.msra.mxu0 %v2583
    %3526 = vmatpush.bf16.msra.mxu0 %v2579
    %3527 = vmatpush.bf16.msra.mxu0 %v2575
    %3528 = vmatpush.bf16.msra.mxu0 %v2571
    %3529 = vmatpush.bf16.msra.mxu0 %v2567
    %3530 = vmatpush.bf16.msra.mxu0 %v2563
    %3531 = vmatpush.bf16.msra.mxu0 %v2559
    %3532 = vmatmul.bf16.gmra.mxu0 %v556
    %v3533 = vpop.f32.mrf.mxu0
    %v3534 = vadd.f32 %v3521, %v3533
    %v3535 = vpop.f32.mrf.mxu0
    %3536 = vdwg.mxu0
    %3537 = vmatpush.bf16.msra.mxu0 %v2619
    %3538 = vmatpush.bf16.msra.mxu0 %v2615
    %3539 = vmatpush.bf16.msra.mxu0 %v2611
    %3540 = vmatpush.bf16.msra.mxu0 %v2607
    %3541 = vmatpush.bf16.msra.mxu0 %v2603
    %3542 = vmatpush.bf16.msra.mxu0 %v2599
    %3543 = vmatpush.bf16.msra.mxu0 %v2595
    %3544 = vmatpush.bf16.msra.mxu0 %v2591
    %3545 = vmatmul.bf16.gmra.mxu0 %v557
    %v3546 = vpop.f32.mrf.mxu0
    %v3547 = vadd.f32 %v3534, %v3546
    %v3548 = vpop.f32.mrf.mxu0
    %3549 = vdwg.mxu0
    %3550 = vmatpush.bf16.msra.mxu0 %v2140
    %3551 = vmatpush.bf16.msra.mxu0 %v2136
    %3552 = vmatpush.bf16.msra.mxu0 %v2132
    %3553 = vmatpush.bf16.msra.mxu0 %v2128
    %3554 = vmatpush.bf16.msra.mxu0 %v2124
    %3555 = vmatpush.bf16.msra.mxu0 %v2120
    %3556 = vmatpush.bf16.msra.mxu0 %v2116
    %3557 = vmatpush.bf16.msra.mxu0 %v2112
    %3558 = vmatmul.bf16.gmra.mxu0 %v540
    %v3559 = vpop.f32.mrf.mxu0
    %v3560 = vadd.f32 0.0, %v3559
    %v3561 = vpop.f32.mrf.mxu0
    %3562 = vdwg.mxu0
    %3563 = vmatpush.bf16.msra.mxu0 %v2172
    %3564 = vmatpush.bf16.msra.mxu0 %v2168
    %3565 = vmatpush.bf16.msra.mxu0 %v2164
    %3566 = vmatpush.bf16.msra.mxu0 %v2160
    %3567 = vmatpush.bf16.msra.mxu0 %v2156
    %3568 = vmatpush.bf16.msra.mxu0 %v2152
    %3569 = vmatpush.bf16.msra.mxu0 %v2148
    %3570 = vmatpush.bf16.msra.mxu0 %v2144
    %3571 = vmatmul.bf16.gmra.mxu0 %v541
    %v3572 = vpop.f32.mrf.mxu0
    %v3573 = vadd.f32 %v3560, %v3572
    %v3574 = vpop.f32.mrf.mxu0
    %3575 = vdwg.mxu0
    %3576 = vmatpush.bf16.msra.mxu0 %v2204
    %3577 = vmatpush.bf16.msra.mxu0 %v2200
    %3578 = vmatpush.bf16.msra.mxu0 %v2196
    %3579 = vmatpush.bf16.msra.mxu0 %v2192
    %3580 = vmatpush.bf16.msra.mxu0 %v2188
    %3581 = vmatpush.bf16.msra.mxu0 %v2184
    %3582 = vmatpush.bf16.msra.mxu0 %v2180
    %3583 = vmatpush.bf16.msra.mxu0 %v2176
    %3584 = vmatmul.bf16.gmra.mxu0 %v542
    %v3585 = vpop.f32.mrf.mxu0
    %v3586 = vadd.f32 %v3573, %v3585
    %v3587 = vpop.f32.mrf.mxu0
    %3588 = vdwg.mxu0
    %3589 = vmatpush.bf16.msra.mxu0 %v2236
    %3590 = vmatpush.bf16.msra.mxu0 %v2232
    %3591 = vmatpush.bf16.msra.mxu0 %v2228
    %3592 = vmatpush.bf16.msra.mxu0 %v2224
    %3593 = vmatpush.bf16.msra.mxu0 %v2220
    %3594 = vmatpush.bf16.msra.mxu0 %v2216
    %3595 = vmatpush.bf16.msra.mxu0 %v2212
    %3596 = vmatpush.bf16.msra.mxu0 %v2208
    %3597 = vmatmul.bf16.gmra.mxu0 %v543
    %v3598 = vpop.f32.mrf.mxu0
    %v3599 = vadd.f32 %v3586, %v3598
    %v3600 = vpop.f32.mrf.mxu0
    %3601 = vdwg.mxu0
    %3602 = vmatpush.bf16.msra.mxu0 %v2268
    %3603 = vmatpush.bf16.msra.mxu0 %v2264
    %3604 = vmatpush.bf16.msra.mxu0 %v2260
    %3605 = vmatpush.bf16.msra.mxu0 %v2256
    %3606 = vmatpush.bf16.msra.mxu0 %v2252
    %3607 = vmatpush.bf16.msra.mxu0 %v2248
    %3608 = vmatpush.bf16.msra.mxu0 %v2244
    %3609 = vmatpush.bf16.msra.mxu0 %v2240
    %3610 = vmatmul.bf16.gmra.mxu0 %v544
    %v3611 = vpop.f32.mrf.mxu0
    %v3612 = vadd.f32 %v3599, %v3611
    %v3613 = vpop.f32.mrf.mxu0
    %3614 = vdwg.mxu0
    %3615 = vmatpush.bf16.msra.mxu0 %v2300
    %3616 = vmatpush.bf16.msra.mxu0 %v2296
    %3617 = vmatpush.bf16.msra.mxu0 %v2292
    %3618 = vmatpush.bf16.msra.mxu0 %v2288
    %3619 = vmatpush.bf16.msra.mxu0 %v2284
    %3620 = vmatpush.bf16.msra.mxu0 %v2280
    %3621 = vmatpush.bf16.msra.mxu0 %v2276
    %3622 = vmatpush.bf16.msra.mxu0 %v2272
    %3623 = vmatmul.bf16.gmra.mxu0 %v545
    %v3624 = vpop.f32.mrf.mxu0
    %v3625 = vadd.f32 %v3612, %v3624
    %v3626 = vpop.f32.mrf.mxu0
    %3627 = vdwg.mxu0
    %3628 = vmatpush.bf16.msra.mxu0 %v2332
    %3629 = vmatpush.bf16.msra.mxu0 %v2328
    %3630 = vmatpush.bf16.msra.mxu0 %v2324
    %3631 = vmatpush.bf16.msra.mxu0 %v2320
    %3632 = vmatpush.bf16.msra.mxu0 %v2316
    %3633 = vmatpush.bf16.msra.mxu0 %v2312
    %3634 = vmatpush.bf16.msra.mxu0 %v2308
    %3635 = vmatpush.bf16.msra.mxu0 %v2304
    %3636 = vmatmul.bf16.gmra.mxu0 %v546
    %v3637 = vpop.f32.mrf.mxu0
    %v3638 = vadd.f32 %v3625, %v3637
    %v3639 = vpop.f32.mrf.mxu0
    %3640 = vdwg.mxu0
    %3641 = vmatpush.bf16.msra.mxu0 %v2364
    %3642 = vmatpush.bf16.msra.mxu0 %v2360
    %3643 = vmatpush.bf16.msra.mxu0 %v2356
    %3644 = vmatpush.bf16.msra.mxu0 %v2352
    %3645 = vmatpush.bf16.msra.mxu0 %v2348
    %3646 = vmatpush.bf16.msra.mxu0 %v2344
    %3647 = vmatpush.bf16.msra.mxu0 %v2340
    %3648 = vmatpush.bf16.msra.mxu0 %v2336
    %3649 = vmatmul.bf16.gmra.mxu0 %v547
    %v3650 = vpop.f32.mrf.mxu0
    %v3651 = vadd.f32 %v3638, %v3650
    %v3652 = vpop.f32.mrf.mxu0
    %3653 = vdwg.mxu0
    %3654 = vmatpush.bf16.msra.mxu0 %v2396
    %3655 = vmatpush.bf16.msra.mxu0 %v2392
    %3656 = vmatpush.bf16.msra.mxu0 %v2388
    %3657 = vmatpush.bf16.msra.mxu0 %v2384
    %3658 = vmatpush.bf16.msra.mxu0 %v2380
    %3659 = vmatpush.bf16.msra.mxu0 %v2376
    %3660 = vmatpush.bf16.msra.mxu0 %v2372
    %3661 = vmatpush.bf16.msra.mxu0 %v2368
    %3662 = vmatmul.bf16.gmra.mxu0 %v550
    %v3663 = vpop.f32.mrf.mxu0
    %v3664 = vadd.f32 %v3651, %v3663
    %v3665 = vpop.f32.mrf.mxu0
    %3666 = vdwg.mxu0
    %3667 = vmatpush.bf16.msra.mxu0 %v2428
    %3668 = vmatpush.bf16.msra.mxu0 %v2424
    %3669 = vmatpush.bf16.msra.mxu0 %v2420
    %3670 = vmatpush.bf16.msra.mxu0 %v2416
    %3671 = vmatpush.bf16.msra.mxu0 %v2412
    %3672 = vmatpush.bf16.msra.mxu0 %v2408
    %3673 = vmatpush.bf16.msra.mxu0 %v2404
    %3674 = vmatpush.bf16.msra.mxu0 %v2400
    %3675 = vmatmul.bf16.gmra.mxu0 %v551
    %v3676 = vpop.f32.mrf.mxu0
    %v3677 = vadd.f32 %v3664, %v3676
    %v3678 = vpop.f32.mrf.mxu0
    %3679 = vdwg.mxu0
    %3680 = vmatpush.bf16.msra.mxu0 %v2460
    %3681 = vmatpush.bf16.msra.mxu0 %v2456
    %3682 = vmatpush.bf16.msra.mxu0 %v2452
    %3683 = vmatpush.bf16.msra.mxu0 %v2448
    %3684 = vmatpush.bf16.msra.mxu0 %v2444
    %3685 = vmatpush.bf16.msra.mxu0 %v2440
    %3686 = vmatpush.bf16.msra.mxu0 %v2436
    %3687 = vmatpush.bf16.msra.mxu0 %v2432
    %3688 = vmatmul.bf16.gmra.mxu0 %v552
    %v3689 = vpop.f32.mrf.mxu0
    %v3690 = vadd.f32 %v3677, %v3689
    %v3691 = vpop.f32.mrf.mxu0
    %3692 = vdwg.mxu0
    %3693 = vmatpush.bf16.msra.mxu0 %v2492
    %3694 = vmatpush.bf16.msra.mxu0 %v2488
    %3695 = vmatpush.bf16.msra.mxu0 %v2484
    %3696 = vmatpush.bf16.msra.mxu0 %v2480
    %3697 = vmatpush.bf16.msra.mxu0 %v2476
    %3698 = vmatpush.bf16.msra.mxu0 %v2472
    %3699 = vmatpush.bf16.msra.mxu0 %v2468
    %3700 = vmatpush.bf16.msra.mxu0 %v2464
    %3701 = vmatmul.bf16.gmra.mxu0 %v553
    %v3702 = vpop.f32.mrf.mxu0
    %v3703 = vadd.f32 %v3690, %v3702
    %v3704 = vpop.f32.mrf.mxu0
    %3705 = vdwg.mxu0
    %3706 = vmatpush.bf16.msra.mxu0 %v2524
    %3707 = vmatpush.bf16.msra.mxu0 %v2520
    %3708 = vmatpush.bf16.msra.mxu0 %v2516
    %3709 = vmatpush.bf16.msra.mxu0 %v2512
    %3710 = vmatpush.bf16.msra.mxu0 %v2508
    %3711 = vmatpush.bf16.msra.mxu0 %v2504
    %3712 = vmatpush.bf16.msra.mxu0 %v2500
    %3713 = vmatpush.bf16.msra.mxu0 %v2496
    %3714 = vmatmul.bf16.gmra.mxu0 %v554
    %v3715 = vpop.f32.mrf.mxu0
    %v3716 = vadd.f32 %v3703, %v3715
    %v3717 = vpop.f32.mrf.mxu0
    %3718 = vdwg.mxu0
    %3719 = vmatpush.bf16.msra.mxu0 %v2556
    %3720 = vmatpush.bf16.msra.mxu0 %v2552
    %3721 = vmatpush.bf16.msra.mxu0 %v2548
    %3722 = vmatpush.bf16.msra.mxu0 %v2544
    %3723 = vmatpush.bf16.msra.mxu0 %v2540
    %3724 = vmatpush.bf16.msra.mxu0 %v2536
    %3725 = vmatpush.bf16.msra.mxu0 %v2532
    %3726 = vmatpush.bf16.msra.mxu0 %v2528
    %3727 = vmatmul.bf16.gmra.mxu0 %v555
    %v3728 = vpop.f32.mrf.mxu0
    %v3729 = vadd.f32 %v3716, %v3728
    %v3730 = vpop.f32.mrf.mxu0
    %3731 = vdwg.mxu0
    %3732 = vmatpush.bf16.msra.mxu0 %v2588
    %3733 = vmatpush.bf16.msra.mxu0 %v2584
    %3734 = vmatpush.bf16.msra.mxu0 %v2580
    %3735 = vmatpush.bf16.msra.mxu0 %v2576
    %3736 = vmatpush.bf16.msra.mxu0 %v2572
    %3737 = vmatpush.bf16.msra.mxu0 %v2568
    %3738 = vmatpush.bf16.msra.mxu0 %v2564
    %3739 = vmatpush.bf16.msra.mxu0 %v2560
    %3740 = vmatmul.bf16.gmra.mxu0 %v556
    %v3741 = vpop.f32.mrf.mxu0
    %v3742 = vadd.f32 %v3729, %v3741
    %v3743 = vpop.f32.mrf.mxu0
    %3744 = vdwg.mxu0
    %3745 = vmatpush.bf16.msra.mxu0 %v2620
    %3746 = vmatpush.bf16.msra.mxu0 %v2616
    %3747 = vmatpush.bf16.msra.mxu0 %v2612
    %3748 = vmatpush.bf16.msra.mxu0 %v2608
    %3749 = vmatpush.bf16.msra.mxu0 %v2604
    %3750 = vmatpush.bf16.msra.mxu0 %v2600
    %3751 = vmatpush.bf16.msra.mxu0 %v2596
    %3752 = vmatpush.bf16.msra.mxu0 %v2592
    %3753 = vmatmul.bf16.gmra.mxu0 %v557
    %v3754 = vpop.f32.mrf.mxu0
    %v3755 = vadd.f32 %v3742, %v3754
    %v3756 = vpop.f32.mrf.mxu0
    %3757 = vdwg.mxu0
    %3758 = vmatpush.bf16.msra.mxu0 %v2141
    %3759 = vmatpush.bf16.msra.mxu0 %v2137
    %3760 = vmatpush.bf16.msra.mxu0 %v2133
    %3761 = vmatpush.bf16.msra.mxu0 %v2129
    %3762 = vmatpush.bf16.msra.mxu0 %v2125
    %3763 = vmatpush.bf16.msra.mxu0 %v2121
    %3764 = vmatpush.bf16.msra.mxu0 %v2117
    %3765 = vmatpush.bf16.msra.mxu0 %v2113
    %3766 = vmatmul.bf16.gmra.mxu0 %v540
    %v3767 = vpop.f32.mrf.mxu0
    %v3768 = vadd.f32 0.0, %v3767
    %v3769 = vpop.f32.mrf.mxu0
    %3770 = vdwg.mxu0
    %3771 = vmatpush.bf16.msra.mxu0 %v2173
    %3772 = vmatpush.bf16.msra.mxu0 %v2169
    %3773 = vmatpush.bf16.msra.mxu0 %v2165
    %3774 = vmatpush.bf16.msra.mxu0 %v2161
    %3775 = vmatpush.bf16.msra.mxu0 %v2157
    %3776 = vmatpush.bf16.msra.mxu0 %v2153
    %3777 = vmatpush.bf16.msra.mxu0 %v2149
    %3778 = vmatpush.bf16.msra.mxu0 %v2145
    %3779 = vmatmul.bf16.gmra.mxu0 %v541
    %v3780 = vpop.f32.mrf.mxu0
    %v3781 = vadd.f32 %v3768, %v3780
    %v3782 = vpop.f32.mrf.mxu0
    %3783 = vdwg.mxu0
    %3784 = vmatpush.bf16.msra.mxu0 %v2205
    %3785 = vmatpush.bf16.msra.mxu0 %v2201
    %3786 = vmatpush.bf16.msra.mxu0 %v2197
    %3787 = vmatpush.bf16.msra.mxu0 %v2193
    %3788 = vmatpush.bf16.msra.mxu0 %v2189
    %3789 = vmatpush.bf16.msra.mxu0 %v2185
    %3790 = vmatpush.bf16.msra.mxu0 %v2181
    %3791 = vmatpush.bf16.msra.mxu0 %v2177
    %3792 = vmatmul.bf16.gmra.mxu0 %v542
    %v3793 = vpop.f32.mrf.mxu0
    %v3794 = vadd.f32 %v3781, %v3793
    %v3795 = vpop.f32.mrf.mxu0
    %3796 = vdwg.mxu0
    %3797 = vmatpush.bf16.msra.mxu0 %v2237
    %3798 = vmatpush.bf16.msra.mxu0 %v2233
    %3799 = vmatpush.bf16.msra.mxu0 %v2229
    %3800 = vmatpush.bf16.msra.mxu0 %v2225
    %3801 = vmatpush.bf16.msra.mxu0 %v2221
    %3802 = vmatpush.bf16.msra.mxu0 %v2217
    %3803 = vmatpush.bf16.msra.mxu0 %v2213
    %3804 = vmatpush.bf16.msra.mxu0 %v2209
    %3805 = vmatmul.bf16.gmra.mxu0 %v543
    %v3806 = vpop.f32.mrf.mxu0
    %v3807 = vadd.f32 %v3794, %v3806
    %v3808 = vpop.f32.mrf.mxu0
    %3809 = vdwg.mxu0
    %3810 = vmatpush.bf16.msra.mxu0 %v2269
    %3811 = vmatpush.bf16.msra.mxu0 %v2265
    %3812 = vmatpush.bf16.msra.mxu0 %v2261
    %3813 = vmatpush.bf16.msra.mxu0 %v2257
    %3814 = vmatpush.bf16.msra.mxu0 %v2253
    %3815 = vmatpush.bf16.msra.mxu0 %v2249
    %3816 = vmatpush.bf16.msra.mxu0 %v2245
    %3817 = vmatpush.bf16.msra.mxu0 %v2241
    %3818 = vmatmul.bf16.gmra.mxu0 %v544
    %v3819 = vpop.f32.mrf.mxu0
    %v3820 = vadd.f32 %v3807, %v3819
    %v3821 = vpop.f32.mrf.mxu0
    %3822 = vdwg.mxu0
    %3823 = vmatpush.bf16.msra.mxu0 %v2301
    %3824 = vmatpush.bf16.msra.mxu0 %v2297
    %3825 = vmatpush.bf16.msra.mxu0 %v2293
    %3826 = vmatpush.bf16.msra.mxu0 %v2289
    %3827 = vmatpush.bf16.msra.mxu0 %v2285
    %3828 = vmatpush.bf16.msra.mxu0 %v2281
    %3829 = vmatpush.bf16.msra.mxu0 %v2277
    %3830 = vmatpush.bf16.msra.mxu0 %v2273
    %3831 = vmatmul.bf16.gmra.mxu0 %v545
    %v3832 = vpop.f32.mrf.mxu0
    %v3833 = vadd.f32 %v3820, %v3832
    %v3834 = vpop.f32.mrf.mxu0
    %3835 = vdwg.mxu0
    %3836 = vmatpush.bf16.msra.mxu0 %v2333
    %3837 = vmatpush.bf16.msra.mxu0 %v2329
    %3838 = vmatpush.bf16.msra.mxu0 %v2325
    %3839 = vmatpush.bf16.msra.mxu0 %v2321
    %3840 = vmatpush.bf16.msra.mxu0 %v2317
    %3841 = vmatpush.bf16.msra.mxu0 %v2313
    %3842 = vmatpush.bf16.msra.mxu0 %v2309
    %3843 = vmatpush.bf16.msra.mxu0 %v2305
    %3844 = vmatmul.bf16.gmra.mxu0 %v546
    %v3845 = vpop.f32.mrf.mxu0
    %v3846 = vadd.f32 %v3833, %v3845
    %v3847 = vpop.f32.mrf.mxu0
    %3848 = vdwg.mxu0
    %3849 = vmatpush.bf16.msra.mxu0 %v2365
    %3850 = vmatpush.bf16.msra.mxu0 %v2361
    %3851 = vmatpush.bf16.msra.mxu0 %v2357
    %3852 = vmatpush.bf16.msra.mxu0 %v2353
    %3853 = vmatpush.bf16.msra.mxu0 %v2349
    %3854 = vmatpush.bf16.msra.mxu0 %v2345
    %3855 = vmatpush.bf16.msra.mxu0 %v2341
    %3856 = vmatpush.bf16.msra.mxu0 %v2337
    %3857 = vmatmul.bf16.gmra.mxu0 %v547
    %v3858 = vpop.f32.mrf.mxu0
    %v3859 = vadd.f32 %v3846, %v3858
    %v3860 = vpop.f32.mrf.mxu0
    %3861 = vdwg.mxu0
    %3862 = vmatpush.bf16.msra.mxu0 %v2397
    %3863 = vmatpush.bf16.msra.mxu0 %v2393
    %3864 = vmatpush.bf16.msra.mxu0 %v2389
    %3865 = vmatpush.bf16.msra.mxu0 %v2385
    %3866 = vmatpush.bf16.msra.mxu0 %v2381
    %3867 = vmatpush.bf16.msra.mxu0 %v2377
    %3868 = vmatpush.bf16.msra.mxu0 %v2373
    %3869 = vmatpush.bf16.msra.mxu0 %v2369
    %3870 = vmatmul.bf16.gmra.mxu0 %v550
    %v3871 = vpop.f32.mrf.mxu0
    %v3872 = vadd.f32 %v3859, %v3871
    %v3873 = vpop.f32.mrf.mxu0
    %3874 = vdwg.mxu0
    %3875 = vmatpush.bf16.msra.mxu0 %v2429
    %3876 = vmatpush.bf16.msra.mxu0 %v2425
    %3877 = vmatpush.bf16.msra.mxu0 %v2421
    %3878 = vmatpush.bf16.msra.mxu0 %v2417
    %3879 = vmatpush.bf16.msra.mxu0 %v2413
    %3880 = vmatpush.bf16.msra.mxu0 %v2409
    %3881 = vmatpush.bf16.msra.mxu0 %v2405
    %3882 = vmatpush.bf16.msra.mxu0 %v2401
    %3883 = vmatmul.bf16.gmra.mxu0 %v551
    %v3884 = vpop.f32.mrf.mxu0
    %v3885 = vadd.f32 %v3872, %v3884
    %v3886 = vpop.f32.mrf.mxu0
    %3887 = vdwg.mxu0
    %3888 = vmatpush.bf16.msra.mxu0 %v2461
    %3889 = vmatpush.bf16.msra.mxu0 %v2457
    %3890 = vmatpush.bf16.msra.mxu0 %v2453
    %3891 = vmatpush.bf16.msra.mxu0 %v2449
    %3892 = vmatpush.bf16.msra.mxu0 %v2445
    %3893 = vmatpush.bf16.msra.mxu0 %v2441
    %3894 = vmatpush.bf16.msra.mxu0 %v2437
    %3895 = vmatpush.bf16.msra.mxu0 %v2433
    %3896 = vmatmul.bf16.gmra.mxu0 %v552
    %v3897 = vpop.f32.mrf.mxu0
    %v3898 = vadd.f32 %v3885, %v3897
    %v3899 = vpop.f32.mrf.mxu0
    %3900 = vdwg.mxu0
    %3901 = vmatpush.bf16.msra.mxu0 %v2493
    %3902 = vmatpush.bf16.msra.mxu0 %v2489
    %3903 = vmatpush.bf16.msra.mxu0 %v2485
    %3904 = vmatpush.bf16.msra.mxu0 %v2481
    %3905 = vmatpush.bf16.msra.mxu0 %v2477
    %3906 = vmatpush.bf16.msra.mxu0 %v2473
    %3907 = vmatpush.bf16.msra.mxu0 %v2469
    %3908 = vmatpush.bf16.msra.mxu0 %v2465
    %3909 = vmatmul.bf16.gmra.mxu0 %v553
    %v3910 = vpop.f32.mrf.mxu0
    %v3911 = vadd.f32 %v3898, %v3910
    %v3912 = vpop.f32.mrf.mxu0
    %3913 = vdwg.mxu0
    %3914 = vmatpush.bf16.msra.mxu0 %v2525
    %3915 = vmatpush.bf16.msra.mxu0 %v2521
    %3916 = vmatpush.bf16.msra.mxu0 %v2517
    %3917 = vmatpush.bf16.msra.mxu0 %v2513
    %3918 = vmatpush.bf16.msra.mxu0 %v2509
    %3919 = vmatpush.bf16.msra.mxu0 %v2505
    %3920 = vmatpush.bf16.msra.mxu0 %v2501
    %3921 = vmatpush.bf16.msra.mxu0 %v2497
    %3922 = vmatmul.bf16.gmra.mxu0 %v554
    %v3923 = vpop.f32.mrf.mxu0
    %v3924 = vadd.f32 %v3911, %v3923
    %v3925 = vpop.f32.mrf.mxu0
    %3926 = vdwg.mxu0
    %3927 = vmatpush.bf16.msra.mxu0 %v2557
    %3928 = vmatpush.bf16.msra.mxu0 %v2553
    %3929 = vmatpush.bf16.msra.mxu0 %v2549
    %3930 = vmatpush.bf16.msra.mxu0 %v2545
    %3931 = vmatpush.bf16.msra.mxu0 %v2541
    %3932 = vmatpush.bf16.msra.mxu0 %v2537
    %3933 = vmatpush.bf16.msra.mxu0 %v2533
    %3934 = vmatpush.bf16.msra.mxu0 %v2529
    %3935 = vmatmul.bf16.gmra.mxu0 %v555
    %v3936 = vpop.f32.mrf.mxu0
    %v3937 = vadd.f32 %v3924, %v3936
    %v3938 = vpop.f32.mrf.mxu0
    %3939 = vdwg.mxu0
    %3940 = vmatpush.bf16.msra.mxu0 %v2589
    %3941 = vmatpush.bf16.msra.mxu0 %v2585
    %3942 = vmatpush.bf16.msra.mxu0 %v2581
    %3943 = vmatpush.bf16.msra.mxu0 %v2577
    %3944 = vmatpush.bf16.msra.mxu0 %v2573
    %3945 = vmatpush.bf16.msra.mxu0 %v2569
    %3946 = vmatpush.bf16.msra.mxu0 %v2565
    %3947 = vmatpush.bf16.msra.mxu0 %v2561
    %3948 = vmatmul.bf16.gmra.mxu0 %v556
    %v3949 = vpop.f32.mrf.mxu0
    %v3950 = vadd.f32 %v3937, %v3949
    %v3951 = vpop.f32.mrf.mxu0
    %3952 = vdwg.mxu0
    %3953 = vmatpush.bf16.msra.mxu0 %v2621
    %3954 = vmatpush.bf16.msra.mxu0 %v2617
    %3955 = vmatpush.bf16.msra.mxu0 %v2613
    %3956 = vmatpush.bf16.msra.mxu0 %v2609
    %3957 = vmatpush.bf16.msra.mxu0 %v2605
    %3958 = vmatpush.bf16.msra.mxu0 %v2601
    %3959 = vmatpush.bf16.msra.mxu0 %v2597
    %3960 = vmatpush.bf16.msra.mxu0 %v2593
    %3961 = vmatmul.bf16.gmra.mxu0 %v557
    %v3962 = vpop.f32.mrf.mxu0
    %v3963 = vadd.f32 %v3950, %v3962
    %v3964 = vpop.f32.mrf.mxu0
    %3965 = vdwg.mxu0
    %v3966 = vld [vmem:[%s2] sm:$0xf]
    %v3968 = vperm.slane %v3966, 0
    %v3969 = vperm.slane %v3966, 1
    %v3970 = vperm.slane %v3966, 2
    %v3971 = vperm.slane %v3966, 3
    %v3976 = vmul.f32 %v3339, %v3968
    %v3977 = vmul.f32 %v3547, %v3969
    %v3978 = vmul.f32 %v3755, %v3970
    %v3979 = vmul.f32 %v3963, %v3971
    %v3980 = vld [vmem:[%s3] sm:$0xf]
    %v3982 = vperm.slane %v3980, 0
    %v3983 = vperm.slane %v3980, 1
    %v3984 = vperm.slane %v3980, 2
    %v3985 = vperm.slane %v3980, 3
    %v3990 = vadd.f32 %v3976, %v3982
    %v3991 = vadd.f32 %v3977, %v3983
    %v3992 = vadd.f32 %v3978, %v3984
    %v3993 = vadd.f32 %v3979, %v3985
    %vm3994 = vcmp.ge.f32.partialorder %v3990, 0.0
    %vm3995 = vcmp.ge.f32.partialorder %v3991, 0.0
    %vm3996 = vcmp.ge.f32.partialorder %v3992, 0.0
    %vm3997 = vcmp.ge.f32.partialorder %v3993, 0.0
    %v3998 = vmul.f32 %v3990, 0.1
    %v3999 = vmul.f32 %v3991, 0.1
    %v4000 = vmul.f32 %v3992, 0.1
    %v4001 = vmul.f32 %v3993, 0.1
    %v4002 = vsel %vm3994, %v3990, %v3998
    %v4003 = vsel %vm3995, %v3991, %v3999
    %v4004 = vsel %vm3996, %v3992, %v4000
    %v4005 = vsel %vm3997, %v3993, %v4001
    %v4006 = vpack.c.bf16 %v4002, %v4002
    %v4007 = vpack.c.bf16 %v4003, %v4003
    %v4008 = vpack.c.bf16 %v4004, %v4004
    %v4009 = vpack.c.bf16 %v4005, %v4005
    %v4010 = vld [vmem:[%s4] sm:$0xf]
    %v4011 = vld [vmem:[%s4 + $0x4] sm:$0xf]
    %v4012 = vld [vmem:[%s4 + $0x8] sm:$0xf]
    %v4013 = vld [vmem:[%s4 + $0xc] sm:$0xf]
    %v4014 = vld [vmem:[%s4 + $0x10] sm:$0xf]
    %v4015 = vld [vmem:[%s4 + $0x14] sm:$0xf]
    %v4016 = vld [vmem:[%s4 + $0x18] sm:$0xf]
    %v4017 = vld [vmem:[%s4 + $0x1c] sm:$0xf]
    %v4018 = vld [vmem:[%s4 + $0x20] sm:$0xf]
    %v4019 = vld [vmem:[%s4 + $0x24] sm:$0xf]
    %v4020 = vld [vmem:[%s4 + $0x28] sm:$0xf]
    %v4021 = vld [vmem:[%s4 + $0x2c] sm:$0xf]
    %v4022 = vld [vmem:[%s4 + $0x30] sm:$0xf]
    %v4023 = vld [vmem:[%s4 + $0x34] sm:$0xf]
    %v4024 = vld [vmem:[%s4 + $0x38] sm:$0xf]
    %v4025 = vld [vmem:[%s4 + $0x3c] sm:$0xf]
    %v4026 = vld [vmem:[%s4 + $0x40] sm:$0xf]
    %v4027 = vld [vmem:[%s4 + $0x44] sm:$0xf]
    %v4028 = vld [vmem:[%s4 + $0x48] sm:$0xf]
    %v4029 = vld [vmem:[%s4 + $0x4c] sm:$0xf]
    %v4030 = vld [vmem:[%s4 + $0x50] sm:$0xf]
    %v4031 = vld [vmem:[%s4 + $0x54] sm:$0xf]
    %v4032 = vld [vmem:[%s4 + $0x58] sm:$0xf]
    %v4033 = vld [vmem:[%s4 + $0x5c] sm:$0xf]
    %v4034 = vld [vmem:[%s4 + $0x60] sm:$0xf]
    %v4035 = vld [vmem:[%s4 + $0x64] sm:$0xf]
    %v4036 = vld [vmem:[%s4 + $0x68] sm:$0xf]
    %v4037 = vld [vmem:[%s4 + $0x6c] sm:$0xf]
    %v4038 = vld [vmem:[%s4 + $0x70] sm:$0xf]
    %v4039 = vld [vmem:[%s4 + $0x74] sm:$0xf]
    %v4040 = vld [vmem:[%s4 + $0x78] sm:$0xf]
    %v4041 = vld [vmem:[%s4 + $0x7c] sm:$0xf]
    %v4042 = vld [vmem:[%s4 + $0x80] sm:$0xf]
    %v4043 = vld [vmem:[%s4 + $0x84] sm:$0xf]
    %v4044 = vld [vmem:[%s4 + $0x88] sm:$0xf]
    %v4045 = vld [vmem:[%s4 + $0x8c] sm:$0xf]
    %v4046 = vld [vmem:[%s4 + $0x90] sm:$0xf]
    %v4047 = vld [vmem:[%s4 + $0x94] sm:$0xf]
    %v4048 = vld [vmem:[%s4 + $0x98] sm:$0xf]
    %v4049 = vld [vmem:[%s4 + $0x9c] sm:$0xf]
    %v4050 = vld [vmem:[%s4 + $0xa0] sm:$0xf]
    %v4051 = vld [vmem:[%s4 + $0xa4] sm:$0xf]
    %v4052 = vld [vmem:[%s4 + $0xa8] sm:$0xf]
    %v4053 = vld [vmem:[%s4 + $0xac] sm:$0xf]
    %v4054 = vld [vmem:[%s4 + $0xb0] sm:$0xf]
    %v4055 = vld [vmem:[%s4 + $0xb4] sm:$0xf]
    %v4056 = vld [vmem:[%s4 + $0xb8] sm:$0xf]
    %v4057 = vld [vmem:[%s4 + $0xbc] sm:$0xf]
    %v4058 = vld [vmem:[%s4 + $0xc0] sm:$0xf]
    %v4059 = vld [vmem:[%s4 + $0xc4] sm:$0xf]
    %v4060 = vld [vmem:[%s4 + $0xc8] sm:$0xf]
    %v4061 = vld [vmem:[%s4 + $0xcc] sm:$0xf]
    %v4062 = vld [vmem:[%s4 + $0xd0] sm:$0xf]
    %v4063 = vld [vmem:[%s4 + $0xd4] sm:$0xf]
    %v4064 = vld [vmem:[%s4 + $0xd8] sm:$0xf]
    %v4065 = vld [vmem:[%s4 + $0xdc] sm:$0xf]
    %v4066 = vld [vmem:[%s4 + $0xe0] sm:$0xf]
    %v4067 = vld [vmem:[%s4 + $0xe4] sm:$0xf]
    %v4068 = vld [vmem:[%s4 + $0xe8] sm:$0xf]
    %v4069 = vld [vmem:[%s4 + $0xec] sm:$0xf]
    %v4070 = vld [vmem:[%s4 + $0xf0] sm:$0xf]
    %v4071 = vld [vmem:[%s4 + $0xf4] sm:$0xf]
    %v4072 = vld [vmem:[%s4 + $0xf8] sm:$0xf]
    %v4073 = vld [vmem:[%s4 + $0xfc] sm:$0xf]
    %v4074 = vld [vmem:[%s5] sm:$0x1]
    %v4076 = vperm.slane %v4074, 0
    %v4142 = vunpack.c.l.b16 %v4010
    %v4143 = vunpack.c.l.b16 %v4011
    %v4144 = vunpack.c.l.b16 %v4012
    %v4145 = vunpack.c.l.b16 %v4013
    %v4146 = vunpack.c.l.b16 %v4014
    %v4147 = vunpack.c.l.b16 %v4015
    %v4148 = vunpack.c.l.b16 %v4016
    %v4149 = vunpack.c.l.b16 %v4017
    %v4150 = vunpack.c.l.b16 %v4018
    %v4151 = vunpack.c.l.b16 %v4019
    %v4152 = vunpack.c.l.b16 %v4020
    %v4153 = vunpack.c.l.b16 %v4021
    %v4154 = vunpack.c.l.b16 %v4022
    %v4155 = vunpack.c.l.b16 %v4023
    %v4156 = vunpack.c.l.b16 %v4024
    %v4157 = vunpack.c.l.b16 %v4025
    %v4158 = vunpack.c.l.b16 %v4026
    %v4159 = vunpack.c.l.b16 %v4027
    %v4160 = vunpack.c.l.b16 %v4028
    %v4161 = vunpack.c.l.b16 %v4029
    %v4162 = vunpack.c.l.b16 %v4030
    %v4163 = vunpack.c.l.b16 %v4031
    %v4164 = vunpack.c.l.b16 %v4032
    %v4165 = vunpack.c.l.b16 %v4033
    %v4166 = vunpack.c.l.b16 %v4034
    %v4167 = vunpack.c.l.b16 %v4035
    %v4168 = vunpack.c.l.b16 %v4036
    %v4169 = vunpack.c.l.b16 %v4037
    %v4170 = vunpack.c.l.b16 %v4038
    %v4171 = vunpack.c.l.b16 %v4039
    %v4172 = vunpack.c.l.b16 %v4040
    %v4173 = vunpack.c.l.b16 %v4041
    %v4174 = vunpack.c.l.b16 %v4042
    %v4175 = vunpack.c.l.b16 %v4043
    %v4176 = vunpack.c.l.b16 %v4044
    %v4177 = vunpack.c.l.b16 %v4045
    %v4178 = vunpack.c.l.b16 %v4046
    %v4179 = vunpack.c.l.b16 %v4047
    %v4180 = vunpack.c.l.b16 %v4048
    %v4181 = vunpack.c.l.b16 %v4049
    %v4182 = vunpack.c.l.b16 %v4050
    %v4183 = vunpack.c.l.b16 %v4051
    %v4184 = vunpack.c.l.b16 %v4052
    %v4185 = vunpack.c.l.b16 %v4053
    %v4186 = vunpack.c.l.b16 %v4054
    %v4187 = vunpack.c.l.b16 %v4055
    %v4188 = vunpack.c.l.b16 %v4056
    %v4189 = vunpack.c.l.b16 %v4057
    %v4190 = vunpack.c.l.b16 %v4058
    %v4191 = vunpack.c.l.b16 %v4059
    %v4192 = vunpack.c.l.b16 %v4060
    %v4193 = vunpack.c.l.b16 %v4061
    %v4194 = vunpack.c.l.b16 %v4062
    %v4195 = vunpack.c.l.b16 %v4063
    %v4196 = vunpack.c.l.b16 %v4064
    %v4197 = vunpack.c.l.b16 %v4065
    %v4198 = vunpack.c.l.b16 %v4066
    %v4199 = vunpack.c.l.b16 %v4067
    %v4200 = vunpack.c.l.b16 %v4068
    %v4201 = vunpack.c.l.b16 %v4069
    %v4202 = vunpack.c.l.b16 %v4070
    %v4203 = vunpack.c.l.b16 %v4071
    %v4204 = vunpack.c.l.b16 %v4072
    %v4205 = vunpack.c.l.b16 %v4073
    %v4206 = vpack.c.b16 %v4143, %v4142
    %v4207 = vpack.c.b16 %v4145, %v4144
    %v4208 = vpack.c.b16 %v4147, %v4146
    %v4209 = vpack.c.b16 %v4149, %v4148
    %v4210 = vpack.c.b16 %v4151, %v4150
    %v4211 = vpack.c.b16 %v4153, %v4152
    %v4212 = vpack.c.b16 %v4155, %v4154
    %v4213 = vpack.c.b16 %v4157, %v4156
    %v4214 = vpack.c.b16 %v4159, %v4158
    %v4215 = vpack.c.b16 %v4161, %v4160
    %v4216 = vpack.c.b16 %v4163, %v4162
    %v4217 = vpack.c.b16 %v4165, %v4164
    %v4218 = vpack.c.b16 %v4167, %v4166
    %v4219 = vpack.c.b16 %v4169, %v4168
    %v4220 = vpack.c.b16 %v4171, %v4170
    %v4221 = vpack.c.b16 %v4173, %v4172
    %v4222 = vpack.c.b16 %v4175, %v4174
    %v4223 = vpack.c.b16 %v4177, %v4176
    %v4224 = vpack.c.b16 %v4179, %v4178
    %v4225 = vpack.c.b16 %v4181, %v4180
    %v4226 = vpack.c.b16 %v4183, %v4182
    %v4227 = vpack.c.b16 %v4185, %v4184
    %v4228 = vpack.c.b16 %v4187, %v4186
    %v4229 = vpack.c.b16 %v4189, %v4188
    %v4230 = vpack.c.b16 %v4191, %v4190
    %v4231 = vpack.c.b16 %v4193, %v4192
    %v4232 = vpack.c.b16 %v4195, %v4194
    %v4233 = vpack.c.b16 %v4197, %v4196
    %v4234 = vpack.c.b16 %v4199, %v4198
    %v4235 = vpack.c.b16 %v4201, %v4200
    %v4236 = vpack.c.b16 %v4203, %v4202
    %v4237 = vpack.c.b16 %v4205, %v4204
    %4270 = vmatpush.bf16.msra.mxu0 %v4213
    %4271 = vmatpush.bf16.msra.mxu0 %v4212
    %4272 = vmatpush.bf16.msra.mxu0 %v4211
    %4273 = vmatpush.bf16.msra.mxu0 %v4210
    %4274 = vmatpush.bf16.msra.mxu0 %v4209
    %4275 = vmatpush.bf16.msra.mxu0 %v4208
    %4276 = vmatpush.bf16.msra.mxu0 %v4207
    %4277 = vmatpush.bf16.msra.mxu0 %v4206
    %4278 = vmatmul.bf16.gmra.mxu0 %v4006
    %v4279 = vpop.f32.mrf.mxu0
    %v4280 = vadd.f32 %v4076, %v4279
    %v4281 = vpop.f32.mrf.mxu0
    %4282 = vdwg.mxu0
    %4283 = vmatpush.bf16.msra.mxu0 %v4221
    %4284 = vmatpush.bf16.msra.mxu0 %v4220
    %4285 = vmatpush.bf16.msra.mxu0 %v4219
    %4286 = vmatpush.bf16.msra.mxu0 %v4218
    %4287 = vmatpush.bf16.msra.mxu0 %v4217
    %4288 = vmatpush.bf16.msra.mxu0 %v4216
    %4289 = vmatpush.bf16.msra.mxu0 %v4215
    %4290 = vmatpush.bf16.msra.mxu0 %v4214
    %4291 = vmatmul.bf16.gmra.mxu0 %v4007
    %v4292 = vpop.f32.mrf.mxu0
    %v4293 = vadd.f32 %v4280, %v4292
    %v4294 = vpop.f32.mrf.mxu0
    %4295 = vdwg.mxu0
    %4296 = vmatpush.bf16.msra.mxu0 %v4229
    %4297 = vmatpush.bf16.msra.mxu0 %v4228
    %4298 = vmatpush.bf16.msra.mxu0 %v4227
    %4299 = vmatpush.bf16.msra.mxu0 %v4226
    %4300 = vmatpush.bf16.msra.mxu0 %v4225
    %4301 = vmatpush.bf16.msra.mxu0 %v4224
    %4302 = vmatpush.bf16.msra.mxu0 %v4223
    %4303 = vmatpush.bf16.msra.mxu0 %v4222
    %4304 = vmatmul.bf16.gmra.mxu0 %v4008
    %v4305 = vpop.f32.mrf.mxu0
    %v4306 = vadd.f32 %v4293, %v4305
    %v4307 = vpop.f32.mrf.mxu0
    %4308 = vdwg.mxu0
    %4309 = vmatpush.bf16.msra.mxu0 %v4237
    %4310 = vmatpush.bf16.msra.mxu0 %v4236
    %4311 = vmatpush.bf16.msra.mxu0 %v4235
    %4312 = vmatpush.bf16.msra.mxu0 %v4234
    %4313 = vmatpush.bf16.msra.mxu0 %v4233
    %4314 = vmatpush.bf16.msra.mxu0 %v4232
    %4315 = vmatpush.bf16.msra.mxu0 %v4231
    %4316 = vmatpush.bf16.msra.mxu0 %v4230
    %4317 = vmatmul.bf16.gmra.mxu0 %v4009
    %v4318 = vpop.f32.mrf.mxu0
    %v4319 = vadd.f32 %v4306, %v4318
    %v4320 = vpop.f32.mrf.mxu0
    %4321 = vdwg.mxu0
    %4322 = vst [vmem:[#allocation2] sm:$0x3] %v4319
    // Predicated region
    $region26: #{ide_forward.3} parent=1 // pred_check
      _
    $region27: #{ide_forward.3} parent=1 // pred_check_branch
      %4324 = sbr.rel (0) target = $region29
    $region28: #{ide_forward.3} parent=1 // pred_region
      %4326 = vsyncadd [#allocation3], 0
      %s4328 = sshll.u32 [#allocation2], 4
      %s4329 = int_to_ptr.vmem [resolvable:$true] %s4328
      %s4330 = sshll.u32 %s6, 4
      %s4331 = int_to_ptr.hbm [resolvable:$true] %s4330
      %4333 = dma.vmem_to_hbm [thread:$0]  %s4329, 32, %s4331, [#allocation3]
    $region29: #{ide_forward.3} parent=1 // pred_fallthru
      _
    // Predicated region
    $region30: #{ide_forward.3} parent=1 // pred_check
      _
    $region31: #{ide_forward.3} parent=1 // pred_check_branch
      %4335 = sbr.rel (0) target = $region33
    $region32: #{ide_forward.3} parent=1 // pred_region
      %4337 = dma.done [#allocation3], 32
    $region33: #{ide_forward.3} parent=1 // pred_fallthru
      _
    %4338 = vsyncpa [#allocation3], 1

</llo_original>
